<compile_context>
chip_gen: v7x
topology: tpu7x:2x2x1
jax: 0.10.0
libtpu: 0.0.40
codegen_flags: <defaults>
</compile_context>

<pallas_src>
import math

import numpy as np
import jax
import jax.numpy as jnp
from jax.experimental import pallas as pl
from jax.experimental.pallas import tpu as pltpu

LANES = 128  # vreg lane width on all TPU generations


def _pad_last_to(x, n):
    pad = n - x.shape[-1]
    if pad <= 0:
        return x
    widths = [(0, 0)] * (x.ndim - 1) + [(0, pad)]
    return jnp.pad(x, widths)


# ---------------------------------------------------------------------------
# Fused 3x3 conv (im2col matmul) + bias + ReLU + 2x2/stride-2 max pool.
# A is laid out (N, 4, Ho*Wo, K): the 4 pooling taps are contiguous row
# blocks, so the pool is plain elementwise maximums of the 4 matmul results.
# The second variant additionally applies the adaptive-avg-pool matrix P
# (spatial 7x7 -> 6x6) as a small matmul epilogue.
# ---------------------------------------------------------------------------
def _conv_relu_pool_kernel(a_ref, w_ref, b_ref, o_ref):
    # a_ref: (1, 4, Mq, K)  w_ref: (K, 128)  b_ref: (1, 128)  o_ref: (1, Mq, 128)
    z = jnp.dot(a_ref[0, 0], w_ref[...], preferred_element_type=jnp.float32)
    for t in range(1, 4):
        z = jnp.maximum(
            z, jnp.dot(a_ref[0, t], w_ref[...], preferred_element_type=jnp.float32))
    # bias is identical across pooling taps and max/ReLU commute, so one
    # bias-add + ReLU after the max is exactly conv -> ReLU -> maxpool.
    o_ref[0] = jnp.maximum(z + b_ref[...], 0.0)


def _conv_relu_pool_avgpool_kernel(a_ref, w_ref, b_ref, p_ref, o_ref):
    # Same as above plus adaptive avg-pool epilogue: o = P @ relu(maxpool(conv)+b).
    # p_ref: (Q, Mq)   o_ref: (1, Q, 128)
    z = jnp.dot(a_ref[0, 0], w_ref[...], preferred_element_type=jnp.float32)
    for t in range(1, 4):
        z = jnp.maximum(
            z, jnp.dot(a_ref[0, t], w_ref[...], preferred_element_type=jnp.float32))
    z = jnp.maximum(z + b_ref[...], 0.0)
    o_ref[0] = jnp.dot(p_ref[...], z, preferred_element_type=jnp.float32)


def conv3x3_relu_pool(x_nhwc, w, b, pool_mat=None):
    """3x3 stride-1 pad-1 conv + ReLU + 2x2 max pool (+ optional avg-pool matrix).

    x_nhwc: (N, H, W, Cin) with even H, W.  w: (Cout, Cin, 3, 3).  b: (Cout,).
    pool_mat: optional (Q, (H//2)*(W//2)) matrix applied to the pooled rows.
    Returns (N, H//2, W//2, 128) if pool_mat is None else (N, Q, 128); real
    channels live in lanes [0, Cout), zeros beyond.
    """
    N, H, W, Cin = x_nhwc.shape
    Cout = w.shape[0]
    Ho, Wo = H // 2, W // 2
    Mq = Ho * Wo
    K = Cin * 9

    # im2col in NHWC (small tensors; pure layout glue).
    xp = jnp.pad(x_nhwc, ((0, 0), (1, 1), (1, 1), (0, 0)))
    taps = [xp[:, kh:kh + H, kw:kw + W, :] for kh in range(3) for kw in range(3)]
    p = jnp.stack(taps, axis=-1)                       # (N, H, W, Cin, 9)
    p = p.reshape(N, H, W, K)                          # feature = cin*9 + kh*3 + kw
    # group rows by 2x2 pooling tap: h = 2*ho + py, w = 2*wo + px
    p = p.reshape(N, Ho, 2, Wo, 2, K).transpose(0, 2, 4, 1, 3, 5)
    a = p.reshape(N, 4, Mq, K)

    # weight / bias with lane-dense (128-padded) output channels
    wmat = _pad_last_to(w.reshape(Cout, K).T.astype(jnp.float32), LANES)  # (K, 128)
    bias = _pad_last_to(b.reshape(1, Cout).astype(jnp.float32), LANES)    # (1, 128)

    if pool_mat is None:
        kernel = _conv_relu_pool_kernel
        Q = Mq
        extra_in, extra_specs = [], []
    else:
        kernel = _conv_relu_pool_avgpool_kernel
        Q = pool_mat.shape[0]
        extra_in = [pool_mat.astype(jnp.float32)]
        extra_specs = [pl.BlockSpec((Q, Mq), lambda n: (0, 0))]

    out = pl.pallas_call(
        kernel,
        out_shape=jax.ShapeDtypeStruct((N, Q, LANES), jnp.float32),
        grid=(N,),
        in_specs=[
            pl.BlockSpec((1, 4, Mq, K), lambda n: (n, 0, 0, 0)),
            pl.BlockSpec((K, LANES), lambda n: (0, 0)),
            pl.BlockSpec((1, LANES), lambda n: (0, 0)),
        ] + extra_specs,
        out_specs=pl.BlockSpec((1, Q, LANES), lambda n: (n, 0, 0)),
        compiler_params=pltpu.CompilerParams(
            dimension_semantics=("parallel",),   # batch grid -> both TCs on v7x
        ),
    )(a, wmat, bias, *extra_in)

    if pool_mat is None:
        return out.reshape(N, Ho, Wo, LANES)
    return out                                     # (N, Q, 128)


# ---------------------------------------------------------------------------
# Fused classifier tail: fc1 + bias + ReLU + fc2 + bias in one kernel.
# Weights are streamed as bf16 (MXU accumulates in f32); the (batch, 1024)
# intermediate never leaves VMEM.
# ---------------------------------------------------------------------------
def _classifier_kernel(a_ref, w1_ref, b1_ref, w2_ref, b2_ref, o_ref):
    a = a_ref[...].astype(jnp.bfloat16)
    h = jnp.dot(a, w1_ref[...], preferred_element_type=jnp.float32) + b1_ref[...]
    h = jnp.maximum(h, 0.0)
    o = jnp.dot(h.astype(jnp.bfloat16), w2_ref[...], preferred_element_type=jnp.float32)
    o_ref[...] = o + b2_ref[...]


def classifier(a, w1_eff, b1, w2t, b2, num_classes):
    M, K1 = a.shape
    Mp = max(8, ((M + 7) // 8) * 8)          # sublane-align the batch rows
    if Mp != M:
        a = jnp.pad(a, ((0, Mp - M), (0, 0)))
    H1 = w1_eff.shape[1]

    out = pl.pallas_call(
        _classifier_kernel,
        out_shape=jax.ShapeDtypeStruct((Mp, LANES), jnp.float32),
        grid=(1,),
        in_specs=[
            pl.BlockSpec((Mp, K1), lambda i: (0, 0)),
            pl.BlockSpec((K1, H1), lambda i: (0, 0)),
            pl.BlockSpec((1, H1), lambda i: (0, 0)),
            pl.BlockSpec((H1, LANES), lambda i: (0, 0)),
            pl.BlockSpec((1, LANES), lambda i: (0, 0)),
        ],
        out_specs=pl.BlockSpec((Mp, LANES), lambda i: (0, 0)),
        compiler_params=pltpu.CompilerParams(
            dimension_semantics=("arbitrary",),
        ),
    )(a, w1_eff, b1, w2t, b2)
    return out[:M, :num_classes]


# ---------------------------------------------------------------------------
# AdaptiveAvgPool2d bin matrix (PyTorch semantics, overlapping bins).
# ---------------------------------------------------------------------------
def _adaptive_pool_matrix(in_size, out_size):
    P = np.zeros((out_size, in_size), dtype=np.float32)
    for o in range(out_size):
        s = (o * in_size) // out_size
        e = -(-((o + 1) * in_size) // out_size)
        P[o, s:e] = 1.0 / (e - s)
    return P


# ---------------------------------------------------------------------------
# Parameters (deterministic, PyTorch-default-style uniform fan-in init).
# ---------------------------------------------------------------------------
def init_params(key, num_classes=10):
    ks = jax.random.split(key, 8)

    def u(k, shape, fan_in):
        bound = 1.0 / math.sqrt(fan_in)
        return jax.random.uniform(k, shape, jnp.float32, -bound, bound)

    return {
        "conv1_w": u(ks[0], (32, 1, 3, 3), 1 * 9),
        "conv1_b": u(ks[1], (32,), 1 * 9),
        "conv2_w": u(ks[2], (64, 32, 3, 3), 32 * 9),
        "conv2_b": u(ks[3], (64,), 32 * 9),
        "fc1_w": u(ks[4], (1024, 64 * 6 * 6), 64 * 36),
        "fc1_b": u(ks[5], (1024,), 64 * 36),
        "fc2_w": u(ks[6], (num_classes, 1024), 1024),
        "fc2_b": u(ks[7], (num_classes,), 1024),
    }


def alexnet_forward(params, x):
    # x: (N, 1, H, W) NCHW (PyTorch layout) -> NHWC; stay NHWC for the whole net.
    N = x.shape[0]
    x = jnp.transpose(x, (0, 2, 3, 1))

    # conv1 + ReLU + maxpool  ->  (N, 14, 14, 128), real channels [0, 32)
    h = conv3x3_relu_pool(x, params["conv1_w"], params["conv1_b"])

    # conv2 + ReLU + maxpool + AdaptiveAvgPool2d((6,6))  ->  (N, 36, 128)
    C1 = params["conv1_w"].shape[0]          # 32
    C2 = params["conv2_w"].shape[0]          # 64
    Hs = h.shape[1] // 2                     # pooled spatial size (7)
    P1 = _adaptive_pool_matrix(Hs, 6)
    P2d = jnp.asarray(np.kron(P1, P1))       # (36, Hs*Hs) compile-time constant
    g = conv3x3_relu_pool(h[..., :C1], params["conv2_w"], params["conv2_b"],
                          pool_mat=P2d)      # (N, 36, 128)

    hidden = params["fc1_w"].shape[0]        # 1024
    num_classes = params["fc2_w"].shape[0]

    # Rearrange fc1 weight rows to the kernel's (q = oh*6+ow, c) flatten order.
    # PyTorch flatten order is (c, oh, ow):  col = c*36 + q.
    w1 = params["fc1_w"].reshape(hidden, C2, 36)                  # [j, c, q]
    w1_eff = jnp.transpose(w1, (2, 1, 0)).reshape(36 * C2, hidden)  # row = q*C2 + c
    w1_eff = w1_eff.astype(jnp.bfloat16)
    b1 = params["fc1_b"].reshape(1, hidden).astype(jnp.float32)

    w2t = _pad_last_to(params["fc2_w"].T.astype(jnp.bfloat16), LANES)              # (hidden,128)
    b2 = _pad_last_to(params["fc2_b"].reshape(1, num_classes).astype(jnp.float32), LANES)

    # flatten (q, c) to match w1_eff's row ordering (q*C2 + c).
    a = g[..., :C2].reshape(N, 36 * C2)
    # TODO(synk): nn.Dropout implemented as identity (inference semantics);
    # training-mode dropout would use pltpu.prng_seed / prng_random_bits.
    return classifier(a, w1_eff, b1, w2t, b2, num_classes)


if __name__ == "__main__":
    key = jax.random.PRNGKey(0)
    pkey, xkey = jax.random.split(key)
    params = init_params(pkey, num_classes=10)
    x = jax.random.normal(xkey, (2, 1, 28, 28), jnp.float32)  # NCHW, 1 input channel

    out = jax.jit(alexnet_forward)(params, x)
    out = jax.block_until_ready(out)
    assert out.shape == (2, 10), out.shape
    assert jnp.all(jnp.isfinite(out))
    print("KERNEL_OK")
</pallas_src>

<mosaic_0001>
module attributes {stable_mosaic.version = 11 : i64} {
  func.func @_conv_relu_pool_kernel(%arg0: i32, %arg1: memref<1x4x196x9xf32, #tpu.memory_space<vmem>>, %arg2: memref<9x128xf32, #tpu.memory_space<vmem>>, %arg3: memref<1x128xf32, #tpu.memory_space<vmem>>, %arg4: memref<1x196x128xf32, #tpu.memory_space<vmem>>) attributes {dimension_semantics = [#tpu.dimension_semantics<parallel>], iteration_bounds = array<i64: 2>, scalar_prefetch = 0 : i64, scratch_operands = 0 : i64, tpu.core_type = #tpu.core_type<tc>, window_params = [{transform_indices = @transform_0, window_bounds = array<i64: 1, 4, 196, 9>}, {pipeline_mode = #tpu.pipeline_mode<synchronous>, transform_indices = @transform_1, window_bounds = array<i64: 9, 128>}, {pipeline_mode = #tpu.pipeline_mode<synchronous>, transform_indices = @transform_2, window_bounds = array<i64: 1, 128>}, {transform_indices = @transform_3, window_bounds = array<i64: 1, 196, 128>}]} {
    %c0 = arith.constant 0 : index
    %c0_0 = arith.constant 0 : index
    %c0_1 = arith.constant 0 : index
    %c0_2 = arith.constant 0 : index
    %0 = vector.load %arg1[%c0, %c0_0, %c0_1, %c0_2] : memref<1x4x196x9xf32, #tpu.memory_space<vmem>>, vector<1x1x196x9xf32>
    %1 = vector.shape_cast %0 : vector<1x1x196x9xf32> to vector<196x9xf32>
    %c0_3 = arith.constant 0 : index
    %c0_4 = arith.constant 0 : index
    %2 = vector.load %arg2[%c0_3, %c0_4] : memref<9x128xf32, #tpu.memory_space<vmem>>, vector<9x128xf32>
    %cst = arith.constant dense<0.000000e+00> : vector<196x128xf32>
    %3 = tpu.matmul %1, %2, %cst {dimension_numbers = #tpu.dot_dimension_numbers<[1], [0], [0], [1], [0, 0, 1, 1], [], []>} : vector<196x9xf32>, vector<9x128xf32>, vector<196x128xf32> -> vector<196x128xf32>
    %c0_5 = arith.constant 0 : index
    %c1 = arith.constant 1 : index
    %c0_6 = arith.constant 0 : index
    %c0_7 = arith.constant 0 : index
    %4 = vector.load %arg1[%c0_5, %c1, %c0_6, %c0_7] : memref<1x4x196x9xf32, #tpu.memory_space<vmem>>, vector<1x1x196x9xf32>
    %5 = vector.shape_cast %4 : vector<1x1x196x9xf32> to vector<196x9xf32>
    %c0_8 = arith.constant 0 : index
    %c0_9 = arith.constant 0 : index
    %6 = vector.load %arg2[%c0_8, %c0_9] : memref<9x128xf32, #tpu.memory_space<vmem>>, vector<9x128xf32>
    %cst_10 = arith.constant dense<0.000000e+00> : vector<196x128xf32>
    %7 = tpu.matmul %5, %6, %cst_10 {dimension_numbers = #tpu.dot_dimension_numbers<[1], [0], [0], [1], [0, 0, 1, 1], [], []>} : vector<196x9xf32>, vector<9x128xf32>, vector<196x128xf32> -> vector<196x128xf32>
    %8 = arith.maximumf %3, %7 : vector<196x128xf32>
    %c0_11 = arith.constant 0 : index
    %c2 = arith.constant 2 : index
    %c0_12 = arith.constant 0 : index
    %c0_13 = arith.constant 0 : index
    %9 = vector.load %arg1[%c0_11, %c2, %c0_12, %c0_13] : memref<1x4x196x9xf32, #tpu.memory_space<vmem>>, vector<1x1x196x9xf32>
    %10 = vector.shape_cast %9 : vector<1x1x196x9xf32> to vector<196x9xf32>
    %c0_14 = arith.constant 0 : index
    %c0_15 = arith.constant 0 : index
    %11 = vector.load %arg2[%c0_14, %c0_15] : memref<9x128xf32, #tpu.memory_space<vmem>>, vector<9x128xf32>
    %cst_16 = arith.constant dense<0.000000e+00> : vector<196x128xf32>
    %12 = tpu.matmul %10, %11, %cst_16 {dimension_numbers = #tpu.dot_dimension_numbers<[1], [0], [0], [1], [0, 0, 1, 1], [], []>} : vector<196x9xf32>, vector<9x128xf32>, vector<196x128xf32> -> vector<196x128xf32>
    %13 = arith.maximumf %8, %12 : vector<196x128xf32>
    %c0_17 = arith.constant 0 : index
    %c3 = arith.constant 3 : index
    %c0_18 = arith.constant 0 : index
    %c0_19 = arith.constant 0 : index
    %14 = vector.load %arg1[%c0_17, %c3, %c0_18, %c0_19] : memref<1x4x196x9xf32, #tpu.memory_space<vmem>>, vector<1x1x196x9xf32>
    %15 = vector.shape_cast %14 : vector<1x1x196x9xf32> to vector<196x9xf32>
    %c0_20 = arith.constant 0 : index
    %c0_21 = arith.constant 0 : index
    %16 = vector.load %arg2[%c0_20, %c0_21] : memref<9x128xf32, #tpu.memory_space<vmem>>, vector<9x128xf32>
    %cst_22 = arith.constant dense<0.000000e+00> : vector<196x128xf32>
    %17 = tpu.matmul %15, %16, %cst_22 {dimension_numbers = #tpu.dot_dimension_numbers<[1], [0], [0], [1], [0, 0, 1, 1], [], []>} : vector<196x9xf32>, vector<9x128xf32>, vector<196x128xf32> -> vector<196x128xf32>
    %18 = arith.maximumf %13, %17 : vector<196x128xf32>
    %c0_23 = arith.constant 0 : index
    %c0_24 = arith.constant 0 : index
    %19 = vector.load %arg3[%c0_23, %c0_24] : memref<1x128xf32, #tpu.memory_space<vmem>>, vector<1x128xf32>
    %20 = vector.broadcast %19 : vector<1x128xf32> to vector<196x128xf32>
    %21 = arith.addf %18, %20 : vector<196x128xf32>
    %cst_25 = arith.constant 0.000000e+00 : f32
    %22 = vector.broadcast %cst_25 : f32 to vector<196x128xf32>
    %23 = arith.maximumf %21, %22 : vector<196x128xf32>
    %c0_26 = arith.constant 0 : index
    %c0_27 = arith.constant 0 : index
    %c0_28 = arith.constant 0 : index
    %24 = vector.load %arg4[%c0_26, %c0_27, %c0_28] : memref<1x196x128xf32, #tpu.memory_space<vmem>>, vector<1x196x128xf32>
    %25 = vector.shape_cast %24 : vector<1x196x128xf32> to vector<196x128xf32>
    %26 = vector.shape_cast %23 : vector<196x128xf32> to vector<1x196x128xf32>
    tpu.vector_store %arg4[%c0_26, %c0_27, %c0_28], %26 {strides = array<i32>} : memref<1x196x128xf32, #tpu.memory_space<vmem>>, vector<1x196x128xf32>,
    return
  }
  func.func @transform_0(%arg0: i32) -> (i32, i32, i32, i32) {
    %c0_i32 = arith.constant 0 : i32
    %c0_i32_0 = arith.constant 0 : i32
    %c0_i32_1 = arith.constant 0 : i32
    %c0_i32_2 = arith.constant 0 : i32
    return %arg0, %c0_i32, %c0_i32_0, %c0_i32_1 : i32, i32, i32, i32
  }
  func.func @transform_1(%arg0: i32) -> (i32, i32) {
    %c0_i32 = arith.constant 0 : i32
    %c0_i32_0 = arith.constant 0 : i32
    %c0_i32_1 = arith.constant 0 : i32
    return %c0_i32, %c0_i32_0 : i32, i32
  }
  func.func @transform_2(%arg0: i32) -> (i32, i32) {
    %c0_i32 = arith.constant 0 : i32
    %c0_i32_0 = arith.constant 0 : i32
    %c0_i32_1 = arith.constant 0 : i32
    return %c0_i32, %c0_i32_0 : i32, i32
  }
  func.func @transform_3(%arg0: i32) -> (i32, i32, i32) {
    %c0_i32 = arith.constant 0 : i32
    %c0_i32_0 = arith.constant 0 : i32
    %c0_i32_1 = arith.constant 0 : i32
    return %arg0, %c0_i32, %c0_i32_0 : i32, i32, i32
  }
}

module attributes {stable_mosaic.version = 11 : i64} {
  func.func @_conv_relu_pool_avgpool_kernel(%arg0: i32, %arg1: memref<1x4x49x288xf32, #tpu.memory_space<vmem>>, %arg2: memref<288x128xf32, #tpu.memory_space<vmem>>, %arg3: memref<1x128xf32, #tpu.memory_space<vmem>>, %arg4: memref<36x49xf32, #tpu.memory_space<vmem>>, %arg5: memref<1x36x128xf32, #tpu.memory_space<vmem>>) attributes {dimension_semantics = [#tpu.dimension_semantics<parallel>], iteration_bounds = array<i64: 2>, scalar_prefetch = 0 : i64, scratch_operands = 0 : i64, tpu.core_type = #tpu.core_type<tc>, window_params = [{transform_indices = @transform_0, window_bounds = array<i64: 1, 4, 49, 288>}, {pipeline_mode = #tpu.pipeline_mode<synchronous>, transform_indices = @transform_1, window_bounds = array<i64: 288, 128>}, {pipeline_mode = #tpu.pipeline_mode<synchronous>, transform_indices = @transform_2, window_bounds = array<i64: 1, 128>}, {pipeline_mode = #tpu.pipeline_mode<synchronous>, transform_indices = @transform_3, window_bounds = array<i64: 36, 49>}, {transform_indices = @transform_4, window_bounds = array<i64: 1, 36, 128>}]} {
    %c0 = arith.constant 0 : index
    %c0_0 = arith.constant 0 : index
    %c0_1 = arith.constant 0 : index
    %c0_2 = arith.constant 0 : index
    %0 = vector.load %arg1[%c0, %c0_0, %c0_1, %c0_2] : memref<1x4x49x288xf32, #tpu.memory_space<vmem>>, vector<1x1x49x288xf32>
    %1 = vector.shape_cast %0 : vector<1x1x49x288xf32> to vector<49x288xf32>
    %c0_3 = arith.constant 0 : index
    %c0_4 = arith.constant 0 : index
    %2 = vector.load %arg2[%c0_3, %c0_4] : memref<288x128xf32, #tpu.memory_space<vmem>>, vector<288x128xf32>
    %cst = arith.constant dense<0.000000e+00> : vector<49x128xf32>
    %3 = tpu.matmul %1, %2, %cst {dimension_numbers = #tpu.dot_dimension_numbers<[1], [0], [0], [1], [0, 0, 1, 1], [], []>} : vector<49x288xf32>, vector<288x128xf32>, vector<49x128xf32> -> vector<49x128xf32>
    %c0_5 = arith.constant 0 : index
    %c1 = arith.constant 1 : index
    %c0_6 = arith.constant 0 : index
    %c0_7 = arith.constant 0 : index
    %4 = vector.load %arg1[%c0_5, %c1, %c0_6, %c0_7] : memref<1x4x49x288xf32, #tpu.memory_space<vmem>>, vector<1x1x49x288xf32>
    %5 = vector.shape_cast %4 : vector<1x1x49x288xf32> to vector<49x288xf32>
    %c0_8 = arith.constant 0 : index
    %c0_9 = arith.constant 0 : index
    %6 = vector.load %arg2[%c0_8, %c0_9] : memref<288x128xf32, #tpu.memory_space<vmem>>, vector<288x128xf32>
    %cst_10 = arith.constant dense<0.000000e+00> : vector<49x128xf32>
    %7 = tpu.matmul %5, %6, %cst_10 {dimension_numbers = #tpu.dot_dimension_numbers<[1], [0], [0], [1], [0, 0, 1, 1], [], []>} : vector<49x288xf32>, vector<288x128xf32>, vector<49x128xf32> -> vector<49x128xf32>
    %8 = arith.maximumf %3, %7 : vector<49x128xf32>
    %c0_11 = arith.constant 0 : index
    %c2 = arith.constant 2 : index
    %c0_12 = arith.constant 0 : index
    %c0_13 = arith.constant 0 : index
    %9 = vector.load %arg1[%c0_11, %c2, %c0_12, %c0_13] : memref<1x4x49x288xf32, #tpu.memory_space<vmem>>, vector<1x1x49x288xf32>
    %10 = vector.shape_cast %9 : vector<1x1x49x288xf32> to vector<49x288xf32>
    %c0_14 = arith.constant 0 : index
    %c0_15 = arith.constant 0 : index
    %11 = vector.load %arg2[%c0_14, %c0_15] : memref<288x128xf32, #tpu.memory_space<vmem>>, vector<288x128xf32>
    %cst_16 = arith.constant dense<0.000000e+00> : vector<49x128xf32>
    %12 = tpu.matmul %10, %11, %cst_16 {dimension_numbers = #tpu.dot_dimension_numbers<[1], [0], [0], [1], [0, 0, 1, 1], [], []>} : vector<49x288xf32>, vector<288x128xf32>, vector<49x128xf32> -> vector<49x128xf32>
    %13 = arith.maximumf %8, %12 : vector<49x128xf32>
    %c0_17 = arith.constant 0 : index
    %c3 = arith.constant 3 : index
    %c0_18 = arith.constant 0 : index
    %c0_19 = arith.constant 0 : index
    %14 = vector.load %arg1[%c0_17, %c3, %c0_18, %c0_19] : memref<1x4x49x288xf32, #tpu.memory_space<vmem>>, vector<1x1x49x288xf32>
    %15 = vector.shape_cast %14 : vector<1x1x49x288xf32> to vector<49x288xf32>
    %c0_20 = arith.constant 0 : index
    %c0_21 = arith.constant 0 : index
    %16 = vector.load %arg2[%c0_20, %c0_21] : memref<288x128xf32, #tpu.memory_space<vmem>>, vector<288x128xf32>
    %cst_22 = arith.constant dense<0.000000e+00> : vector<49x128xf32>
    %17 = tpu.matmul %15, %16, %cst_22 {dimension_numbers = #tpu.dot_dimension_numbers<[1], [0], [0], [1], [0, 0, 1, 1], [], []>} : vector<49x288xf32>, vector<288x128xf32>, vector<49x128xf32> -> vector<49x128xf32>
    %18 = arith.maximumf %13, %17 : vector<49x128xf32>
    %c0_23 = arith.constant 0 : index
    %c0_24 = arith.constant 0 : index
    %19 = vector.load %arg3[%c0_23, %c0_24] : memref<1x128xf32, #tpu.memory_space<vmem>>, vector<1x128xf32>
    %20 = vector.broadcast %19 : vector<1x128xf32> to vector<49x128xf32>
    %21 = arith.addf %18, %20 : vector<49x128xf32>
    %cst_25 = arith.constant 0.000000e+00 : f32
    %22 = vector.broadcast %cst_25 : f32 to vector<49x128xf32>
    %23 = arith.maximumf %21, %22 : vector<49x128xf32>
    %c0_26 = arith.constant 0 : index
    %c0_27 = arith.constant 0 : index
    %24 = vector.load %arg4[%c0_26, %c0_27] : memref<36x49xf32, #tpu.memory_space<vmem>>, vector<36x49xf32>
    %cst_28 = arith.constant dense<0.000000e+00> : vector<36x128xf32>
    %25 = tpu.matmul %24, %23, %cst_28 {dimension_numbers = #tpu.dot_dimension_numbers<[1], [0], [0], [1], [0, 0, 1, 1], [], []>} : vector<36x49xf32>, vector<49x128xf32>, vector<36x128xf32> -> vector<36x128xf32>
    %c0_29 = arith.constant 0 : index
    %c0_30 = arith.constant 0 : index
    %c0_31 = arith.constant 0 : index
    %26 = vector.load %arg5[%c0_29, %c0_30, %c0_31] : memref<1x36x128xf32, #tpu.memory_space<vmem>>, vector<1x36x128xf32>
    %27 = vector.shape_cast %26 : vector<1x36x128xf32> to vector<36x128xf32>
    %28 = vector.shape_cast %25 : vector<36x128xf32> to vector<1x36x128xf32>
    tpu.vector_store %arg5[%c0_29, %c0_30, %c0_31], %28 {strides = array<i32>} : memref<1x36x128xf32, #tpu.memory_space<vmem>>, vector<1x36x128xf32>,
    return
  }
  func.func @transform_0(%arg0: i32) -> (i32, i32, i32, i32) {
    %c0_i32 = arith.constant 0 : i32
    %c0_i32_0 = arith.constant 0 : i32
    %c0_i32_1 = arith.constant 0 : i32
    %c0_i32_2 = arith.constant 0 : i32
    return %arg0, %c0_i32, %c0_i32_0, %c0_i32_1 : i32, i32, i32, i32
  }
  func.func @transform_1(%arg0: i32) -> (i32, i32) {
    %c0_i32 = arith.constant 0 : i32
    %c0_i32_0 = arith.constant 0 : i32
    %c0_i32_1 = arith.constant 0 : i32
    return %c0_i32, %c0_i32_0 : i32, i32
  }
  func.func @transform_2(%arg0: i32) -> (i32, i32) {
    %c0_i32 = arith.constant 0 : i32
    %c0_i32_0 = arith.constant 0 : i32
    %c0_i32_1 = arith.constant 0 : i32
    return %c0_i32, %c0_i32_0 : i32, i32
  }
  func.func @transform_3(%arg0: i32) -> (i32, i32) {
    %c0_i32 = arith.constant 0 : i32
    %c0_i32_0 = arith.constant 0 : i32
    %c0_i32_1 = arith.constant 0 : i32
    return %c0_i32, %c0_i32_0 : i32, i32
  }
  func.func @transform_4(%arg0: i32) -> (i32, i32, i32) {
    %c0_i32 = arith.constant 0 : i32
    %c0_i32_0 = arith.constant 0 : i32
    %c0_i32_1 = arith.constant 0 : i32
    return %arg0, %c0_i32, %c0_i32_0 : i32, i32, i32
  }
}

module attributes {stable_mosaic.version = 11 : i64} {
  func.func @_classifier_kernel(%arg0: i32, %arg1: memref<8x2304xf32, #tpu.memory_space<vmem>>, %arg2: memref<2304x1024xbf16, #tpu.memory_space<vmem>>, %arg3: memref<1x1024xf32, #tpu.memory_space<vmem>>, %arg4: memref<1024x128xbf16, #tpu.memory_space<vmem>>, %arg5: memref<1x128xf32, #tpu.memory_space<vmem>>, %arg6: memref<8x128xf32, #tpu.memory_space<vmem>>) attributes {dimension_semantics = [#tpu.dimension_semantics<arbitrary>], iteration_bounds = array<i64: 1>, scalar_prefetch = 0 : i64, scratch_operands = 0 : i64, tpu.core_type = #tpu.core_type<tc>, window_params = [{pipeline_mode = #tpu.pipeline_mode<synchronous>, transform_indices = @transform_0, window_bounds = array<i64: 8, 2304>}, {pipeline_mode = #tpu.pipeline_mode<synchronous>, transform_indices = @transform_1, window_bounds = array<i64: 2304, 1024>}, {pipeline_mode = #tpu.pipeline_mode<synchronous>, transform_indices = @transform_2, window_bounds = array<i64: 1, 1024>}, {pipeline_mode = #tpu.pipeline_mode<synchronous>, transform_indices = @transform_3, window_bounds = array<i64: 1024, 128>}, {pipeline_mode = #tpu.pipeline_mode<synchronous>, transform_indices = @transform_4, window_bounds = array<i64: 1, 128>}, {pipeline_mode = #tpu.pipeline_mode<synchronous>, transform_indices = @transform_5, window_bounds = array<i64: 8, 128>}]} {
    %c0 = arith.constant 0 : index
    %c0_0 = arith.constant 0 : index
    %0 = vector.load %arg1[%c0, %c0_0] : memref<8x2304xf32, #tpu.memory_space<vmem>>, vector<8x2304xf32>
    %1 = arith.truncf %0 : vector<8x2304xf32> to vector<8x2304xbf16>
    %c0_1 = arith.constant 0 : index
    %c0_2 = arith.constant 0 : index
    %2 = vector.load %arg2[%c0_1, %c0_2] : memref<2304x1024xbf16, #tpu.memory_space<vmem>>, vector<2304x1024xbf16>
    %cst = arith.constant dense<0.000000e+00> : vector<8x1024xf32>
    %3 = tpu.matmul %1, %2, %cst {dimension_numbers = #tpu.dot_dimension_numbers<[1], [0], [0], [1], [0, 0, 1, 1], [], []>} : vector<8x2304xbf16>, vector<2304x1024xbf16>, vector<8x1024xf32> -> vector<8x1024xf32>
    %c0_3 = arith.constant 0 : index
    %c0_4 = arith.constant 0 : index
    %4 = vector.load %arg3[%c0_3, %c0_4] : memref<1x1024xf32, #tpu.memory_space<vmem>>, vector<1x1024xf32>
    %5 = vector.broadcast %4 : vector<1x1024xf32> to vector<8x1024xf32>
    %6 = arith.addf %3, %5 : vector<8x1024xf32>
    %cst_5 = arith.constant 0.000000e+00 : f32
    %7 = vector.broadcast %cst_5 : f32 to vector<8x1024xf32>
    %8 = arith.maximumf %6, %7 : vector<8x1024xf32>
    %9 = arith.truncf %8 : vector<8x1024xf32> to vector<8x1024xbf16>
    %c0_6 = arith.constant 0 : index
    %c0_7 = arith.constant 0 : index
    %10 = vector.load %arg4[%c0_6, %c0_7] : memref<1024x128xbf16, #tpu.memory_space<vmem>>, vector<1024x128xbf16>
    %cst_8 = arith.constant dense<0.000000e+00> : vector<8x128xf32>
    %11 = tpu.matmul %9, %10, %cst_8 {dimension_numbers = #tpu.dot_dimension_numbers<[1], [0], [0], [1], [0, 0, 1, 1], [], []>} : vector<8x1024xbf16>, vector<1024x128xbf16>, vector<8x128xf32> -> vector<8x128xf32>
    %c0_9 = arith.constant 0 : index
    %c0_10 = arith.constant 0 : index
    %12 = vector.load %arg5[%c0_9, %c0_10] : memref<1x128xf32, #tpu.memory_space<vmem>>, vector<1x128xf32>
    %13 = vector.broadcast %12 : vector<1x128xf32> to vector<8x128xf32>
    %14 = arith.addf %11, %13 : vector<8x128xf32>
    %c0_11 = arith.constant 0 : index
    %c0_12 = arith.constant 0 : index
    %15 = vector.load %arg6[%c0_11, %c0_12] : memref<8x128xf32, #tpu.memory_space<vmem>>, vector<8x128xf32>
    tpu.vector_store %arg6[%c0_11, %c0_12], %14 {strides = array<i32>} : memref<8x128xf32, #tpu.memory_space<vmem>>, vector<8x128xf32>,
    return
  }
  func.func @transform_0(%arg0: i32) -> (i32, i32) {
    %c0_i32 = arith.constant 0 : i32
    %c0_i32_0 = arith.constant 0 : i32
    %c0_i32_1 = arith.constant 0 : i32
    return %c0_i32, %c0_i32_0 : i32, i32
  }
  func.func @transform_1(%arg0: i32) -> (i32, i32) {
    %c0_i32 = arith.constant 0 : i32
    %c0_i32_0 = arith.constant 0 : i32
    %c0_i32_1 = arith.constant 0 : i32
    return %c0_i32, %c0_i32_0 : i32, i32
  }
  func.func @transform_2(%arg0: i32) -> (i32, i32) {
    %c0_i32 = arith.constant 0 : i32
    %c0_i32_0 = arith.constant 0 : i32
    %c0_i32_1 = arith.constant 0 : i32
    return %c0_i32, %c0_i32_0 : i32, i32
  }
  func.func @transform_3(%arg0: i32) -> (i32, i32) {
    %c0_i32 = arith.constant 0 : i32
    %c0_i32_0 = arith.constant 0 : i32
    %c0_i32_1 = arith.constant 0 : i32
    return %c0_i32, %c0_i32_0 : i32, i32
  }
  func.func @transform_4(%arg0: i32) -> (i32, i32) {
    %c0_i32 = arith.constant 0 : i32
    %c0_i32_0 = arith.constant 0 : i32
    %c0_i32_1 = arith.constant 0 : i32
    return %c0_i32, %c0_i32_0 : i32, i32
  }
  func.func @transform_5(%arg0: i32) -> (i32, i32) {
    %c0_i32 = arith.constant 0 : i32
    %c0_i32_0 = arith.constant 0 : i32
    %c0_i32_1 = arith.constant 0 : i32
    return %c0_i32, %c0_i32_0 : i32, i32
  }
}

</mosaic_0001>

<llo_original>
// kernel: alexnet_forward.3
$region0: #{alexnet_forward.3}
  #allocation0 [shape = 'u32[]', space=smem, size = 0x4, offset = 0x4, fixed_abs, tag = 'smem constant byte address 0x4 - core index']
  #allocation1 [shape = 'u32[144,128]{1,0:T(1,128)}', space=vmem, size = 0x12000, scoped, tag = 'internal scratch']
  %s0 = inlined_call_operand.vmem [shape: f32[2,4,196,9], index: 0, kind: input, shape index: {}]
  %s1 = inlined_call_operand.vmem [shape: f32[9,128], index: 1, kind: input, shape index: {}]
  %s2 = inlined_call_operand.vmem [shape: f32[1,128], index: 2, kind: input, shape index: {}]
  %s3 = inlined_call_operand.vmem [shape: f32[2,196,128], index: 3, kind: output, shape index: {}]
  %s4 = sld [smem:[#allocation0]]
  $region45: #{alexnet_forward.3} parent=0
    _
  %s6 = ssub.s32 1, %s4
  %s7 = scalar_select 0, %s6, %s4
  loop: start=0, step=1, limit=4
  $region2: #{alexnet_forward.3} parent=0 // loop_pre_header
    _
  $region3: #{alexnet_forward.3} parent=0 // loop_header
    %s9 = sphi 0, %s13
    %p10 = scmp.ge.s32.totalorder %s9, 4
    %s19 = sphi 0, %s21
    %s22 = sphi 0, %s19
    %s23 = sphi 0, %s22
    %s39 = sphi 0, %s23
    %s43 = sphi 0, %s43
    %s45 = sphi 0, %s43
    %s46 = sphi 0, %s45
    %s60 = sphi 0, %s46
    %s64 = sphi 0, %s64
    %s66 = sphi 0, %s64
    %s67 = sphi 0, %s66
    %s81 = sphi 0, %s67
    %s87 = sphi 0, %s89
    %s90 = sphi 0, %s87
    %s91 = sphi 0, %s90
    %s107 = sphi 0, %s91
  $region4: #{alexnet_forward.3} parent=0 // loop_header_branch
    %12 = sbr.rel (%p10) target = $region8
  $region5: #{alexnet_forward.3} parent=0 // loop_body
    %s14 = ssub.s32 %s9, 1
    %s15 = ssub.s32 %s9, 2
    %s16 = sadd.s32 %s9, 1
    %s17 = ssub.s32 %s9, %s16
    %p18 = scmp.eq.s32.totalorder %s17, 0
    %s20 = sadd.s32 %s19, 1
    %s21 = scalar_select %p18, %s19, %s20
    %p24 = pneg %p18
    %p25 = scmp.eq.s32.totalorder %s9, 1
    %p26 = por %p24, %p25
    %p27 = scmp.ne.s32.totalorder %s19, %s22
    %p28 = scmp.eq.s32.totalorder %s9, 0
    %p29 = por %p27, %p28
    %p30 = scmp.ne.s32.totalorder %s19, %s22
    %p31 = scmp.eq.s32.totalorder %s14, 1
    %p32 = por %p30, %p31
    %p33 = scmp.ne.s32.totalorder %s22, %s23
    %p34 = scmp.eq.s32.totalorder %s14, 0
    %p35 = por %p33, %p34
    %p36 = scmp.ne.s32.totalorder %s22, %s23
    %p37 = scmp.eq.s32.totalorder %s15, 1
    %p38 = por %p36, %p37
    %p40 = scmp.ne.s32.totalorder %s23, %s39
    %p41 = scmp.eq.s32.totalorder %s15, 0
    %p42 = por %p40, %p41
    %s44 = sadd.s32 %s43, 1
    %p47 = scmp.eq.s32.totalorder %s9, 1
    %p48 = scmp.ne.s32.totalorder %s43, %s45
    %p49 = scmp.eq.s32.totalorder %s9, 0
    %p50 = por %p48, %p49
    %p51 = scmp.ne.s32.totalorder %s43, %s45
    %p52 = scmp.eq.s32.totalorder %s14, 1
    %p53 = por %p51, %p52
    %p54 = scmp.ne.s32.totalorder %s45, %s46
    %p55 = scmp.eq.s32.totalorder %s14, 0
    %p56 = por %p54, %p55
    %p57 = scmp.ne.s32.totalorder %s45, %s46
    %p58 = scmp.eq.s32.totalorder %s15, 1
    %p59 = por %p57, %p58
    %p61 = scmp.ne.s32.totalorder %s46, %s60
    %p62 = scmp.eq.s32.totalorder %s15, 0
    %p63 = por %p61, %p62
    %s65 = sadd.s32 %s64, 1
    %p68 = scmp.eq.s32.totalorder %s9, 1
    %p69 = scmp.ne.s32.totalorder %s64, %s66
    %p70 = scmp.eq.s32.totalorder %s9, 0
    %p71 = por %p69, %p70
    %p72 = scmp.ne.s32.totalorder %s64, %s66
    %p73 = scmp.eq.s32.totalorder %s14, 1
    %p74 = por %p72, %p73
    %p75 = scmp.ne.s32.totalorder %s66, %s67
    %p76 = scmp.eq.s32.totalorder %s14, 0
    %p77 = por %p75, %p76
    %p78 = scmp.ne.s32.totalorder %s66, %s67
    %p79 = scmp.eq.s32.totalorder %s15, 1
    %p80 = por %p78, %p79
    %p82 = scmp.ne.s32.totalorder %s67, %s81
    %p83 = scmp.eq.s32.totalorder %s15, 0
    %p84 = por %p82, %p83
    %s85 = ssub.s32 %s9, %s16
    %p86 = scmp.eq.s32.totalorder %s85, 0
    %s88 = sadd.s32 %s87, 1
    %s89 = scalar_select %p86, %s87, %s88
    %p92 = pneg %p86
    %p93 = scmp.eq.s32.totalorder %s9, 1
    %p94 = por %p92, %p93
    %p95 = scmp.ne.s32.totalorder %s87, %s90
    %p96 = scmp.eq.s32.totalorder %s9, 0
    %p97 = por %p95, %p96
    %p98 = scmp.ne.s32.totalorder %s87, %s90
    %p99 = scmp.eq.s32.totalorder %s14, 1
    %p100 = por %p98, %p99
    %p101 = scmp.ne.s32.totalorder %s90, %s91
    %p102 = scmp.eq.s32.totalorder %s14, 0
    %p103 = por %p101, %p102
    %p104 = scmp.ne.s32.totalorder %s90, %s91
    %p105 = scmp.eq.s32.totalorder %s15, 1
    %p106 = por %p104, %p105
    %p108 = scmp.ne.s32.totalorder %s91, %s107
    %p109 = scmp.eq.s32.totalorder %s15, 0
    %p110 = por %p108, %p109
    %p111 = scmp.le.s32.totalorder 1, %s9
    %p112 = scmp.lt.s32.totalorder %s9, 3
    %p113 = pnand %p111, %p112
    %p114 = pneg %p113
    // Predicated region
    $region9: #{alexnet_forward.3} parent=5 // pred_check
      _
    $region10: #{alexnet_forward.3} parent=5 // pred_check_branch
      %116 = sbr.rel (%p113) target = $region12
    $region11: #{alexnet_forward.3} parent=5 // pred_region
      %s117 = ssub.s32 %s9, 1
      // Predicated region
      $region13: #{alexnet_forward.3} parent=11 // pred_check
        %p118 = pneg %p56
      $region14: #{alexnet_forward.3} parent=11 // pred_check_branch
        %120 = sbr.rel (%p118) target = $region16
      $region15: #{alexnet_forward.3} parent=11 // pred_region
        _
      $region16: #{alexnet_forward.3} parent=11 // pred_fallthru
        _
      // Predicated region
      $region17: #{alexnet_forward.3} parent=11 // pred_check
        %p121 = pneg %p77
      $region18: #{alexnet_forward.3} parent=11 // pred_check_branch
        %123 = sbr.rel (%p121) target = $region20
      $region19: #{alexnet_forward.3} parent=11 // pred_region
        _
      $region20: #{alexnet_forward.3} parent=11 // pred_fallthru
        _
    $region12: #{alexnet_forward.3} parent=5 // pred_fallthru
      _
    %p124 = scmp.lt.s32.totalorder %s9, 2
    // Predicated region
    $region21: #{alexnet_forward.3} parent=5 // pred_check
      %p125 = pneg %p124
    $region22: #{alexnet_forward.3} parent=5 // pred_check_branch
      %127 = sbr.rel (%p125) target = $region24
    $region23: #{alexnet_forward.3} parent=5 // pred_region
      // Predicated region
      $region25: #{alexnet_forward.3} parent=23 // pred_check
        %p128 = pneg %p29
      $region26: #{alexnet_forward.3} parent=23 // pred_check_branch
        %130 = sbr.rel (%p128) target = $region28
      $region27: #{alexnet_forward.3} parent=23 // pred_region
        %p131 = scmp.lt.s32.totalorder %s9, 1
        %s132 = scalar_select %p131, %s9, 1
        %s133 = smul.addr %s132, 100
        %s134 = smul.addr %s133, 8
        %s135 = scalar_lea.vmem %s0, %s134
      $region28: #{alexnet_forward.3} parent=23 // pred_fallthru
        _
    $region24: #{alexnet_forward.3} parent=5 // pred_fallthru
      _
    %p136 = scmp.le.s32.totalorder 1, %s9
    %p137 = scmp.lt.s32.totalorder %s9, 3
    %p138 = pnand %p136, %p137
    %p139 = pneg %p138
    // Predicated region
    $region29: #{alexnet_forward.3} parent=5 // pred_check
      _
    $region30: #{alexnet_forward.3} parent=5 // pred_check_branch
      %141 = sbr.rel (%p138) target = $region32
    $region31: #{alexnet_forward.3} parent=5 // pred_region
      %s142 = ssub.s32 %s9, 1
      %p143 = scmp.lt.s32.totalorder %s14, 1
      %s144 = scalar_select %p143, %s14, 1
      %s145 = smul.addr %s144, 100
      %s146 = smul.addr %s145, 8
      %s147 = scalar_lea.vmem %s0, %s146
      %p148 = pneg %p35
      %p149 = pneg %p32
      %p150 = pneg %p56
      %p151 = pneg %p53
      %p152 = pneg %p77
      %p153 = pneg %p74
      %p154 = pneg %p103
      %p155 = pneg %p100
      %p156 = scmp.lt.s32.totalorder %s14, 1
      %s157 = scalar_select %p156, %s14, 1
      %s158 = smul.addr %s157, 25
      %s159 = smul.addr %s158, 8
      %s160 = scalar_lea.vmem %s3, %s159
      %p161 = scmp.lt.s32.totalorder %s14, 1
      %s162 = scalar_select %p161, %s14, 1
      %s163 = smul.addr %s162, 100
      %s164 = smul.addr %s163, 8
      %s165 = scalar_lea.vmem %s0, %s164
      %p166 = scmp.lt.s32.totalorder %s14, 1
      %s167 = scalar_select %p166, %s14, 1
      %s168 = smul.addr %s167, 25
      %s169 = smul.addr %s168, 8
      %s170 = scalar_lea.vmem %s3, %s169
      %v171 = vld [vmem:[%s165] sm:$0xff]
      %v172 = vld [vmem:[%s165 + $0x8] sm:$0xff]
      %v173 = vld [vmem:[%s165 + $0x10] sm:$0xff]
      %v174 = vld [vmem:[%s165 + $0x18] sm:$0xff]
      %v175 = vld [vmem:[%s165 + $0x20] sm:$0xff]
      %v176 = vld [vmem:[%s165 + $0x28] sm:$0xff]
      %v177 = vld [vmem:[%s165 + $0x30] sm:$0xff]
      %v178 = vld [vmem:[%s165 + $0x38] sm:$0xff]
      %v179 = vld [vmem:[%s165 + $0x40] sm:$0xff]
      %v180 = vld [vmem:[%s165 + $0x48] sm:$0xff]
      %v181 = vld [vmem:[%s165 + $0x50] sm:$0xff]
      %v182 = vld [vmem:[%s165 + $0x58] sm:$0xff]
      %v183 = vld [vmem:[%s165 + $0x60] sm:$0xff]
      %v184 = vld [vmem:[%s165 + $0x68] sm:$0xff]
      %v185 = vld [vmem:[%s165 + $0x70] sm:$0xff]
      %v186 = vld [vmem:[%s165 + $0x78] sm:$0xff]
      %v187 = vld [vmem:[%s165 + $0x80] sm:$0xff]
      %v188 = vld [vmem:[%s165 + $0x88] sm:$0xff]
      %v189 = vld [vmem:[%s165 + $0x90] sm:$0xff]
      %v190 = vld [vmem:[%s165 + $0x98] sm:$0xff]
      %v191 = vld [vmem:[%s165 + $0xa0] sm:$0xff]
      %v192 = vld [vmem:[%s165 + $0xa8] sm:$0xff]
      %v193 = vld [vmem:[%s165 + $0xb0] sm:$0xff]
      %v194 = vld [vmem:[%s165 + $0xb8] sm:$0xff]
      %v195 = vld [vmem:[%s165 + $0xc0] sm:$0xf]
      %v196 = vld [vmem:[%s1] sm:$0xff]
      %v197 = vld [vmem:[%s1 + $0x8] sm:$0x1]
      %vm198 = vcmask 72704
      %v200 = vsel %vm198, %v171, 0
      %v203 = vsel %vm198, %v172, 0
      %v206 = vsel %vm198, %v173, 0
      %v209 = vsel %vm198, %v174, 0
      %v212 = vsel %vm198, %v175, 0
      %v215 = vsel %vm198, %v176, 0
      %v218 = vsel %vm198, %v177, 0
      %v221 = vsel %vm198, %v178, 0
      %v224 = vsel %vm198, %v179, 0
      %v227 = vsel %vm198, %v180, 0
      %v230 = vsel %vm198, %v181, 0
      %v233 = vsel %vm198, %v182, 0
      %v236 = vsel %vm198, %v183, 0
      %v239 = vsel %vm198, %v184, 0
      %v242 = vsel %vm198, %v185, 0
      %v245 = vsel %vm198, %v186, 0
      %v248 = vsel %vm198, %v187, 0
      %v251 = vsel %vm198, %v188, 0
      %v254 = vsel %vm198, %v189, 0
      %v257 = vsel %vm198, %v190, 0
      %v260 = vsel %vm198, %v191, 0
      %v263 = vsel %vm198, %v192, 0
      %v266 = vsel %vm198, %v193, 0
      %v269 = vsel %vm198, %v194, 0
      %v272 = vsel %vm198, %v195, 0
      %vm274 = vcmask 1040384
      %v276 = vsel %vm274, %v197, 0
      %278 = vmatprep.subr.mxu0 0.0
      %279 = vmatpush1.msra.mxu0 %v196
      %280 = vmatprep.subr.mxu0 0.0
      %281 = vmatpush1.msra.mxu0 %v276
      %282 = vmatprep.subr.mxu0 0.0
      %283 = vmatpush1.msra.mxu0 0.0
      %284 = vmatprep.subr.mxu0 0.0
      %285 = vmatpush1.msra.mxu0 0.0
      %286 = vmatprep.subr.mxu0 0.0
      %287 = vmatpush1.msra.mxu0 0.0
      %288 = vmatprep.subr.mxu0 0.0
      %289 = vmatpush1.msra.mxu0 0.0
      %290 = vmatprep.subr.mxu0 0.0
      %291 = vmatpush1.msra.mxu0 0.0
      %292 = vmatprep.subr.mxu0 0.0
      %293 = vmatpush1.msra.mxu0 0.0
      %294 = vmatprep.subr.mxu0 0.0
      %295 = vmatpush1.msra.mxu0 0.0
      %296 = vmatprep.subr.mxu0 0.0
      %297 = vmatpush1.msra.mxu0 0.0
      %298 = vmatprep.subr.mxu0 0.0
      %299 = vmatpush1.msra.mxu0 0.0
      %300 = vmatprep.subr.mxu0 0.0
      %301 = vmatpush1.msra.mxu0 0.0
      %302 = vmatprep.subr.mxu0 0.0
      %303 = vmatpush1.msra.mxu0 0.0
      %304 = vmatprep.subr.mxu0 0.0
      %305 = vmatpush1.msra.mxu0 0.0
      %306 = vmatprep.subr.mxu0 0.0
      %307 = vmatpush1.msra.mxu0 0.0
      %308 = vmatprep.subr.mxu0 0.0
      %309 = vmatpush1.msra.mxu0 0.0
      %310 = vmatprep.subr.mxu0 0.0
      %311 = vmatpush1.msra.mxu0 0.0
      %312 = vmatprep.subr.mxu0 0.0
      %313 = vmatpush1.msra.mxu0 0.0
      %314 = vmatprep.subr.mxu0 0.0
      %315 = vmatpush1.msra.mxu0 0.0
      %316 = vmatprep.subr.mxu0 0.0
      %317 = vmatpush1.msra.mxu0 0.0
      %318 = vmatprep.subr.mxu0 0.0
      %319 = vmatpush1.msra.mxu0 0.0
      %320 = vmatprep.subr.mxu0 0.0
      %321 = vmatpush1.msra.mxu0 0.0
      %322 = vmatprep.subr.mxu0 0.0
      %323 = vmatpush1.msra.mxu0 0.0
      %324 = vmatprep.subr.mxu0 0.0
      %325 = vmatpush1.msra.mxu0 0.0
      %326 = vmatprep.subr.mxu0 0.0
      %327 = vmatpush1.msra.mxu0 0.0
      %328 = vmatprep.subr.mxu0 0.0
      %329 = vmatpush1.msra.mxu0 0.0
      %330 = vmatprep.subr.mxu0 0.0
      %331 = vmatpush1.msra.mxu0 0.0
      %332 = vmatprep.subr.mxu0 0.0
      %333 = vmatpush1.msra.mxu0 0.0
      %334 = vmatprep.subr.mxu0 0.0
      %335 = vmatpush1.msra.mxu0 0.0
      %336 = vmatprep.subr.mxu0 0.0
      %337 = vmatpush1.msra.mxu0 0.0
      %338 = vmatprep.subr.mxu0 0.0
      %339 = vmatpush1.msra.mxu0 0.0
      %340 = vmatprep.subr.mxu0 0.0
      %341 = vmatpush1.msra.mxu0 0.0
      %342 = vmatprep.mubr.f32.mxu0 0.0
      %343 = vmatmul.mubr.f32.gmra.mrb[0].mxu0 %v200
      %v344 = vpop.f32.mrb[0].mxu0
      %v345 = vadd.f32 0.0, %v344
      %v346 = vpop.f32.mrb[0].mxu0
      %347 = vmatprep.mubr.f32.mxu0 0.0
      %348 = vmatmul.mubr.f32.gmra.mrb[0].mxu0 %v203
      %v349 = vpop.f32.mrb[0].mxu0
      %v350 = vadd.f32 0.0, %v349
      %v351 = vpop.f32.mrb[0].mxu0
      %352 = vmatprep.mubr.f32.mxu0 0.0
      %353 = vmatmul.mubr.f32.gmra.mrb[0].mxu0 %v206
      %v354 = vpop.f32.mrb[0].mxu0
      %v355 = vadd.f32 0.0, %v354
      %v356 = vpop.f32.mrb[0].mxu0
      %357 = vmatprep.mubr.f32.mxu0 0.0
      %358 = vmatmul.mubr.f32.gmra.mrb[0].mxu0 %v209
      %v359 = vpop.f32.mrb[0].mxu0
      %v360 = vadd.f32 0.0, %v359
      %v361 = vpop.f32.mrb[0].mxu0
      %362 = vmatprep.mubr.f32.mxu0 0.0
      %363 = vmatmul.mubr.f32.gmra.mrb[0].mxu0 %v212
      %v364 = vpop.f32.mrb[0].mxu0
      %v365 = vadd.f32 0.0, %v364
      %v366 = vpop.f32.mrb[0].mxu0
      %367 = vmatprep.mubr.f32.mxu0 0.0
      %368 = vmatmul.mubr.f32.gmra.mrb[0].mxu0 %v215
      %v369 = vpop.f32.mrb[0].mxu0
      %v370 = vadd.f32 0.0, %v369
      %v371 = vpop.f32.mrb[0].mxu0
      %372 = vmatprep.mubr.f32.mxu0 0.0
      %373 = vmatmul.mubr.f32.gmra.mrb[0].mxu0 %v218
      %v374 = vpop.f32.mrb[0].mxu0
      %v375 = vadd.f32 0.0, %v374
      %v376 = vpop.f32.mrb[0].mxu0
      %377 = vmatprep.mubr.f32.mxu0 0.0
      %378 = vmatmul.mubr.f32.gmra.mrb[0].mxu0 %v221
      %v379 = vpop.f32.mrb[0].mxu0
      %v380 = vadd.f32 0.0, %v379
      %v381 = vpop.f32.mrb[0].mxu0
      %382 = vmatprep.mubr.f32.mxu0 0.0
      %383 = vmatmul.mubr.f32.gmra.mrb[0].mxu0 %v224
      %v384 = vpop.f32.mrb[0].mxu0
      %v385 = vadd.f32 0.0, %v384
      %v386 = vpop.f32.mrb[0].mxu0
      %387 = vmatprep.mubr.f32.mxu0 0.0
      %388 = vmatmul.mubr.f32.gmra.mrb[0].mxu0 %v227
      %v389 = vpop.f32.mrb[0].mxu0
      %v390 = vadd.f32 0.0, %v389
      %v391 = vpop.f32.mrb[0].mxu0
      %392 = vmatprep.mubr.f32.mxu0 0.0
      %393 = vmatmul.mubr.f32.gmra.mrb[0].mxu0 %v230
      %v394 = vpop.f32.mrb[0].mxu0
      %v395 = vadd.f32 0.0, %v394
      %v396 = vpop.f32.mrb[0].mxu0
      %397 = vmatprep.mubr.f32.mxu0 0.0
      %398 = vmatmul.mubr.f32.gmra.mrb[0].mxu0 %v233
      %v399 = vpop.f32.mrb[0].mxu0
      %v400 = vadd.f32 0.0, %v399
      %v401 = vpop.f32.mrb[0].mxu0
      %402 = vmatprep.mubr.f32.mxu0 0.0
      %403 = vmatmul.mubr.f32.gmra.mrb[0].mxu0 %v236
      %v404 = vpop.f32.mrb[0].mxu0
      %v405 = vadd.f32 0.0, %v404
      %v406 = vpop.f32.mrb[0].mxu0
      %407 = vmatprep.mubr.f32.mxu0 0.0
      %408 = vmatmul.mubr.f32.gmra.mrb[0].mxu0 %v239
      %v409 = vpop.f32.mrb[0].mxu0
      %v410 = vadd.f32 0.0, %v409
      %v411 = vpop.f32.mrb[0].mxu0
      %412 = vmatprep.mubr.f32.mxu0 0.0
      %413 = vmatmul.mubr.f32.gmra.mrb[0].mxu0 %v242
      %v414 = vpop.f32.mrb[0].mxu0
      %v415 = vadd.f32 0.0, %v414
      %v416 = vpop.f32.mrb[0].mxu0
      %417 = vmatprep.mubr.f32.mxu0 0.0
      %418 = vmatmul.mubr.f32.gmra.mrb[0].mxu0 %v245
      %v419 = vpop.f32.mrb[0].mxu0
      %v420 = vadd.f32 0.0, %v419
      %v421 = vpop.f32.mrb[0].mxu0
      %422 = vmatprep.mubr.f32.mxu0 0.0
      %423 = vmatmul.mubr.f32.gmra.mrb[0].mxu0 %v248
      %v424 = vpop.f32.mrb[0].mxu0
      %v425 = vadd.f32 0.0, %v424
      %v426 = vpop.f32.mrb[0].mxu0
      %427 = vmatprep.mubr.f32.mxu0 0.0
      %428 = vmatmul.mubr.f32.gmra.mrb[0].mxu0 %v251
      %v429 = vpop.f32.mrb[0].mxu0
      %v430 = vadd.f32 0.0, %v429
      %v431 = vpop.f32.mrb[0].mxu0
      %432 = vmatprep.mubr.f32.mxu0 0.0
      %433 = vmatmul.mubr.f32.gmra.mrb[0].mxu0 %v254
      %v434 = vpop.f32.mrb[0].mxu0
      %v435 = vadd.f32 0.0, %v434
      %v436 = vpop.f32.mrb[0].mxu0
      %437 = vmatprep.mubr.f32.mxu0 0.0
      %438 = vmatmul.mubr.f32.gmra.mrb[0].mxu0 %v257
      %v439 = vpop.f32.mrb[0].mxu0
      %v440 = vadd.f32 0.0, %v439
      %v441 = vpop.f32.mrb[0].mxu0
      %442 = vmatprep.mubr.f32.mxu0 0.0
      %443 = vmatmul.mubr.f32.gmra.mrb[0].mxu0 %v260
      %v444 = vpop.f32.mrb[0].mxu0
      %v445 = vadd.f32 0.0, %v444
      %v446 = vpop.f32.mrb[0].mxu0
      %447 = vmatprep.mubr.f32.mxu0 0.0
      %448 = vmatmul.mubr.f32.gmra.mrb[0].mxu0 %v263
      %v449 = vpop.f32.mrb[0].mxu0
      %v450 = vadd.f32 0.0, %v449
      %v451 = vpop.f32.mrb[0].mxu0
      %452 = vmatprep.mubr.f32.mxu0 0.0
      %453 = vmatmul.mubr.f32.gmra.mrb[0].mxu0 %v266
      %v454 = vpop.f32.mrb[0].mxu0
      %v455 = vadd.f32 0.0, %v454
      %v456 = vpop.f32.mrb[0].mxu0
      %457 = vmatprep.mubr.f32.mxu0 0.0
      %458 = vmatmul.mubr.f32.gmra.mrb[0].mxu0 %v269
      %v459 = vpop.f32.mrb[0].mxu0
      %v460 = vadd.f32 0.0, %v459
      %v461 = vpop.f32.mrb[0].mxu0
      %462 = vmatprep.mubr.f32.mxu0 0.0
      %463 = vmatmul.mubr.f32.gmra.mrb[0].mxu0 %v272
      %v464 = vpop.f32.mrb[0].mxu0
      %v465 = vadd.f32 0.0, %v464
      %v466 = vpop.f32.mrb[0].mxu0
      %467 = vdwg.mxu0
      %s468 = scalar_lea.vmem %s165, 200
      %v469 = vld [vmem:[%s468] sm:$0xff]
      %v470 = vld [vmem:[%s468 + $0x8] sm:$0xff]
      %v471 = vld [vmem:[%s468 + $0x10] sm:$0xff]
      %v472 = vld [vmem:[%s468 + $0x18] sm:$0xff]
      %v473 = vld [vmem:[%s468 + $0x20] sm:$0xff]
      %v474 = vld [vmem:[%s468 + $0x28] sm:$0xff]
      %v475 = vld [vmem:[%s468 + $0x30] sm:$0xff]
      %v476 = vld [vmem:[%s468 + $0x38] sm:$0xff]
      %v477 = vld [vmem:[%s468 + $0x40] sm:$0xff]
      %v478 = vld [vmem:[%s468 + $0x48] sm:$0xff]
      %v479 = vld [vmem:[%s468 + $0x50] sm:$0xff]
      %v480 = vld [vmem:[%s468 + $0x58] sm:$0xff]
      %v481 = vld [vmem:[%s468 + $0x60] sm:$0xff]
      %v482 = vld [vmem:[%s468 + $0x68] sm:$0xff]
      %v483 = vld [vmem:[%s468 + $0x70] sm:$0xff]
      %v484 = vld [vmem:[%s468 + $0x78] sm:$0xff]
      %v485 = vld [vmem:[%s468 + $0x80] sm:$0xff]
      %v486 = vld [vmem:[%s468 + $0x88] sm:$0xff]
      %v487 = vld [vmem:[%s468 + $0x90] sm:$0xff]
      %v488 = vld [vmem:[%s468 + $0x98] sm:$0xff]
      %v489 = vld [vmem:[%s468 + $0xa0] sm:$0xff]
      %v490 = vld [vmem:[%s468 + $0xa8] sm:$0xff]
      %v491 = vld [vmem:[%s468 + $0xb0] sm:$0xff]
      %v492 = vld [vmem:[%s468 + $0xb8] sm:$0xff]
      %v493 = vld [vmem:[%s468 + $0xc0] sm:$0xf]
      %v495 = vsel %vm198, %v469, 0
      %v498 = vsel %vm198, %v470, 0
      %v501 = vsel %vm198, %v471, 0
      %v504 = vsel %vm198, %v472, 0
      %v507 = vsel %vm198, %v473, 0
      %v510 = vsel %vm198, %v474, 0
      %v513 = vsel %vm198, %v475, 0
      %v516 = vsel %vm198, %v476, 0
      %v519 = vsel %vm198, %v477, 0
      %v522 = vsel %vm198, %v478, 0
      %v525 = vsel %vm198, %v479, 0
      %v528 = vsel %vm198, %v480, 0
      %v531 = vsel %vm198, %v481, 0
      %v534 = vsel %vm198, %v482, 0
      %v537 = vsel %vm198, %v483, 0
      %v540 = vsel %vm198, %v484, 0
      %v543 = vsel %vm198, %v485, 0
      %v546 = vsel %vm198, %v486, 0
      %v549 = vsel %vm198, %v487, 0
      %v552 = vsel %vm198, %v488, 0
      %v555 = vsel %vm198, %v489, 0
      %v558 = vsel %vm198, %v490, 0
      %v561 = vsel %vm198, %v491, 0
      %v564 = vsel %vm198, %v492, 0
      %v567 = vsel %vm198, %v493, 0
      %569 = vmatprep.subr.mxu0 0.0
      %570 = vmatpush1.msra.mxu0 %v196
      %571 = vmatprep.subr.mxu0 0.0
      %572 = vmatpush1.msra.mxu0 %v276
      %573 = vmatprep.subr.mxu0 0.0
      %574 = vmatpush1.msra.mxu0 0.0
      %575 = vmatprep.subr.mxu0 0.0
      %576 = vmatpush1.msra.mxu0 0.0
      %577 = vmatprep.subr.mxu0 0.0
      %578 = vmatpush1.msra.mxu0 0.0
      %579 = vmatprep.subr.mxu0 0.0
      %580 = vmatpush1.msra.mxu0 0.0
      %581 = vmatprep.subr.mxu0 0.0
      %582 = vmatpush1.msra.mxu0 0.0
      %583 = vmatprep.subr.mxu0 0.0
      %584 = vmatpush1.msra.mxu0 0.0
      %585 = vmatprep.subr.mxu0 0.0
      %586 = vmatpush1.msra.mxu0 0.0
      %587 = vmatprep.subr.mxu0 0.0
      %588 = vmatpush1.msra.mxu0 0.0
      %589 = vmatprep.subr.mxu0 0.0
      %590 = vmatpush1.msra.mxu0 0.0
      %591 = vmatprep.subr.mxu0 0.0
      %592 = vmatpush1.msra.mxu0 0.0
      %593 = vmatprep.subr.mxu0 0.0
      %594 = vmatpush1.msra.mxu0 0.0
      %595 = vmatprep.subr.mxu0 0.0
      %596 = vmatpush1.msra.mxu0 0.0
      %597 = vmatprep.subr.mxu0 0.0
      %598 = vmatpush1.msra.mxu0 0.0
      %599 = vmatprep.subr.mxu0 0.0
      %600 = vmatpush1.msra.mxu0 0.0
      %601 = vmatprep.subr.mxu0 0.0
      %602 = vmatpush1.msra.mxu0 0.0
      %603 = vmatprep.subr.mxu0 0.0
      %604 = vmatpush1.msra.mxu0 0.0
      %605 = vmatprep.subr.mxu0 0.0
      %606 = vmatpush1.msra.mxu0 0.0
      %607 = vmatprep.subr.mxu0 0.0
      %608 = vmatpush1.msra.mxu0 0.0
      %609 = vmatprep.subr.mxu0 0.0
      %610 = vmatpush1.msra.mxu0 0.0
      %611 = vmatprep.subr.mxu0 0.0
      %612 = vmatpush1.msra.mxu0 0.0
      %613 = vmatprep.subr.mxu0 0.0
      %614 = vmatpush1.msra.mxu0 0.0
      %615 = vmatprep.subr.mxu0 0.0
      %616 = vmatpush1.msra.mxu0 0.0
      %617 = vmatprep.subr.mxu0 0.0
      %618 = vmatpush1.msra.mxu0 0.0
      %619 = vmatprep.subr.mxu0 0.0
      %620 = vmatpush1.msra.mxu0 0.0
      %621 = vmatprep.subr.mxu0 0.0
      %622 = vmatpush1.msra.mxu0 0.0
      %623 = vmatprep.subr.mxu0 0.0
      %624 = vmatpush1.msra.mxu0 0.0
      %625 = vmatprep.subr.mxu0 0.0
      %626 = vmatpush1.msra.mxu0 0.0
      %627 = vmatprep.subr.mxu0 0.0
      %628 = vmatpush1.msra.mxu0 0.0
      %629 = vmatprep.subr.mxu0 0.0
      %630 = vmatpush1.msra.mxu0 0.0
      %631 = vmatprep.subr.mxu0 0.0
      %632 = vmatpush1.msra.mxu0 0.0
      %633 = vmatprep.mubr.f32.mxu0 0.0
      %634 = vmatmul.mubr.f32.gmra.mrb[0].mxu0 %v495
      %v635 = vpop.f32.mrb[0].mxu0
      %v636 = vadd.f32 0.0, %v635
      %v637 = vpop.f32.mrb[0].mxu0
      %638 = vmatprep.mubr.f32.mxu0 0.0
      %639 = vmatmul.mubr.f32.gmra.mrb[0].mxu0 %v498
      %v640 = vpop.f32.mrb[0].mxu0
      %v641 = vadd.f32 0.0, %v640
      %v642 = vpop.f32.mrb[0].mxu0
      %643 = vmatprep.mubr.f32.mxu0 0.0
      %644 = vmatmul.mubr.f32.gmra.mrb[0].mxu0 %v501
      %v645 = vpop.f32.mrb[0].mxu0
      %v646 = vadd.f32 0.0, %v645
      %v647 = vpop.f32.mrb[0].mxu0
      %648 = vmatprep.mubr.f32.mxu0 0.0
      %649 = vmatmul.mubr.f32.gmra.mrb[0].mxu0 %v504
      %v650 = vpop.f32.mrb[0].mxu0
      %v651 = vadd.f32 0.0, %v650
      %v652 = vpop.f32.mrb[0].mxu0
      %653 = vmatprep.mubr.f32.mxu0 0.0
      %654 = vmatmul.mubr.f32.gmra.mrb[0].mxu0 %v507
      %v655 = vpop.f32.mrb[0].mxu0
      %v656 = vadd.f32 0.0, %v655
      %v657 = vpop.f32.mrb[0].mxu0
      %658 = vmatprep.mubr.f32.mxu0 0.0
      %659 = vmatmul.mubr.f32.gmra.mrb[0].mxu0 %v510
      %v660 = vpop.f32.mrb[0].mxu0
      %v661 = vadd.f32 0.0, %v660
      %v662 = vpop.f32.mrb[0].mxu0
      %663 = vmatprep.mubr.f32.mxu0 0.0
      %664 = vmatmul.mubr.f32.gmra.mrb[0].mxu0 %v513
      %v665 = vpop.f32.mrb[0].mxu0
      %v666 = vadd.f32 0.0, %v665
      %v667 = vpop.f32.mrb[0].mxu0
      %668 = vmatprep.mubr.f32.mxu0 0.0
      %669 = vmatmul.mubr.f32.gmra.mrb[0].mxu0 %v516
      %v670 = vpop.f32.mrb[0].mxu0
      %v671 = vadd.f32 0.0, %v670
      %v672 = vpop.f32.mrb[0].mxu0
      %673 = vmatprep.mubr.f32.mxu0 0.0
      %674 = vmatmul.mubr.f32.gmra.mrb[0].mxu0 %v519
      %v675 = vpop.f32.mrb[0].mxu0
      %v676 = vadd.f32 0.0, %v675
      %v677 = vpop.f32.mrb[0].mxu0
      %678 = vmatprep.mubr.f32.mxu0 0.0
      %679 = vmatmul.mubr.f32.gmra.mrb[0].mxu0 %v522
      %v680 = vpop.f32.mrb[0].mxu0
      %v681 = vadd.f32 0.0, %v680
      %v682 = vpop.f32.mrb[0].mxu0
      %683 = vmatprep.mubr.f32.mxu0 0.0
      %684 = vmatmul.mubr.f32.gmra.mrb[0].mxu0 %v525
      %v685 = vpop.f32.mrb[0].mxu0
      %v686 = vadd.f32 0.0, %v685
      %v687 = vpop.f32.mrb[0].mxu0
      %688 = vmatprep.mubr.f32.mxu0 0.0
      %689 = vmatmul.mubr.f32.gmra.mrb[0].mxu0 %v528
      %v690 = vpop.f32.mrb[0].mxu0
      %v691 = vadd.f32 0.0, %v690
      %v692 = vpop.f32.mrb[0].mxu0
      %693 = vmatprep.mubr.f32.mxu0 0.0
      %694 = vmatmul.mubr.f32.gmra.mrb[0].mxu0 %v531
      %v695 = vpop.f32.mrb[0].mxu0
      %v696 = vadd.f32 0.0, %v695
      %v697 = vpop.f32.mrb[0].mxu0
      %698 = vmatprep.mubr.f32.mxu0 0.0
      %699 = vmatmul.mubr.f32.gmra.mrb[0].mxu0 %v534
      %v700 = vpop.f32.mrb[0].mxu0
      %v701 = vadd.f32 0.0, %v700
      %v702 = vpop.f32.mrb[0].mxu0
      %703 = vmatprep.mubr.f32.mxu0 0.0
      %704 = vmatmul.mubr.f32.gmra.mrb[0].mxu0 %v537
      %v705 = vpop.f32.mrb[0].mxu0
      %v706 = vadd.f32 0.0, %v705
      %v707 = vpop.f32.mrb[0].mxu0
      %708 = vmatprep.mubr.f32.mxu0 0.0
      %709 = vmatmul.mubr.f32.gmra.mrb[0].mxu0 %v540
      %v710 = vpop.f32.mrb[0].mxu0
      %v711 = vadd.f32 0.0, %v710
      %v712 = vpop.f32.mrb[0].mxu0
      %713 = vmatprep.mubr.f32.mxu0 0.0
      %714 = vmatmul.mubr.f32.gmra.mrb[0].mxu0 %v543
      %v715 = vpop.f32.mrb[0].mxu0
      %v716 = vadd.f32 0.0, %v715
      %v717 = vpop.f32.mrb[0].mxu0
      %718 = vmatprep.mubr.f32.mxu0 0.0
      %719 = vmatmul.mubr.f32.gmra.mrb[0].mxu0 %v546
      %v720 = vpop.f32.mrb[0].mxu0
      %v721 = vadd.f32 0.0, %v720
      %v722 = vpop.f32.mrb[0].mxu0
      %723 = vmatprep.mubr.f32.mxu0 0.0
      %724 = vmatmul.mubr.f32.gmra.mrb[0].mxu0 %v549
      %v725 = vpop.f32.mrb[0].mxu0
      %v726 = vadd.f32 0.0, %v725
      %v727 = vpop.f32.mrb[0].mxu0
      %728 = vmatprep.mubr.f32.mxu0 0.0
      %729 = vmatmul.mubr.f32.gmra.mrb[0].mxu0 %v552
      %v730 = vpop.f32.mrb[0].mxu0
      %v731 = vadd.f32 0.0, %v730
      %v732 = vpop.f32.mrb[0].mxu0
      %733 = vmatprep.mubr.f32.mxu0 0.0
      %734 = vmatmul.mubr.f32.gmra.mrb[0].mxu0 %v555
      %v735 = vpop.f32.mrb[0].mxu0
      %v736 = vadd.f32 0.0, %v735
      %v737 = vpop.f32.mrb[0].mxu0
      %738 = vmatprep.mubr.f32.mxu0 0.0
      %739 = vmatmul.mubr.f32.gmra.mrb[0].mxu0 %v558
      %v740 = vpop.f32.mrb[0].mxu0
      %v741 = vadd.f32 0.0, %v740
      %v742 = vpop.f32.mrb[0].mxu0
      %743 = vmatprep.mubr.f32.mxu0 0.0
      %744 = vmatmul.mubr.f32.gmra.mrb[0].mxu0 %v561
      %v745 = vpop.f32.mrb[0].mxu0
      %v746 = vadd.f32 0.0, %v745
      %v747 = vpop.f32.mrb[0].mxu0
      %748 = vmatprep.mubr.f32.mxu0 0.0
      %749 = vmatmul.mubr.f32.gmra.mrb[0].mxu0 %v564
      %v750 = vpop.f32.mrb[0].mxu0
      %v751 = vadd.f32 0.0, %v750
      %v752 = vpop.f32.mrb[0].mxu0
      %753 = vmatprep.mubr.f32.mxu0 0.0
      %754 = vmatmul.mubr.f32.gmra.mrb[0].mxu0 %v567
      %v755 = vpop.f32.mrb[0].mxu0
      %v756 = vadd.f32 0.0, %v755
      %v757 = vpop.f32.mrb[0].mxu0
      %758 = vdwg.mxu0
      %v759 = vmax.f32 %v345, %v636
      %v760 = vmax.f32 %v350, %v641
      %v761 = vmax.f32 %v355, %v646
      %v762 = vmax.f32 %v360, %v651
      %v763 = vmax.f32 %v365, %v656
      %v764 = vmax.f32 %v370, %v661
      %v765 = vmax.f32 %v375, %v666
      %v766 = vmax.f32 %v380, %v671
      %v767 = vmax.f32 %v385, %v676
      %v768 = vmax.f32 %v390, %v681
      %v769 = vmax.f32 %v395, %v686
      %v770 = vmax.f32 %v400, %v691
      %v771 = vmax.f32 %v405, %v696
      %v772 = vmax.f32 %v410, %v701
      %v773 = vmax.f32 %v415, %v706
      %v774 = vmax.f32 %v420, %v711
      %v775 = vmax.f32 %v425, %v716
      %v776 = vmax.f32 %v430, %v721
      %v777 = vmax.f32 %v435, %v726
      %v778 = vmax.f32 %v440, %v731
      %v779 = vmax.f32 %v445, %v736
      %v780 = vmax.f32 %v450, %v741
      %v781 = vmax.f32 %v455, %v746
      %v782 = vmax.f32 %v460, %v751
      %v783 = vmax.f32 %v465, %v756
      %s784 = scalar_lea.vmem %s165, 400
      %v785 = vld [vmem:[%s784] sm:$0xff]
      %v786 = vld [vmem:[%s784 + $0x8] sm:$0xff]
      %v787 = vld [vmem:[%s784 + $0x10] sm:$0xff]
      %v788 = vld [vmem:[%s784 + $0x18] sm:$0xff]
      %v789 = vld [vmem:[%s784 + $0x20] sm:$0xff]
      %v790 = vld [vmem:[%s784 + $0x28] sm:$0xff]
      %v791 = vld [vmem:[%s784 + $0x30] sm:$0xff]
      %v792 = vld [vmem:[%s784 + $0x38] sm:$0xff]
      %v793 = vld [vmem:[%s784 + $0x40] sm:$0xff]
      %v794 = vld [vmem:[%s784 + $0x48] sm:$0xff]
      %v795 = vld [vmem:[%s784 + $0x50] sm:$0xff]
      %v796 = vld [vmem:[%s784 + $0x58] sm:$0xff]
      %v797 = vld [vmem:[%s784 + $0x60] sm:$0xff]
      %v798 = vld [vmem:[%s784 + $0x68] sm:$0xff]
      %v799 = vld [vmem:[%s784 + $0x70] sm:$0xff]
      %v800 = vld [vmem:[%s784 + $0x78] sm:$0xff]
      %v801 = vld [vmem:[%s784 + $0x80] sm:$0xff]
      %v802 = vld [vmem:[%s784 + $0x88] sm:$0xff]
      %v803 = vld [vmem:[%s784 + $0x90] sm:$0xff]
      %v804 = vld [vmem:[%s784 + $0x98] sm:$0xff]
      %v805 = vld [vmem:[%s784 + $0xa0] sm:$0xff]
      %v806 = vld [vmem:[%s784 + $0xa8] sm:$0xff]
      %v807 = vld [vmem:[%s784 + $0xb0] sm:$0xff]
      %v808 = vld [vmem:[%s784 + $0xb8] sm:$0xff]
      %v809 = vld [vmem:[%s784 + $0xc0] sm:$0xf]
      %v811 = vsel %vm198, %v785, 0
      %v814 = vsel %vm198, %v786, 0
      %v817 = vsel %vm198, %v787, 0
      %v820 = vsel %vm198, %v788, 0
      %v823 = vsel %vm198, %v789, 0
      %v826 = vsel %vm198, %v790, 0
      %v829 = vsel %vm198, %v791, 0
      %v832 = vsel %vm198, %v792, 0
      %v835 = vsel %vm198, %v793, 0
      %v838 = vsel %vm198, %v794, 0
      %v841 = vsel %vm198, %v795, 0
      %v844 = vsel %vm198, %v796, 0
      %v847 = vsel %vm198, %v797, 0
      %v850 = vsel %vm198, %v798, 0
      %v853 = vsel %vm198, %v799, 0
      %v856 = vsel %vm198, %v800, 0
      %v859 = vsel %vm198, %v801, 0
      %v862 = vsel %vm198, %v802, 0
      %v865 = vsel %vm198, %v803, 0
      %v868 = vsel %vm198, %v804, 0
      %v871 = vsel %vm198, %v805, 0
      %v874 = vsel %vm198, %v806, 0
      %v877 = vsel %vm198, %v807, 0
      %v880 = vsel %vm198, %v808, 0
      %v883 = vsel %vm198, %v809, 0
      %885 = vmatprep.subr.mxu0 0.0
      %886 = vmatpush1.msra.mxu0 %v196
      %887 = vmatprep.subr.mxu0 0.0
      %888 = vmatpush1.msra.mxu0 %v276
      %889 = vmatprep.subr.mxu0 0.0
      %890 = vmatpush1.msra.mxu0 0.0
      %891 = vmatprep.subr.mxu0 0.0
      %892 = vmatpush1.msra.mxu0 0.0
      %893 = vmatprep.subr.mxu0 0.0
      %894 = vmatpush1.msra.mxu0 0.0
      %895 = vmatprep.subr.mxu0 0.0
      %896 = vmatpush1.msra.mxu0 0.0
      %897 = vmatprep.subr.mxu0 0.0
      %898 = vmatpush1.msra.mxu0 0.0
      %899 = vmatprep.subr.mxu0 0.0
      %900 = vmatpush1.msra.mxu0 0.0
      %901 = vmatprep.subr.mxu0 0.0
      %902 = vmatpush1.msra.mxu0 0.0
      %903 = vmatprep.subr.mxu0 0.0
      %904 = vmatpush1.msra.mxu0 0.0
      %905 = vmatprep.subr.mxu0 0.0
      %906 = vmatpush1.msra.mxu0 0.0
      %907 = vmatprep.subr.mxu0 0.0
      %908 = vmatpush1.msra.mxu0 0.0
      %909 = vmatprep.subr.mxu0 0.0
      %910 = vmatpush1.msra.mxu0 0.0
      %911 = vmatprep.subr.mxu0 0.0
      %912 = vmatpush1.msra.mxu0 0.0
      %913 = vmatprep.subr.mxu0 0.0
      %914 = vmatpush1.msra.mxu0 0.0
      %915 = vmatprep.subr.mxu0 0.0
      %916 = vmatpush1.msra.mxu0 0.0
      %917 = vmatprep.subr.mxu0 0.0
      %918 = vmatpush1.msra.mxu0 0.0
      %919 = vmatprep.subr.mxu0 0.0
      %920 = vmatpush1.msra.mxu0 0.0
      %921 = vmatprep.subr.mxu0 0.0
      %922 = vmatpush1.msra.mxu0 0.0
      %923 = vmatprep.subr.mxu0 0.0
      %924 = vmatpush1.msra.mxu0 0.0
      %925 = vmatprep.subr.mxu0 0.0
      %926 = vmatpush1.msra.mxu0 0.0
      %927 = vmatprep.subr.mxu0 0.0
      %928 = vmatpush1.msra.mxu0 0.0
      %929 = vmatprep.subr.mxu0 0.0
      %930 = vmatpush1.msra.mxu0 0.0
      %931 = vmatprep.subr.mxu0 0.0
      %932 = vmatpush1.msra.mxu0 0.0
      %933 = vmatprep.subr.mxu0 0.0
      %934 = vmatpush1.msra.mxu0 0.0
      %935 = vmatprep.subr.mxu0 0.0
      %936 = vmatpush1.msra.mxu0 0.0
      %937 = vmatprep.subr.mxu0 0.0
      %938 = vmatpush1.msra.mxu0 0.0
      %939 = vmatprep.subr.mxu0 0.0
      %940 = vmatpush1.msra.mxu0 0.0
      %941 = vmatprep.subr.mxu0 0.0
      %942 = vmatpush1.msra.mxu0 0.0
      %943 = vmatprep.subr.mxu0 0.0
      %944 = vmatpush1.msra.mxu0 0.0
      %945 = vmatprep.subr.mxu0 0.0
      %946 = vmatpush1.msra.mxu0 0.0
      %947 = vmatprep.subr.mxu0 0.0
      %948 = vmatpush1.msra.mxu0 0.0
      %949 = vmatprep.mubr.f32.mxu0 0.0
      %950 = vmatmul.mubr.f32.gmra.mrb[0].mxu0 %v811
      %v951 = vpop.f32.mrb[0].mxu0
      %v952 = vadd.f32 0.0, %v951
      %v953 = vpop.f32.mrb[0].mxu0
      %954 = vmatprep.mubr.f32.mxu0 0.0
      %955 = vmatmul.mubr.f32.gmra.mrb[0].mxu0 %v814
      %v956 = vpop.f32.mrb[0].mxu0
      %v957 = vadd.f32 0.0, %v956
      %v958 = vpop.f32.mrb[0].mxu0
      %959 = vmatprep.mubr.f32.mxu0 0.0
      %960 = vmatmul.mubr.f32.gmra.mrb[0].mxu0 %v817
      %v961 = vpop.f32.mrb[0].mxu0
      %v962 = vadd.f32 0.0, %v961
      %v963 = vpop.f32.mrb[0].mxu0
      %964 = vmatprep.mubr.f32.mxu0 0.0
      %965 = vmatmul.mubr.f32.gmra.mrb[0].mxu0 %v820
      %v966 = vpop.f32.mrb[0].mxu0
      %v967 = vadd.f32 0.0, %v966
      %v968 = vpop.f32.mrb[0].mxu0
      %969 = vmatprep.mubr.f32.mxu0 0.0
      %970 = vmatmul.mubr.f32.gmra.mrb[0].mxu0 %v823
      %v971 = vpop.f32.mrb[0].mxu0
      %v972 = vadd.f32 0.0, %v971
      %v973 = vpop.f32.mrb[0].mxu0
      %974 = vmatprep.mubr.f32.mxu0 0.0
      %975 = vmatmul.mubr.f32.gmra.mrb[0].mxu0 %v826
      %v976 = vpop.f32.mrb[0].mxu0
      %v977 = vadd.f32 0.0, %v976
      %v978 = vpop.f32.mrb[0].mxu0
      %979 = vmatprep.mubr.f32.mxu0 0.0
      %980 = vmatmul.mubr.f32.gmra.mrb[0].mxu0 %v829
      %v981 = vpop.f32.mrb[0].mxu0
      %v982 = vadd.f32 0.0, %v981
      %v983 = vpop.f32.mrb[0].mxu0
      %984 = vmatprep.mubr.f32.mxu0 0.0
      %985 = vmatmul.mubr.f32.gmra.mrb[0].mxu0 %v832
      %v986 = vpop.f32.mrb[0].mxu0
      %v987 = vadd.f32 0.0, %v986
      %v988 = vpop.f32.mrb[0].mxu0
      %989 = vmatprep.mubr.f32.mxu0 0.0
      %990 = vmatmul.mubr.f32.gmra.mrb[0].mxu0 %v835
      %v991 = vpop.f32.mrb[0].mxu0
      %v992 = vadd.f32 0.0, %v991
      %v993 = vpop.f32.mrb[0].mxu0
      %994 = vmatprep.mubr.f32.mxu0 0.0
      %995 = vmatmul.mubr.f32.gmra.mrb[0].mxu0 %v838
      %v996 = vpop.f32.mrb[0].mxu0
      %v997 = vadd.f32 0.0, %v996
      %v998 = vpop.f32.mrb[0].mxu0
      %999 = vmatprep.mubr.f32.mxu0 0.0
      %1000 = vmatmul.mubr.f32.gmra.mrb[0].mxu0 %v841
      %v1001 = vpop.f32.mrb[0].mxu0
      %v1002 = vadd.f32 0.0, %v1001
      %v1003 = vpop.f32.mrb[0].mxu0
      %1004 = vmatprep.mubr.f32.mxu0 0.0
      %1005 = vmatmul.mubr.f32.gmra.mrb[0].mxu0 %v844
      %v1006 = vpop.f32.mrb[0].mxu0
      %v1007 = vadd.f32 0.0, %v1006
      %v1008 = vpop.f32.mrb[0].mxu0
      %1009 = vmatprep.mubr.f32.mxu0 0.0
      %1010 = vmatmul.mubr.f32.gmra.mrb[0].mxu0 %v847
      %v1011 = vpop.f32.mrb[0].mxu0
      %v1012 = vadd.f32 0.0, %v1011
      %v1013 = vpop.f32.mrb[0].mxu0
      %1014 = vmatprep.mubr.f32.mxu0 0.0
      %1015 = vmatmul.mubr.f32.gmra.mrb[0].mxu0 %v850
      %v1016 = vpop.f32.mrb[0].mxu0
      %v1017 = vadd.f32 0.0, %v1016
      %v1018 = vpop.f32.mrb[0].mxu0
      %1019 = vmatprep.mubr.f32.mxu0 0.0
      %1020 = vmatmul.mubr.f32.gmra.mrb[0].mxu0 %v853
      %v1021 = vpop.f32.mrb[0].mxu0
      %v1022 = vadd.f32 0.0, %v1021
      %v1023 = vpop.f32.mrb[0].mxu0
      %1024 = vmatprep.mubr.f32.mxu0 0.0
      %1025 = vmatmul.mubr.f32.gmra.mrb[0].mxu0 %v856
      %v1026 = vpop.f32.mrb[0].mxu0
      %v1027 = vadd.f32 0.0, %v1026
      %v1028 = vpop.f32.mrb[0].mxu0
      %1029 = vmatprep.mubr.f32.mxu0 0.0
      %1030 = vmatmul.mubr.f32.gmra.mrb[0].mxu0 %v859
      %v1031 = vpop.f32.mrb[0].mxu0
      %v1032 = vadd.f32 0.0, %v1031
      %v1033 = vpop.f32.mrb[0].mxu0
      %1034 = vmatprep.mubr.f32.mxu0 0.0
      %1035 = vmatmul.mubr.f32.gmra.mrb[0].mxu0 %v862
      %v1036 = vpop.f32.mrb[0].mxu0
      %v1037 = vadd.f32 0.0, %v1036
      %v1038 = vpop.f32.mrb[0].mxu0
      %1039 = vmatprep.mubr.f32.mxu0 0.0
      %1040 = vmatmul.mubr.f32.gmra.mrb[0].mxu0 %v865
      %v1041 = vpop.f32.mrb[0].mxu0
      %v1042 = vadd.f32 0.0, %v1041
      %v1043 = vpop.f32.mrb[0].mxu0
      %1044 = vmatprep.mubr.f32.mxu0 0.0
      %1045 = vmatmul.mubr.f32.gmra.mrb[0].mxu0 %v868
      %v1046 = vpop.f32.mrb[0].mxu0
      %v1047 = vadd.f32 0.0, %v1046
      %v1048 = vpop.f32.mrb[0].mxu0
      %1049 = vmatprep.mubr.f32.mxu0 0.0
      %1050 = vmatmul.mubr.f32.gmra.mrb[0].mxu0 %v871
      %v1051 = vpop.f32.mrb[0].mxu0
      %v1052 = vadd.f32 0.0, %v1051
      %v1053 = vpop.f32.mrb[0].mxu0
      %1054 = vmatprep.mubr.f32.mxu0 0.0
      %1055 = vmatmul.mubr.f32.gmra.mrb[0].mxu0 %v874
      %v1056 = vpop.f32.mrb[0].mxu0
      %v1057 = vadd.f32 0.0, %v1056
      %v1058 = vpop.f32.mrb[0].mxu0
      %1059 = vmatprep.mubr.f32.mxu0 0.0
      %1060 = vmatmul.mubr.f32.gmra.mrb[0].mxu0 %v877
      %v1061 = vpop.f32.mrb[0].mxu0
      %v1062 = vadd.f32 0.0, %v1061
      %v1063 = vpop.f32.mrb[0].mxu0
      %1064 = vmatprep.mubr.f32.mxu0 0.0
      %1065 = vmatmul.mubr.f32.gmra.mrb[0].mxu0 %v880
      %v1066 = vpop.f32.mrb[0].mxu0
      %v1067 = vadd.f32 0.0, %v1066
      %v1068 = vpop.f32.mrb[0].mxu0
      %1069 = vmatprep.mubr.f32.mxu0 0.0
      %1070 = vmatmul.mubr.f32.gmra.mrb[0].mxu0 %v883
      %v1071 = vpop.f32.mrb[0].mxu0
      %v1072 = vadd.f32 0.0, %v1071
      %v1073 = vpop.f32.mrb[0].mxu0
      %1074 = vdwg.mxu0
      %v1075 = vmax.f32 %v759, %v952
      %v1076 = vmax.f32 %v760, %v957
      %v1077 = vmax.f32 %v761, %v962
      %v1078 = vmax.f32 %v762, %v967
      %v1079 = vmax.f32 %v763, %v972
      %v1080 = vmax.f32 %v764, %v977
      %v1081 = vmax.f32 %v765, %v982
      %v1082 = vmax.f32 %v766, %v987
      %v1083 = vmax.f32 %v767, %v992
      %v1084 = vmax.f32 %v768, %v997
      %v1085 = vmax.f32 %v769, %v1002
      %v1086 = vmax.f32 %v770, %v1007
      %v1087 = vmax.f32 %v771, %v1012
      %v1088 = vmax.f32 %v772, %v1017
      %v1089 = vmax.f32 %v773, %v1022
      %v1090 = vmax.f32 %v774, %v1027
      %v1091 = vmax.f32 %v775, %v1032
      %v1092 = vmax.f32 %v776, %v1037
      %v1093 = vmax.f32 %v777, %v1042
      %v1094 = vmax.f32 %v778, %v1047
      %v1095 = vmax.f32 %v779, %v1052
      %v1096 = vmax.f32 %v780, %v1057
      %v1097 = vmax.f32 %v781, %v1062
      %v1098 = vmax.f32 %v782, %v1067
      %v1099 = vmax.f32 %v783, %v1072
      %s1100 = scalar_lea.vmem %s165, 600
      %v1101 = vld [vmem:[%s1100] sm:$0xff]
      %v1102 = vld [vmem:[%s1100 + $0x8] sm:$0xff]
      %v1103 = vld [vmem:[%s1100 + $0x10] sm:$0xff]
      %v1104 = vld [vmem:[%s1100 + $0x18] sm:$0xff]
      %v1105 = vld [vmem:[%s1100 + $0x20] sm:$0xff]
      %v1106 = vld [vmem:[%s1100 + $0x28] sm:$0xff]
      %v1107 = vld [vmem:[%s1100 + $0x30] sm:$0xff]
      %v1108 = vld [vmem:[%s1100 + $0x38] sm:$0xff]
      %v1109 = vld [vmem:[%s1100 + $0x40] sm:$0xff]
      %v1110 = vld [vmem:[%s1100 + $0x48] sm:$0xff]
      %v1111 = vld [vmem:[%s1100 + $0x50] sm:$0xff]
      %v1112 = vld [vmem:[%s1100 + $0x58] sm:$0xff]
      %v1113 = vld [vmem:[%s1100 + $0x60] sm:$0xff]
      %v1114 = vld [vmem:[%s1100 + $0x68] sm:$0xff]
      %v1115 = vld [vmem:[%s1100 + $0x70] sm:$0xff]
      %v1116 = vld [vmem:[%s1100 + $0x78] sm:$0xff]
      %v1117 = vld [vmem:[%s1100 + $0x80] sm:$0xff]
      %v1118 = vld [vmem:[%s1100 + $0x88] sm:$0xff]
      %v1119 = vld [vmem:[%s1100 + $0x90] sm:$0xff]
      %v1120 = vld [vmem:[%s1100 + $0x98] sm:$0xff]
      %v1121 = vld [vmem:[%s1100 + $0xa0] sm:$0xff]
      %v1122 = vld [vmem:[%s1100 + $0xa8] sm:$0xff]
      %v1123 = vld [vmem:[%s1100 + $0xb0] sm:$0xff]
      %v1124 = vld [vmem:[%s1100 + $0xb8] sm:$0xff]
      %v1125 = vld [vmem:[%s1100 + $0xc0] sm:$0xf]
      %v1127 = vsel %vm198, %v1101, 0
      %v1130 = vsel %vm198, %v1102, 0
      %v1133 = vsel %vm198, %v1103, 0
      %v1136 = vsel %vm198, %v1104, 0
      %v1139 = vsel %vm198, %v1105, 0
      %v1142 = vsel %vm198, %v1106, 0
      %v1145 = vsel %vm198, %v1107, 0
      %v1148 = vsel %vm198, %v1108, 0
      %v1151 = vsel %vm198, %v1109, 0
      %v1154 = vsel %vm198, %v1110, 0
      %v1157 = vsel %vm198, %v1111, 0
      %v1160 = vsel %vm198, %v1112, 0
      %v1163 = vsel %vm198, %v1113, 0
      %v1166 = vsel %vm198, %v1114, 0
      %v1169 = vsel %vm198, %v1115, 0
      %v1172 = vsel %vm198, %v1116, 0
      %v1175 = vsel %vm198, %v1117, 0
      %v1178 = vsel %vm198, %v1118, 0
      %v1181 = vsel %vm198, %v1119, 0
      %v1184 = vsel %vm198, %v1120, 0
      %v1187 = vsel %vm198, %v1121, 0
      %v1190 = vsel %vm198, %v1122, 0
      %v1193 = vsel %vm198, %v1123, 0
      %v1196 = vsel %vm198, %v1124, 0
      %v1199 = vsel %vm198, %v1125, 0
      %1201 = vmatprep.subr.mxu0 0.0
      %1202 = vmatpush1.msra.mxu0 %v196
      %1203 = vmatprep.subr.mxu0 0.0
      %1204 = vmatpush1.msra.mxu0 %v276
      %1205 = vmatprep.subr.mxu0 0.0
      %1206 = vmatpush1.msra.mxu0 0.0
      %1207 = vmatprep.subr.mxu0 0.0
      %1208 = vmatpush1.msra.mxu0 0.0
      %1209 = vmatprep.subr.mxu0 0.0
      %1210 = vmatpush1.msra.mxu0 0.0
      %1211 = vmatprep.subr.mxu0 0.0
      %1212 = vmatpush1.msra.mxu0 0.0
      %1213 = vmatprep.subr.mxu0 0.0
      %1214 = vmatpush1.msra.mxu0 0.0
      %1215 = vmatprep.subr.mxu0 0.0
      %1216 = vmatpush1.msra.mxu0 0.0
      %1217 = vmatprep.subr.mxu0 0.0
      %1218 = vmatpush1.msra.mxu0 0.0
      %1219 = vmatprep.subr.mxu0 0.0
      %1220 = vmatpush1.msra.mxu0 0.0
      %1221 = vmatprep.subr.mxu0 0.0
      %1222 = vmatpush1.msra.mxu0 0.0
      %1223 = vmatprep.subr.mxu0 0.0
      %1224 = vmatpush1.msra.mxu0 0.0
      %1225 = vmatprep.subr.mxu0 0.0
      %1226 = vmatpush1.msra.mxu0 0.0
      %1227 = vmatprep.subr.mxu0 0.0
      %1228 = vmatpush1.msra.mxu0 0.0
      %1229 = vmatprep.subr.mxu0 0.0
      %1230 = vmatpush1.msra.mxu0 0.0
      %1231 = vmatprep.subr.mxu0 0.0
      %1232 = vmatpush1.msra.mxu0 0.0
      %1233 = vmatprep.subr.mxu0 0.0
      %1234 = vmatpush1.msra.mxu0 0.0
      %1235 = vmatprep.subr.mxu0 0.0
      %1236 = vmatpush1.msra.mxu0 0.0
      %1237 = vmatprep.subr.mxu0 0.0
      %1238 = vmatpush1.msra.mxu0 0.0
      %1239 = vmatprep.subr.mxu0 0.0
      %1240 = vmatpush1.msra.mxu0 0.0
      %1241 = vmatprep.subr.mxu0 0.0
      %1242 = vmatpush1.msra.mxu0 0.0
      %1243 = vmatprep.subr.mxu0 0.0
      %1244 = vmatpush1.msra.mxu0 0.0
      %1245 = vmatprep.subr.mxu0 0.0
      %1246 = vmatpush1.msra.mxu0 0.0
      %1247 = vmatprep.subr.mxu0 0.0
      %1248 = vmatpush1.msra.mxu0 0.0
      %1249 = vmatprep.subr.mxu0 0.0
      %1250 = vmatpush1.msra.mxu0 0.0
      %1251 = vmatprep.subr.mxu0 0.0
      %1252 = vmatpush1.msra.mxu0 0.0
      %1253 = vmatprep.subr.mxu0 0.0
      %1254 = vmatpush1.msra.mxu0 0.0
      %1255 = vmatprep.subr.mxu0 0.0
      %1256 = vmatpush1.msra.mxu0 0.0
      %1257 = vmatprep.subr.mxu0 0.0
      %1258 = vmatpush1.msra.mxu0 0.0
      %1259 = vmatprep.subr.mxu0 0.0
      %1260 = vmatpush1.msra.mxu0 0.0
      %1261 = vmatprep.subr.mxu0 0.0
      %1262 = vmatpush1.msra.mxu0 0.0
      %1263 = vmatprep.subr.mxu0 0.0
      %1264 = vmatpush1.msra.mxu0 0.0
      %1265 = vmatprep.mubr.f32.mxu0 0.0
      %1266 = vmatmul.mubr.f32.gmra.mrb[0].mxu0 %v1127
      %v1267 = vpop.f32.mrb[0].mxu0
      %v1268 = vadd.f32 0.0, %v1267
      %v1269 = vpop.f32.mrb[0].mxu0
      %1270 = vmatprep.mubr.f32.mxu0 0.0
      %1271 = vmatmul.mubr.f32.gmra.mrb[0].mxu0 %v1130
      %v1272 = vpop.f32.mrb[0].mxu0
      %v1273 = vadd.f32 0.0, %v1272
      %v1274 = vpop.f32.mrb[0].mxu0
      %1275 = vmatprep.mubr.f32.mxu0 0.0
      %1276 = vmatmul.mubr.f32.gmra.mrb[0].mxu0 %v1133
      %v1277 = vpop.f32.mrb[0].mxu0
      %v1278 = vadd.f32 0.0, %v1277
      %v1279 = vpop.f32.mrb[0].mxu0
      %1280 = vmatprep.mubr.f32.mxu0 0.0
      %1281 = vmatmul.mubr.f32.gmra.mrb[0].mxu0 %v1136
      %v1282 = vpop.f32.mrb[0].mxu0
      %v1283 = vadd.f32 0.0, %v1282
      %v1284 = vpop.f32.mrb[0].mxu0
      %1285 = vmatprep.mubr.f32.mxu0 0.0
      %1286 = vmatmul.mubr.f32.gmra.mrb[0].mxu0 %v1139
      %v1287 = vpop.f32.mrb[0].mxu0
      %v1288 = vadd.f32 0.0, %v1287
      %v1289 = vpop.f32.mrb[0].mxu0
      %1290 = vmatprep.mubr.f32.mxu0 0.0
      %1291 = vmatmul.mubr.f32.gmra.mrb[0].mxu0 %v1142
      %v1292 = vpop.f32.mrb[0].mxu0
      %v1293 = vadd.f32 0.0, %v1292
      %v1294 = vpop.f32.mrb[0].mxu0
      %1295 = vmatprep.mubr.f32.mxu0 0.0
      %1296 = vmatmul.mubr.f32.gmra.mrb[0].mxu0 %v1145
      %v1297 = vpop.f32.mrb[0].mxu0
      %v1298 = vadd.f32 0.0, %v1297
      %v1299 = vpop.f32.mrb[0].mxu0
      %1300 = vmatprep.mubr.f32.mxu0 0.0
      %1301 = vmatmul.mubr.f32.gmra.mrb[0].mxu0 %v1148
      %v1302 = vpop.f32.mrb[0].mxu0
      %v1303 = vadd.f32 0.0, %v1302
      %v1304 = vpop.f32.mrb[0].mxu0
      %1305 = vmatprep.mubr.f32.mxu0 0.0
      %1306 = vmatmul.mubr.f32.gmra.mrb[0].mxu0 %v1151
      %v1307 = vpop.f32.mrb[0].mxu0
      %v1308 = vadd.f32 0.0, %v1307
      %v1309 = vpop.f32.mrb[0].mxu0
      %1310 = vmatprep.mubr.f32.mxu0 0.0
      %1311 = vmatmul.mubr.f32.gmra.mrb[0].mxu0 %v1154
      %v1312 = vpop.f32.mrb[0].mxu0
      %v1313 = vadd.f32 0.0, %v1312
      %v1314 = vpop.f32.mrb[0].mxu0
      %1315 = vmatprep.mubr.f32.mxu0 0.0
      %1316 = vmatmul.mubr.f32.gmra.mrb[0].mxu0 %v1157
      %v1317 = vpop.f32.mrb[0].mxu0
      %v1318 = vadd.f32 0.0, %v1317
      %v1319 = vpop.f32.mrb[0].mxu0
      %1320 = vmatprep.mubr.f32.mxu0 0.0
      %1321 = vmatmul.mubr.f32.gmra.mrb[0].mxu0 %v1160
      %v1322 = vpop.f32.mrb[0].mxu0
      %v1323 = vadd.f32 0.0, %v1322
      %v1324 = vpop.f32.mrb[0].mxu0
      %1325 = vmatprep.mubr.f32.mxu0 0.0
      %1326 = vmatmul.mubr.f32.gmra.mrb[0].mxu0 %v1163
      %v1327 = vpop.f32.mrb[0].mxu0
      %v1328 = vadd.f32 0.0, %v1327
      %v1329 = vpop.f32.mrb[0].mxu0
      %1330 = vmatprep.mubr.f32.mxu0 0.0
      %1331 = vmatmul.mubr.f32.gmra.mrb[0].mxu0 %v1166
      %v1332 = vpop.f32.mrb[0].mxu0
      %v1333 = vadd.f32 0.0, %v1332
      %v1334 = vpop.f32.mrb[0].mxu0
      %1335 = vmatprep.mubr.f32.mxu0 0.0
      %1336 = vmatmul.mubr.f32.gmra.mrb[0].mxu0 %v1169
      %v1337 = vpop.f32.mrb[0].mxu0
      %v1338 = vadd.f32 0.0, %v1337
      %v1339 = vpop.f32.mrb[0].mxu0
      %1340 = vmatprep.mubr.f32.mxu0 0.0
      %1341 = vmatmul.mubr.f32.gmra.mrb[0].mxu0 %v1172
      %v1342 = vpop.f32.mrb[0].mxu0
      %v1343 = vadd.f32 0.0, %v1342
      %v1344 = vpop.f32.mrb[0].mxu0
      %1345 = vmatprep.mubr.f32.mxu0 0.0
      %1346 = vmatmul.mubr.f32.gmra.mrb[0].mxu0 %v1175
      %v1347 = vpop.f32.mrb[0].mxu0
      %v1348 = vadd.f32 0.0, %v1347
      %v1349 = vpop.f32.mrb[0].mxu0
      %1350 = vmatprep.mubr.f32.mxu0 0.0
      %1351 = vmatmul.mubr.f32.gmra.mrb[0].mxu0 %v1178
      %v1352 = vpop.f32.mrb[0].mxu0
      %v1353 = vadd.f32 0.0, %v1352
      %v1354 = vpop.f32.mrb[0].mxu0
      %1355 = vmatprep.mubr.f32.mxu0 0.0
      %1356 = vmatmul.mubr.f32.gmra.mrb[0].mxu0 %v1181
      %v1357 = vpop.f32.mrb[0].mxu0
      %v1358 = vadd.f32 0.0, %v1357
      %v1359 = vpop.f32.mrb[0].mxu0
      %1360 = vmatprep.mubr.f32.mxu0 0.0
      %1361 = vmatmul.mubr.f32.gmra.mrb[0].mxu0 %v1184
      %v1362 = vpop.f32.mrb[0].mxu0
      %v1363 = vadd.f32 0.0, %v1362
      %v1364 = vpop.f32.mrb[0].mxu0
      %1365 = vmatprep.mubr.f32.mxu0 0.0
      %1366 = vmatmul.mubr.f32.gmra.mrb[0].mxu0 %v1187
      %v1367 = vpop.f32.mrb[0].mxu0
      %v1368 = vadd.f32 0.0, %v1367
      %v1369 = vpop.f32.mrb[0].mxu0
      %1370 = vmatprep.mubr.f32.mxu0 0.0
      %1371 = vmatmul.mubr.f32.gmra.mrb[0].mxu0 %v1190
      %v1372 = vpop.f32.mrb[0].mxu0
      %v1373 = vadd.f32 0.0, %v1372
      %v1374 = vpop.f32.mrb[0].mxu0
      %1375 = vmatprep.mubr.f32.mxu0 0.0
      %1376 = vmatmul.mubr.f32.gmra.mrb[0].mxu0 %v1193
      %v1377 = vpop.f32.mrb[0].mxu0
      %v1378 = vadd.f32 0.0, %v1377
      %v1379 = vpop.f32.mrb[0].mxu0
      %1380 = vmatprep.mubr.f32.mxu0 0.0
      %1381 = vmatmul.mubr.f32.gmra.mrb[0].mxu0 %v1196
      %v1382 = vpop.f32.mrb[0].mxu0
      %v1383 = vadd.f32 0.0, %v1382
      %v1384 = vpop.f32.mrb[0].mxu0
      %1385 = vmatprep.mubr.f32.mxu0 0.0
      %1386 = vmatmul.mubr.f32.gmra.mrb[0].mxu0 %v1199
      %v1387 = vpop.f32.mrb[0].mxu0
      %v1388 = vadd.f32 0.0, %v1387
      %v1389 = vpop.f32.mrb[0].mxu0
      %1390 = vdwg.mxu0
      %v1391 = vmax.f32 %v1075, %v1268
      %v1392 = vmax.f32 %v1076, %v1273
      %v1393 = vmax.f32 %v1077, %v1278
      %v1394 = vmax.f32 %v1078, %v1283
      %v1395 = vmax.f32 %v1079, %v1288
      %v1396 = vmax.f32 %v1080, %v1293
      %v1397 = vmax.f32 %v1081, %v1298
      %v1398 = vmax.f32 %v1082, %v1303
      %v1399 = vmax.f32 %v1083, %v1308
      %v1400 = vmax.f32 %v1084, %v1313
      %v1401 = vmax.f32 %v1085, %v1318
      %v1402 = vmax.f32 %v1086, %v1323
      %v1403 = vmax.f32 %v1087, %v1328
      %v1404 = vmax.f32 %v1088, %v1333
      %v1405 = vmax.f32 %v1089, %v1338
      %v1406 = vmax.f32 %v1090, %v1343
      %v1407 = vmax.f32 %v1091, %v1348
      %v1408 = vmax.f32 %v1092, %v1353
      %v1409 = vmax.f32 %v1093, %v1358
      %v1410 = vmax.f32 %v1094, %v1363
      %v1411 = vmax.f32 %v1095, %v1368
      %v1412 = vmax.f32 %v1096, %v1373
      %v1413 = vmax.f32 %v1097, %v1378
      %v1414 = vmax.f32 %v1098, %v1383
      %v1415 = vmax.f32 %v1099, %v1388
      %v1416 = vld [vmem:[%s2] sm:$0x1]
      %v1418 = vlaneseq
      %v1419 = vshrl.u32 %v1418, 7
      %v1420 = vsub.s32 0, %v1419
      %v1421 = vrot.slane %v1416, %v1420
      %v1423 = vadd.f32 %v1391, %v1421
      %v1424 = vadd.f32 %v1392, %v1421
      %v1425 = vadd.f32 %v1393, %v1421
      %v1426 = vadd.f32 %v1394, %v1421
      %v1427 = vadd.f32 %v1395, %v1421
      %v1428 = vadd.f32 %v1396, %v1421
      %v1429 = vadd.f32 %v1397, %v1421
      %v1430 = vadd.f32 %v1398, %v1421
      %v1431 = vadd.f32 %v1399, %v1421
      %v1432 = vadd.f32 %v1400, %v1421
      %v1433 = vadd.f32 %v1401, %v1421
      %v1434 = vadd.f32 %v1402, %v1421
      %v1435 = vadd.f32 %v1403, %v1421
      %v1436 = vadd.f32 %v1404, %v1421
      %v1437 = vadd.f32 %v1405, %v1421
      %v1438 = vadd.f32 %v1406, %v1421
      %v1439 = vadd.f32 %v1407, %v1421
      %v1440 = vadd.f32 %v1408, %v1421
      %v1441 = vadd.f32 %v1409, %v1421
      %v1442 = vadd.f32 %v1410, %v1421
      %v1443 = vadd.f32 %v1411, %v1421
      %v1444 = vadd.f32 %v1412, %v1421
      %v1445 = vadd.f32 %v1413, %v1421
      %v1446 = vadd.f32 %v1414, %v1421
      %v1447 = vadd.f32 %v1415, %v1421
      %v1448 = vmax.f32 %v1423, 0.0
      %v1449 = vmax.f32 %v1424, 0.0
      %v1450 = vmax.f32 %v1425, 0.0
      %v1451 = vmax.f32 %v1426, 0.0
      %v1452 = vmax.f32 %v1427, 0.0
      %v1453 = vmax.f32 %v1428, 0.0
      %v1454 = vmax.f32 %v1429, 0.0
      %v1455 = vmax.f32 %v1430, 0.0
      %v1456 = vmax.f32 %v1431, 0.0
      %v1457 = vmax.f32 %v1432, 0.0
      %v1458 = vmax.f32 %v1433, 0.0
      %v1459 = vmax.f32 %v1434, 0.0
      %v1460 = vmax.f32 %v1435, 0.0
      %v1461 = vmax.f32 %v1436, 0.0
      %v1462 = vmax.f32 %v1437, 0.0
      %v1463 = vmax.f32 %v1438, 0.0
      %v1464 = vmax.f32 %v1439, 0.0
      %v1465 = vmax.f32 %v1440, 0.0
      %v1466 = vmax.f32 %v1441, 0.0
      %v1467 = vmax.f32 %v1442, 0.0
      %v1468 = vmax.f32 %v1443, 0.0
      %v1469 = vmax.f32 %v1444, 0.0
      %v1470 = vmax.f32 %v1445, 0.0
      %v1471 = vmax.f32 %v1446, 0.0
      %v1472 = vmax.f32 %v1447, 0.0
      %1473 = vst [vmem:[%s170] sm:$0xff] %v1448
      %1474 = vst [vmem:[%s170 + $0x8] sm:$0xff] %v1449
      %1475 = vst [vmem:[%s170 + $0x10] sm:$0xff] %v1450
      %1476 = vst [vmem:[%s170 + $0x18] sm:$0xff] %v1451
      %1477 = vst [vmem:[%s170 + $0x20] sm:$0xff] %v1452
      %1478 = vst [vmem:[%s170 + $0x28] sm:$0xff] %v1453
      %1479 = vst [vmem:[%s170 + $0x30] sm:$0xff] %v1454
      %1480 = vst [vmem:[%s170 + $0x38] sm:$0xff] %v1455
      %1481 = vst [vmem:[%s170 + $0x40] sm:$0xff] %v1456
      %1482 = vst [vmem:[%s170 + $0x48] sm:$0xff] %v1457
      %1483 = vst [vmem:[%s170 + $0x50] sm:$0xff] %v1458
      %1484 = vst [vmem:[%s170 + $0x58] sm:$0xff] %v1459
      %1485 = vst [vmem:[%s170 + $0x60] sm:$0xff] %v1460
      %1486 = vst [vmem:[%s170 + $0x68] sm:$0xff] %v1461
      %1487 = vst [vmem:[%s170 + $0x70] sm:$0xff] %v1462
      %1488 = vst [vmem:[%s170 + $0x78] sm:$0xff] %v1463
      %1489 = vst [vmem:[%s170 + $0x80] sm:$0xff] %v1464
      %1490 = vst [vmem:[%s170 + $0x88] sm:$0xff] %v1465
      %1491 = vst [vmem:[%s170 + $0x90] sm:$0xff] %v1466
      %1492 = vst [vmem:[%s170 + $0x98] sm:$0xff] %v1467
      %1493 = vst [vmem:[%s170 + $0xa0] sm:$0xff] %v1468
      %1494 = vst [vmem:[%s170 + $0xa8] sm:$0xff] %v1469
      %1495 = vst [vmem:[%s170 + $0xb0] sm:$0xff] %v1470
      %1496 = vst [vmem:[%s170 + $0xb8] sm:$0xff] %v1471
      %1497 = vst [vmem:[%s170 + $0xc0] sm:$0xf] %v1472
      %p1498 = scmp.lt.s32.totalorder %s14, 1
      %s1499 = scalar_select %p1498, %s14, 1
      %s1500 = smul.addr %s1499, 25
      %s1501 = smul.addr %s1500, 8
      %s1502 = scalar_lea.vmem %s3, %s1501
      // Predicated region
      $region33: #{alexnet_forward.3} parent=31 // pred_check
        %p1503 = pneg %p100
      $region34: #{alexnet_forward.3} parent=31 // pred_check_branch
        %1505 = sbr.rel (%p1503) target = $region36
      $region35: #{alexnet_forward.3} parent=31 // pred_region
        _
      $region36: #{alexnet_forward.3} parent=31 // pred_fallthru
        _
    $region32: #{alexnet_forward.3} parent=5 // pred_fallthru
      _
    %p1506 = scmp.le.s32.totalorder 2, %s9
    // Predicated region
    $region37: #{alexnet_forward.3} parent=5 // pred_check
      %p1507 = pneg %p1506
    $region38: #{alexnet_forward.3} parent=5 // pred_check_branch
      %1509 = sbr.rel (%p1507) target = $region40
    $region39: #{alexnet_forward.3} parent=5 // pred_region
      %s1510 = ssub.s32 %s9, 2
      // Predicated region
      $region41: #{alexnet_forward.3} parent=39 // pred_check
        %p1511 = pneg %p106
      $region42: #{alexnet_forward.3} parent=39 // pred_check_branch
        %1513 = sbr.rel (%p1511) target = $region44
      $region43: #{alexnet_forward.3} parent=39 // pred_region
        %p1514 = scmp.lt.s32.totalorder %s15, 1
        %s1515 = scalar_select %p1514, %s15, 1
        %s1516 = smul.addr %s1515, 25
        %s1517 = smul.addr %s1516, 8
        %s1518 = scalar_lea.vmem %s3, %s1517
      $region44: #{alexnet_forward.3} parent=39 // pred_fallthru
        _
    $region40: #{alexnet_forward.3} parent=5 // pred_fallthru
      _
  $region6: #{alexnet_forward.3} parent=0 // loop_footer
    %s13 = sadd.s32 1, %s9
  $region7: #{alexnet_forward.3} parent=0 // loop_footer_branch
    %8 = sbr.rel target = $region3
  $region8: #{alexnet_forward.3} parent=0 // loop_exit
    _

// kernel: alexnet_forward.4
$region0: #{alexnet_forward.4}
  #allocation0 [shape = 'u32[]', space=smem, size = 0x4, offset = 0x4, fixed_abs, tag = 'smem constant byte address 0x4 - core index']
  #allocation1 [shape = 'u32[144,128]{1,0:T(1,128)}', space=vmem, size = 0x12000, scoped, tag = 'internal scratch']
  %s0 = inlined_call_operand.vmem [shape: f32[2,4,49,288], index: 0, kind: input, shape index: {}]
  %s1 = inlined_call_operand.vmem [shape: f32[288,128], index: 1, kind: input, shape index: {}]
  %s2 = inlined_call_operand.vmem [shape: f32[1,128], index: 2, kind: input, shape index: {}]
  %s3 = inlined_call_operand.vmem [shape: f32[36,49], index: 3, kind: input, shape index: {}]
  %s4 = inlined_call_operand.vmem [shape: f32[2,36,128], index: 4, kind: output, shape index: {}]
  %s5 = sld [smem:[#allocation0]]
  $region49: #{alexnet_forward.4} parent=0
    _
  %s7 = ssub.s32 1, %s5
  %s8 = scalar_select 0, %s7, %s5
  loop: start=0, step=1, limit=4
  $region2: #{alexnet_forward.4} parent=0 // loop_pre_header
    _
  $region3: #{alexnet_forward.4} parent=0 // loop_header
    %s10 = sphi 0, %s14
    %p11 = scmp.ge.s32.totalorder %s10, 4
    %s20 = sphi 0, %s22
    %s23 = sphi 0, %s20
    %s24 = sphi 0, %s23
    %s40 = sphi 0, %s24
    %s44 = sphi 0, %s44
    %s46 = sphi 0, %s44
    %s47 = sphi 0, %s46
    %s61 = sphi 0, %s47
    %s65 = sphi 0, %s65
    %s67 = sphi 0, %s65
    %s68 = sphi 0, %s67
    %s82 = sphi 0, %s68
    %s86 = sphi 0, %s86
    %s88 = sphi 0, %s86
    %s89 = sphi 0, %s88
    %s103 = sphi 0, %s89
    %s109 = sphi 0, %s111
    %s112 = sphi 0, %s109
    %s113 = sphi 0, %s112
    %s129 = sphi 0, %s113
  $region4: #{alexnet_forward.4} parent=0 // loop_header_branch
    %13 = sbr.rel (%p11) target = $region8
  $region5: #{alexnet_forward.4} parent=0 // loop_body
    %s15 = ssub.s32 %s10, 1
    %s16 = ssub.s32 %s10, 2
    %s17 = sadd.s32 %s10, 1
    %s18 = ssub.s32 %s10, %s17
    %p19 = scmp.eq.s32.totalorder %s18, 0
    %s21 = sadd.s32 %s20, 1
    %s22 = scalar_select %p19, %s20, %s21
    %p25 = pneg %p19
    %p26 = scmp.eq.s32.totalorder %s10, 1
    %p27 = por %p25, %p26
    %p28 = scmp.ne.s32.totalorder %s20, %s23
    %p29 = scmp.eq.s32.totalorder %s10, 0
    %p30 = por %p28, %p29
    %p31 = scmp.ne.s32.totalorder %s20, %s23
    %p32 = scmp.eq.s32.totalorder %s15, 1
    %p33 = por %p31, %p32
    %p34 = scmp.ne.s32.totalorder %s23, %s24
    %p35 = scmp.eq.s32.totalorder %s15, 0
    %p36 = por %p34, %p35
    %p37 = scmp.ne.s32.totalorder %s23, %s24
    %p38 = scmp.eq.s32.totalorder %s16, 1
    %p39 = por %p37, %p38
    %p41 = scmp.ne.s32.totalorder %s24, %s40
    %p42 = scmp.eq.s32.totalorder %s16, 0
    %p43 = por %p41, %p42
    %s45 = sadd.s32 %s44, 1
    %p48 = scmp.eq.s32.totalorder %s10, 1
    %p49 = scmp.ne.s32.totalorder %s44, %s46
    %p50 = scmp.eq.s32.totalorder %s10, 0
    %p51 = por %p49, %p50
    %p52 = scmp.ne.s32.totalorder %s44, %s46
    %p53 = scmp.eq.s32.totalorder %s15, 1
    %p54 = por %p52, %p53
    %p55 = scmp.ne.s32.totalorder %s46, %s47
    %p56 = scmp.eq.s32.totalorder %s15, 0
    %p57 = por %p55, %p56
    %p58 = scmp.ne.s32.totalorder %s46, %s47
    %p59 = scmp.eq.s32.totalorder %s16, 1
    %p60 = por %p58, %p59
    %p62 = scmp.ne.s32.totalorder %s47, %s61
    %p63 = scmp.eq.s32.totalorder %s16, 0
    %p64 = por %p62, %p63
    %s66 = sadd.s32 %s65, 1
    %p69 = scmp.eq.s32.totalorder %s10, 1
    %p70 = scmp.ne.s32.totalorder %s65, %s67
    %p71 = scmp.eq.s32.totalorder %s10, 0
    %p72 = por %p70, %p71
    %p73 = scmp.ne.s32.totalorder %s65, %s67
    %p74 = scmp.eq.s32.totalorder %s15, 1
    %p75 = por %p73, %p74
    %p76 = scmp.ne.s32.totalorder %s67, %s68
    %p77 = scmp.eq.s32.totalorder %s15, 0
    %p78 = por %p76, %p77
    %p79 = scmp.ne.s32.totalorder %s67, %s68
    %p80 = scmp.eq.s32.totalorder %s16, 1
    %p81 = por %p79, %p80
    %p83 = scmp.ne.s32.totalorder %s68, %s82
    %p84 = scmp.eq.s32.totalorder %s16, 0
    %p85 = por %p83, %p84
    %s87 = sadd.s32 %s86, 1
    %p90 = scmp.eq.s32.totalorder %s10, 1
    %p91 = scmp.ne.s32.totalorder %s86, %s88
    %p92 = scmp.eq.s32.totalorder %s10, 0
    %p93 = por %p91, %p92
    %p94 = scmp.ne.s32.totalorder %s86, %s88
    %p95 = scmp.eq.s32.totalorder %s15, 1
    %p96 = por %p94, %p95
    %p97 = scmp.ne.s32.totalorder %s88, %s89
    %p98 = scmp.eq.s32.totalorder %s15, 0
    %p99 = por %p97, %p98
    %p100 = scmp.ne.s32.totalorder %s88, %s89
    %p101 = scmp.eq.s32.totalorder %s16, 1
    %p102 = por %p100, %p101
    %p104 = scmp.ne.s32.totalorder %s89, %s103
    %p105 = scmp.eq.s32.totalorder %s16, 0
    %p106 = por %p104, %p105
    %s107 = ssub.s32 %s10, %s17
    %p108 = scmp.eq.s32.totalorder %s107, 0
    %s110 = sadd.s32 %s109, 1
    %s111 = scalar_select %p108, %s109, %s110
    %p114 = pneg %p108
    %p115 = scmp.eq.s32.totalorder %s10, 1
    %p116 = por %p114, %p115
    %p117 = scmp.ne.s32.totalorder %s109, %s112
    %p118 = scmp.eq.s32.totalorder %s10, 0
    %p119 = por %p117, %p118
    %p120 = scmp.ne.s32.totalorder %s109, %s112
    %p121 = scmp.eq.s32.totalorder %s15, 1
    %p122 = por %p120, %p121
    %p123 = scmp.ne.s32.totalorder %s112, %s113
    %p124 = scmp.eq.s32.totalorder %s15, 0
    %p125 = por %p123, %p124
    %p126 = scmp.ne.s32.totalorder %s112, %s113
    %p127 = scmp.eq.s32.totalorder %s16, 1
    %p128 = por %p126, %p127
    %p130 = scmp.ne.s32.totalorder %s113, %s129
    %p131 = scmp.eq.s32.totalorder %s16, 0
    %p132 = por %p130, %p131
    %p133 = scmp.le.s32.totalorder 1, %s10
    %p134 = scmp.lt.s32.totalorder %s10, 3
    %p135 = pnand %p133, %p134
    %p136 = pneg %p135
    // Predicated region
    $region9: #{alexnet_forward.4} parent=5 // pred_check
      _
    $region10: #{alexnet_forward.4} parent=5 // pred_check_branch
      %138 = sbr.rel (%p135) target = $region12
    $region11: #{alexnet_forward.4} parent=5 // pred_region
      %s139 = ssub.s32 %s10, 1
      // Predicated region
      $region13: #{alexnet_forward.4} parent=11 // pred_check
        %p140 = pneg %p57
      $region14: #{alexnet_forward.4} parent=11 // pred_check_branch
        %142 = sbr.rel (%p140) target = $region16
      $region15: #{alexnet_forward.4} parent=11 // pred_region
        _
      $region16: #{alexnet_forward.4} parent=11 // pred_fallthru
        _
      // Predicated region
      $region17: #{alexnet_forward.4} parent=11 // pred_check
        %p143 = pneg %p78
      $region18: #{alexnet_forward.4} parent=11 // pred_check_branch
        %145 = sbr.rel (%p143) target = $region20
      $region19: #{alexnet_forward.4} parent=11 // pred_region
        _
      $region20: #{alexnet_forward.4} parent=11 // pred_fallthru
        _
      // Predicated region
      $region21: #{alexnet_forward.4} parent=11 // pred_check
        %p146 = pneg %p99
      $region22: #{alexnet_forward.4} parent=11 // pred_check_branch
        %148 = sbr.rel (%p146) target = $region24
      $region23: #{alexnet_forward.4} parent=11 // pred_region
        _
      $region24: #{alexnet_forward.4} parent=11 // pred_fallthru
        _
    $region12: #{alexnet_forward.4} parent=5 // pred_fallthru
      _
    %p149 = scmp.lt.s32.totalorder %s10, 2
    // Predicated region
    $region25: #{alexnet_forward.4} parent=5 // pred_check
      %p150 = pneg %p149
    $region26: #{alexnet_forward.4} parent=5 // pred_check_branch
      %152 = sbr.rel (%p150) target = $region28
    $region27: #{alexnet_forward.4} parent=5 // pred_region
      // Predicated region
      $region29: #{alexnet_forward.4} parent=27 // pred_check
        %p153 = pneg %p30
      $region30: #{alexnet_forward.4} parent=27 // pred_check_branch
        %155 = sbr.rel (%p153) target = $region32
      $region31: #{alexnet_forward.4} parent=27 // pred_region
        %p156 = scmp.lt.s32.totalorder %s10, 1
        %s157 = scalar_select %p156, %s10, 1
        %s158 = smul.addr %s157, 84
        %s159 = smul.addr %s158, 8
        %s160 = scalar_lea.vmem %s0, %s159
      $region32: #{alexnet_forward.4} parent=27 // pred_fallthru
        _
    $region28: #{alexnet_forward.4} parent=5 // pred_fallthru
      _
    %p161 = scmp.le.s32.totalorder 1, %s10
    %p162 = scmp.lt.s32.totalorder %s10, 3
    %p163 = pnand %p161, %p162
    %p164 = pneg %p163
    // Predicated region
    $region33: #{alexnet_forward.4} parent=5 // pred_check
      _
    $region34: #{alexnet_forward.4} parent=5 // pred_check_branch
      %166 = sbr.rel (%p163) target = $region36
    $region35: #{alexnet_forward.4} parent=5 // pred_region
      %s167 = ssub.s32 %s10, 1
      %p168 = scmp.lt.s32.totalorder %s15, 1
      %s169 = scalar_select %p168, %s15, 1
      %s170 = smul.addr %s169, 84
      %s171 = smul.addr %s170, 8
      %s172 = scalar_lea.vmem %s0, %s171
      %p173 = pneg %p36
      %p174 = pneg %p33
      %p175 = pneg %p57
      %p176 = pneg %p54
      %p177 = pneg %p78
      %p178 = pneg %p75
      %p179 = pneg %p99
      %p180 = pneg %p96
      %p181 = pneg %p125
      %p182 = pneg %p122
      %p183 = scmp.lt.s32.totalorder %s15, 1
      %s184 = scalar_select %p183, %s15, 1
      %s185 = smul.addr %s184, 5
      %s186 = smul.addr %s185, 8
      %s187 = scalar_lea.vmem %s4, %s186
      %p188 = scmp.lt.s32.totalorder %s15, 1
      %s189 = scalar_select %p188, %s15, 1
      %s190 = smul.addr %s189, 84
      %s191 = smul.addr %s190, 8
      %s192 = scalar_lea.vmem %s0, %s191
      %p193 = scmp.lt.s32.totalorder %s15, 1
      %s194 = scalar_select %p193, %s15, 1
      %s195 = smul.addr %s194, 5
      %s196 = smul.addr %s195, 8
      %s197 = scalar_lea.vmem %s4, %s196
      %v198 = vld [vmem:[%s192] sm:$0xff]
      %v199 = vld [vmem:[%s192 + $0x8] sm:$0xff]
      %v200 = vld [vmem:[%s192 + $0x10] sm:$0xff]
      %v201 = vld [vmem:[%s192 + $0x18] sm:$0xff]
      %v202 = vld [vmem:[%s192 + $0x20] sm:$0xff]
      %v203 = vld [vmem:[%s192 + $0x28] sm:$0xff]
      %v204 = vld [vmem:[%s192 + $0x30] sm:$0xff]
      %v205 = vld [vmem:[%s192 + $0x38] sm:$0xff]
      %v206 = vld [vmem:[%s192 + $0x40] sm:$0xff]
      %v207 = vld [vmem:[%s192 + $0x48] sm:$0xff]
      %v208 = vld [vmem:[%s192 + $0x50] sm:$0xff]
      %v209 = vld [vmem:[%s192 + $0x58] sm:$0xff]
      %v210 = vld [vmem:[%s192 + $0x60] sm:$0xff]
      %v211 = vld [vmem:[%s192 + $0x68] sm:$0xff]
      %v212 = vld [vmem:[%s192 + $0x70] sm:$0xff]
      %v213 = vld [vmem:[%s192 + $0x78] sm:$0xff]
      %v214 = vld [vmem:[%s192 + $0x80] sm:$0xff]
      %v215 = vld [vmem:[%s192 + $0x88] sm:$0xff]
      %v216 = vld [vmem:[%s192 + $0x90] sm:$0x1]
      %v217 = vld [vmem:[%s192 + $0x98] sm:$0x1]
      %v218 = vld [vmem:[%s192 + $0xa0] sm:$0x1]
      %v219 = vld [vmem:[%s1] sm:$0xff]
      %v220 = vld [vmem:[%s1 + $0x8] sm:$0xff]
      %v221 = vld [vmem:[%s1 + $0x10] sm:$0xff]
      %v222 = vld [vmem:[%s1 + $0x18] sm:$0xff]
      %v223 = vld [vmem:[%s1 + $0x20] sm:$0xff]
      %v224 = vld [vmem:[%s1 + $0x28] sm:$0xff]
      %v225 = vld [vmem:[%s1 + $0x30] sm:$0xff]
      %v226 = vld [vmem:[%s1 + $0x38] sm:$0xff]
      %v227 = vld [vmem:[%s1 + $0x40] sm:$0xff]
      %v228 = vld [vmem:[%s1 + $0x48] sm:$0xff]
      %v229 = vld [vmem:[%s1 + $0x50] sm:$0xff]
      %v230 = vld [vmem:[%s1 + $0x58] sm:$0xff]
      %v231 = vld [vmem:[%s1 + $0x60] sm:$0xff]
      %v232 = vld [vmem:[%s1 + $0x68] sm:$0xff]
      %v233 = vld [vmem:[%s1 + $0x70] sm:$0xff]
      %v234 = vld [vmem:[%s1 + $0x78] sm:$0xff]
      %v235 = vld [vmem:[%s1 + $0x80] sm:$0xff]
      %v236 = vld [vmem:[%s1 + $0x88] sm:$0xff]
      %v237 = vld [vmem:[%s1 + $0x90] sm:$0xff]
      %v238 = vld [vmem:[%s1 + $0x98] sm:$0xff]
      %v239 = vld [vmem:[%s1 + $0xa0] sm:$0xff]
      %v240 = vld [vmem:[%s1 + $0xa8] sm:$0xff]
      %v241 = vld [vmem:[%s1 + $0xb0] sm:$0xff]
      %v242 = vld [vmem:[%s1 + $0xb8] sm:$0xff]
      %v243 = vld [vmem:[%s1 + $0xc0] sm:$0xff]
      %v244 = vld [vmem:[%s1 + $0xc8] sm:$0xff]
      %v245 = vld [vmem:[%s1 + $0xd0] sm:$0xff]
      %v246 = vld [vmem:[%s1 + $0xd8] sm:$0xff]
      %v247 = vld [vmem:[%s1 + $0xe0] sm:$0xff]
      %v248 = vld [vmem:[%s1 + $0xe8] sm:$0xff]
      %v249 = vld [vmem:[%s1 + $0xf0] sm:$0xff]
      %v250 = vld [vmem:[%s1 + $0xf8] sm:$0xff]
      %v251 = vld [vmem:[%s1 + $0x100] sm:$0xff]
      %v252 = vld [vmem:[%s1 + $0x108] sm:$0xff]
      %v253 = vld [vmem:[%s1 + $0x110] sm:$0xff]
      %v254 = vld [vmem:[%s1 + $0x118] sm:$0xff]
      %vm255 = vcmask 261120
      %v257 = vsel %vm255, %v200, 0
      %v260 = vsel %vm255, %v203, 0
      %v263 = vsel %vm255, %v206, 0
      %v266 = vsel %vm255, %v209, 0
      %v269 = vsel %vm255, %v212, 0
      %v272 = vsel %vm255, %v215, 0
      %v275 = vsel %vm255, %v218, 0
      %277 = vmatprep.subr.mxu0 0.0
      %278 = vmatpush1.msra.mxu0 %v219
      %279 = vmatprep.subr.mxu0 0.0
      %280 = vmatpush1.msra.mxu0 %v220
      %281 = vmatprep.subr.mxu0 0.0
      %282 = vmatpush1.msra.mxu0 %v221
      %283 = vmatprep.subr.mxu0 0.0
      %284 = vmatpush1.msra.mxu0 %v222
      %285 = vmatprep.subr.mxu0 0.0
      %286 = vmatpush1.msra.mxu0 %v223
      %287 = vmatprep.subr.mxu0 0.0
      %288 = vmatpush1.msra.mxu0 %v224
      %289 = vmatprep.subr.mxu0 0.0
      %290 = vmatpush1.msra.mxu0 %v225
      %291 = vmatprep.subr.mxu0 0.0
      %292 = vmatpush1.msra.mxu0 %v226
      %293 = vmatprep.subr.mxu0 0.0
      %294 = vmatpush1.msra.mxu0 %v227
      %295 = vmatprep.subr.mxu0 0.0
      %296 = vmatpush1.msra.mxu0 %v228
      %297 = vmatprep.subr.mxu0 0.0
      %298 = vmatpush1.msra.mxu0 %v229
      %299 = vmatprep.subr.mxu0 0.0
      %300 = vmatpush1.msra.mxu0 %v230
      %301 = vmatprep.subr.mxu0 0.0
      %302 = vmatpush1.msra.mxu0 %v231
      %303 = vmatprep.subr.mxu0 0.0
      %304 = vmatpush1.msra.mxu0 %v232
      %305 = vmatprep.subr.mxu0 0.0
      %306 = vmatpush1.msra.mxu0 %v233
      %307 = vmatprep.subr.mxu0 0.0
      %308 = vmatpush1.msra.mxu0 %v234
      %309 = vmatprep.subr.mxu0 0.0
      %310 = vmatpush1.msra.mxu0 %v235
      %311 = vmatprep.subr.mxu0 0.0
      %312 = vmatpush1.msra.mxu0 %v236
      %313 = vmatprep.subr.mxu0 0.0
      %314 = vmatpush1.msra.mxu0 %v237
      %315 = vmatprep.subr.mxu0 0.0
      %316 = vmatpush1.msra.mxu0 %v238
      %317 = vmatprep.subr.mxu0 0.0
      %318 = vmatpush1.msra.mxu0 %v239
      %319 = vmatprep.subr.mxu0 0.0
      %320 = vmatpush1.msra.mxu0 %v240
      %321 = vmatprep.subr.mxu0 0.0
      %322 = vmatpush1.msra.mxu0 %v241
      %323 = vmatprep.subr.mxu0 0.0
      %324 = vmatpush1.msra.mxu0 %v242
      %325 = vmatprep.subr.mxu0 0.0
      %326 = vmatpush1.msra.mxu0 %v243
      %327 = vmatprep.subr.mxu0 0.0
      %328 = vmatpush1.msra.mxu0 %v244
      %329 = vmatprep.subr.mxu0 0.0
      %330 = vmatpush1.msra.mxu0 %v245
      %331 = vmatprep.subr.mxu0 0.0
      %332 = vmatpush1.msra.mxu0 %v246
      %333 = vmatprep.subr.mxu0 0.0
      %334 = vmatpush1.msra.mxu0 %v247
      %335 = vmatprep.subr.mxu0 0.0
      %336 = vmatpush1.msra.mxu0 %v248
      %337 = vmatprep.subr.mxu0 0.0
      %338 = vmatpush1.msra.mxu0 %v249
      %339 = vmatprep.subr.mxu0 0.0
      %340 = vmatpush1.msra.mxu0 %v250
      %341 = vmatprep.mubr.f32.mxu0 %v199
      %342 = vmatmul.mubr.f32.gmra.mrb[0].mxu0 %v198
      %v343 = vpop.f32.mrb[0].mxu0
      %v344 = vadd.f32 0.0, %v343
      %v345 = vpop.f32.mrb[0].mxu0
      %346 = vmatprep.mubr.f32.mxu0 %v202
      %347 = vmatmul.mubr.f32.gmra.mrb[0].mxu0 %v201
      %v348 = vpop.f32.mrb[0].mxu0
      %v349 = vadd.f32 0.0, %v348
      %v350 = vpop.f32.mrb[0].mxu0
      %351 = vmatprep.mubr.f32.mxu0 %v205
      %352 = vmatmul.mubr.f32.gmra.mrb[0].mxu0 %v204
      %v353 = vpop.f32.mrb[0].mxu0
      %v354 = vadd.f32 0.0, %v353
      %v355 = vpop.f32.mrb[0].mxu0
      %356 = vmatprep.mubr.f32.mxu0 %v208
      %357 = vmatmul.mubr.f32.gmra.mrb[0].mxu0 %v207
      %v358 = vpop.f32.mrb[0].mxu0
      %v359 = vadd.f32 0.0, %v358
      %v360 = vpop.f32.mrb[0].mxu0
      %361 = vmatprep.mubr.f32.mxu0 %v211
      %362 = vmatmul.mubr.f32.gmra.mrb[0].mxu0 %v210
      %v363 = vpop.f32.mrb[0].mxu0
      %v364 = vadd.f32 0.0, %v363
      %v365 = vpop.f32.mrb[0].mxu0
      %366 = vmatprep.mubr.f32.mxu0 %v214
      %367 = vmatmul.mubr.f32.gmra.mrb[0].mxu0 %v213
      %v368 = vpop.f32.mrb[0].mxu0
      %v369 = vadd.f32 0.0, %v368
      %v370 = vpop.f32.mrb[0].mxu0
      %371 = vmatprep.mubr.f32.mxu0 %v217
      %372 = vmatmul.mubr.f32.gmra.mrb[0].mxu0 %v216
      %v373 = vpop.f32.mrb[0].mxu0
      %v374 = vadd.f32 0.0, %v373
      %v375 = vpop.f32.mrb[0].mxu0
      %376 = vdwg.mxu0
      %377 = vmatprep.subr.mxu0 0.0
      %378 = vmatpush1.msra.mxu0 %v251
      %379 = vmatprep.subr.mxu0 0.0
      %380 = vmatpush1.msra.mxu0 %v252
      %381 = vmatprep.subr.mxu0 0.0
      %382 = vmatpush1.msra.mxu0 %v253
      %383 = vmatprep.subr.mxu0 0.0
      %384 = vmatpush1.msra.mxu0 %v254
      %385 = vmatprep.subr.mxu0 0.0
      %386 = vmatpush1.msra.mxu0 0.0
      %387 = vmatprep.subr.mxu0 0.0
      %388 = vmatpush1.msra.mxu0 0.0
      %389 = vmatprep.subr.mxu0 0.0
      %390 = vmatpush1.msra.mxu0 0.0
      %391 = vmatprep.subr.mxu0 0.0
      %392 = vmatpush1.msra.mxu0 0.0
      %393 = vmatprep.subr.mxu0 0.0
      %394 = vmatpush1.msra.mxu0 0.0
      %395 = vmatprep.subr.mxu0 0.0
      %396 = vmatpush1.msra.mxu0 0.0
      %397 = vmatprep.subr.mxu0 0.0
      %398 = vmatpush1.msra.mxu0 0.0
      %399 = vmatprep.subr.mxu0 0.0
      %400 = vmatpush1.msra.mxu0 0.0
      %401 = vmatprep.subr.mxu0 0.0
      %402 = vmatpush1.msra.mxu0 0.0
      %403 = vmatprep.subr.mxu0 0.0
      %404 = vmatpush1.msra.mxu0 0.0
      %405 = vmatprep.subr.mxu0 0.0
      %406 = vmatpush1.msra.mxu0 0.0
      %407 = vmatprep.subr.mxu0 0.0
      %408 = vmatpush1.msra.mxu0 0.0
      %409 = vmatprep.subr.mxu0 0.0
      %410 = vmatpush1.msra.mxu0 0.0
      %411 = vmatprep.subr.mxu0 0.0
      %412 = vmatpush1.msra.mxu0 0.0
      %413 = vmatprep.subr.mxu0 0.0
      %414 = vmatpush1.msra.mxu0 0.0
      %415 = vmatprep.subr.mxu0 0.0
      %416 = vmatpush1.msra.mxu0 0.0
      %417 = vmatprep.subr.mxu0 0.0
      %418 = vmatpush1.msra.mxu0 0.0
      %419 = vmatprep.subr.mxu0 0.0
      %420 = vmatpush1.msra.mxu0 0.0
      %421 = vmatprep.subr.mxu0 0.0
      %422 = vmatpush1.msra.mxu0 0.0
      %423 = vmatprep.subr.mxu0 0.0
      %424 = vmatpush1.msra.mxu0 0.0
      %425 = vmatprep.subr.mxu0 0.0
      %426 = vmatpush1.msra.mxu0 0.0
      %427 = vmatprep.subr.mxu0 0.0
      %428 = vmatpush1.msra.mxu0 0.0
      %429 = vmatprep.subr.mxu0 0.0
      %430 = vmatpush1.msra.mxu0 0.0
      %431 = vmatprep.subr.mxu0 0.0
      %432 = vmatpush1.msra.mxu0 0.0
      %433 = vmatprep.subr.mxu0 0.0
      %434 = vmatpush1.msra.mxu0 0.0
      %435 = vmatprep.subr.mxu0 0.0
      %436 = vmatpush1.msra.mxu0 0.0
      %437 = vmatprep.subr.mxu0 0.0
      %438 = vmatpush1.msra.mxu0 0.0
      %439 = vmatprep.subr.mxu0 0.0
      %440 = vmatpush1.msra.mxu0 0.0
      %441 = vmatprep.mubr.f32.mxu0 0.0
      %442 = vmatmul.mubr.f32.gmra.mrb[0].mxu0 %v257
      %v443 = vpop.f32.mrb[0].mxu0
      %v444 = vadd.f32 %v344, %v443
      %v445 = vpop.f32.mrb[0].mxu0
      %446 = vmatprep.mubr.f32.mxu0 0.0
      %447 = vmatmul.mubr.f32.gmra.mrb[0].mxu0 %v260
      %v448 = vpop.f32.mrb[0].mxu0
      %v449 = vadd.f32 %v349, %v448
      %v450 = vpop.f32.mrb[0].mxu0
      %451 = vmatprep.mubr.f32.mxu0 0.0
      %452 = vmatmul.mubr.f32.gmra.mrb[0].mxu0 %v263
      %v453 = vpop.f32.mrb[0].mxu0
      %v454 = vadd.f32 %v354, %v453
      %v455 = vpop.f32.mrb[0].mxu0
      %456 = vmatprep.mubr.f32.mxu0 0.0
      %457 = vmatmul.mubr.f32.gmra.mrb[0].mxu0 %v266
      %v458 = vpop.f32.mrb[0].mxu0
      %v459 = vadd.f32 %v359, %v458
      %v460 = vpop.f32.mrb[0].mxu0
      %461 = vmatprep.mubr.f32.mxu0 0.0
      %462 = vmatmul.mubr.f32.gmra.mrb[0].mxu0 %v269
      %v463 = vpop.f32.mrb[0].mxu0
      %v464 = vadd.f32 %v364, %v463
      %v465 = vpop.f32.mrb[0].mxu0
      %466 = vmatprep.mubr.f32.mxu0 0.0
      %467 = vmatmul.mubr.f32.gmra.mrb[0].mxu0 %v272
      %v468 = vpop.f32.mrb[0].mxu0
      %v469 = vadd.f32 %v369, %v468
      %v470 = vpop.f32.mrb[0].mxu0
      %471 = vmatprep.mubr.f32.mxu0 0.0
      %472 = vmatmul.mubr.f32.gmra.mrb[0].mxu0 %v275
      %v473 = vpop.f32.mrb[0].mxu0
      %v474 = vadd.f32 %v374, %v473
      %v475 = vpop.f32.mrb[0].mxu0
      %476 = vdwg.mxu0
      %s477 = scalar_lea.vmem %s192, 168
      %v478 = vld [vmem:[%s477] sm:$0xff]
      %v479 = vld [vmem:[%s477 + $0x8] sm:$0xff]
      %v480 = vld [vmem:[%s477 + $0x10] sm:$0xff]
      %v481 = vld [vmem:[%s477 + $0x18] sm:$0xff]
      %v482 = vld [vmem:[%s477 + $0x20] sm:$0xff]
      %v483 = vld [vmem:[%s477 + $0x28] sm:$0xff]
      %v484 = vld [vmem:[%s477 + $0x30] sm:$0xff]
      %v485 = vld [vmem:[%s477 + $0x38] sm:$0xff]
      %v486 = vld [vmem:[%s477 + $0x40] sm:$0xff]
      %v487 = vld [vmem:[%s477 + $0x48] sm:$0xff]
      %v488 = vld [vmem:[%s477 + $0x50] sm:$0xff]
      %v489 = vld [vmem:[%s477 + $0x58] sm:$0xff]
      %v490 = vld [vmem:[%s477 + $0x60] sm:$0xff]
      %v491 = vld [vmem:[%s477 + $0x68] sm:$0xff]
      %v492 = vld [vmem:[%s477 + $0x70] sm:$0xff]
      %v493 = vld [vmem:[%s477 + $0x78] sm:$0xff]
      %v494 = vld [vmem:[%s477 + $0x80] sm:$0xff]
      %v495 = vld [vmem:[%s477 + $0x88] sm:$0xff]
      %v496 = vld [vmem:[%s477 + $0x90] sm:$0x1]
      %v497 = vld [vmem:[%s477 + $0x98] sm:$0x1]
      %v498 = vld [vmem:[%s477 + $0xa0] sm:$0x1]
      %v500 = vsel %vm255, %v480, 0
      %v503 = vsel %vm255, %v483, 0
      %v506 = vsel %vm255, %v486, 0
      %v509 = vsel %vm255, %v489, 0
      %v512 = vsel %vm255, %v492, 0
      %v515 = vsel %vm255, %v495, 0
      %v518 = vsel %vm255, %v498, 0
      %520 = vmatprep.subr.mxu0 0.0
      %521 = vmatpush1.msra.mxu0 %v219
      %522 = vmatprep.subr.mxu0 0.0
      %523 = vmatpush1.msra.mxu0 %v220
      %524 = vmatprep.subr.mxu0 0.0
      %525 = vmatpush1.msra.mxu0 %v221
      %526 = vmatprep.subr.mxu0 0.0
      %527 = vmatpush1.msra.mxu0 %v222
      %528 = vmatprep.subr.mxu0 0.0
      %529 = vmatpush1.msra.mxu0 %v223
      %530 = vmatprep.subr.mxu0 0.0
      %531 = vmatpush1.msra.mxu0 %v224
      %532 = vmatprep.subr.mxu0 0.0
      %533 = vmatpush1.msra.mxu0 %v225
      %534 = vmatprep.subr.mxu0 0.0
      %535 = vmatpush1.msra.mxu0 %v226
      %536 = vmatprep.subr.mxu0 0.0
      %537 = vmatpush1.msra.mxu0 %v227
      %538 = vmatprep.subr.mxu0 0.0
      %539 = vmatpush1.msra.mxu0 %v228
      %540 = vmatprep.subr.mxu0 0.0
      %541 = vmatpush1.msra.mxu0 %v229
      %542 = vmatprep.subr.mxu0 0.0
      %543 = vmatpush1.msra.mxu0 %v230
      %544 = vmatprep.subr.mxu0 0.0
      %545 = vmatpush1.msra.mxu0 %v231
      %546 = vmatprep.subr.mxu0 0.0
      %547 = vmatpush1.msra.mxu0 %v232
      %548 = vmatprep.subr.mxu0 0.0
      %549 = vmatpush1.msra.mxu0 %v233
      %550 = vmatprep.subr.mxu0 0.0
      %551 = vmatpush1.msra.mxu0 %v234
      %552 = vmatprep.subr.mxu0 0.0
      %553 = vmatpush1.msra.mxu0 %v235
      %554 = vmatprep.subr.mxu0 0.0
      %555 = vmatpush1.msra.mxu0 %v236
      %556 = vmatprep.subr.mxu0 0.0
      %557 = vmatpush1.msra.mxu0 %v237
      %558 = vmatprep.subr.mxu0 0.0
      %559 = vmatpush1.msra.mxu0 %v238
      %560 = vmatprep.subr.mxu0 0.0
      %561 = vmatpush1.msra.mxu0 %v239
      %562 = vmatprep.subr.mxu0 0.0
      %563 = vmatpush1.msra.mxu0 %v240
      %564 = vmatprep.subr.mxu0 0.0
      %565 = vmatpush1.msra.mxu0 %v241
      %566 = vmatprep.subr.mxu0 0.0
      %567 = vmatpush1.msra.mxu0 %v242
      %568 = vmatprep.subr.mxu0 0.0
      %569 = vmatpush1.msra.mxu0 %v243
      %570 = vmatprep.subr.mxu0 0.0
      %571 = vmatpush1.msra.mxu0 %v244
      %572 = vmatprep.subr.mxu0 0.0
      %573 = vmatpush1.msra.mxu0 %v245
      %574 = vmatprep.subr.mxu0 0.0
      %575 = vmatpush1.msra.mxu0 %v246
      %576 = vmatprep.subr.mxu0 0.0
      %577 = vmatpush1.msra.mxu0 %v247
      %578 = vmatprep.subr.mxu0 0.0
      %579 = vmatpush1.msra.mxu0 %v248
      %580 = vmatprep.subr.mxu0 0.0
      %581 = vmatpush1.msra.mxu0 %v249
      %582 = vmatprep.subr.mxu0 0.0
      %583 = vmatpush1.msra.mxu0 %v250
      %584 = vmatprep.mubr.f32.mxu0 %v479
      %585 = vmatmul.mubr.f32.gmra.mrb[0].mxu0 %v478
      %v586 = vpop.f32.mrb[0].mxu0
      %v587 = vadd.f32 0.0, %v586
      %v588 = vpop.f32.mrb[0].mxu0
      %589 = vmatprep.mubr.f32.mxu0 %v482
      %590 = vmatmul.mubr.f32.gmra.mrb[0].mxu0 %v481
      %v591 = vpop.f32.mrb[0].mxu0
      %v592 = vadd.f32 0.0, %v591
      %v593 = vpop.f32.mrb[0].mxu0
      %594 = vmatprep.mubr.f32.mxu0 %v485
      %595 = vmatmul.mubr.f32.gmra.mrb[0].mxu0 %v484
      %v596 = vpop.f32.mrb[0].mxu0
      %v597 = vadd.f32 0.0, %v596
      %v598 = vpop.f32.mrb[0].mxu0
      %599 = vmatprep.mubr.f32.mxu0 %v488
      %600 = vmatmul.mubr.f32.gmra.mrb[0].mxu0 %v487
      %v601 = vpop.f32.mrb[0].mxu0
      %v602 = vadd.f32 0.0, %v601
      %v603 = vpop.f32.mrb[0].mxu0
      %604 = vmatprep.mubr.f32.mxu0 %v491
      %605 = vmatmul.mubr.f32.gmra.mrb[0].mxu0 %v490
      %v606 = vpop.f32.mrb[0].mxu0
      %v607 = vadd.f32 0.0, %v606
      %v608 = vpop.f32.mrb[0].mxu0
      %609 = vmatprep.mubr.f32.mxu0 %v494
      %610 = vmatmul.mubr.f32.gmra.mrb[0].mxu0 %v493
      %v611 = vpop.f32.mrb[0].mxu0
      %v612 = vadd.f32 0.0, %v611
      %v613 = vpop.f32.mrb[0].mxu0
      %614 = vmatprep.mubr.f32.mxu0 %v497
      %615 = vmatmul.mubr.f32.gmra.mrb[0].mxu0 %v496
      %v616 = vpop.f32.mrb[0].mxu0
      %v617 = vadd.f32 0.0, %v616
      %v618 = vpop.f32.mrb[0].mxu0
      %619 = vdwg.mxu0
      %620 = vmatprep.subr.mxu0 0.0
      %621 = vmatpush1.msra.mxu0 %v251
      %622 = vmatprep.subr.mxu0 0.0
      %623 = vmatpush1.msra.mxu0 %v252
      %624 = vmatprep.subr.mxu0 0.0
      %625 = vmatpush1.msra.mxu0 %v253
      %626 = vmatprep.subr.mxu0 0.0
      %627 = vmatpush1.msra.mxu0 %v254
      %628 = vmatprep.subr.mxu0 0.0
      %629 = vmatpush1.msra.mxu0 0.0
      %630 = vmatprep.subr.mxu0 0.0
      %631 = vmatpush1.msra.mxu0 0.0
      %632 = vmatprep.subr.mxu0 0.0
      %633 = vmatpush1.msra.mxu0 0.0
      %634 = vmatprep.subr.mxu0 0.0
      %635 = vmatpush1.msra.mxu0 0.0
      %636 = vmatprep.subr.mxu0 0.0
      %637 = vmatpush1.msra.mxu0 0.0
      %638 = vmatprep.subr.mxu0 0.0
      %639 = vmatpush1.msra.mxu0 0.0
      %640 = vmatprep.subr.mxu0 0.0
      %641 = vmatpush1.msra.mxu0 0.0
      %642 = vmatprep.subr.mxu0 0.0
      %643 = vmatpush1.msra.mxu0 0.0
      %644 = vmatprep.subr.mxu0 0.0
      %645 = vmatpush1.msra.mxu0 0.0
      %646 = vmatprep.subr.mxu0 0.0
      %647 = vmatpush1.msra.mxu0 0.0
      %648 = vmatprep.subr.mxu0 0.0
      %649 = vmatpush1.msra.mxu0 0.0
      %650 = vmatprep.subr.mxu0 0.0
      %651 = vmatpush1.msra.mxu0 0.0
      %652 = vmatprep.subr.mxu0 0.0
      %653 = vmatpush1.msra.mxu0 0.0
      %654 = vmatprep.subr.mxu0 0.0
      %655 = vmatpush1.msra.mxu0 0.0
      %656 = vmatprep.subr.mxu0 0.0
      %657 = vmatpush1.msra.mxu0 0.0
      %658 = vmatprep.subr.mxu0 0.0
      %659 = vmatpush1.msra.mxu0 0.0
      %660 = vmatprep.subr.mxu0 0.0
      %661 = vmatpush1.msra.mxu0 0.0
      %662 = vmatprep.subr.mxu0 0.0
      %663 = vmatpush1.msra.mxu0 0.0
      %664 = vmatprep.subr.mxu0 0.0
      %665 = vmatpush1.msra.mxu0 0.0
      %666 = vmatprep.subr.mxu0 0.0
      %667 = vmatpush1.msra.mxu0 0.0
      %668 = vmatprep.subr.mxu0 0.0
      %669 = vmatpush1.msra.mxu0 0.0
      %670 = vmatprep.subr.mxu0 0.0
      %671 = vmatpush1.msra.mxu0 0.0
      %672 = vmatprep.subr.mxu0 0.0
      %673 = vmatpush1.msra.mxu0 0.0
      %674 = vmatprep.subr.mxu0 0.0
      %675 = vmatpush1.msra.mxu0 0.0
      %676 = vmatprep.subr.mxu0 0.0
      %677 = vmatpush1.msra.mxu0 0.0
      %678 = vmatprep.subr.mxu0 0.0
      %679 = vmatpush1.msra.mxu0 0.0
      %680 = vmatprep.subr.mxu0 0.0
      %681 = vmatpush1.msra.mxu0 0.0
      %682 = vmatprep.subr.mxu0 0.0
      %683 = vmatpush1.msra.mxu0 0.0
      %684 = vmatprep.mubr.f32.mxu0 0.0
      %685 = vmatmul.mubr.f32.gmra.mrb[0].mxu0 %v500
      %v686 = vpop.f32.mrb[0].mxu0
      %v687 = vadd.f32 %v587, %v686
      %v688 = vpop.f32.mrb[0].mxu0
      %689 = vmatprep.mubr.f32.mxu0 0.0
      %690 = vmatmul.mubr.f32.gmra.mrb[0].mxu0 %v503
      %v691 = vpop.f32.mrb[0].mxu0
      %v692 = vadd.f32 %v592, %v691
      %v693 = vpop.f32.mrb[0].mxu0
      %694 = vmatprep.mubr.f32.mxu0 0.0
      %695 = vmatmul.mubr.f32.gmra.mrb[0].mxu0 %v506
      %v696 = vpop.f32.mrb[0].mxu0
      %v697 = vadd.f32 %v597, %v696
      %v698 = vpop.f32.mrb[0].mxu0
      %699 = vmatprep.mubr.f32.mxu0 0.0
      %700 = vmatmul.mubr.f32.gmra.mrb[0].mxu0 %v509
      %v701 = vpop.f32.mrb[0].mxu0
      %v702 = vadd.f32 %v602, %v701
      %v703 = vpop.f32.mrb[0].mxu0
      %704 = vmatprep.mubr.f32.mxu0 0.0
      %705 = vmatmul.mubr.f32.gmra.mrb[0].mxu0 %v512
      %v706 = vpop.f32.mrb[0].mxu0
      %v707 = vadd.f32 %v607, %v706
      %v708 = vpop.f32.mrb[0].mxu0
      %709 = vmatprep.mubr.f32.mxu0 0.0
      %710 = vmatmul.mubr.f32.gmra.mrb[0].mxu0 %v515
      %v711 = vpop.f32.mrb[0].mxu0
      %v712 = vadd.f32 %v612, %v711
      %v713 = vpop.f32.mrb[0].mxu0
      %714 = vmatprep.mubr.f32.mxu0 0.0
      %715 = vmatmul.mubr.f32.gmra.mrb[0].mxu0 %v518
      %v716 = vpop.f32.mrb[0].mxu0
      %v717 = vadd.f32 %v617, %v716
      %v718 = vpop.f32.mrb[0].mxu0
      %719 = vdwg.mxu0
      %v720 = vmax.f32 %v444, %v687
      %v721 = vmax.f32 %v449, %v692
      %v722 = vmax.f32 %v454, %v697
      %v723 = vmax.f32 %v459, %v702
      %v724 = vmax.f32 %v464, %v707
      %v725 = vmax.f32 %v469, %v712
      %v726 = vmax.f32 %v474, %v717
      %s727 = scalar_lea.vmem %s192, 336
      %v728 = vld [vmem:[%s727] sm:$0xff]
      %v729 = vld [vmem:[%s727 + $0x8] sm:$0xff]
      %v730 = vld [vmem:[%s727 + $0x10] sm:$0xff]
      %v731 = vld [vmem:[%s727 + $0x18] sm:$0xff]
      %v732 = vld [vmem:[%s727 + $0x20] sm:$0xff]
      %v733 = vld [vmem:[%s727 + $0x28] sm:$0xff]
      %v734 = vld [vmem:[%s727 + $0x30] sm:$0xff]
      %v735 = vld [vmem:[%s727 + $0x38] sm:$0xff]
      %v736 = vld [vmem:[%s727 + $0x40] sm:$0xff]
      %v737 = vld [vmem:[%s727 + $0x48] sm:$0xff]
      %v738 = vld [vmem:[%s727 + $0x50] sm:$0xff]
      %v739 = vld [vmem:[%s727 + $0x58] sm:$0xff]
      %v740 = vld [vmem:[%s727 + $0x60] sm:$0xff]
      %v741 = vld [vmem:[%s727 + $0x68] sm:$0xff]
      %v742 = vld [vmem:[%s727 + $0x70] sm:$0xff]
      %v743 = vld [vmem:[%s727 + $0x78] sm:$0xff]
      %v744 = vld [vmem:[%s727 + $0x80] sm:$0xff]
      %v745 = vld [vmem:[%s727 + $0x88] sm:$0xff]
      %v746 = vld [vmem:[%s727 + $0x90] sm:$0x1]
      %v747 = vld [vmem:[%s727 + $0x98] sm:$0x1]
      %v748 = vld [vmem:[%s727 + $0xa0] sm:$0x1]
      %v750 = vsel %vm255, %v730, 0
      %v753 = vsel %vm255, %v733, 0
      %v756 = vsel %vm255, %v736, 0
      %v759 = vsel %vm255, %v739, 0
      %v762 = vsel %vm255, %v742, 0
      %v765 = vsel %vm255, %v745, 0
      %v768 = vsel %vm255, %v748, 0
      %770 = vmatprep.subr.mxu0 0.0
      %771 = vmatpush1.msra.mxu0 %v219
      %772 = vmatprep.subr.mxu0 0.0
      %773 = vmatpush1.msra.mxu0 %v220
      %774 = vmatprep.subr.mxu0 0.0
      %775 = vmatpush1.msra.mxu0 %v221
      %776 = vmatprep.subr.mxu0 0.0
      %777 = vmatpush1.msra.mxu0 %v222
      %778 = vmatprep.subr.mxu0 0.0
      %779 = vmatpush1.msra.mxu0 %v223
      %780 = vmatprep.subr.mxu0 0.0
      %781 = vmatpush1.msra.mxu0 %v224
      %782 = vmatprep.subr.mxu0 0.0
      %783 = vmatpush1.msra.mxu0 %v225
      %784 = vmatprep.subr.mxu0 0.0
      %785 = vmatpush1.msra.mxu0 %v226
      %786 = vmatprep.subr.mxu0 0.0
      %787 = vmatpush1.msra.mxu0 %v227
      %788 = vmatprep.subr.mxu0 0.0
      %789 = vmatpush1.msra.mxu0 %v228
      %790 = vmatprep.subr.mxu0 0.0
      %791 = vmatpush1.msra.mxu0 %v229
      %792 = vmatprep.subr.mxu0 0.0
      %793 = vmatpush1.msra.mxu0 %v230
      %794 = vmatprep.subr.mxu0 0.0
      %795 = vmatpush1.msra.mxu0 %v231
      %796 = vmatprep.subr.mxu0 0.0
      %797 = vmatpush1.msra.mxu0 %v232
      %798 = vmatprep.subr.mxu0 0.0
      %799 = vmatpush1.msra.mxu0 %v233
      %800 = vmatprep.subr.mxu0 0.0
      %801 = vmatpush1.msra.mxu0 %v234
      %802 = vmatprep.subr.mxu0 0.0
      %803 = vmatpush1.msra.mxu0 %v235
      %804 = vmatprep.subr.mxu0 0.0
      %805 = vmatpush1.msra.mxu0 %v236
      %806 = vmatprep.subr.mxu0 0.0
      %807 = vmatpush1.msra.mxu0 %v237
      %808 = vmatprep.subr.mxu0 0.0
      %809 = vmatpush1.msra.mxu0 %v238
      %810 = vmatprep.subr.mxu0 0.0
      %811 = vmatpush1.msra.mxu0 %v239
      %812 = vmatprep.subr.mxu0 0.0
      %813 = vmatpush1.msra.mxu0 %v240
      %814 = vmatprep.subr.mxu0 0.0
      %815 = vmatpush1.msra.mxu0 %v241
      %816 = vmatprep.subr.mxu0 0.0
      %817 = vmatpush1.msra.mxu0 %v242
      %818 = vmatprep.subr.mxu0 0.0
      %819 = vmatpush1.msra.mxu0 %v243
      %820 = vmatprep.subr.mxu0 0.0
      %821 = vmatpush1.msra.mxu0 %v244
      %822 = vmatprep.subr.mxu0 0.0
      %823 = vmatpush1.msra.mxu0 %v245
      %824 = vmatprep.subr.mxu0 0.0
      %825 = vmatpush1.msra.mxu0 %v246
      %826 = vmatprep.subr.mxu0 0.0
      %827 = vmatpush1.msra.mxu0 %v247
      %828 = vmatprep.subr.mxu0 0.0
      %829 = vmatpush1.msra.mxu0 %v248
      %830 = vmatprep.subr.mxu0 0.0
      %831 = vmatpush1.msra.mxu0 %v249
      %832 = vmatprep.subr.mxu0 0.0
      %833 = vmatpush1.msra.mxu0 %v250
      %834 = vmatprep.mubr.f32.mxu0 %v729
      %835 = vmatmul.mubr.f32.gmra.mrb[0].mxu0 %v728
      %v836 = vpop.f32.mrb[0].mxu0
      %v837 = vadd.f32 0.0, %v836
      %v838 = vpop.f32.mrb[0].mxu0
      %839 = vmatprep.mubr.f32.mxu0 %v732
      %840 = vmatmul.mubr.f32.gmra.mrb[0].mxu0 %v731
      %v841 = vpop.f32.mrb[0].mxu0
      %v842 = vadd.f32 0.0, %v841
      %v843 = vpop.f32.mrb[0].mxu0
      %844 = vmatprep.mubr.f32.mxu0 %v735
      %845 = vmatmul.mubr.f32.gmra.mrb[0].mxu0 %v734
      %v846 = vpop.f32.mrb[0].mxu0
      %v847 = vadd.f32 0.0, %v846
      %v848 = vpop.f32.mrb[0].mxu0
      %849 = vmatprep.mubr.f32.mxu0 %v738
      %850 = vmatmul.mubr.f32.gmra.mrb[0].mxu0 %v737
      %v851 = vpop.f32.mrb[0].mxu0
      %v852 = vadd.f32 0.0, %v851
      %v853 = vpop.f32.mrb[0].mxu0
      %854 = vmatprep.mubr.f32.mxu0 %v741
      %855 = vmatmul.mubr.f32.gmra.mrb[0].mxu0 %v740
      %v856 = vpop.f32.mrb[0].mxu0
      %v857 = vadd.f32 0.0, %v856
      %v858 = vpop.f32.mrb[0].mxu0
      %859 = vmatprep.mubr.f32.mxu0 %v744
      %860 = vmatmul.mubr.f32.gmra.mrb[0].mxu0 %v743
      %v861 = vpop.f32.mrb[0].mxu0
      %v862 = vadd.f32 0.0, %v861
      %v863 = vpop.f32.mrb[0].mxu0
      %864 = vmatprep.mubr.f32.mxu0 %v747
      %865 = vmatmul.mubr.f32.gmra.mrb[0].mxu0 %v746
      %v866 = vpop.f32.mrb[0].mxu0
      %v867 = vadd.f32 0.0, %v866
      %v868 = vpop.f32.mrb[0].mxu0
      %869 = vdwg.mxu0
      %870 = vmatprep.subr.mxu0 0.0
      %871 = vmatpush1.msra.mxu0 %v251
      %872 = vmatprep.subr.mxu0 0.0
      %873 = vmatpush1.msra.mxu0 %v252
      %874 = vmatprep.subr.mxu0 0.0
      %875 = vmatpush1.msra.mxu0 %v253
      %876 = vmatprep.subr.mxu0 0.0
      %877 = vmatpush1.msra.mxu0 %v254
      %878 = vmatprep.subr.mxu0 0.0
      %879 = vmatpush1.msra.mxu0 0.0
      %880 = vmatprep.subr.mxu0 0.0
      %881 = vmatpush1.msra.mxu0 0.0
      %882 = vmatprep.subr.mxu0 0.0
      %883 = vmatpush1.msra.mxu0 0.0
      %884 = vmatprep.subr.mxu0 0.0
      %885 = vmatpush1.msra.mxu0 0.0
      %886 = vmatprep.subr.mxu0 0.0
      %887 = vmatpush1.msra.mxu0 0.0
      %888 = vmatprep.subr.mxu0 0.0
      %889 = vmatpush1.msra.mxu0 0.0
      %890 = vmatprep.subr.mxu0 0.0
      %891 = vmatpush1.msra.mxu0 0.0
      %892 = vmatprep.subr.mxu0 0.0
      %893 = vmatpush1.msra.mxu0 0.0
      %894 = vmatprep.subr.mxu0 0.0
      %895 = vmatpush1.msra.mxu0 0.0
      %896 = vmatprep.subr.mxu0 0.0
      %897 = vmatpush1.msra.mxu0 0.0
      %898 = vmatprep.subr.mxu0 0.0
      %899 = vmatpush1.msra.mxu0 0.0
      %900 = vmatprep.subr.mxu0 0.0
      %901 = vmatpush1.msra.mxu0 0.0
      %902 = vmatprep.subr.mxu0 0.0
      %903 = vmatpush1.msra.mxu0 0.0
      %904 = vmatprep.subr.mxu0 0.0
      %905 = vmatpush1.msra.mxu0 0.0
      %906 = vmatprep.subr.mxu0 0.0
      %907 = vmatpush1.msra.mxu0 0.0
      %908 = vmatprep.subr.mxu0 0.0
      %909 = vmatpush1.msra.mxu0 0.0
      %910 = vmatprep.subr.mxu0 0.0
      %911 = vmatpush1.msra.mxu0 0.0
      %912 = vmatprep.subr.mxu0 0.0
      %913 = vmatpush1.msra.mxu0 0.0
      %914 = vmatprep.subr.mxu0 0.0
      %915 = vmatpush1.msra.mxu0 0.0
      %916 = vmatprep.subr.mxu0 0.0
      %917 = vmatpush1.msra.mxu0 0.0
      %918 = vmatprep.subr.mxu0 0.0
      %919 = vmatpush1.msra.mxu0 0.0
      %920 = vmatprep.subr.mxu0 0.0
      %921 = vmatpush1.msra.mxu0 0.0
      %922 = vmatprep.subr.mxu0 0.0
      %923 = vmatpush1.msra.mxu0 0.0
      %924 = vmatprep.subr.mxu0 0.0
      %925 = vmatpush1.msra.mxu0 0.0
      %926 = vmatprep.subr.mxu0 0.0
      %927 = vmatpush1.msra.mxu0 0.0
      %928 = vmatprep.subr.mxu0 0.0
      %929 = vmatpush1.msra.mxu0 0.0
      %930 = vmatprep.subr.mxu0 0.0
      %931 = vmatpush1.msra.mxu0 0.0
      %932 = vmatprep.subr.mxu0 0.0
      %933 = vmatpush1.msra.mxu0 0.0
      %934 = vmatprep.mubr.f32.mxu0 0.0
      %935 = vmatmul.mubr.f32.gmra.mrb[0].mxu0 %v750
      %v936 = vpop.f32.mrb[0].mxu0
      %v937 = vadd.f32 %v837, %v936
      %v938 = vpop.f32.mrb[0].mxu0
      %939 = vmatprep.mubr.f32.mxu0 0.0
      %940 = vmatmul.mubr.f32.gmra.mrb[0].mxu0 %v753
      %v941 = vpop.f32.mrb[0].mxu0
      %v942 = vadd.f32 %v842, %v941
      %v943 = vpop.f32.mrb[0].mxu0
      %944 = vmatprep.mubr.f32.mxu0 0.0
      %945 = vmatmul.mubr.f32.gmra.mrb[0].mxu0 %v756
      %v946 = vpop.f32.mrb[0].mxu0
      %v947 = vadd.f32 %v847, %v946
      %v948 = vpop.f32.mrb[0].mxu0
      %949 = vmatprep.mubr.f32.mxu0 0.0
      %950 = vmatmul.mubr.f32.gmra.mrb[0].mxu0 %v759
      %v951 = vpop.f32.mrb[0].mxu0
      %v952 = vadd.f32 %v852, %v951
      %v953 = vpop.f32.mrb[0].mxu0
      %954 = vmatprep.mubr.f32.mxu0 0.0
      %955 = vmatmul.mubr.f32.gmra.mrb[0].mxu0 %v762
      %v956 = vpop.f32.mrb[0].mxu0
      %v957 = vadd.f32 %v857, %v956
      %v958 = vpop.f32.mrb[0].mxu0
      %959 = vmatprep.mubr.f32.mxu0 0.0
      %960 = vmatmul.mubr.f32.gmra.mrb[0].mxu0 %v765
      %v961 = vpop.f32.mrb[0].mxu0
      %v962 = vadd.f32 %v862, %v961
      %v963 = vpop.f32.mrb[0].mxu0
      %964 = vmatprep.mubr.f32.mxu0 0.0
      %965 = vmatmul.mubr.f32.gmra.mrb[0].mxu0 %v768
      %v966 = vpop.f32.mrb[0].mxu0
      %v967 = vadd.f32 %v867, %v966
      %v968 = vpop.f32.mrb[0].mxu0
      %969 = vdwg.mxu0
      %v970 = vmax.f32 %v720, %v937
      %v971 = vmax.f32 %v721, %v942
      %v972 = vmax.f32 %v722, %v947
      %v973 = vmax.f32 %v723, %v952
      %v974 = vmax.f32 %v724, %v957
      %v975 = vmax.f32 %v725, %v962
      %v976 = vmax.f32 %v726, %v967
      %s977 = scalar_lea.vmem %s192, 504
      %v978 = vld [vmem:[%s977] sm:$0xff]
      %v979 = vld [vmem:[%s977 + $0x8] sm:$0xff]
      %v980 = vld [vmem:[%s977 + $0x10] sm:$0xff]
      %v981 = vld [vmem:[%s977 + $0x18] sm:$0xff]
      %v982 = vld [vmem:[%s977 + $0x20] sm:$0xff]
      %v983 = vld [vmem:[%s977 + $0x28] sm:$0xff]
      %v984 = vld [vmem:[%s977 + $0x30] sm:$0xff]
      %v985 = vld [vmem:[%s977 + $0x38] sm:$0xff]
      %v986 = vld [vmem:[%s977 + $0x40] sm:$0xff]
      %v987 = vld [vmem:[%s977 + $0x48] sm:$0xff]
      %v988 = vld [vmem:[%s977 + $0x50] sm:$0xff]
      %v989 = vld [vmem:[%s977 + $0x58] sm:$0xff]
      %v990 = vld [vmem:[%s977 + $0x60] sm:$0xff]
      %v991 = vld [vmem:[%s977 + $0x68] sm:$0xff]
      %v992 = vld [vmem:[%s977 + $0x70] sm:$0xff]
      %v993 = vld [vmem:[%s977 + $0x78] sm:$0xff]
      %v994 = vld [vmem:[%s977 + $0x80] sm:$0xff]
      %v995 = vld [vmem:[%s977 + $0x88] sm:$0xff]
      %v996 = vld [vmem:[%s977 + $0x90] sm:$0x1]
      %v997 = vld [vmem:[%s977 + $0x98] sm:$0x1]
      %v998 = vld [vmem:[%s977 + $0xa0] sm:$0x1]
      %v1000 = vsel %vm255, %v980, 0
      %v1003 = vsel %vm255, %v983, 0
      %v1006 = vsel %vm255, %v986, 0
      %v1009 = vsel %vm255, %v989, 0
      %v1012 = vsel %vm255, %v992, 0
      %v1015 = vsel %vm255, %v995, 0
      %v1018 = vsel %vm255, %v998, 0
      %1020 = vmatprep.subr.mxu0 0.0
      %1021 = vmatpush1.msra.mxu0 %v219
      %1022 = vmatprep.subr.mxu0 0.0
      %1023 = vmatpush1.msra.mxu0 %v220
      %1024 = vmatprep.subr.mxu0 0.0
      %1025 = vmatpush1.msra.mxu0 %v221
      %1026 = vmatprep.subr.mxu0 0.0
      %1027 = vmatpush1.msra.mxu0 %v222
      %1028 = vmatprep.subr.mxu0 0.0
      %1029 = vmatpush1.msra.mxu0 %v223
      %1030 = vmatprep.subr.mxu0 0.0
      %1031 = vmatpush1.msra.mxu0 %v224
      %1032 = vmatprep.subr.mxu0 0.0
      %1033 = vmatpush1.msra.mxu0 %v225
      %1034 = vmatprep.subr.mxu0 0.0
      %1035 = vmatpush1.msra.mxu0 %v226
      %1036 = vmatprep.subr.mxu0 0.0
      %1037 = vmatpush1.msra.mxu0 %v227
      %1038 = vmatprep.subr.mxu0 0.0
      %1039 = vmatpush1.msra.mxu0 %v228
      %1040 = vmatprep.subr.mxu0 0.0
      %1041 = vmatpush1.msra.mxu0 %v229
      %1042 = vmatprep.subr.mxu0 0.0
      %1043 = vmatpush1.msra.mxu0 %v230
      %1044 = vmatprep.subr.mxu0 0.0
      %1045 = vmatpush1.msra.mxu0 %v231
      %1046 = vmatprep.subr.mxu0 0.0
      %1047 = vmatpush1.msra.mxu0 %v232
      %1048 = vmatprep.subr.mxu0 0.0
      %1049 = vmatpush1.msra.mxu0 %v233
      %1050 = vmatprep.subr.mxu0 0.0
      %1051 = vmatpush1.msra.mxu0 %v234
      %1052 = vmatprep.subr.mxu0 0.0
      %1053 = vmatpush1.msra.mxu0 %v235
      %1054 = vmatprep.subr.mxu0 0.0
      %1055 = vmatpush1.msra.mxu0 %v236
      %1056 = vmatprep.subr.mxu0 0.0
      %1057 = vmatpush1.msra.mxu0 %v237
      %1058 = vmatprep.subr.mxu0 0.0
      %1059 = vmatpush1.msra.mxu0 %v238
      %1060 = vmatprep.subr.mxu0 0.0
      %1061 = vmatpush1.msra.mxu0 %v239
      %1062 = vmatprep.subr.mxu0 0.0
      %1063 = vmatpush1.msra.mxu0 %v240
      %1064 = vmatprep.subr.mxu0 0.0
      %1065 = vmatpush1.msra.mxu0 %v241
      %1066 = vmatprep.subr.mxu0 0.0
      %1067 = vmatpush1.msra.mxu0 %v242
      %1068 = vmatprep.subr.mxu0 0.0
      %1069 = vmatpush1.msra.mxu0 %v243
      %1070 = vmatprep.subr.mxu0 0.0
      %1071 = vmatpush1.msra.mxu0 %v244
      %1072 = vmatprep.subr.mxu0 0.0
      %1073 = vmatpush1.msra.mxu0 %v245
      %1074 = vmatprep.subr.mxu0 0.0
      %1075 = vmatpush1.msra.mxu0 %v246
      %1076 = vmatprep.subr.mxu0 0.0
      %1077 = vmatpush1.msra.mxu0 %v247
      %1078 = vmatprep.subr.mxu0 0.0
      %1079 = vmatpush1.msra.mxu0 %v248
      %1080 = vmatprep.subr.mxu0 0.0
      %1081 = vmatpush1.msra.mxu0 %v249
      %1082 = vmatprep.subr.mxu0 0.0
      %1083 = vmatpush1.msra.mxu0 %v250
      %1084 = vmatprep.mubr.f32.mxu0 %v979
      %1085 = vmatmul.mubr.f32.gmra.mrb[0].mxu0 %v978
      %v1086 = vpop.f32.mrb[0].mxu0
      %v1087 = vadd.f32 0.0, %v1086
      %v1088 = vpop.f32.mrb[0].mxu0
      %1089 = vmatprep.mubr.f32.mxu0 %v982
      %1090 = vmatmul.mubr.f32.gmra.mrb[0].mxu0 %v981
      %v1091 = vpop.f32.mrb[0].mxu0
      %v1092 = vadd.f32 0.0, %v1091
      %v1093 = vpop.f32.mrb[0].mxu0
      %1094 = vmatprep.mubr.f32.mxu0 %v985
      %1095 = vmatmul.mubr.f32.gmra.mrb[0].mxu0 %v984
      %v1096 = vpop.f32.mrb[0].mxu0
      %v1097 = vadd.f32 0.0, %v1096
      %v1098 = vpop.f32.mrb[0].mxu0
      %1099 = vmatprep.mubr.f32.mxu0 %v988
      %1100 = vmatmul.mubr.f32.gmra.mrb[0].mxu0 %v987
      %v1101 = vpop.f32.mrb[0].mxu0
      %v1102 = vadd.f32 0.0, %v1101
      %v1103 = vpop.f32.mrb[0].mxu0
      %1104 = vmatprep.mubr.f32.mxu0 %v991
      %1105 = vmatmul.mubr.f32.gmra.mrb[0].mxu0 %v990
      %v1106 = vpop.f32.mrb[0].mxu0
      %v1107 = vadd.f32 0.0, %v1106
      %v1108 = vpop.f32.mrb[0].mxu0
      %1109 = vmatprep.mubr.f32.mxu0 %v994
      %1110 = vmatmul.mubr.f32.gmra.mrb[0].mxu0 %v993
      %v1111 = vpop.f32.mrb[0].mxu0
      %v1112 = vadd.f32 0.0, %v1111
      %v1113 = vpop.f32.mrb[0].mxu0
      %1114 = vmatprep.mubr.f32.mxu0 %v997
      %1115 = vmatmul.mubr.f32.gmra.mrb[0].mxu0 %v996
      %v1116 = vpop.f32.mrb[0].mxu0
      %v1117 = vadd.f32 0.0, %v1116
      %v1118 = vpop.f32.mrb[0].mxu0
      %1119 = vdwg.mxu0
      %1120 = vmatprep.subr.mxu0 0.0
      %1121 = vmatpush1.msra.mxu0 %v251
      %1122 = vmatprep.subr.mxu0 0.0
      %1123 = vmatpush1.msra.mxu0 %v252
      %1124 = vmatprep.subr.mxu0 0.0
      %1125 = vmatpush1.msra.mxu0 %v253
      %1126 = vmatprep.subr.mxu0 0.0
      %1127 = vmatpush1.msra.mxu0 %v254
      %1128 = vmatprep.subr.mxu0 0.0
      %1129 = vmatpush1.msra.mxu0 0.0
      %1130 = vmatprep.subr.mxu0 0.0
      %1131 = vmatpush1.msra.mxu0 0.0
      %1132 = vmatprep.subr.mxu0 0.0
      %1133 = vmatpush1.msra.mxu0 0.0
      %1134 = vmatprep.subr.mxu0 0.0
      %1135 = vmatpush1.msra.mxu0 0.0
      %1136 = vmatprep.subr.mxu0 0.0
      %1137 = vmatpush1.msra.mxu0 0.0
      %1138 = vmatprep.subr.mxu0 0.0
      %1139 = vmatpush1.msra.mxu0 0.0
      %1140 = vmatprep.subr.mxu0 0.0
      %1141 = vmatpush1.msra.mxu0 0.0
      %1142 = vmatprep.subr.mxu0 0.0
      %1143 = vmatpush1.msra.mxu0 0.0
      %1144 = vmatprep.subr.mxu0 0.0
      %1145 = vmatpush1.msra.mxu0 0.0
      %1146 = vmatprep.subr.mxu0 0.0
      %1147 = vmatpush1.msra.mxu0 0.0
      %1148 = vmatprep.subr.mxu0 0.0
      %1149 = vmatpush1.msra.mxu0 0.0
      %1150 = vmatprep.subr.mxu0 0.0
      %1151 = vmatpush1.msra.mxu0 0.0
      %1152 = vmatprep.subr.mxu0 0.0
      %1153 = vmatpush1.msra.mxu0 0.0
      %1154 = vmatprep.subr.mxu0 0.0
      %1155 = vmatpush1.msra.mxu0 0.0
      %1156 = vmatprep.subr.mxu0 0.0
      %1157 = vmatpush1.msra.mxu0 0.0
      %1158 = vmatprep.subr.mxu0 0.0
      %1159 = vmatpush1.msra.mxu0 0.0
      %1160 = vmatprep.subr.mxu0 0.0
      %1161 = vmatpush1.msra.mxu0 0.0
      %1162 = vmatprep.subr.mxu0 0.0
      %1163 = vmatpush1.msra.mxu0 0.0
      %1164 = vmatprep.subr.mxu0 0.0
      %1165 = vmatpush1.msra.mxu0 0.0
      %1166 = vmatprep.subr.mxu0 0.0
      %1167 = vmatpush1.msra.mxu0 0.0
      %1168 = vmatprep.subr.mxu0 0.0
      %1169 = vmatpush1.msra.mxu0 0.0
      %1170 = vmatprep.subr.mxu0 0.0
      %1171 = vmatpush1.msra.mxu0 0.0
      %1172 = vmatprep.subr.mxu0 0.0
      %1173 = vmatpush1.msra.mxu0 0.0
      %1174 = vmatprep.subr.mxu0 0.0
      %1175 = vmatpush1.msra.mxu0 0.0
      %1176 = vmatprep.subr.mxu0 0.0
      %1177 = vmatpush1.msra.mxu0 0.0
      %1178 = vmatprep.subr.mxu0 0.0
      %1179 = vmatpush1.msra.mxu0 0.0
      %1180 = vmatprep.subr.mxu0 0.0
      %1181 = vmatpush1.msra.mxu0 0.0
      %1182 = vmatprep.subr.mxu0 0.0
      %1183 = vmatpush1.msra.mxu0 0.0
      %1184 = vmatprep.mubr.f32.mxu0 0.0
      %1185 = vmatmul.mubr.f32.gmra.mrb[0].mxu0 %v1000
      %v1186 = vpop.f32.mrb[0].mxu0
      %v1187 = vadd.f32 %v1087, %v1186
      %v1188 = vpop.f32.mrb[0].mxu0
      %1189 = vmatprep.mubr.f32.mxu0 0.0
      %1190 = vmatmul.mubr.f32.gmra.mrb[0].mxu0 %v1003
      %v1191 = vpop.f32.mrb[0].mxu0
      %v1192 = vadd.f32 %v1092, %v1191
      %v1193 = vpop.f32.mrb[0].mxu0
      %1194 = vmatprep.mubr.f32.mxu0 0.0
      %1195 = vmatmul.mubr.f32.gmra.mrb[0].mxu0 %v1006
      %v1196 = vpop.f32.mrb[0].mxu0
      %v1197 = vadd.f32 %v1097, %v1196
      %v1198 = vpop.f32.mrb[0].mxu0
      %1199 = vmatprep.mubr.f32.mxu0 0.0
      %1200 = vmatmul.mubr.f32.gmra.mrb[0].mxu0 %v1009
      %v1201 = vpop.f32.mrb[0].mxu0
      %v1202 = vadd.f32 %v1102, %v1201
      %v1203 = vpop.f32.mrb[0].mxu0
      %1204 = vmatprep.mubr.f32.mxu0 0.0
      %1205 = vmatmul.mubr.f32.gmra.mrb[0].mxu0 %v1012
      %v1206 = vpop.f32.mrb[0].mxu0
      %v1207 = vadd.f32 %v1107, %v1206
      %v1208 = vpop.f32.mrb[0].mxu0
      %1209 = vmatprep.mubr.f32.mxu0 0.0
      %1210 = vmatmul.mubr.f32.gmra.mrb[0].mxu0 %v1015
      %v1211 = vpop.f32.mrb[0].mxu0
      %v1212 = vadd.f32 %v1112, %v1211
      %v1213 = vpop.f32.mrb[0].mxu0
      %1214 = vmatprep.mubr.f32.mxu0 0.0
      %1215 = vmatmul.mubr.f32.gmra.mrb[0].mxu0 %v1018
      %v1216 = vpop.f32.mrb[0].mxu0
      %v1217 = vadd.f32 %v1117, %v1216
      %v1218 = vpop.f32.mrb[0].mxu0
      %1219 = vdwg.mxu0
      %v1220 = vmax.f32 %v970, %v1187
      %v1221 = vmax.f32 %v971, %v1192
      %v1222 = vmax.f32 %v972, %v1197
      %v1223 = vmax.f32 %v973, %v1202
      %v1224 = vmax.f32 %v974, %v1207
      %v1225 = vmax.f32 %v975, %v1212
      %v1226 = vmax.f32 %v976, %v1217
      %v1227 = vld [vmem:[%s2] sm:$0x1]
      %v1229 = vlaneseq
      %v1230 = vshrl.u32 %v1229, 7
      %v1231 = vsub.s32 0, %v1230
      %v1232 = vrot.slane %v1227, %v1231
      %v1234 = vadd.f32 %v1220, %v1232
      %v1235 = vadd.f32 %v1221, %v1232
      %v1236 = vadd.f32 %v1222, %v1232
      %v1237 = vadd.f32 %v1223, %v1232
      %v1238 = vadd.f32 %v1224, %v1232
      %v1239 = vadd.f32 %v1225, %v1232
      %v1240 = vadd.f32 %v1226, %v1232
      %v1241 = vmax.f32 %v1234, 0.0
      %v1242 = vmax.f32 %v1235, 0.0
      %v1243 = vmax.f32 %v1236, 0.0
      %v1244 = vmax.f32 %v1237, 0.0
      %v1245 = vmax.f32 %v1238, 0.0
      %v1246 = vmax.f32 %v1239, 0.0
      %v1247 = vmax.f32 %v1240, 0.0
      %v1248 = vld [vmem:[%s3] sm:$0xff]
      %v1249 = vld [vmem:[%s3 + $0x8] sm:$0xff]
      %v1250 = vld [vmem:[%s3 + $0x10] sm:$0xff]
      %v1251 = vld [vmem:[%s3 + $0x18] sm:$0xff]
      %v1252 = vld [vmem:[%s3 + $0x20] sm:$0xf]
      %vm1253 = vcmask 400384
      %v1255 = vsel %vm1253, %v1248, 0
      %v1258 = vsel %vm1253, %v1249, 0
      %v1261 = vsel %vm1253, %v1250, 0
      %v1264 = vsel %vm1253, %v1251, 0
      %v1267 = vsel %vm1253, %v1252, 0
      %vm1269 = vcmask 1040384
      %v1271 = vsel %vm1269, %v1247, 0
      %1273 = vmatprep.subr.mxu0 0.0
      %1274 = vmatpush1.msra.mxu0 %v1241
      %1275 = vmatprep.subr.mxu0 0.0
      %1276 = vmatpush1.msra.mxu0 %v1242
      %1277 = vmatprep.subr.mxu0 0.0
      %1278 = vmatpush1.msra.mxu0 %v1243
      %1279 = vmatprep.subr.mxu0 0.0
      %1280 = vmatpush1.msra.mxu0 %v1244
      %1281 = vmatprep.subr.mxu0 0.0
      %1282 = vmatpush1.msra.mxu0 %v1245
      %1283 = vmatprep.subr.mxu0 0.0
      %1284 = vmatpush1.msra.mxu0 %v1246
      %1285 = vmatprep.subr.mxu0 0.0
      %1286 = vmatpush1.msra.mxu0 %v1271
      %1287 = vmatprep.subr.mxu0 0.0
      %1288 = vmatpush1.msra.mxu0 0.0
      %1289 = vmatprep.subr.mxu0 0.0
      %1290 = vmatpush1.msra.mxu0 0.0
      %1291 = vmatprep.subr.mxu0 0.0
      %1292 = vmatpush1.msra.mxu0 0.0
      %1293 = vmatprep.subr.mxu0 0.0
      %1294 = vmatpush1.msra.mxu0 0.0
      %1295 = vmatprep.subr.mxu0 0.0
      %1296 = vmatpush1.msra.mxu0 0.0
      %1297 = vmatprep.subr.mxu0 0.0
      %1298 = vmatpush1.msra.mxu0 0.0
      %1299 = vmatprep.subr.mxu0 0.0
      %1300 = vmatpush1.msra.mxu0 0.0
      %1301 = vmatprep.subr.mxu0 0.0
      %1302 = vmatpush1.msra.mxu0 0.0
      %1303 = vmatprep.subr.mxu0 0.0
      %1304 = vmatpush1.msra.mxu0 0.0
      %1305 = vmatprep.subr.mxu0 0.0
      %1306 = vmatpush1.msra.mxu0 0.0
      %1307 = vmatprep.subr.mxu0 0.0
      %1308 = vmatpush1.msra.mxu0 0.0
      %1309 = vmatprep.subr.mxu0 0.0
      %1310 = vmatpush1.msra.mxu0 0.0
      %1311 = vmatprep.subr.mxu0 0.0
      %1312 = vmatpush1.msra.mxu0 0.0
      %1313 = vmatprep.subr.mxu0 0.0
      %1314 = vmatpush1.msra.mxu0 0.0
      %1315 = vmatprep.subr.mxu0 0.0
      %1316 = vmatpush1.msra.mxu0 0.0
      %1317 = vmatprep.subr.mxu0 0.0
      %1318 = vmatpush1.msra.mxu0 0.0
      %1319 = vmatprep.subr.mxu0 0.0
      %1320 = vmatpush1.msra.mxu0 0.0
      %1321 = vmatprep.subr.mxu0 0.0
      %1322 = vmatpush1.msra.mxu0 0.0
      %1323 = vmatprep.subr.mxu0 0.0
      %1324 = vmatpush1.msra.mxu0 0.0
      %1325 = vmatprep.subr.mxu0 0.0
      %1326 = vmatpush1.msra.mxu0 0.0
      %1327 = vmatprep.subr.mxu0 0.0
      %1328 = vmatpush1.msra.mxu0 0.0
      %1329 = vmatprep.subr.mxu0 0.0
      %1330 = vmatpush1.msra.mxu0 0.0
      %1331 = vmatprep.subr.mxu0 0.0
      %1332 = vmatpush1.msra.mxu0 0.0
      %1333 = vmatprep.subr.mxu0 0.0
      %1334 = vmatpush1.msra.mxu0 0.0
      %1335 = vmatprep.subr.mxu0 0.0
      %1336 = vmatpush1.msra.mxu0 0.0
      %1337 = vmatprep.mubr.f32.mxu0 0.0
      %1338 = vmatmul.mubr.f32.gmra.mrb[0].mxu0 %v1255
      %v1339 = vpop.f32.mrb[0].mxu0
      %v1340 = vadd.f32 0.0, %v1339
      %v1341 = vpop.f32.mrb[0].mxu0
      %1342 = vmatprep.mubr.f32.mxu0 0.0
      %1343 = vmatmul.mubr.f32.gmra.mrb[0].mxu0 %v1258
      %v1344 = vpop.f32.mrb[0].mxu0
      %v1345 = vadd.f32 0.0, %v1344
      %v1346 = vpop.f32.mrb[0].mxu0
      %1347 = vmatprep.mubr.f32.mxu0 0.0
      %1348 = vmatmul.mubr.f32.gmra.mrb[0].mxu0 %v1261
      %v1349 = vpop.f32.mrb[0].mxu0
      %v1350 = vadd.f32 0.0, %v1349
      %v1351 = vpop.f32.mrb[0].mxu0
      %1352 = vmatprep.mubr.f32.mxu0 0.0
      %1353 = vmatmul.mubr.f32.gmra.mrb[0].mxu0 %v1264
      %v1354 = vpop.f32.mrb[0].mxu0
      %v1355 = vadd.f32 0.0, %v1354
      %v1356 = vpop.f32.mrb[0].mxu0
      %1357 = vmatprep.mubr.f32.mxu0 0.0
      %1358 = vmatmul.mubr.f32.gmra.mrb[0].mxu0 %v1267
      %v1359 = vpop.f32.mrb[0].mxu0
      %v1360 = vadd.f32 0.0, %v1359
      %v1361 = vpop.f32.mrb[0].mxu0
      %1362 = vdwg.mxu0
      %1363 = vst [vmem:[%s197] sm:$0xff] %v1340
      %1364 = vst [vmem:[%s197 + $0x8] sm:$0xff] %v1345
      %1365 = vst [vmem:[%s197 + $0x10] sm:$0xff] %v1350
      %1366 = vst [vmem:[%s197 + $0x18] sm:$0xff] %v1355
      %1367 = vst [vmem:[%s197 + $0x20] sm:$0xf] %v1360
      %p1368 = scmp.lt.s32.totalorder %s15, 1
      %s1369 = scalar_select %p1368, %s15, 1
      %s1370 = smul.addr %s1369, 5
      %s1371 = smul.addr %s1370, 8
      %s1372 = scalar_lea.vmem %s4, %s1371
      // Predicated region
      $region37: #{alexnet_forward.4} parent=35 // pred_check
        %p1373 = pneg %p122
      $region38: #{alexnet_forward.4} parent=35 // pred_check_branch
        %1375 = sbr.rel (%p1373) target = $region40
      $region39: #{alexnet_forward.4} parent=35 // pred_region
        _
      $region40: #{alexnet_forward.4} parent=35 // pred_fallthru
        _
    $region36: #{alexnet_forward.4} parent=5 // pred_fallthru
      _
    %p1376 = scmp.le.s32.totalorder 2, %s10
    // Predicated region
    $region41: #{alexnet_forward.4} parent=5 // pred_check
      %p1377 = pneg %p1376
    $region42: #{alexnet_forward.4} parent=5 // pred_check_branch
      %1379 = sbr.rel (%p1377) target = $region44
    $region43: #{alexnet_forward.4} parent=5 // pred_region
      %s1380 = ssub.s32 %s10, 2
      // Predicated region
      $region45: #{alexnet_forward.4} parent=43 // pred_check
        %p1381 = pneg %p128
      $region46: #{alexnet_forward.4} parent=43 // pred_check_branch
        %1383 = sbr.rel (%p1381) target = $region48
      $region47: #{alexnet_forward.4} parent=43 // pred_region
        %p1384 = scmp.lt.s32.totalorder %s16, 1
        %s1385 = scalar_select %p1384, %s16, 1
        %s1386 = smul.addr %s1385, 5
        %s1387 = smul.addr %s1386, 8
        %s1388 = scalar_lea.vmem %s4, %s1387
      $region48: #{alexnet_forward.4} parent=43 // pred_fallthru
        _
    $region44: #{alexnet_forward.4} parent=5 // pred_fallthru
      _
  $region6: #{alexnet_forward.4} parent=0 // loop_footer
    %s14 = sadd.s32 1, %s10
  $region7: #{alexnet_forward.4} parent=0 // loop_footer_branch
    %9 = sbr.rel target = $region3
  $region8: #{alexnet_forward.4} parent=0 // loop_exit
    _

// kernel: alexnet_forward.5
$region0: #{alexnet_forward.5}
  #allocation0 [shape = 'u32[]', space=smem, size = 0x4, offset = 0x4, fixed_abs, tag = 'smem constant byte address 0x4 - core index']
  #allocation1 [shape = 'u32[144,128]{1,0:T(1,128)}', space=vmem, size = 0x12000, scoped, tag = 'internal scratch']
  %s0 = inlined_call_operand.vmem [shape: f32[8,2304], index: 0, kind: input, shape index: {}]
  %s1 = inlined_call_operand.vmem [shape: bf16[2304,1024], index: 1, kind: input, shape index: {}]
  %s2 = inlined_call_operand.vmem [shape: f32[1,1024], index: 2, kind: input, shape index: {}]
  %s3 = inlined_call_operand.vmem [shape: bf16[1024,128], index: 3, kind: input, shape index: {}]
  %s4 = inlined_call_operand.vmem [shape: f32[1,128], index: 4, kind: input, shape index: {}]
  %s5 = inlined_call_operand.vmem [shape: f32[8,128], index: 5, kind: output, shape index: {}]
  %s6 = sld [smem:[#allocation0]]
  $region30: #{alexnet_forward.5} parent=0
    _
  %s8 = ssub.s32 1, %s6
  %s9 = scalar_select 0, %s8, %s6
  // Predicated region
  $region2: #{alexnet_forward.5} parent=0 // pred_check
    _
  $region3: #{alexnet_forward.5} parent=0 // pred_check_branch
    %11 = sbr.rel (0) target = $region5
  $region4: #{alexnet_forward.5} parent=0 // pred_region
    _
  $region5: #{alexnet_forward.5} parent=0 // pred_fallthru
    _
  // Predicated region
  $region6: #{alexnet_forward.5} parent=0 // pred_check
    _
  $region7: #{alexnet_forward.5} parent=0 // pred_check_branch
    %13 = sbr.rel (0) target = $region9
  $region8: #{alexnet_forward.5} parent=0 // pred_region
    _
  $region9: #{alexnet_forward.5} parent=0 // pred_fallthru
    _
  // Predicated region
  $region10: #{alexnet_forward.5} parent=0 // pred_check
    _
  $region11: #{alexnet_forward.5} parent=0 // pred_check_branch
    %15 = sbr.rel (0) target = $region13
  $region12: #{alexnet_forward.5} parent=0 // pred_region
    _
  $region13: #{alexnet_forward.5} parent=0 // pred_fallthru
    _
  // Predicated region
  $region14: #{alexnet_forward.5} parent=0 // pred_check
    _
  $region15: #{alexnet_forward.5} parent=0 // pred_check_branch
    %17 = sbr.rel (0) target = $region17
  $region16: #{alexnet_forward.5} parent=0 // pred_region
    _
  $region17: #{alexnet_forward.5} parent=0 // pred_fallthru
    _
  // Predicated region
  $region18: #{alexnet_forward.5} parent=0 // pred_check
    _
  $region19: #{alexnet_forward.5} parent=0 // pred_check_branch
    %19 = sbr.rel (0) target = $region21
  $region20: #{alexnet_forward.5} parent=0 // pred_region
    _
  $region21: #{alexnet_forward.5} parent=0 // pred_fallthru
    _
  %v21 = vld [vmem:[%s0] sm:$0xff]
  %v22 = vld [vmem:[%s0 + $0x8] sm:$0xff]
  %v23 = vld [vmem:[%s0 + $0x10] sm:$0xff]
  %v24 = vld [vmem:[%s0 + $0x18] sm:$0xff]
  %v25 = vld [vmem:[%s0 + $0x20] sm:$0xff]
  %v26 = vld [vmem:[%s0 + $0x28] sm:$0xff]
  %v27 = vld [vmem:[%s0 + $0x30] sm:$0xff]
  %v28 = vld [vmem:[%s0 + $0x38] sm:$0xff]
  %v29 = vld [vmem:[%s0 + $0x40] sm:$0xff]
  %v30 = vld [vmem:[%s0 + $0x48] sm:$0xff]
  %v31 = vld [vmem:[%s0 + $0x50] sm:$0xff]
  %v32 = vld [vmem:[%s0 + $0x58] sm:$0xff]
  %v33 = vld [vmem:[%s0 + $0x60] sm:$0xff]
  %v34 = vld [vmem:[%s0 + $0x68] sm:$0xff]
  %v35 = vld [vmem:[%s0 + $0x70] sm:$0xff]
  %v36 = vld [vmem:[%s0 + $0x78] sm:$0xff]
  %v37 = vld [vmem:[%s0 + $0x80] sm:$0xff]
  %v38 = vld [vmem:[%s0 + $0x88] sm:$0xff]
  %v39 = vpack.c.bf16 %v21, %v21
  %v40 = vpack.c.bf16 %v22, %v22
  %v41 = vpack.c.bf16 %v23, %v23
  %v42 = vpack.c.bf16 %v24, %v24
  %v43 = vpack.c.bf16 %v25, %v25
  %v44 = vpack.c.bf16 %v26, %v26
  %v45 = vpack.c.bf16 %v27, %v27
  %v46 = vpack.c.bf16 %v28, %v28
  %v47 = vpack.c.bf16 %v29, %v29
  %v48 = vpack.c.bf16 %v30, %v30
  %v49 = vpack.c.bf16 %v31, %v31
  %v50 = vpack.c.bf16 %v32, %v32
  %v51 = vpack.c.bf16 %v33, %v33
  %v52 = vpack.c.bf16 %v34, %v34
  %v53 = vpack.c.bf16 %v35, %v35
  %v54 = vpack.c.bf16 %v36, %v36
  %v55 = vpack.c.bf16 %v37, %v37
  %v56 = vpack.c.bf16 %v38, %v38
  %v57 = vld [vmem:[%s1] sm:$0xff]
  %v58 = vld [vmem:[%s1 + $0x8] sm:$0xff]
  %v59 = vld [vmem:[%s1 + $0x10] sm:$0xff]
  %v60 = vld [vmem:[%s1 + $0x18] sm:$0xff]
  %v61 = vld [vmem:[%s1 + $0x20] sm:$0xff]
  %v62 = vld [vmem:[%s1 + $0x28] sm:$0xff]
  %v63 = vld [vmem:[%s1 + $0x30] sm:$0xff]
  %v64 = vld [vmem:[%s1 + $0x38] sm:$0xff]
  %v65 = vld [vmem:[%s1 + $0x40] sm:$0xff]
  %v66 = vld [vmem:[%s1 + $0x48] sm:$0xff]
  %v67 = vld [vmem:[%s1 + $0x50] sm:$0xff]
  %v68 = vld [vmem:[%s1 + $0x58] sm:$0xff]
  %v69 = vld [vmem:[%s1 + $0x60] sm:$0xff]
  %v70 = vld [vmem:[%s1 + $0x68] sm:$0xff]
  %v71 = vld [vmem:[%s1 + $0x70] sm:$0xff]
  %v72 = vld [vmem:[%s1 + $0x78] sm:$0xff]
  %v73 = vld [vmem:[%s1 + $0x80] sm:$0xff]
  %v74 = vld [vmem:[%s1 + $0x88] sm:$0xff]
  %v75 = vld [vmem:[%s1 + $0x90] sm:$0xff]
  %v76 = vld [vmem:[%s1 + $0x98] sm:$0xff]
  %v77 = vld [vmem:[%s1 + $0xa0] sm:$0xff]
  %v78 = vld [vmem:[%s1 + $0xa8] sm:$0xff]
  %v79 = vld [vmem:[%s1 + $0xb0] sm:$0xff]
  %v80 = vld [vmem:[%s1 + $0xb8] sm:$0xff]
  %v81 = vld [vmem:[%s1 + $0xc0] sm:$0xff]
  %v82 = vld [vmem:[%s1 + $0xc8] sm:$0xff]
  %v83 = vld [vmem:[%s1 + $0xd0] sm:$0xff]
  %v84 = vld [vmem:[%s1 + $0xd8] sm:$0xff]
  %v85 = vld [vmem:[%s1 + $0xe0] sm:$0xff]
  %v86 = vld [vmem:[%s1 + $0xe8] sm:$0xff]
  %v87 = vld [vmem:[%s1 + $0xf0] sm:$0xff]
  %v88 = vld [vmem:[%s1 + $0xf8] sm:$0xff]
  %v89 = vld [vmem:[%s1 + $0x100] sm:$0xff]
  %v90 = vld [vmem:[%s1 + $0x108] sm:$0xff]
  %v91 = vld [vmem:[%s1 + $0x110] sm:$0xff]
  %v92 = vld [vmem:[%s1 + $0x118] sm:$0xff]
  %v93 = vld [vmem:[%s1 + $0x120] sm:$0xff]
  %v94 = vld [vmem:[%s1 + $0x128] sm:$0xff]
  %v95 = vld [vmem:[%s1 + $0x130] sm:$0xff]
  %v96 = vld [vmem:[%s1 + $0x138] sm:$0xff]
  %v97 = vld [vmem:[%s1 + $0x140] sm:$0xff]
  %v98 = vld [vmem:[%s1 + $0x148] sm:$0xff]
  %v99 = vld [vmem:[%s1 + $0x150] sm:$0xff]
  %v100 = vld [vmem:[%s1 + $0x158] sm:$0xff]
  %v101 = vld [vmem:[%s1 + $0x160] sm:$0xff]
  %v102 = vld [vmem:[%s1 + $0x168] sm:$0xff]
  %v103 = vld [vmem:[%s1 + $0x170] sm:$0xff]
  %v104 = vld [vmem:[%s1 + $0x178] sm:$0xff]
  %v105 = vld [vmem:[%s1 + $0x180] sm:$0xff]
  %v106 = vld [vmem:[%s1 + $0x188] sm:$0xff]
  %v107 = vld [vmem:[%s1 + $0x190] sm:$0xff]
  %v108 = vld [vmem:[%s1 + $0x198] sm:$0xff]
  %v109 = vld [vmem:[%s1 + $0x1a0] sm:$0xff]
  %v110 = vld [vmem:[%s1 + $0x1a8] sm:$0xff]
  %v111 = vld [vmem:[%s1 + $0x1b0] sm:$0xff]
  %v112 = vld [vmem:[%s1 + $0x1b8] sm:$0xff]
  %v113 = vld [vmem:[%s1 + $0x1c0] sm:$0xff]
  %v114 = vld [vmem:[%s1 + $0x1c8] sm:$0xff]
  %v115 = vld [vmem:[%s1 + $0x1d0] sm:$0xff]
  %v116 = vld [vmem:[%s1 + $0x1d8] sm:$0xff]
  %v117 = vld [vmem:[%s1 + $0x1e0] sm:$0xff]
  %v118 = vld [vmem:[%s1 + $0x1e8] sm:$0xff]
  %v119 = vld [vmem:[%s1 + $0x1f0] sm:$0xff]
  %v120 = vld [vmem:[%s1 + $0x1f8] sm:$0xff]
  %v121 = vld [vmem:[%s1 + $0x200] sm:$0xff]
  %v122 = vld [vmem:[%s1 + $0x208] sm:$0xff]
  %v123 = vld [vmem:[%s1 + $0x210] sm:$0xff]
  %v124 = vld [vmem:[%s1 + $0x218] sm:$0xff]
  %v125 = vld [vmem:[%s1 + $0x220] sm:$0xff]
  %v126 = vld [vmem:[%s1 + $0x228] sm:$0xff]
  %v127 = vld [vmem:[%s1 + $0x230] sm:$0xff]
  %v128 = vld [vmem:[%s1 + $0x238] sm:$0xff]
  %v129 = vld [vmem:[%s1 + $0x240] sm:$0xff]
  %v130 = vld [vmem:[%s1 + $0x248] sm:$0xff]
  %v131 = vld [vmem:[%s1 + $0x250] sm:$0xff]
  %v132 = vld [vmem:[%s1 + $0x258] sm:$0xff]
  %v133 = vld [vmem:[%s1 + $0x260] sm:$0xff]
  %v134 = vld [vmem:[%s1 + $0x268] sm:$0xff]
  %v135 = vld [vmem:[%s1 + $0x270] sm:$0xff]
  %v136 = vld [vmem:[%s1 + $0x278] sm:$0xff]
  %v137 = vld [vmem:[%s1 + $0x280] sm:$0xff]
  %v138 = vld [vmem:[%s1 + $0x288] sm:$0xff]
  %v139 = vld [vmem:[%s1 + $0x290] sm:$0xff]
  %v140 = vld [vmem:[%s1 + $0x298] sm:$0xff]
  %v141 = vld [vmem:[%s1 + $0x2a0] sm:$0xff]
  %v142 = vld [vmem:[%s1 + $0x2a8] sm:$0xff]
  %v143 = vld [vmem:[%s1 + $0x2b0] sm:$0xff]
  %v144 = vld [vmem:[%s1 + $0x2b8] sm:$0xff]
  %v145 = vld [vmem:[%s1 + $0x2c0] sm:$0xff]
  %v146 = vld [vmem:[%s1 + $0x2c8] sm:$0xff]
  %v147 = vld [vmem:[%s1 + $0x2d0] sm:$0xff]
  %v148 = vld [vmem:[%s1 + $0x2d8] sm:$0xff]
  %v149 = vld [vmem:[%s1 + $0x2e0] sm:$0xff]
  %v150 = vld [vmem:[%s1 + $0x2e8] sm:$0xff]
  %v151 = vld [vmem:[%s1 + $0x2f0] sm:$0xff]
  %v152 = vld [vmem:[%s1 + $0x2f8] sm:$0xff]
  %v153 = vld [vmem:[%s1 + $0x300] sm:$0xff]
  %v154 = vld [vmem:[%s1 + $0x308] sm:$0xff]
  %v155 = vld [vmem:[%s1 + $0x310] sm:$0xff]
  %v156 = vld [vmem:[%s1 + $0x318] sm:$0xff]
  %v157 = vld [vmem:[%s1 + $0x320] sm:$0xff]
  %v158 = vld [vmem:[%s1 + $0x328] sm:$0xff]
  %v159 = vld [vmem:[%s1 + $0x330] sm:$0xff]
  %v160 = vld [vmem:[%s1 + $0x338] sm:$0xff]
  %v161 = vld [vmem:[%s1 + $0x340] sm:$0xff]
  %v162 = vld [vmem:[%s1 + $0x348] sm:$0xff]
  %v163 = vld [vmem:[%s1 + $0x350] sm:$0xff]
  %v164 = vld [vmem:[%s1 + $0x358] sm:$0xff]
  %v165 = vld [vmem:[%s1 + $0x360] sm:$0xff]
  %v166 = vld [vmem:[%s1 + $0x368] sm:$0xff]
  %v167 = vld [vmem:[%s1 + $0x370] sm:$0xff]
  %v168 = vld [vmem:[%s1 + $0x378] sm:$0xff]
  %v169 = vld [vmem:[%s1 + $0x380] sm:$0xff]
  %v170 = vld [vmem:[%s1 + $0x388] sm:$0xff]
  %v171 = vld [vmem:[%s1 + $0x390] sm:$0xff]
  %v172 = vld [vmem:[%s1 + $0x398] sm:$0xff]
  %v173 = vld [vmem:[%s1 + $0x3a0] sm:$0xff]
  %v174 = vld [vmem:[%s1 + $0x3a8] sm:$0xff]
  %v175 = vld [vmem:[%s1 + $0x3b0] sm:$0xff]
  %v176 = vld [vmem:[%s1 + $0x3b8] sm:$0xff]
  %v177 = vld [vmem:[%s1 + $0x3c0] sm:$0xff]
  %v178 = vld [vmem:[%s1 + $0x3c8] sm:$0xff]
  %v179 = vld [vmem:[%s1 + $0x3d0] sm:$0xff]
  %v180 = vld [vmem:[%s1 + $0x3d8] sm:$0xff]
  %v181 = vld [vmem:[%s1 + $0x3e0] sm:$0xff]
  %v182 = vld [vmem:[%s1 + $0x3e8] sm:$0xff]
  %v183 = vld [vmem:[%s1 + $0x3f0] sm:$0xff]
  %v184 = vld [vmem:[%s1 + $0x3f8] sm:$0xff]
  %v185 = vld [vmem:[%s1 + $0x400] sm:$0xff]
  %v186 = vld [vmem:[%s1 + $0x408] sm:$0xff]
  %v187 = vld [vmem:[%s1 + $0x410] sm:$0xff]
  %v188 = vld [vmem:[%s1 + $0x418] sm:$0xff]
  %v189 = vld [vmem:[%s1 + $0x420] sm:$0xff]
  %v190 = vld [vmem:[%s1 + $0x428] sm:$0xff]
  %v191 = vld [vmem:[%s1 + $0x430] sm:$0xff]
  %v192 = vld [vmem:[%s1 + $0x438] sm:$0xff]
  %v193 = vld [vmem:[%s1 + $0x440] sm:$0xff]
  %v194 = vld [vmem:[%s1 + $0x448] sm:$0xff]
  %v195 = vld [vmem:[%s1 + $0x450] sm:$0xff]
  %v196 = vld [vmem:[%s1 + $0x458] sm:$0xff]
  %v197 = vld [vmem:[%s1 + $0x460] sm:$0xff]
  %v198 = vld [vmem:[%s1 + $0x468] sm:$0xff]
  %v199 = vld [vmem:[%s1 + $0x470] sm:$0xff]
  %v200 = vld [vmem:[%s1 + $0x478] sm:$0xff]
  %v201 = vld [vmem:[%s1 + $0x480] sm:$0xff]
  %v202 = vld [vmem:[%s1 + $0x488] sm:$0xff]
  %v203 = vld [vmem:[%s1 + $0x490] sm:$0xff]
  %v204 = vld [vmem:[%s1 + $0x498] sm:$0xff]
  %v205 = vld [vmem:[%s1 + $0x4a0] sm:$0xff]
  %v206 = vld [vmem:[%s1 + $0x4a8] sm:$0xff]
  %v207 = vld [vmem:[%s1 + $0x4b0] sm:$0xff]
  %v208 = vld [vmem:[%s1 + $0x4b8] sm:$0xff]
  %v209 = vld [vmem:[%s1 + $0x4c0] sm:$0xff]
  %v210 = vld [vmem:[%s1 + $0x4c8] sm:$0xff]
  %v211 = vld [vmem:[%s1 + $0x4d0] sm:$0xff]
  %v212 = vld [vmem:[%s1 + $0x4d8] sm:$0xff]
  %v213 = vld [vmem:[%s1 + $0x4e0] sm:$0xff]
  %v214 = vld [vmem:[%s1 + $0x4e8] sm:$0xff]
  %v215 = vld [vmem:[%s1 + $0x4f0] sm:$0xff]
  %v216 = vld [vmem:[%s1 + $0x4f8] sm:$0xff]
  %v217 = vld [vmem:[%s1 + $0x500] sm:$0xff]
  %v218 = vld [vmem:[%s1 + $0x508] sm:$0xff]
  %v219 = vld [vmem:[%s1 + $0x510] sm:$0xff]
  %v220 = vld [vmem:[%s1 + $0x518] sm:$0xff]
  %v221 = vld [vmem:[%s1 + $0x520] sm:$0xff]
  %v222 = vld [vmem:[%s1 + $0x528] sm:$0xff]
  %v223 = vld [vmem:[%s1 + $0x530] sm:$0xff]
  %v224 = vld [vmem:[%s1 + $0x538] sm:$0xff]
  %v225 = vld [vmem:[%s1 + $0x540] sm:$0xff]
  %v226 = vld [vmem:[%s1 + $0x548] sm:$0xff]
  %v227 = vld [vmem:[%s1 + $0x550] sm:$0xff]
  %v228 = vld [vmem:[%s1 + $0x558] sm:$0xff]
  %v229 = vld [vmem:[%s1 + $0x560] sm:$0xff]
  %v230 = vld [vmem:[%s1 + $0x568] sm:$0xff]
  %v231 = vld [vmem:[%s1 + $0x570] sm:$0xff]
  %v232 = vld [vmem:[%s1 + $0x578] sm:$0xff]
  %v233 = vld [vmem:[%s1 + $0x580] sm:$0xff]
  %v234 = vld [vmem:[%s1 + $0x588] sm:$0xff]
  %v235 = vld [vmem:[%s1 + $0x590] sm:$0xff]
  %v236 = vld [vmem:[%s1 + $0x598] sm:$0xff]
  %v237 = vld [vmem:[%s1 + $0x5a0] sm:$0xff]
  %v238 = vld [vmem:[%s1 + $0x5a8] sm:$0xff]
  %v239 = vld [vmem:[%s1 + $0x5b0] sm:$0xff]
  %v240 = vld [vmem:[%s1 + $0x5b8] sm:$0xff]
  %v241 = vld [vmem:[%s1 + $0x5c0] sm:$0xff]
  %v242 = vld [vmem:[%s1 + $0x5c8] sm:$0xff]
  %v243 = vld [vmem:[%s1 + $0x5d0] sm:$0xff]
  %v244 = vld [vmem:[%s1 + $0x5d8] sm:$0xff]
  %v245 = vld [vmem:[%s1 + $0x5e0] sm:$0xff]
  %v246 = vld [vmem:[%s1 + $0x5e8] sm:$0xff]
  %v247 = vld [vmem:[%s1 + $0x5f0] sm:$0xff]
  %v248 = vld [vmem:[%s1 + $0x5f8] sm:$0xff]
  %v249 = vld [vmem:[%s1 + $0x600] sm:$0xff]
  %v250 = vld [vmem:[%s1 + $0x608] sm:$0xff]
  %v251 = vld [vmem:[%s1 + $0x610] sm:$0xff]
  %v252 = vld [vmem:[%s1 + $0x618] sm:$0xff]
  %v253 = vld [vmem:[%s1 + $0x620] sm:$0xff]
  %v254 = vld [vmem:[%s1 + $0x628] sm:$0xff]
  %v255 = vld [vmem:[%s1 + $0x630] sm:$0xff]
  %v256 = vld [vmem:[%s1 + $0x638] sm:$0xff]
  %v257 = vld [vmem:[%s1 + $0x640] sm:$0xff]
  %v258 = vld [vmem:[%s1 + $0x648] sm:$0xff]
  %v259 = vld [vmem:[%s1 + $0x650] sm:$0xff]
  %v260 = vld [vmem:[%s1 + $0x658] sm:$0xff]
  %v261 = vld [vmem:[%s1 + $0x660] sm:$0xff]
  %v262 = vld [vmem:[%s1 + $0x668] sm:$0xff]
  %v263 = vld [vmem:[%s1 + $0x670] sm:$0xff]
  %v264 = vld [vmem:[%s1 + $0x678] sm:$0xff]
  %v265 = vld [vmem:[%s1 + $0x680] sm:$0xff]
  %v266 = vld [vmem:[%s1 + $0x688] sm:$0xff]
  %v267 = vld [vmem:[%s1 + $0x690] sm:$0xff]
  %v268 = vld [vmem:[%s1 + $0x698] sm:$0xff]
  %v269 = vld [vmem:[%s1 + $0x6a0] sm:$0xff]
  %v270 = vld [vmem:[%s1 + $0x6a8] sm:$0xff]
  %v271 = vld [vmem:[%s1 + $0x6b0] sm:$0xff]
  %v272 = vld [vmem:[%s1 + $0x6b8] sm:$0xff]
  %v273 = vld [vmem:[%s1 + $0x6c0] sm:$0xff]
  %v274 = vld [vmem:[%s1 + $0x6c8] sm:$0xff]
  %v275 = vld [vmem:[%s1 + $0x6d0] sm:$0xff]
  %v276 = vld [vmem:[%s1 + $0x6d8] sm:$0xff]
  %v277 = vld [vmem:[%s1 + $0x6e0] sm:$0xff]
  %v278 = vld [vmem:[%s1 + $0x6e8] sm:$0xff]
  %v279 = vld [vmem:[%s1 + $0x6f0] sm:$0xff]
  %v280 = vld [vmem:[%s1 + $0x6f8] sm:$0xff]
  %v281 = vld [vmem:[%s1 + $0x700] sm:$0xff]
  %v282 = vld [vmem:[%s1 + $0x708] sm:$0xff]
  %v283 = vld [vmem:[%s1 + $0x710] sm:$0xff]
  %v284 = vld [vmem:[%s1 + $0x718] sm:$0xff]
  %v285 = vld [vmem:[%s1 + $0x720] sm:$0xff]
  %v286 = vld [vmem:[%s1 + $0x728] sm:$0xff]
  %v287 = vld [vmem:[%s1 + $0x730] sm:$0xff]
  %v288 = vld [vmem:[%s1 + $0x738] sm:$0xff]
  %v289 = vld [vmem:[%s1 + $0x740] sm:$0xff]
  %v290 = vld [vmem:[%s1 + $0x748] sm:$0xff]
  %v291 = vld [vmem:[%s1 + $0x750] sm:$0xff]
  %v292 = vld [vmem:[%s1 + $0x758] sm:$0xff]
  %v293 = vld [vmem:[%s1 + $0x760] sm:$0xff]
  %v294 = vld [vmem:[%s1 + $0x768] sm:$0xff]
  %v295 = vld [vmem:[%s1 + $0x770] sm:$0xff]
  %v296 = vld [vmem:[%s1 + $0x778] sm:$0xff]
  %v297 = vld [vmem:[%s1 + $0x780] sm:$0xff]
  %v298 = vld [vmem:[%s1 + $0x788] sm:$0xff]
  %v299 = vld [vmem:[%s1 + $0x790] sm:$0xff]
  %v300 = vld [vmem:[%s1 + $0x798] sm:$0xff]
  %v301 = vld [vmem:[%s1 + $0x7a0] sm:$0xff]
  %v302 = vld [vmem:[%s1 + $0x7a8] sm:$0xff]
  %v303 = vld [vmem:[%s1 + $0x7b0] sm:$0xff]
  %v304 = vld [vmem:[%s1 + $0x7b8] sm:$0xff]
  %v305 = vld [vmem:[%s1 + $0x7c0] sm:$0xff]
  %v306 = vld [vmem:[%s1 + $0x7c8] sm:$0xff]
  %v307 = vld [vmem:[%s1 + $0x7d0] sm:$0xff]
  %v308 = vld [vmem:[%s1 + $0x7d8] sm:$0xff]
  %v309 = vld [vmem:[%s1 + $0x7e0] sm:$0xff]
  %v310 = vld [vmem:[%s1 + $0x7e8] sm:$0xff]
  %v311 = vld [vmem:[%s1 + $0x7f0] sm:$0xff]
  %v312 = vld [vmem:[%s1 + $0x7f8] sm:$0xff]
  %v313 = vld [vmem:[%s1 + $0x800] sm:$0xff]
  %v314 = vld [vmem:[%s1 + $0x808] sm:$0xff]
  %v315 = vld [vmem:[%s1 + $0x810] sm:$0xff]
  %v316 = vld [vmem:[%s1 + $0x818] sm:$0xff]
  %v317 = vld [vmem:[%s1 + $0x820] sm:$0xff]
  %v318 = vld [vmem:[%s1 + $0x828] sm:$0xff]
  %v319 = vld [vmem:[%s1 + $0x830] sm:$0xff]
  %v320 = vld [vmem:[%s1 + $0x838] sm:$0xff]
  %v321 = vld [vmem:[%s1 + $0x840] sm:$0xff]
  %v322 = vld [vmem:[%s1 + $0x848] sm:$0xff]
  %v323 = vld [vmem:[%s1 + $0x850] sm:$0xff]
  %v324 = vld [vmem:[%s1 + $0x858] sm:$0xff]
  %v325 = vld [vmem:[%s1 + $0x860] sm:$0xff]
  %v326 = vld [vmem:[%s1 + $0x868] sm:$0xff]
  %v327 = vld [vmem:[%s1 + $0x870] sm:$0xff]
  %v328 = vld [vmem:[%s1 + $0x878] sm:$0xff]
  %v329 = vld [vmem:[%s1 + $0x880] sm:$0xff]
  %v330 = vld [vmem:[%s1 + $0x888] sm:$0xff]
  %v331 = vld [vmem:[%s1 + $0x890] sm:$0xff]
  %v332 = vld [vmem:[%s1 + $0x898] sm:$0xff]
  %v333 = vld [vmem:[%s1 + $0x8a0] sm:$0xff]
  %v334 = vld [vmem:[%s1 + $0x8a8] sm:$0xff]
  %v335 = vld [vmem:[%s1 + $0x8b0] sm:$0xff]
  %v336 = vld [vmem:[%s1 + $0x8b8] sm:$0xff]
  %v337 = vld [vmem:[%s1 + $0x8c0] sm:$0xff]
  %v338 = vld [vmem:[%s1 + $0x8c8] sm:$0xff]
  %v339 = vld [vmem:[%s1 + $0x8d0] sm:$0xff]
  %v340 = vld [vmem:[%s1 + $0x8d8] sm:$0xff]
  %v341 = vld [vmem:[%s1 + $0x8e0] sm:$0xff]
  %v342 = vld [vmem:[%s1 + $0x8e8] sm:$0xff]
  %v343 = vld [vmem:[%s1 + $0x8f0] sm:$0xff]
  %v344 = vld [vmem:[%s1 + $0x8f8] sm:$0xff]
  %v345 = vld [vmem:[%s1 + $0x900] sm:$0xff]
  %v346 = vld [vmem:[%s1 + $0x908] sm:$0xff]
  %v347 = vld [vmem:[%s1 + $0x910] sm:$0xff]
  %v348 = vld [vmem:[%s1 + $0x918] sm:$0xff]
  %v349 = vld [vmem:[%s1 + $0x920] sm:$0xff]
  %v350 = vld [vmem:[%s1 + $0x928] sm:$0xff]
  %v351 = vld [vmem:[%s1 + $0x930] sm:$0xff]
  %v352 = vld [vmem:[%s1 + $0x938] sm:$0xff]
  %v353 = vld [vmem:[%s1 + $0x940] sm:$0xff]
  %v354 = vld [vmem:[%s1 + $0x948] sm:$0xff]
  %v355 = vld [vmem:[%s1 + $0x950] sm:$0xff]
  %v356 = vld [vmem:[%s1 + $0x958] sm:$0xff]
  %v357 = vld [vmem:[%s1 + $0x960] sm:$0xff]
  %v358 = vld [vmem:[%s1 + $0x968] sm:$0xff]
  %v359 = vld [vmem:[%s1 + $0x970] sm:$0xff]
  %v360 = vld [vmem:[%s1 + $0x978] sm:$0xff]
  %v361 = vld [vmem:[%s1 + $0x980] sm:$0xff]
  %v362 = vld [vmem:[%s1 + $0x988] sm:$0xff]
  %v363 = vld [vmem:[%s1 + $0x990] sm:$0xff]
  %v364 = vld [vmem:[%s1 + $0x998] sm:$0xff]
  %v365 = vld [vmem:[%s1 + $0x9a0] sm:$0xff]
  %v366 = vld [vmem:[%s1 + $0x9a8] sm:$0xff]
  %v367 = vld [vmem:[%s1 + $0x9b0] sm:$0xff]
  %v368 = vld [vmem:[%s1 + $0x9b8] sm:$0xff]
  %v369 = vld [vmem:[%s1 + $0x9c0] sm:$0xff]
  %v370 = vld [vmem:[%s1 + $0x9c8] sm:$0xff]
  %v371 = vld [vmem:[%s1 + $0x9d0] sm:$0xff]
  %v372 = vld [vmem:[%s1 + $0x9d8] sm:$0xff]
  %v373 = vld [vmem:[%s1 + $0x9e0] sm:$0xff]
  %v374 = vld [vmem:[%s1 + $0x9e8] sm:$0xff]
  %v375 = vld [vmem:[%s1 + $0x9f0] sm:$0xff]
  %v376 = vld [vmem:[%s1 + $0x9f8] sm:$0xff]
  %v377 = vld [vmem:[%s1 + $0xa00] sm:$0xff]
  %v378 = vld [vmem:[%s1 + $0xa08] sm:$0xff]
  %v379 = vld [vmem:[%s1 + $0xa10] sm:$0xff]
  %v380 = vld [vmem:[%s1 + $0xa18] sm:$0xff]
  %v381 = vld [vmem:[%s1 + $0xa20] sm:$0xff]
  %v382 = vld [vmem:[%s1 + $0xa28] sm:$0xff]
  %v383 = vld [vmem:[%s1 + $0xa30] sm:$0xff]
  %v384 = vld [vmem:[%s1 + $0xa38] sm:$0xff]
  %v385 = vld [vmem:[%s1 + $0xa40] sm:$0xff]
  %v386 = vld [vmem:[%s1 + $0xa48] sm:$0xff]
  %v387 = vld [vmem:[%s1 + $0xa50] sm:$0xff]
  %v388 = vld [vmem:[%s1 + $0xa58] sm:$0xff]
  %v389 = vld [vmem:[%s1 + $0xa60] sm:$0xff]
  %v390 = vld [vmem:[%s1 + $0xa68] sm:$0xff]
  %v391 = vld [vmem:[%s1 + $0xa70] sm:$0xff]
  %v392 = vld [vmem:[%s1 + $0xa78] sm:$0xff]
  %v393 = vld [vmem:[%s1 + $0xa80] sm:$0xff]
  %v394 = vld [vmem:[%s1 + $0xa88] sm:$0xff]
  %v395 = vld [vmem:[%s1 + $0xa90] sm:$0xff]
  %v396 = vld [vmem:[%s1 + $0xa98] sm:$0xff]
  %v397 = vld [vmem:[%s1 + $0xaa0] sm:$0xff]
  %v398 = vld [vmem:[%s1 + $0xaa8] sm:$0xff]
  %v399 = vld [vmem:[%s1 + $0xab0] sm:$0xff]
  %v400 = vld [vmem:[%s1 + $0xab8] sm:$0xff]
  %v401 = vld [vmem:[%s1 + $0xac0] sm:$0xff]
  %v402 = vld [vmem:[%s1 + $0xac8] sm:$0xff]
  %v403 = vld [vmem:[%s1 + $0xad0] sm:$0xff]
  %v404 = vld [vmem:[%s1 + $0xad8] sm:$0xff]
  %v405 = vld [vmem:[%s1 + $0xae0] sm:$0xff]
  %v406 = vld [vmem:[%s1 + $0xae8] sm:$0xff]
  %v407 = vld [vmem:[%s1 + $0xaf0] sm:$0xff]
  %v408 = vld [vmem:[%s1 + $0xaf8] sm:$0xff]
  %v409 = vld [vmem:[%s1 + $0xb00] sm:$0xff]
  %v410 = vld [vmem:[%s1 + $0xb08] sm:$0xff]
  %v411 = vld [vmem:[%s1 + $0xb10] sm:$0xff]
  %v412 = vld [vmem:[%s1 + $0xb18] sm:$0xff]
  %v413 = vld [vmem:[%s1 + $0xb20] sm:$0xff]
  %v414 = vld [vmem:[%s1 + $0xb28] sm:$0xff]
  %v415 = vld [vmem:[%s1 + $0xb30] sm:$0xff]
  %v416 = vld [vmem:[%s1 + $0xb38] sm:$0xff]
  %v417 = vld [vmem:[%s1 + $0xb40] sm:$0xff]
  %v418 = vld [vmem:[%s1 + $0xb48] sm:$0xff]
  %v419 = vld [vmem:[%s1 + $0xb50] sm:$0xff]
  %v420 = vld [vmem:[%s1 + $0xb58] sm:$0xff]
  %v421 = vld [vmem:[%s1 + $0xb60] sm:$0xff]
  %v422 = vld [vmem:[%s1 + $0xb68] sm:$0xff]
  %v423 = vld [vmem:[%s1 + $0xb70] sm:$0xff]
  %v424 = vld [vmem:[%s1 + $0xb78] sm:$0xff]
  %v425 = vld [vmem:[%s1 + $0xb80] sm:$0xff]
  %v426 = vld [vmem:[%s1 + $0xb88] sm:$0xff]
  %v427 = vld [vmem:[%s1 + $0xb90] sm:$0xff]
  %v428 = vld [vmem:[%s1 + $0xb98] sm:$0xff]
  %v429 = vld [vmem:[%s1 + $0xba0] sm:$0xff]
  %v430 = vld [vmem:[%s1 + $0xba8] sm:$0xff]
  %v431 = vld [vmem:[%s1 + $0xbb0] sm:$0xff]
  %v432 = vld [vmem:[%s1 + $0xbb8] sm:$0xff]
  %v433 = vld [vmem:[%s1 + $0xbc0] sm:$0xff]
  %v434 = vld [vmem:[%s1 + $0xbc8] sm:$0xff]
  %v435 = vld [vmem:[%s1 + $0xbd0] sm:$0xff]
  %v436 = vld [vmem:[%s1 + $0xbd8] sm:$0xff]
  %v437 = vld [vmem:[%s1 + $0xbe0] sm:$0xff]
  %v438 = vld [vmem:[%s1 + $0xbe8] sm:$0xff]
  %v439 = vld [vmem:[%s1 + $0xbf0] sm:$0xff]
  %v440 = vld [vmem:[%s1 + $0xbf8] sm:$0xff]
  %v441 = vld [vmem:[%s1 + $0xc00] sm:$0xff]
  %v442 = vld [vmem:[%s1 + $0xc08] sm:$0xff]
  %v443 = vld [vmem:[%s1 + $0xc10] sm:$0xff]
  %v444 = vld [vmem:[%s1 + $0xc18] sm:$0xff]
  %v445 = vld [vmem:[%s1 + $0xc20] sm:$0xff]
  %v446 = vld [vmem:[%s1 + $0xc28] sm:$0xff]
  %v447 = vld [vmem:[%s1 + $0xc30] sm:$0xff]
  %v448 = vld [vmem:[%s1 + $0xc38] sm:$0xff]
  %v449 = vld [vmem:[%s1 + $0xc40] sm:$0xff]
  %v450 = vld [vmem:[%s1 + $0xc48] sm:$0xff]
  %v451 = vld [vmem:[%s1 + $0xc50] sm:$0xff]
  %v452 = vld [vmem:[%s1 + $0xc58] sm:$0xff]
  %v453 = vld [vmem:[%s1 + $0xc60] sm:$0xff]
  %v454 = vld [vmem:[%s1 + $0xc68] sm:$0xff]
  %v455 = vld [vmem:[%s1 + $0xc70] sm:$0xff]
  %v456 = vld [vmem:[%s1 + $0xc78] sm:$0xff]
  %v457 = vld [vmem:[%s1 + $0xc80] sm:$0xff]
  %v458 = vld [vmem:[%s1 + $0xc88] sm:$0xff]
  %v459 = vld [vmem:[%s1 + $0xc90] sm:$0xff]
  %v460 = vld [vmem:[%s1 + $0xc98] sm:$0xff]
  %v461 = vld [vmem:[%s1 + $0xca0] sm:$0xff]
  %v462 = vld [vmem:[%s1 + $0xca8] sm:$0xff]
  %v463 = vld [vmem:[%s1 + $0xcb0] sm:$0xff]
  %v464 = vld [vmem:[%s1 + $0xcb8] sm:$0xff]
  %v465 = vld [vmem:[%s1 + $0xcc0] sm:$0xff]
  %v466 = vld [vmem:[%s1 + $0xcc8] sm:$0xff]
  %v467 = vld [vmem:[%s1 + $0xcd0] sm:$0xff]
  %v468 = vld [vmem:[%s1 + $0xcd8] sm:$0xff]
  %v469 = vld [vmem:[%s1 + $0xce0] sm:$0xff]
  %v470 = vld [vmem:[%s1 + $0xce8] sm:$0xff]
  %v471 = vld [vmem:[%s1 + $0xcf0] sm:$0xff]
  %v472 = vld [vmem:[%s1 + $0xcf8] sm:$0xff]
  %v473 = vld [vmem:[%s1 + $0xd00] sm:$0xff]
  %v474 = vld [vmem:[%s1 + $0xd08] sm:$0xff]
  %v475 = vld [vmem:[%s1 + $0xd10] sm:$0xff]
  %v476 = vld [vmem:[%s1 + $0xd18] sm:$0xff]
  %v477 = vld [vmem:[%s1 + $0xd20] sm:$0xff]
  %v478 = vld [vmem:[%s1 + $0xd28] sm:$0xff]
  %v479 = vld [vmem:[%s1 + $0xd30] sm:$0xff]
  %v480 = vld [vmem:[%s1 + $0xd38] sm:$0xff]
  %v481 = vld [vmem:[%s1 + $0xd40] sm:$0xff]
  %v482 = vld [vmem:[%s1 + $0xd48] sm:$0xff]
  %v483 = vld [vmem:[%s1 + $0xd50] sm:$0xff]
  %v484 = vld [vmem:[%s1 + $0xd58] sm:$0xff]
  %v485 = vld [vmem:[%s1 + $0xd60] sm:$0xff]
  %v486 = vld [vmem:[%s1 + $0xd68] sm:$0xff]
  %v487 = vld [vmem:[%s1 + $0xd70] sm:$0xff]
  %v488 = vld [vmem:[%s1 + $0xd78] sm:$0xff]
  %v489 = vld [vmem:[%s1 + $0xd80] sm:$0xff]
  %v490 = vld [vmem:[%s1 + $0xd88] sm:$0xff]
  %v491 = vld [vmem:[%s1 + $0xd90] sm:$0xff]
  %v492 = vld [vmem:[%s1 + $0xd98] sm:$0xff]
  %v493 = vld [vmem:[%s1 + $0xda0] sm:$0xff]
  %v494 = vld [vmem:[%s1 + $0xda8] sm:$0xff]
  %v495 = vld [vmem:[%s1 + $0xdb0] sm:$0xff]
  %v496 = vld [vmem:[%s1 + $0xdb8] sm:$0xff]
  %v497 = vld [vmem:[%s1 + $0xdc0] sm:$0xff]
  %v498 = vld [vmem:[%s1 + $0xdc8] sm:$0xff]
  %v499 = vld [vmem:[%s1 + $0xdd0] sm:$0xff]
  %v500 = vld [vmem:[%s1 + $0xdd8] sm:$0xff]
  %v501 = vld [vmem:[%s1 + $0xde0] sm:$0xff]
  %v502 = vld [vmem:[%s1 + $0xde8] sm:$0xff]
  %v503 = vld [vmem:[%s1 + $0xdf0] sm:$0xff]
  %v504 = vld [vmem:[%s1 + $0xdf8] sm:$0xff]
  %v505 = vld [vmem:[%s1 + $0xe00] sm:$0xff]
  %v506 = vld [vmem:[%s1 + $0xe08] sm:$0xff]
  %v507 = vld [vmem:[%s1 + $0xe10] sm:$0xff]
  %v508 = vld [vmem:[%s1 + $0xe18] sm:$0xff]
  %v509 = vld [vmem:[%s1 + $0xe20] sm:$0xff]
  %v510 = vld [vmem:[%s1 + $0xe28] sm:$0xff]
  %v511 = vld [vmem:[%s1 + $0xe30] sm:$0xff]
  %v512 = vld [vmem:[%s1 + $0xe38] sm:$0xff]
  %v513 = vld [vmem:[%s1 + $0xe40] sm:$0xff]
  %v514 = vld [vmem:[%s1 + $0xe48] sm:$0xff]
  %v515 = vld [vmem:[%s1 + $0xe50] sm:$0xff]
  %v516 = vld [vmem:[%s1 + $0xe58] sm:$0xff]
  %v517 = vld [vmem:[%s1 + $0xe60] sm:$0xff]
  %v518 = vld [vmem:[%s1 + $0xe68] sm:$0xff]
  %v519 = vld [vmem:[%s1 + $0xe70] sm:$0xff]
  %v520 = vld [vmem:[%s1 + $0xe78] sm:$0xff]
  %v521 = vld [vmem:[%s1 + $0xe80] sm:$0xff]
  %v522 = vld [vmem:[%s1 + $0xe88] sm:$0xff]
  %v523 = vld [vmem:[%s1 + $0xe90] sm:$0xff]
  %v524 = vld [vmem:[%s1 + $0xe98] sm:$0xff]
  %v525 = vld [vmem:[%s1 + $0xea0] sm:$0xff]
  %v526 = vld [vmem:[%s1 + $0xea8] sm:$0xff]
  %v527 = vld [vmem:[%s1 + $0xeb0] sm:$0xff]
  %v528 = vld [vmem:[%s1 + $0xeb8] sm:$0xff]
  %v529 = vld [vmem:[%s1 + $0xec0] sm:$0xff]
  %v530 = vld [vmem:[%s1 + $0xec8] sm:$0xff]
  %v531 = vld [vmem:[%s1 + $0xed0] sm:$0xff]
  %v532 = vld [vmem:[%s1 + $0xed8] sm:$0xff]
  %v533 = vld [vmem:[%s1 + $0xee0] sm:$0xff]
  %v534 = vld [vmem:[%s1 + $0xee8] sm:$0xff]
  %v535 = vld [vmem:[%s1 + $0xef0] sm:$0xff]
  %v536 = vld [vmem:[%s1 + $0xef8] sm:$0xff]
  %v537 = vld [vmem:[%s1 + $0xf00] sm:$0xff]
  %v538 = vld [vmem:[%s1 + $0xf08] sm:$0xff]
  %v539 = vld [vmem:[%s1 + $0xf10] sm:$0xff]
  %v540 = vld [vmem:[%s1 + $0xf18] sm:$0xff]
  %v541 = vld [vmem:[%s1 + $0xf20] sm:$0xff]
  %v542 = vld [vmem:[%s1 + $0xf28] sm:$0xff]
  %v543 = vld [vmem:[%s1 + $0xf30] sm:$0xff]
  %v544 = vld [vmem:[%s1 + $0xf38] sm:$0xff]
  %v545 = vld [vmem:[%s1 + $0xf40] sm:$0xff]
  %v546 = vld [vmem:[%s1 + $0xf48] sm:$0xff]
  %v547 = vld [vmem:[%s1 + $0xf50] sm:$0xff]
  %v548 = vld [vmem:[%s1 + $0xf58] sm:$0xff]
  %v549 = vld [vmem:[%s1 + $0xf60] sm:$0xff]
  %v550 = vld [vmem:[%s1 + $0xf68] sm:$0xff]
  %v551 = vld [vmem:[%s1 + $0xf70] sm:$0xff]
  %v552 = vld [vmem:[%s1 + $0xf78] sm:$0xff]
  %v553 = vld [vmem:[%s1 + $0xf80] sm:$0xff]
  %v554 = vld [vmem:[%s1 + $0xf88] sm:$0xff]
  %v555 = vld [vmem:[%s1 + $0xf90] sm:$0xff]
  %v556 = vld [vmem:[%s1 + $0xf98] sm:$0xff]
  %v557 = vld [vmem:[%s1 + $0xfa0] sm:$0xff]
  %v558 = vld [vmem:[%s1 + $0xfa8] sm:$0xff]
  %v559 = vld [vmem:[%s1 + $0xfb0] sm:$0xff]
  %v560 = vld [vmem:[%s1 + $0xfb8] sm:$0xff]
  %v561 = vld [vmem:[%s1 + $0xfc0] sm:$0xff]
  %v562 = vld [vmem:[%s1 + $0xfc8] sm:$0xff]
  %v563 = vld [vmem:[%s1 + $0xfd0] sm:$0xff]
  %v564 = vld [vmem:[%s1 + $0xfd8] sm:$0xff]
  %v565 = vld [vmem:[%s1 + $0xfe0] sm:$0xff]
  %v566 = vld [vmem:[%s1 + $0xfe8] sm:$0xff]
  %v567 = vld [vmem:[%s1 + $0xff0] sm:$0xff]
  %v568 = vld [vmem:[%s1 + $0xff8] sm:$0xff]
  %v569 = vld [vmem:[%s1 + $0x1000] sm:$0xff]
  %v570 = vld [vmem:[%s1 + $0x1008] sm:$0xff]
  %v571 = vld [vmem:[%s1 + $0x1010] sm:$0xff]
  %v572 = vld [vmem:[%s1 + $0x1018] sm:$0xff]
  %v573 = vld [vmem:[%s1 + $0x1020] sm:$0xff]
  %v574 = vld [vmem:[%s1 + $0x1028] sm:$0xff]
  %v575 = vld [vmem:[%s1 + $0x1030] sm:$0xff]
  %v576 = vld [vmem:[%s1 + $0x1038] sm:$0xff]
  %v577 = vld [vmem:[%s1 + $0x1040] sm:$0xff]
  %v578 = vld [vmem:[%s1 + $0x1048] sm:$0xff]
  %v579 = vld [vmem:[%s1 + $0x1050] sm:$0xff]
  %v580 = vld [vmem:[%s1 + $0x1058] sm:$0xff]
  %v581 = vld [vmem:[%s1 + $0x1060] sm:$0xff]
  %v582 = vld [vmem:[%s1 + $0x1068] sm:$0xff]
  %v583 = vld [vmem:[%s1 + $0x1070] sm:$0xff]
  %v584 = vld [vmem:[%s1 + $0x1078] sm:$0xff]
  %v585 = vld [vmem:[%s1 + $0x1080] sm:$0xff]
  %v586 = vld [vmem:[%s1 + $0x1088] sm:$0xff]
  %v587 = vld [vmem:[%s1 + $0x1090] sm:$0xff]
  %v588 = vld [vmem:[%s1 + $0x1098] sm:$0xff]
  %v589 = vld [vmem:[%s1 + $0x10a0] sm:$0xff]
  %v590 = vld [vmem:[%s1 + $0x10a8] sm:$0xff]
  %v591 = vld [vmem:[%s1 + $0x10b0] sm:$0xff]
  %v592 = vld [vmem:[%s1 + $0x10b8] sm:$0xff]
  %v593 = vld [vmem:[%s1 + $0x10c0] sm:$0xff]
  %v594 = vld [vmem:[%s1 + $0x10c8] sm:$0xff]
  %v595 = vld [vmem:[%s1 + $0x10d0] sm:$0xff]
  %v596 = vld [vmem:[%s1 + $0x10d8] sm:$0xff]
  %v597 = vld [vmem:[%s1 + $0x10e0] sm:$0xff]
  %v598 = vld [vmem:[%s1 + $0x10e8] sm:$0xff]
  %v599 = vld [vmem:[%s1 + $0x10f0] sm:$0xff]
  %v600 = vld [vmem:[%s1 + $0x10f8] sm:$0xff]
  %v601 = vld [vmem:[%s1 + $0x1100] sm:$0xff]
  %v602 = vld [vmem:[%s1 + $0x1108] sm:$0xff]
  %v603 = vld [vmem:[%s1 + $0x1110] sm:$0xff]
  %v604 = vld [vmem:[%s1 + $0x1118] sm:$0xff]
  %v605 = vld [vmem:[%s1 + $0x1120] sm:$0xff]
  %v606 = vld [vmem:[%s1 + $0x1128] sm:$0xff]
  %v607 = vld [vmem:[%s1 + $0x1130] sm:$0xff]
  %v608 = vld [vmem:[%s1 + $0x1138] sm:$0xff]
  %v609 = vld [vmem:[%s1 + $0x1140] sm:$0xff]
  %v610 = vld [vmem:[%s1 + $0x1148] sm:$0xff]
  %v611 = vld [vmem:[%s1 + $0x1150] sm:$0xff]
  %v612 = vld [vmem:[%s1 + $0x1158] sm:$0xff]
  %v613 = vld [vmem:[%s1 + $0x1160] sm:$0xff]
  %v614 = vld [vmem:[%s1 + $0x1168] sm:$0xff]
  %v615 = vld [vmem:[%s1 + $0x1170] sm:$0xff]
  %v616 = vld [vmem:[%s1 + $0x1178] sm:$0xff]
  %v617 = vld [vmem:[%s1 + $0x1180] sm:$0xff]
  %v618 = vld [vmem:[%s1 + $0x1188] sm:$0xff]
  %v619 = vld [vmem:[%s1 + $0x1190] sm:$0xff]
  %v620 = vld [vmem:[%s1 + $0x1198] sm:$0xff]
  %v621 = vld [vmem:[%s1 + $0x11a0] sm:$0xff]
  %v622 = vld [vmem:[%s1 + $0x11a8] sm:$0xff]
  %v623 = vld [vmem:[%s1 + $0x11b0] sm:$0xff]
  %v624 = vld [vmem:[%s1 + $0x11b8] sm:$0xff]
  %v625 = vld [vmem:[%s1 + $0x11c0] sm:$0xff]
  %v626 = vld [vmem:[%s1 + $0x11c8] sm:$0xff]
  %v627 = vld [vmem:[%s1 + $0x11d0] sm:$0xff]
  %v628 = vld [vmem:[%s1 + $0x11d8] sm:$0xff]
  %v629 = vld [vmem:[%s1 + $0x11e0] sm:$0xff]
  %v630 = vld [vmem:[%s1 + $0x11e8] sm:$0xff]
  %v631 = vld [vmem:[%s1 + $0x11f0] sm:$0xff]
  %v632 = vld [vmem:[%s1 + $0x11f8] sm:$0xff]
  %v633 = vld [vmem:[%s1 + $0x1200] sm:$0xff]
  %v634 = vld [vmem:[%s1 + $0x1208] sm:$0xff]
  %v635 = vld [vmem:[%s1 + $0x1210] sm:$0xff]
  %v636 = vld [vmem:[%s1 + $0x1218] sm:$0xff]
  %v637 = vld [vmem:[%s1 + $0x1220] sm:$0xff]
  %v638 = vld [vmem:[%s1 + $0x1228] sm:$0xff]
  %v639 = vld [vmem:[%s1 + $0x1230] sm:$0xff]
  %v640 = vld [vmem:[%s1 + $0x1238] sm:$0xff]
  %v641 = vld [vmem:[%s1 + $0x1240] sm:$0xff]
  %v642 = vld [vmem:[%s1 + $0x1248] sm:$0xff]
  %v643 = vld [vmem:[%s1 + $0x1250] sm:$0xff]
  %v644 = vld [vmem:[%s1 + $0x1258] sm:$0xff]
  %v645 = vld [vmem:[%s1 + $0x1260] sm:$0xff]
  %v646 = vld [vmem:[%s1 + $0x1268] sm:$0xff]
  %v647 = vld [vmem:[%s1 + $0x1270] sm:$0xff]
  %v648 = vld [vmem:[%s1 + $0x1278] sm:$0xff]
  %v649 = vld [vmem:[%s1 + $0x1280] sm:$0xff]
  %v650 = vld [vmem:[%s1 + $0x1288] sm:$0xff]
  %v651 = vld [vmem:[%s1 + $0x1290] sm:$0xff]
  %v652 = vld [vmem:[%s1 + $0x1298] sm:$0xff]
  %v653 = vld [vmem:[%s1 + $0x12a0] sm:$0xff]
  %v654 = vld [vmem:[%s1 + $0x12a8] sm:$0xff]
  %v655 = vld [vmem:[%s1 + $0x12b0] sm:$0xff]
  %v656 = vld [vmem:[%s1 + $0x12b8] sm:$0xff]
  %v657 = vld [vmem:[%s1 + $0x12c0] sm:$0xff]
  %v658 = vld [vmem:[%s1 + $0x12c8] sm:$0xff]
  %v659 = vld [vmem:[%s1 + $0x12d0] sm:$0xff]
  %v660 = vld [vmem:[%s1 + $0x12d8] sm:$0xff]
  %v661 = vld [vmem:[%s1 + $0x12e0] sm:$0xff]
  %v662 = vld [vmem:[%s1 + $0x12e8] sm:$0xff]
  %v663 = vld [vmem:[%s1 + $0x12f0] sm:$0xff]
  %v664 = vld [vmem:[%s1 + $0x12f8] sm:$0xff]
  %v665 = vld [vmem:[%s1 + $0x1300] sm:$0xff]
  %v666 = vld [vmem:[%s1 + $0x1308] sm:$0xff]
  %v667 = vld [vmem:[%s1 + $0x1310] sm:$0xff]
  %v668 = vld [vmem:[%s1 + $0x1318] sm:$0xff]
  %v669 = vld [vmem:[%s1 + $0x1320] sm:$0xff]
  %v670 = vld [vmem:[%s1 + $0x1328] sm:$0xff]
  %v671 = vld [vmem:[%s1 + $0x1330] sm:$0xff]
  %v672 = vld [vmem:[%s1 + $0x1338] sm:$0xff]
  %v673 = vld [vmem:[%s1 + $0x1340] sm:$0xff]
  %v674 = vld [vmem:[%s1 + $0x1348] sm:$0xff]
  %v675 = vld [vmem:[%s1 + $0x1350] sm:$0xff]
  %v676 = vld [vmem:[%s1 + $0x1358] sm:$0xff]
  %v677 = vld [vmem:[%s1 + $0x1360] sm:$0xff]
  %v678 = vld [vmem:[%s1 + $0x1368] sm:$0xff]
  %v679 = vld [vmem:[%s1 + $0x1370] sm:$0xff]
  %v680 = vld [vmem:[%s1 + $0x1378] sm:$0xff]
  %v681 = vld [vmem:[%s1 + $0x1380] sm:$0xff]
  %v682 = vld [vmem:[%s1 + $0x1388] sm:$0xff]
  %v683 = vld [vmem:[%s1 + $0x1390] sm:$0xff]
  %v684 = vld [vmem:[%s1 + $0x1398] sm:$0xff]
  %v685 = vld [vmem:[%s1 + $0x13a0] sm:$0xff]
  %v686 = vld [vmem:[%s1 + $0x13a8] sm:$0xff]
  %v687 = vld [vmem:[%s1 + $0x13b0] sm:$0xff]
  %v688 = vld [vmem:[%s1 + $0x13b8] sm:$0xff]
  %v689 = vld [vmem:[%s1 + $0x13c0] sm:$0xff]
  %v690 = vld [vmem:[%s1 + $0x13c8] sm:$0xff]
  %v691 = vld [vmem:[%s1 + $0x13d0] sm:$0xff]
  %v692 = vld [vmem:[%s1 + $0x13d8] sm:$0xff]
  %v693 = vld [vmem:[%s1 + $0x13e0] sm:$0xff]
  %v694 = vld [vmem:[%s1 + $0x13e8] sm:$0xff]
  %v695 = vld [vmem:[%s1 + $0x13f0] sm:$0xff]
  %v696 = vld [vmem:[%s1 + $0x13f8] sm:$0xff]
  %v697 = vld [vmem:[%s1 + $0x1400] sm:$0xff]
  %v698 = vld [vmem:[%s1 + $0x1408] sm:$0xff]
  %v699 = vld [vmem:[%s1 + $0x1410] sm:$0xff]
  %v700 = vld [vmem:[%s1 + $0x1418] sm:$0xff]
  %v701 = vld [vmem:[%s1 + $0x1420] sm:$0xff]
  %v702 = vld [vmem:[%s1 + $0x1428] sm:$0xff]
  %v703 = vld [vmem:[%s1 + $0x1430] sm:$0xff]
  %v704 = vld [vmem:[%s1 + $0x1438] sm:$0xff]
  %v705 = vld [vmem:[%s1 + $0x1440] sm:$0xff]
  %v706 = vld [vmem:[%s1 + $0x1448] sm:$0xff]
  %v707 = vld [vmem:[%s1 + $0x1450] sm:$0xff]
  %v708 = vld [vmem:[%s1 + $0x1458] sm:$0xff]
  %v709 = vld [vmem:[%s1 + $0x1460] sm:$0xff]
  %v710 = vld [vmem:[%s1 + $0x1468] sm:$0xff]
  %v711 = vld [vmem:[%s1 + $0x1470] sm:$0xff]
  %v712 = vld [vmem:[%s1 + $0x1478] sm:$0xff]
  %v713 = vld [vmem:[%s1 + $0x1480] sm:$0xff]
  %v714 = vld [vmem:[%s1 + $0x1488] sm:$0xff]
  %v715 = vld [vmem:[%s1 + $0x1490] sm:$0xff]
  %v716 = vld [vmem:[%s1 + $0x1498] sm:$0xff]
  %v717 = vld [vmem:[%s1 + $0x14a0] sm:$0xff]
  %v718 = vld [vmem:[%s1 + $0x14a8] sm:$0xff]
  %v719 = vld [vmem:[%s1 + $0x14b0] sm:$0xff]
  %v720 = vld [vmem:[%s1 + $0x14b8] sm:$0xff]
  %v721 = vld [vmem:[%s1 + $0x14c0] sm:$0xff]
  %v722 = vld [vmem:[%s1 + $0x14c8] sm:$0xff]
  %v723 = vld [vmem:[%s1 + $0x14d0] sm:$0xff]
  %v724 = vld [vmem:[%s1 + $0x14d8] sm:$0xff]
  %v725 = vld [vmem:[%s1 + $0x14e0] sm:$0xff]
  %v726 = vld [vmem:[%s1 + $0x14e8] sm:$0xff]
  %v727 = vld [vmem:[%s1 + $0x14f0] sm:$0xff]
  %v728 = vld [vmem:[%s1 + $0x14f8] sm:$0xff]
  %v729 = vld [vmem:[%s1 + $0x1500] sm:$0xff]
  %v730 = vld [vmem:[%s1 + $0x1508] sm:$0xff]
  %v731 = vld [vmem:[%s1 + $0x1510] sm:$0xff]
  %v732 = vld [vmem:[%s1 + $0x1518] sm:$0xff]
  %v733 = vld [vmem:[%s1 + $0x1520] sm:$0xff]
  %v734 = vld [vmem:[%s1 + $0x1528] sm:$0xff]
  %v735 = vld [vmem:[%s1 + $0x1530] sm:$0xff]
  %v736 = vld [vmem:[%s1 + $0x1538] sm:$0xff]
  %v737 = vld [vmem:[%s1 + $0x1540] sm:$0xff]
  %v738 = vld [vmem:[%s1 + $0x1548] sm:$0xff]
  %v739 = vld [vmem:[%s1 + $0x1550] sm:$0xff]
  %v740 = vld [vmem:[%s1 + $0x1558] sm:$0xff]
  %v741 = vld [vmem:[%s1 + $0x1560] sm:$0xff]
  %v742 = vld [vmem:[%s1 + $0x1568] sm:$0xff]
  %v743 = vld [vmem:[%s1 + $0x1570] sm:$0xff]
  %v744 = vld [vmem:[%s1 + $0x1578] sm:$0xff]
  %v745 = vld [vmem:[%s1 + $0x1580] sm:$0xff]
  %v746 = vld [vmem:[%s1 + $0x1588] sm:$0xff]
  %v747 = vld [vmem:[%s1 + $0x1590] sm:$0xff]
  %v748 = vld [vmem:[%s1 + $0x1598] sm:$0xff]
  %v749 = vld [vmem:[%s1 + $0x15a0] sm:$0xff]
  %v750 = vld [vmem:[%s1 + $0x15a8] sm:$0xff]
  %v751 = vld [vmem:[%s1 + $0x15b0] sm:$0xff]
  %v752 = vld [vmem:[%s1 + $0x15b8] sm:$0xff]
  %v753 = vld [vmem:[%s1 + $0x15c0] sm:$0xff]
  %v754 = vld [vmem:[%s1 + $0x15c8] sm:$0xff]
  %v755 = vld [vmem:[%s1 + $0x15d0] sm:$0xff]
  %v756 = vld [vmem:[%s1 + $0x15d8] sm:$0xff]
  %v757 = vld [vmem:[%s1 + $0x15e0] sm:$0xff]
  %v758 = vld [vmem:[%s1 + $0x15e8] sm:$0xff]
  %v759 = vld [vmem:[%s1 + $0x15f0] sm:$0xff]
  %v760 = vld [vmem:[%s1 + $0x15f8] sm:$0xff]
  %v761 = vld [vmem:[%s1 + $0x1600] sm:$0xff]
  %v762 = vld [vmem:[%s1 + $0x1608] sm:$0xff]
  %v763 = vld [vmem:[%s1 + $0x1610] sm:$0xff]
  %v764 = vld [vmem:[%s1 + $0x1618] sm:$0xff]
  %v765 = vld [vmem:[%s1 + $0x1620] sm:$0xff]
  %v766 = vld [vmem:[%s1 + $0x1628] sm:$0xff]
  %v767 = vld [vmem:[%s1 + $0x1630] sm:$0xff]
  %v768 = vld [vmem:[%s1 + $0x1638] sm:$0xff]
  %v769 = vld [vmem:[%s1 + $0x1640] sm:$0xff]
  %v770 = vld [vmem:[%s1 + $0x1648] sm:$0xff]
  %v771 = vld [vmem:[%s1 + $0x1650] sm:$0xff]
  %v772 = vld [vmem:[%s1 + $0x1658] sm:$0xff]
  %v773 = vld [vmem:[%s1 + $0x1660] sm:$0xff]
  %v774 = vld [vmem:[%s1 + $0x1668] sm:$0xff]
  %v775 = vld [vmem:[%s1 + $0x1670] sm:$0xff]
  %v776 = vld [vmem:[%s1 + $0x1678] sm:$0xff]
  %v777 = vld [vmem:[%s1 + $0x1680] sm:$0xff]
  %v778 = vld [vmem:[%s1 + $0x1688] sm:$0xff]
  %v779 = vld [vmem:[%s1 + $0x1690] sm:$0xff]
  %v780 = vld [vmem:[%s1 + $0x1698] sm:$0xff]
  %v781 = vld [vmem:[%s1 + $0x16a0] sm:$0xff]
  %v782 = vld [vmem:[%s1 + $0x16a8] sm:$0xff]
  %v783 = vld [vmem:[%s1 + $0x16b0] sm:$0xff]
  %v784 = vld [vmem:[%s1 + $0x16b8] sm:$0xff]
  %v785 = vld [vmem:[%s1 + $0x16c0] sm:$0xff]
  %v786 = vld [vmem:[%s1 + $0x16c8] sm:$0xff]
  %v787 = vld [vmem:[%s1 + $0x16d0] sm:$0xff]
  %v788 = vld [vmem:[%s1 + $0x16d8] sm:$0xff]
  %v789 = vld [vmem:[%s1 + $0x16e0] sm:$0xff]
  %v790 = vld [vmem:[%s1 + $0x16e8] sm:$0xff]
  %v791 = vld [vmem:[%s1 + $0x16f0] sm:$0xff]
  %v792 = vld [vmem:[%s1 + $0x16f8] sm:$0xff]
  %v793 = vld [vmem:[%s1 + $0x1700] sm:$0xff]
  %v794 = vld [vmem:[%s1 + $0x1708] sm:$0xff]
  %v795 = vld [vmem:[%s1 + $0x1710] sm:$0xff]
  %v796 = vld [vmem:[%s1 + $0x1718] sm:$0xff]
  %v797 = vld [vmem:[%s1 + $0x1720] sm:$0xff]
  %v798 = vld [vmem:[%s1 + $0x1728] sm:$0xff]
  %v799 = vld [vmem:[%s1 + $0x1730] sm:$0xff]
  %v800 = vld [vmem:[%s1 + $0x1738] sm:$0xff]
  %v801 = vld [vmem:[%s1 + $0x1740] sm:$0xff]
  %v802 = vld [vmem:[%s1 + $0x1748] sm:$0xff]
  %v803 = vld [vmem:[%s1 + $0x1750] sm:$0xff]
  %v804 = vld [vmem:[%s1 + $0x1758] sm:$0xff]
  %v805 = vld [vmem:[%s1 + $0x1760] sm:$0xff]
  %v806 = vld [vmem:[%s1 + $0x1768] sm:$0xff]
  %v807 = vld [vmem:[%s1 + $0x1770] sm:$0xff]
  %v808 = vld [vmem:[%s1 + $0x1778] sm:$0xff]
  %v809 = vld [vmem:[%s1 + $0x1780] sm:$0xff]
  %v810 = vld [vmem:[%s1 + $0x1788] sm:$0xff]
  %v811 = vld [vmem:[%s1 + $0x1790] sm:$0xff]
  %v812 = vld [vmem:[%s1 + $0x1798] sm:$0xff]
  %v813 = vld [vmem:[%s1 + $0x17a0] sm:$0xff]
  %v814 = vld [vmem:[%s1 + $0x17a8] sm:$0xff]
  %v815 = vld [vmem:[%s1 + $0x17b0] sm:$0xff]
  %v816 = vld [vmem:[%s1 + $0x17b8] sm:$0xff]
  %v817 = vld [vmem:[%s1 + $0x17c0] sm:$0xff]
  %v818 = vld [vmem:[%s1 + $0x17c8] sm:$0xff]
  %v819 = vld [vmem:[%s1 + $0x17d0] sm:$0xff]
  %v820 = vld [vmem:[%s1 + $0x17d8] sm:$0xff]
  %v821 = vld [vmem:[%s1 + $0x17e0] sm:$0xff]
  %v822 = vld [vmem:[%s1 + $0x17e8] sm:$0xff]
  %v823 = vld [vmem:[%s1 + $0x17f0] sm:$0xff]
  %v824 = vld [vmem:[%s1 + $0x17f8] sm:$0xff]
  %v825 = vld [vmem:[%s1 + $0x1800] sm:$0xff]
  %v826 = vld [vmem:[%s1 + $0x1808] sm:$0xff]
  %v827 = vld [vmem:[%s1 + $0x1810] sm:$0xff]
  %v828 = vld [vmem:[%s1 + $0x1818] sm:$0xff]
  %v829 = vld [vmem:[%s1 + $0x1820] sm:$0xff]
  %v830 = vld [vmem:[%s1 + $0x1828] sm:$0xff]
  %v831 = vld [vmem:[%s1 + $0x1830] sm:$0xff]
  %v832 = vld [vmem:[%s1 + $0x1838] sm:$0xff]
  %v833 = vld [vmem:[%s1 + $0x1840] sm:$0xff]
  %v834 = vld [vmem:[%s1 + $0x1848] sm:$0xff]
  %v835 = vld [vmem:[%s1 + $0x1850] sm:$0xff]
  %v836 = vld [vmem:[%s1 + $0x1858] sm:$0xff]
  %v837 = vld [vmem:[%s1 + $0x1860] sm:$0xff]
  %v838 = vld [vmem:[%s1 + $0x1868] sm:$0xff]
  %v839 = vld [vmem:[%s1 + $0x1870] sm:$0xff]
  %v840 = vld [vmem:[%s1 + $0x1878] sm:$0xff]
  %v841 = vld [vmem:[%s1 + $0x1880] sm:$0xff]
  %v842 = vld [vmem:[%s1 + $0x1888] sm:$0xff]
  %v843 = vld [vmem:[%s1 + $0x1890] sm:$0xff]
  %v844 = vld [vmem:[%s1 + $0x1898] sm:$0xff]
  %v845 = vld [vmem:[%s1 + $0x18a0] sm:$0xff]
  %v846 = vld [vmem:[%s1 + $0x18a8] sm:$0xff]
  %v847 = vld [vmem:[%s1 + $0x18b0] sm:$0xff]
  %v848 = vld [vmem:[%s1 + $0x18b8] sm:$0xff]
  %v849 = vld [vmem:[%s1 + $0x18c0] sm:$0xff]
  %v850 = vld [vmem:[%s1 + $0x18c8] sm:$0xff]
  %v851 = vld [vmem:[%s1 + $0x18d0] sm:$0xff]
  %v852 = vld [vmem:[%s1 + $0x18d8] sm:$0xff]
  %v853 = vld [vmem:[%s1 + $0x18e0] sm:$0xff]
  %v854 = vld [vmem:[%s1 + $0x18e8] sm:$0xff]
  %v855 = vld [vmem:[%s1 + $0x18f0] sm:$0xff]
  %v856 = vld [vmem:[%s1 + $0x18f8] sm:$0xff]
  %v857 = vld [vmem:[%s1 + $0x1900] sm:$0xff]
  %v858 = vld [vmem:[%s1 + $0x1908] sm:$0xff]
  %v859 = vld [vmem:[%s1 + $0x1910] sm:$0xff]
  %v860 = vld [vmem:[%s1 + $0x1918] sm:$0xff]
  %v861 = vld [vmem:[%s1 + $0x1920] sm:$0xff]
  %v862 = vld [vmem:[%s1 + $0x1928] sm:$0xff]
  %v863 = vld [vmem:[%s1 + $0x1930] sm:$0xff]
  %v864 = vld [vmem:[%s1 + $0x1938] sm:$0xff]
  %v865 = vld [vmem:[%s1 + $0x1940] sm:$0xff]
  %v866 = vld [vmem:[%s1 + $0x1948] sm:$0xff]
  %v867 = vld [vmem:[%s1 + $0x1950] sm:$0xff]
  %v868 = vld [vmem:[%s1 + $0x1958] sm:$0xff]
  %v869 = vld [vmem:[%s1 + $0x1960] sm:$0xff]
  %v870 = vld [vmem:[%s1 + $0x1968] sm:$0xff]
  %v871 = vld [vmem:[%s1 + $0x1970] sm:$0xff]
  %v872 = vld [vmem:[%s1 + $0x1978] sm:$0xff]
  %v873 = vld [vmem:[%s1 + $0x1980] sm:$0xff]
  %v874 = vld [vmem:[%s1 + $0x1988] sm:$0xff]
  %v875 = vld [vmem:[%s1 + $0x1990] sm:$0xff]
  %v876 = vld [vmem:[%s1 + $0x1998] sm:$0xff]
  %v877 = vld [vmem:[%s1 + $0x19a0] sm:$0xff]
  %v878 = vld [vmem:[%s1 + $0x19a8] sm:$0xff]
  %v879 = vld [vmem:[%s1 + $0x19b0] sm:$0xff]
  %v880 = vld [vmem:[%s1 + $0x19b8] sm:$0xff]
  %v881 = vld [vmem:[%s1 + $0x19c0] sm:$0xff]
  %v882 = vld [vmem:[%s1 + $0x19c8] sm:$0xff]
  %v883 = vld [vmem:[%s1 + $0x19d0] sm:$0xff]
  %v884 = vld [vmem:[%s1 + $0x19d8] sm:$0xff]
  %v885 = vld [vmem:[%s1 + $0x19e0] sm:$0xff]
  %v886 = vld [vmem:[%s1 + $0x19e8] sm:$0xff]
  %v887 = vld [vmem:[%s1 + $0x19f0] sm:$0xff]
  %v888 = vld [vmem:[%s1 + $0x19f8] sm:$0xff]
  %v889 = vld [vmem:[%s1 + $0x1a00] sm:$0xff]
  %v890 = vld [vmem:[%s1 + $0x1a08] sm:$0xff]
  %v891 = vld [vmem:[%s1 + $0x1a10] sm:$0xff]
  %v892 = vld [vmem:[%s1 + $0x1a18] sm:$0xff]
  %v893 = vld [vmem:[%s1 + $0x1a20] sm:$0xff]
  %v894 = vld [vmem:[%s1 + $0x1a28] sm:$0xff]
  %v895 = vld [vmem:[%s1 + $0x1a30] sm:$0xff]
  %v896 = vld [vmem:[%s1 + $0x1a38] sm:$0xff]
  %v897 = vld [vmem:[%s1 + $0x1a40] sm:$0xff]
  %v898 = vld [vmem:[%s1 + $0x1a48] sm:$0xff]
  %v899 = vld [vmem:[%s1 + $0x1a50] sm:$0xff]
  %v900 = vld [vmem:[%s1 + $0x1a58] sm:$0xff]
  %v901 = vld [vmem:[%s1 + $0x1a60] sm:$0xff]
  %v902 = vld [vmem:[%s1 + $0x1a68] sm:$0xff]
  %v903 = vld [vmem:[%s1 + $0x1a70] sm:$0xff]
  %v904 = vld [vmem:[%s1 + $0x1a78] sm:$0xff]
  %v905 = vld [vmem:[%s1 + $0x1a80] sm:$0xff]
  %v906 = vld [vmem:[%s1 + $0x1a88] sm:$0xff]
  %v907 = vld [vmem:[%s1 + $0x1a90] sm:$0xff]
  %v908 = vld [vmem:[%s1 + $0x1a98] sm:$0xff]
  %v909 = vld [vmem:[%s1 + $0x1aa0] sm:$0xff]
  %v910 = vld [vmem:[%s1 + $0x1aa8] sm:$0xff]
  %v911 = vld [vmem:[%s1 + $0x1ab0] sm:$0xff]
  %v912 = vld [vmem:[%s1 + $0x1ab8] sm:$0xff]
  %v913 = vld [vmem:[%s1 + $0x1ac0] sm:$0xff]
  %v914 = vld [vmem:[%s1 + $0x1ac8] sm:$0xff]
  %v915 = vld [vmem:[%s1 + $0x1ad0] sm:$0xff]
  %v916 = vld [vmem:[%s1 + $0x1ad8] sm:$0xff]
  %v917 = vld [vmem:[%s1 + $0x1ae0] sm:$0xff]
  %v918 = vld [vmem:[%s1 + $0x1ae8] sm:$0xff]
  %v919 = vld [vmem:[%s1 + $0x1af0] sm:$0xff]
  %v920 = vld [vmem:[%s1 + $0x1af8] sm:$0xff]
  %v921 = vld [vmem:[%s1 + $0x1b00] sm:$0xff]
  %v922 = vld [vmem:[%s1 + $0x1b08] sm:$0xff]
  %v923 = vld [vmem:[%s1 + $0x1b10] sm:$0xff]
  %v924 = vld [vmem:[%s1 + $0x1b18] sm:$0xff]
  %v925 = vld [vmem:[%s1 + $0x1b20] sm:$0xff]
  %v926 = vld [vmem:[%s1 + $0x1b28] sm:$0xff]
  %v927 = vld [vmem:[%s1 + $0x1b30] sm:$0xff]
  %v928 = vld [vmem:[%s1 + $0x1b38] sm:$0xff]
  %v929 = vld [vmem:[%s1 + $0x1b40] sm:$0xff]
  %v930 = vld [vmem:[%s1 + $0x1b48] sm:$0xff]
  %v931 = vld [vmem:[%s1 + $0x1b50] sm:$0xff]
  %v932 = vld [vmem:[%s1 + $0x1b58] sm:$0xff]
  %v933 = vld [vmem:[%s1 + $0x1b60] sm:$0xff]
  %v934 = vld [vmem:[%s1 + $0x1b68] sm:$0xff]
  %v935 = vld [vmem:[%s1 + $0x1b70] sm:$0xff]
  %v936 = vld [vmem:[%s1 + $0x1b78] sm:$0xff]
  %v937 = vld [vmem:[%s1 + $0x1b80] sm:$0xff]
  %v938 = vld [vmem:[%s1 + $0x1b88] sm:$0xff]
  %v939 = vld [vmem:[%s1 + $0x1b90] sm:$0xff]
  %v940 = vld [vmem:[%s1 + $0x1b98] sm:$0xff]
  %v941 = vld [vmem:[%s1 + $0x1ba0] sm:$0xff]
  %v942 = vld [vmem:[%s1 + $0x1ba8] sm:$0xff]
  %v943 = vld [vmem:[%s1 + $0x1bb0] sm:$0xff]
  %v944 = vld [vmem:[%s1 + $0x1bb8] sm:$0xff]
  %v945 = vld [vmem:[%s1 + $0x1bc0] sm:$0xff]
  %v946 = vld [vmem:[%s1 + $0x1bc8] sm:$0xff]
  %v947 = vld [vmem:[%s1 + $0x1bd0] sm:$0xff]
  %v948 = vld [vmem:[%s1 + $0x1bd8] sm:$0xff]
  %v949 = vld [vmem:[%s1 + $0x1be0] sm:$0xff]
  %v950 = vld [vmem:[%s1 + $0x1be8] sm:$0xff]
  %v951 = vld [vmem:[%s1 + $0x1bf0] sm:$0xff]
  %v952 = vld [vmem:[%s1 + $0x1bf8] sm:$0xff]
  %v953 = vld [vmem:[%s1 + $0x1c00] sm:$0xff]
  %v954 = vld [vmem:[%s1 + $0x1c08] sm:$0xff]
  %v955 = vld [vmem:[%s1 + $0x1c10] sm:$0xff]
  %v956 = vld [vmem:[%s1 + $0x1c18] sm:$0xff]
  %v957 = vld [vmem:[%s1 + $0x1c20] sm:$0xff]
  %v958 = vld [vmem:[%s1 + $0x1c28] sm:$0xff]
  %v959 = vld [vmem:[%s1 + $0x1c30] sm:$0xff]
  %v960 = vld [vmem:[%s1 + $0x1c38] sm:$0xff]
  %v961 = vld [vmem:[%s1 + $0x1c40] sm:$0xff]
  %v962 = vld [vmem:[%s1 + $0x1c48] sm:$0xff]
  %v963 = vld [vmem:[%s1 + $0x1c50] sm:$0xff]
  %v964 = vld [vmem:[%s1 + $0x1c58] sm:$0xff]
  %v965 = vld [vmem:[%s1 + $0x1c60] sm:$0xff]
  %v966 = vld [vmem:[%s1 + $0x1c68] sm:$0xff]
  %v967 = vld [vmem:[%s1 + $0x1c70] sm:$0xff]
  %v968 = vld [vmem:[%s1 + $0x1c78] sm:$0xff]
  %v969 = vld [vmem:[%s1 + $0x1c80] sm:$0xff]
  %v970 = vld [vmem:[%s1 + $0x1c88] sm:$0xff]
  %v971 = vld [vmem:[%s1 + $0x1c90] sm:$0xff]
  %v972 = vld [vmem:[%s1 + $0x1c98] sm:$0xff]
  %v973 = vld [vmem:[%s1 + $0x1ca0] sm:$0xff]
  %v974 = vld [vmem:[%s1 + $0x1ca8] sm:$0xff]
  %v975 = vld [vmem:[%s1 + $0x1cb0] sm:$0xff]
  %v976 = vld [vmem:[%s1 + $0x1cb8] sm:$0xff]
  %v977 = vld [vmem:[%s1 + $0x1cc0] sm:$0xff]
  %v978 = vld [vmem:[%s1 + $0x1cc8] sm:$0xff]
  %v979 = vld [vmem:[%s1 + $0x1cd0] sm:$0xff]
  %v980 = vld [vmem:[%s1 + $0x1cd8] sm:$0xff]
  %v981 = vld [vmem:[%s1 + $0x1ce0] sm:$0xff]
  %v982 = vld [vmem:[%s1 + $0x1ce8] sm:$0xff]
  %v983 = vld [vmem:[%s1 + $0x1cf0] sm:$0xff]
  %v984 = vld [vmem:[%s1 + $0x1cf8] sm:$0xff]
  %v985 = vld [vmem:[%s1 + $0x1d00] sm:$0xff]
  %v986 = vld [vmem:[%s1 + $0x1d08] sm:$0xff]
  %v987 = vld [vmem:[%s1 + $0x1d10] sm:$0xff]
  %v988 = vld [vmem:[%s1 + $0x1d18] sm:$0xff]
  %v989 = vld [vmem:[%s1 + $0x1d20] sm:$0xff]
  %v990 = vld [vmem:[%s1 + $0x1d28] sm:$0xff]
  %v991 = vld [vmem:[%s1 + $0x1d30] sm:$0xff]
  %v992 = vld [vmem:[%s1 + $0x1d38] sm:$0xff]
  %v993 = vld [vmem:[%s1 + $0x1d40] sm:$0xff]
  %v994 = vld [vmem:[%s1 + $0x1d48] sm:$0xff]
  %v995 = vld [vmem:[%s1 + $0x1d50] sm:$0xff]
  %v996 = vld [vmem:[%s1 + $0x1d58] sm:$0xff]
  %v997 = vld [vmem:[%s1 + $0x1d60] sm:$0xff]
  %v998 = vld [vmem:[%s1 + $0x1d68] sm:$0xff]
  %v999 = vld [vmem:[%s1 + $0x1d70] sm:$0xff]
  %v1000 = vld [vmem:[%s1 + $0x1d78] sm:$0xff]
  %v1001 = vld [vmem:[%s1 + $0x1d80] sm:$0xff]
  %v1002 = vld [vmem:[%s1 + $0x1d88] sm:$0xff]
  %v1003 = vld [vmem:[%s1 + $0x1d90] sm:$0xff]
  %v1004 = vld [vmem:[%s1 + $0x1d98] sm:$0xff]
  %v1005 = vld [vmem:[%s1 + $0x1da0] sm:$0xff]
  %v1006 = vld [vmem:[%s1 + $0x1da8] sm:$0xff]
  %v1007 = vld [vmem:[%s1 + $0x1db0] sm:$0xff]
  %v1008 = vld [vmem:[%s1 + $0x1db8] sm:$0xff]
  %v1009 = vld [vmem:[%s1 + $0x1dc0] sm:$0xff]
  %v1010 = vld [vmem:[%s1 + $0x1dc8] sm:$0xff]
  %v1011 = vld [vmem:[%s1 + $0x1dd0] sm:$0xff]
  %v1012 = vld [vmem:[%s1 + $0x1dd8] sm:$0xff]
  %v1013 = vld [vmem:[%s1 + $0x1de0] sm:$0xff]
  %v1014 = vld [vmem:[%s1 + $0x1de8] sm:$0xff]
  %v1015 = vld [vmem:[%s1 + $0x1df0] sm:$0xff]
  %v1016 = vld [vmem:[%s1 + $0x1df8] sm:$0xff]
  %v1017 = vld [vmem:[%s1 + $0x1e00] sm:$0xff]
  %v1018 = vld [vmem:[%s1 + $0x1e08] sm:$0xff]
  %v1019 = vld [vmem:[%s1 + $0x1e10] sm:$0xff]
  %v1020 = vld [vmem:[%s1 + $0x1e18] sm:$0xff]
  %v1021 = vld [vmem:[%s1 + $0x1e20] sm:$0xff]
  %v1022 = vld [vmem:[%s1 + $0x1e28] sm:$0xff]
  %v1023 = vld [vmem:[%s1 + $0x1e30] sm:$0xff]
  %v1024 = vld [vmem:[%s1 + $0x1e38] sm:$0xff]
  %v1025 = vld [vmem:[%s1 + $0x1e40] sm:$0xff]
  %v1026 = vld [vmem:[%s1 + $0x1e48] sm:$0xff]
  %v1027 = vld [vmem:[%s1 + $0x1e50] sm:$0xff]
  %v1028 = vld [vmem:[%s1 + $0x1e58] sm:$0xff]
  %v1029 = vld [vmem:[%s1 + $0x1e60] sm:$0xff]
  %v1030 = vld [vmem:[%s1 + $0x1e68] sm:$0xff]
  %v1031 = vld [vmem:[%s1 + $0x1e70] sm:$0xff]
  %v1032 = vld [vmem:[%s1 + $0x1e78] sm:$0xff]
  %v1033 = vld [vmem:[%s1 + $0x1e80] sm:$0xff]
  %v1034 = vld [vmem:[%s1 + $0x1e88] sm:$0xff]
  %v1035 = vld [vmem:[%s1 + $0x1e90] sm:$0xff]
  %v1036 = vld [vmem:[%s1 + $0x1e98] sm:$0xff]
  %v1037 = vld [vmem:[%s1 + $0x1ea0] sm:$0xff]
  %v1038 = vld [vmem:[%s1 + $0x1ea8] sm:$0xff]
  %v1039 = vld [vmem:[%s1 + $0x1eb0] sm:$0xff]
  %v1040 = vld [vmem:[%s1 + $0x1eb8] sm:$0xff]
  %v1041 = vld [vmem:[%s1 + $0x1ec0] sm:$0xff]
  %v1042 = vld [vmem:[%s1 + $0x1ec8] sm:$0xff]
  %v1043 = vld [vmem:[%s1 + $0x1ed0] sm:$0xff]
  %v1044 = vld [vmem:[%s1 + $0x1ed8] sm:$0xff]
  %v1045 = vld [vmem:[%s1 + $0x1ee0] sm:$0xff]
  %v1046 = vld [vmem:[%s1 + $0x1ee8] sm:$0xff]
  %v1047 = vld [vmem:[%s1 + $0x1ef0] sm:$0xff]
  %v1048 = vld [vmem:[%s1 + $0x1ef8] sm:$0xff]
  %v1049 = vld [vmem:[%s1 + $0x1f00] sm:$0xff]
  %v1050 = vld [vmem:[%s1 + $0x1f08] sm:$0xff]
  %v1051 = vld [vmem:[%s1 + $0x1f10] sm:$0xff]
  %v1052 = vld [vmem:[%s1 + $0x1f18] sm:$0xff]
  %v1053 = vld [vmem:[%s1 + $0x1f20] sm:$0xff]
  %v1054 = vld [vmem:[%s1 + $0x1f28] sm:$0xff]
  %v1055 = vld [vmem:[%s1 + $0x1f30] sm:$0xff]
  %v1056 = vld [vmem:[%s1 + $0x1f38] sm:$0xff]
  %v1057 = vld [vmem:[%s1 + $0x1f40] sm:$0xff]
  %v1058 = vld [vmem:[%s1 + $0x1f48] sm:$0xff]
  %v1059 = vld [vmem:[%s1 + $0x1f50] sm:$0xff]
  %v1060 = vld [vmem:[%s1 + $0x1f58] sm:$0xff]
  %v1061 = vld [vmem:[%s1 + $0x1f60] sm:$0xff]
  %v1062 = vld [vmem:[%s1 + $0x1f68] sm:$0xff]
  %v1063 = vld [vmem:[%s1 + $0x1f70] sm:$0xff]
  %v1064 = vld [vmem:[%s1 + $0x1f78] sm:$0xff]
  %v1065 = vld [vmem:[%s1 + $0x1f80] sm:$0xff]
  %v1066 = vld [vmem:[%s1 + $0x1f88] sm:$0xff]
  %v1067 = vld [vmem:[%s1 + $0x1f90] sm:$0xff]
  %v1068 = vld [vmem:[%s1 + $0x1f98] sm:$0xff]
  %v1069 = vld [vmem:[%s1 + $0x1fa0] sm:$0xff]
  %v1070 = vld [vmem:[%s1 + $0x1fa8] sm:$0xff]
  %v1071 = vld [vmem:[%s1 + $0x1fb0] sm:$0xff]
  %v1072 = vld [vmem:[%s1 + $0x1fb8] sm:$0xff]
  %v1073 = vld [vmem:[%s1 + $0x1fc0] sm:$0xff]
  %v1074 = vld [vmem:[%s1 + $0x1fc8] sm:$0xff]
  %v1075 = vld [vmem:[%s1 + $0x1fd0] sm:$0xff]
  %v1076 = vld [vmem:[%s1 + $0x1fd8] sm:$0xff]
  %v1077 = vld [vmem:[%s1 + $0x1fe0] sm:$0xff]
  %v1078 = vld [vmem:[%s1 + $0x1fe8] sm:$0xff]
  %v1079 = vld [vmem:[%s1 + $0x1ff0] sm:$0xff]
  %v1080 = vld [vmem:[%s1 + $0x1ff8] sm:$0xff]
  %v1081 = vld [vmem:[%s1 + $0x2000] sm:$0xff]
  %v1082 = vld [vmem:[%s1 + $0x2008] sm:$0xff]
  %v1083 = vld [vmem:[%s1 + $0x2010] sm:$0xff]
  %v1084 = vld [vmem:[%s1 + $0x2018] sm:$0xff]
  %v1085 = vld [vmem:[%s1 + $0x2020] sm:$0xff]
  %v1086 = vld [vmem:[%s1 + $0x2028] sm:$0xff]
  %v1087 = vld [vmem:[%s1 + $0x2030] sm:$0xff]
  %v1088 = vld [vmem:[%s1 + $0x2038] sm:$0xff]
  %v1089 = vld [vmem:[%s1 + $0x2040] sm:$0xff]
  %v1090 = vld [vmem:[%s1 + $0x2048] sm:$0xff]
  %v1091 = vld [vmem:[%s1 + $0x2050] sm:$0xff]
  %v1092 = vld [vmem:[%s1 + $0x2058] sm:$0xff]
  %v1093 = vld [vmem:[%s1 + $0x2060] sm:$0xff]
  %v1094 = vld [vmem:[%s1 + $0x2068] sm:$0xff]
  %v1095 = vld [vmem:[%s1 + $0x2070] sm:$0xff]
  %v1096 = vld [vmem:[%s1 + $0x2078] sm:$0xff]
  %v1097 = vld [vmem:[%s1 + $0x2080] sm:$0xff]
  %v1098 = vld [vmem:[%s1 + $0x2088] sm:$0xff]
  %v1099 = vld [vmem:[%s1 + $0x2090] sm:$0xff]
  %v1100 = vld [vmem:[%s1 + $0x2098] sm:$0xff]
  %v1101 = vld [vmem:[%s1 + $0x20a0] sm:$0xff]
  %v1102 = vld [vmem:[%s1 + $0x20a8] sm:$0xff]
  %v1103 = vld [vmem:[%s1 + $0x20b0] sm:$0xff]
  %v1104 = vld [vmem:[%s1 + $0x20b8] sm:$0xff]
  %v1105 = vld [vmem:[%s1 + $0x20c0] sm:$0xff]
  %v1106 = vld [vmem:[%s1 + $0x20c8] sm:$0xff]
  %v1107 = vld [vmem:[%s1 + $0x20d0] sm:$0xff]
  %v1108 = vld [vmem:[%s1 + $0x20d8] sm:$0xff]
  %v1109 = vld [vmem:[%s1 + $0x20e0] sm:$0xff]
  %v1110 = vld [vmem:[%s1 + $0x20e8] sm:$0xff]
  %v1111 = vld [vmem:[%s1 + $0x20f0] sm:$0xff]
  %v1112 = vld [vmem:[%s1 + $0x20f8] sm:$0xff]
  %v1113 = vld [vmem:[%s1 + $0x2100] sm:$0xff]
  %v1114 = vld [vmem:[%s1 + $0x2108] sm:$0xff]
  %v1115 = vld [vmem:[%s1 + $0x2110] sm:$0xff]
  %v1116 = vld [vmem:[%s1 + $0x2118] sm:$0xff]
  %v1117 = vld [vmem:[%s1 + $0x2120] sm:$0xff]
  %v1118 = vld [vmem:[%s1 + $0x2128] sm:$0xff]
  %v1119 = vld [vmem:[%s1 + $0x2130] sm:$0xff]
  %v1120 = vld [vmem:[%s1 + $0x2138] sm:$0xff]
  %v1121 = vld [vmem:[%s1 + $0x2140] sm:$0xff]
  %v1122 = vld [vmem:[%s1 + $0x2148] sm:$0xff]
  %v1123 = vld [vmem:[%s1 + $0x2150] sm:$0xff]
  %v1124 = vld [vmem:[%s1 + $0x2158] sm:$0xff]
  %v1125 = vld [vmem:[%s1 + $0x2160] sm:$0xff]
  %v1126 = vld [vmem:[%s1 + $0x2168] sm:$0xff]
  %v1127 = vld [vmem:[%s1 + $0x2170] sm:$0xff]
  %v1128 = vld [vmem:[%s1 + $0x2178] sm:$0xff]
  %v1129 = vld [vmem:[%s1 + $0x2180] sm:$0xff]
  %v1130 = vld [vmem:[%s1 + $0x2188] sm:$0xff]
  %v1131 = vld [vmem:[%s1 + $0x2190] sm:$0xff]
  %v1132 = vld [vmem:[%s1 + $0x2198] sm:$0xff]
  %v1133 = vld [vmem:[%s1 + $0x21a0] sm:$0xff]
  %v1134 = vld [vmem:[%s1 + $0x21a8] sm:$0xff]
  %v1135 = vld [vmem:[%s1 + $0x21b0] sm:$0xff]
  %v1136 = vld [vmem:[%s1 + $0x21b8] sm:$0xff]
  %v1137 = vld [vmem:[%s1 + $0x21c0] sm:$0xff]
  %v1138 = vld [vmem:[%s1 + $0x21c8] sm:$0xff]
  %v1139 = vld [vmem:[%s1 + $0x21d0] sm:$0xff]
  %v1140 = vld [vmem:[%s1 + $0x21d8] sm:$0xff]
  %v1141 = vld [vmem:[%s1 + $0x21e0] sm:$0xff]
  %v1142 = vld [vmem:[%s1 + $0x21e8] sm:$0xff]
  %v1143 = vld [vmem:[%s1 + $0x21f0] sm:$0xff]
  %v1144 = vld [vmem:[%s1 + $0x21f8] sm:$0xff]
  %v1145 = vld [vmem:[%s1 + $0x2200] sm:$0xff]
  %v1146 = vld [vmem:[%s1 + $0x2208] sm:$0xff]
  %v1147 = vld [vmem:[%s1 + $0x2210] sm:$0xff]
  %v1148 = vld [vmem:[%s1 + $0x2218] sm:$0xff]
  %v1149 = vld [vmem:[%s1 + $0x2220] sm:$0xff]
  %v1150 = vld [vmem:[%s1 + $0x2228] sm:$0xff]
  %v1151 = vld [vmem:[%s1 + $0x2230] sm:$0xff]
  %v1152 = vld [vmem:[%s1 + $0x2238] sm:$0xff]
  %v1153 = vld [vmem:[%s1 + $0x2240] sm:$0xff]
  %v1154 = vld [vmem:[%s1 + $0x2248] sm:$0xff]
  %v1155 = vld [vmem:[%s1 + $0x2250] sm:$0xff]
  %v1156 = vld [vmem:[%s1 + $0x2258] sm:$0xff]
  %v1157 = vld [vmem:[%s1 + $0x2260] sm:$0xff]
  %v1158 = vld [vmem:[%s1 + $0x2268] sm:$0xff]
  %v1159 = vld [vmem:[%s1 + $0x2270] sm:$0xff]
  %v1160 = vld [vmem:[%s1 + $0x2278] sm:$0xff]
  %v1161 = vld [vmem:[%s1 + $0x2280] sm:$0xff]
  %v1162 = vld [vmem:[%s1 + $0x2288] sm:$0xff]
  %v1163 = vld [vmem:[%s1 + $0x2290] sm:$0xff]
  %v1164 = vld [vmem:[%s1 + $0x2298] sm:$0xff]
  %v1165 = vld [vmem:[%s1 + $0x22a0] sm:$0xff]
  %v1166 = vld [vmem:[%s1 + $0x22a8] sm:$0xff]
  %v1167 = vld [vmem:[%s1 + $0x22b0] sm:$0xff]
  %v1168 = vld [vmem:[%s1 + $0x22b8] sm:$0xff]
  %v1169 = vld [vmem:[%s1 + $0x22c0] sm:$0xff]
  %v1170 = vld [vmem:[%s1 + $0x22c8] sm:$0xff]
  %v1171 = vld [vmem:[%s1 + $0x22d0] sm:$0xff]
  %v1172 = vld [vmem:[%s1 + $0x22d8] sm:$0xff]
  %v1173 = vld [vmem:[%s1 + $0x22e0] sm:$0xff]
  %v1174 = vld [vmem:[%s1 + $0x22e8] sm:$0xff]
  %v1175 = vld [vmem:[%s1 + $0x22f0] sm:$0xff]
  %v1176 = vld [vmem:[%s1 + $0x22f8] sm:$0xff]
  %v1177 = vld [vmem:[%s1 + $0x2300] sm:$0xff]
  %v1178 = vld [vmem:[%s1 + $0x2308] sm:$0xff]
  %v1179 = vld [vmem:[%s1 + $0x2310] sm:$0xff]
  %v1180 = vld [vmem:[%s1 + $0x2318] sm:$0xff]
  %v1181 = vld [vmem:[%s1 + $0x2320] sm:$0xff]
  %v1182 = vld [vmem:[%s1 + $0x2328] sm:$0xff]
  %v1183 = vld [vmem:[%s1 + $0x2330] sm:$0xff]
  %v1184 = vld [vmem:[%s1 + $0x2338] sm:$0xff]
  %v1185 = vld [vmem:[%s1 + $0x2340] sm:$0xff]
  %v1186 = vld [vmem:[%s1 + $0x2348] sm:$0xff]
  %v1187 = vld [vmem:[%s1 + $0x2350] sm:$0xff]
  %v1188 = vld [vmem:[%s1 + $0x2358] sm:$0xff]
  %v1189 = vld [vmem:[%s1 + $0x2360] sm:$0xff]
  %v1190 = vld [vmem:[%s1 + $0x2368] sm:$0xff]
  %v1191 = vld [vmem:[%s1 + $0x2370] sm:$0xff]
  %v1192 = vld [vmem:[%s1 + $0x2378] sm:$0xff]
  %v1193 = vld [vmem:[%s1 + $0x2380] sm:$0xff]
  %v1194 = vld [vmem:[%s1 + $0x2388] sm:$0xff]
  %v1195 = vld [vmem:[%s1 + $0x2390] sm:$0xff]
  %v1196 = vld [vmem:[%s1 + $0x2398] sm:$0xff]
  %v1197 = vld [vmem:[%s1 + $0x23a0] sm:$0xff]
  %v1198 = vld [vmem:[%s1 + $0x23a8] sm:$0xff]
  %v1199 = vld [vmem:[%s1 + $0x23b0] sm:$0xff]
  %v1200 = vld [vmem:[%s1 + $0x23b8] sm:$0xff]
  %v1201 = vld [vmem:[%s1 + $0x23c0] sm:$0xff]
  %v1202 = vld [vmem:[%s1 + $0x23c8] sm:$0xff]
  %v1203 = vld [vmem:[%s1 + $0x23d0] sm:$0xff]
  %v1204 = vld [vmem:[%s1 + $0x23d8] sm:$0xff]
  %v1205 = vld [vmem:[%s1 + $0x23e0] sm:$0xff]
  %v1206 = vld [vmem:[%s1 + $0x23e8] sm:$0xff]
  %v1207 = vld [vmem:[%s1 + $0x23f0] sm:$0xff]
  %v1208 = vld [vmem:[%s1 + $0x23f8] sm:$0xff]
  %v1209 = vld [vmem:[%s2] sm:$0xff]
  %v1211 = vlaneseq
  %v1212 = vshrl.u32 %v1211, 7
  %v1213 = vsub.s32 0, %v1212
  %v1214 = vrot.slane %v1209, %v1213
  %v1215 = vlaneseq
  %v1216 = vshrl.u32 %v1215, 7
  %v1217 = vsub.s32 1, %v1216
  %v1218 = vrot.slane %v1209, %v1217
  %v1219 = vlaneseq
  %v1220 = vshrl.u32 %v1219, 7
  %v1221 = vsub.s32 2, %v1220
  %v1222 = vrot.slane %v1209, %v1221
  %v1223 = vlaneseq
  %v1224 = vshrl.u32 %v1223, 7
  %v1225 = vsub.s32 3, %v1224
  %v1226 = vrot.slane %v1209, %v1225
  %v1227 = vlaneseq
  %v1228 = vshrl.u32 %v1227, 7
  %v1229 = vsub.s32 4, %v1228
  %v1230 = vrot.slane %v1209, %v1229
  %v1231 = vlaneseq
  %v1232 = vshrl.u32 %v1231, 7
  %v1233 = vsub.s32 5, %v1232
  %v1234 = vrot.slane %v1209, %v1233
  %v1235 = vlaneseq
  %v1236 = vshrl.u32 %v1235, 7
  %v1237 = vsub.s32 6, %v1236
  %v1238 = vrot.slane %v1209, %v1237
  %v1239 = vlaneseq
  %v1240 = vshrl.u32 %v1239, 7
  %v1241 = vsub.s32 7, %v1240
  %v1242 = vrot.slane %v1209, %v1241
  %v2403 = vunpack.c.l.b16 %v57
  %v2404 = vunpack.c.h.b16 %v57
  %v2405 = vunpack.c.l.b16 %v58
  %v2406 = vunpack.c.h.b16 %v58
  %v2407 = vunpack.c.l.b16 %v59
  %v2408 = vunpack.c.h.b16 %v59
  %v2409 = vunpack.c.l.b16 %v60
  %v2410 = vunpack.c.h.b16 %v60
  %v2411 = vunpack.c.l.b16 %v61
  %v2412 = vunpack.c.h.b16 %v61
  %v2413 = vunpack.c.l.b16 %v62
  %v2414 = vunpack.c.h.b16 %v62
  %v2415 = vunpack.c.l.b16 %v63
  %v2416 = vunpack.c.h.b16 %v63
  %v2417 = vunpack.c.l.b16 %v64
  %v2418 = vunpack.c.h.b16 %v64
  %v2419 = vunpack.c.l.b16 %v65
  %v2420 = vunpack.c.h.b16 %v65
  %v2421 = vunpack.c.l.b16 %v66
  %v2422 = vunpack.c.h.b16 %v66
  %v2423 = vunpack.c.l.b16 %v67
  %v2424 = vunpack.c.h.b16 %v67
  %v2425 = vunpack.c.l.b16 %v68
  %v2426 = vunpack.c.h.b16 %v68
  %v2427 = vunpack.c.l.b16 %v69
  %v2428 = vunpack.c.h.b16 %v69
  %v2429 = vunpack.c.l.b16 %v70
  %v2430 = vunpack.c.h.b16 %v70
  %v2431 = vunpack.c.l.b16 %v71
  %v2432 = vunpack.c.h.b16 %v71
  %v2433 = vunpack.c.l.b16 %v72
  %v2434 = vunpack.c.h.b16 %v72
  %v2435 = vunpack.c.l.b16 %v73
  %v2436 = vunpack.c.h.b16 %v73
  %v2437 = vunpack.c.l.b16 %v74
  %v2438 = vunpack.c.h.b16 %v74
  %v2439 = vunpack.c.l.b16 %v75
  %v2440 = vunpack.c.h.b16 %v75
  %v2441 = vunpack.c.l.b16 %v76
  %v2442 = vunpack.c.h.b16 %v76
  %v2443 = vunpack.c.l.b16 %v77
  %v2444 = vunpack.c.h.b16 %v77
  %v2445 = vunpack.c.l.b16 %v78
  %v2446 = vunpack.c.h.b16 %v78
  %v2447 = vunpack.c.l.b16 %v79
  %v2448 = vunpack.c.h.b16 %v79
  %v2449 = vunpack.c.l.b16 %v80
  %v2450 = vunpack.c.h.b16 %v80
  %v2451 = vunpack.c.l.b16 %v81
  %v2452 = vunpack.c.h.b16 %v81
  %v2453 = vunpack.c.l.b16 %v82
  %v2454 = vunpack.c.h.b16 %v82
  %v2455 = vunpack.c.l.b16 %v83
  %v2456 = vunpack.c.h.b16 %v83
  %v2457 = vunpack.c.l.b16 %v84
  %v2458 = vunpack.c.h.b16 %v84
  %v2459 = vunpack.c.l.b16 %v85
  %v2460 = vunpack.c.h.b16 %v85
  %v2461 = vunpack.c.l.b16 %v86
  %v2462 = vunpack.c.h.b16 %v86
  %v2463 = vunpack.c.l.b16 %v87
  %v2464 = vunpack.c.h.b16 %v87
  %v2465 = vunpack.c.l.b16 %v88
  %v2466 = vunpack.c.h.b16 %v88
  %v2467 = vunpack.c.l.b16 %v89
  %v2468 = vunpack.c.h.b16 %v89
  %v2469 = vunpack.c.l.b16 %v90
  %v2470 = vunpack.c.h.b16 %v90
  %v2471 = vunpack.c.l.b16 %v91
  %v2472 = vunpack.c.h.b16 %v91
  %v2473 = vunpack.c.l.b16 %v92
  %v2474 = vunpack.c.h.b16 %v92
  %v2475 = vunpack.c.l.b16 %v93
  %v2476 = vunpack.c.h.b16 %v93
  %v2477 = vunpack.c.l.b16 %v94
  %v2478 = vunpack.c.h.b16 %v94
  %v2479 = vunpack.c.l.b16 %v95
  %v2480 = vunpack.c.h.b16 %v95
  %v2481 = vunpack.c.l.b16 %v96
  %v2482 = vunpack.c.h.b16 %v96
  %v2483 = vunpack.c.l.b16 %v97
  %v2484 = vunpack.c.h.b16 %v97
  %v2485 = vunpack.c.l.b16 %v98
  %v2486 = vunpack.c.h.b16 %v98
  %v2487 = vunpack.c.l.b16 %v99
  %v2488 = vunpack.c.h.b16 %v99
  %v2489 = vunpack.c.l.b16 %v100
  %v2490 = vunpack.c.h.b16 %v100
  %v2491 = vunpack.c.l.b16 %v101
  %v2492 = vunpack.c.h.b16 %v101
  %v2493 = vunpack.c.l.b16 %v102
  %v2494 = vunpack.c.h.b16 %v102
  %v2495 = vunpack.c.l.b16 %v103
  %v2496 = vunpack.c.h.b16 %v103
  %v2497 = vunpack.c.l.b16 %v104
  %v2498 = vunpack.c.h.b16 %v104
  %v2499 = vunpack.c.l.b16 %v105
  %v2500 = vunpack.c.h.b16 %v105
  %v2501 = vunpack.c.l.b16 %v106
  %v2502 = vunpack.c.h.b16 %v106
  %v2503 = vunpack.c.l.b16 %v107
  %v2504 = vunpack.c.h.b16 %v107
  %v2505 = vunpack.c.l.b16 %v108
  %v2506 = vunpack.c.h.b16 %v108
  %v2507 = vunpack.c.l.b16 %v109
  %v2508 = vunpack.c.h.b16 %v109
  %v2509 = vunpack.c.l.b16 %v110
  %v2510 = vunpack.c.h.b16 %v110
  %v2511 = vunpack.c.l.b16 %v111
  %v2512 = vunpack.c.h.b16 %v111
  %v2513 = vunpack.c.l.b16 %v112
  %v2514 = vunpack.c.h.b16 %v112
  %v2515 = vunpack.c.l.b16 %v113
  %v2516 = vunpack.c.h.b16 %v113
  %v2517 = vunpack.c.l.b16 %v114
  %v2518 = vunpack.c.h.b16 %v114
  %v2519 = vunpack.c.l.b16 %v115
  %v2520 = vunpack.c.h.b16 %v115
  %v2521 = vunpack.c.l.b16 %v116
  %v2522 = vunpack.c.h.b16 %v116
  %v2523 = vunpack.c.l.b16 %v117
  %v2524 = vunpack.c.h.b16 %v117
  %v2525 = vunpack.c.l.b16 %v118
  %v2526 = vunpack.c.h.b16 %v118
  %v2527 = vunpack.c.l.b16 %v119
  %v2528 = vunpack.c.h.b16 %v119
  %v2529 = vunpack.c.l.b16 %v120
  %v2530 = vunpack.c.h.b16 %v120
  %v2531 = vunpack.c.l.b16 %v121
  %v2532 = vunpack.c.h.b16 %v121
  %v2533 = vunpack.c.l.b16 %v122
  %v2534 = vunpack.c.h.b16 %v122
  %v2535 = vunpack.c.l.b16 %v123
  %v2536 = vunpack.c.h.b16 %v123
  %v2537 = vunpack.c.l.b16 %v124
  %v2538 = vunpack.c.h.b16 %v124
  %v2539 = vunpack.c.l.b16 %v125
  %v2540 = vunpack.c.h.b16 %v125
  %v2541 = vunpack.c.l.b16 %v126
  %v2542 = vunpack.c.h.b16 %v126
  %v2543 = vunpack.c.l.b16 %v127
  %v2544 = vunpack.c.h.b16 %v127
  %v2545 = vunpack.c.l.b16 %v128
  %v2546 = vunpack.c.h.b16 %v128
  %v2547 = vunpack.c.l.b16 %v129
  %v2548 = vunpack.c.h.b16 %v129
  %v2549 = vunpack.c.l.b16 %v130
  %v2550 = vunpack.c.h.b16 %v130
  %v2551 = vunpack.c.l.b16 %v131
  %v2552 = vunpack.c.h.b16 %v131
  %v2553 = vunpack.c.l.b16 %v132
  %v2554 = vunpack.c.h.b16 %v132
  %v2555 = vunpack.c.l.b16 %v133
  %v2556 = vunpack.c.h.b16 %v133
  %v2557 = vunpack.c.l.b16 %v134
  %v2558 = vunpack.c.h.b16 %v134
  %v2559 = vunpack.c.l.b16 %v135
  %v2560 = vunpack.c.h.b16 %v135
  %v2561 = vunpack.c.l.b16 %v136
  %v2562 = vunpack.c.h.b16 %v136
  %v2563 = vunpack.c.l.b16 %v137
  %v2564 = vunpack.c.h.b16 %v137
  %v2565 = vunpack.c.l.b16 %v138
  %v2566 = vunpack.c.h.b16 %v138
  %v2567 = vunpack.c.l.b16 %v139
  %v2568 = vunpack.c.h.b16 %v139
  %v2569 = vunpack.c.l.b16 %v140
  %v2570 = vunpack.c.h.b16 %v140
  %v2571 = vunpack.c.l.b16 %v141
  %v2572 = vunpack.c.h.b16 %v141
  %v2573 = vunpack.c.l.b16 %v142
  %v2574 = vunpack.c.h.b16 %v142
  %v2575 = vunpack.c.l.b16 %v143
  %v2576 = vunpack.c.h.b16 %v143
  %v2577 = vunpack.c.l.b16 %v144
  %v2578 = vunpack.c.h.b16 %v144
  %v2579 = vunpack.c.l.b16 %v145
  %v2580 = vunpack.c.h.b16 %v145
  %v2581 = vunpack.c.l.b16 %v146
  %v2582 = vunpack.c.h.b16 %v146
  %v2583 = vunpack.c.l.b16 %v147
  %v2584 = vunpack.c.h.b16 %v147
  %v2585 = vunpack.c.l.b16 %v148
  %v2586 = vunpack.c.h.b16 %v148
  %v2587 = vunpack.c.l.b16 %v149
  %v2588 = vunpack.c.h.b16 %v149
  %v2589 = vunpack.c.l.b16 %v150
  %v2590 = vunpack.c.h.b16 %v150
  %v2591 = vunpack.c.l.b16 %v151
  %v2592 = vunpack.c.h.b16 %v151
  %v2593 = vunpack.c.l.b16 %v152
  %v2594 = vunpack.c.h.b16 %v152
  %v2595 = vunpack.c.l.b16 %v153
  %v2596 = vunpack.c.h.b16 %v153
  %v2597 = vunpack.c.l.b16 %v154
  %v2598 = vunpack.c.h.b16 %v154
  %v2599 = vunpack.c.l.b16 %v155
  %v2600 = vunpack.c.h.b16 %v155
  %v2601 = vunpack.c.l.b16 %v156
  %v2602 = vunpack.c.h.b16 %v156
  %v2603 = vunpack.c.l.b16 %v157
  %v2604 = vunpack.c.h.b16 %v157
  %v2605 = vunpack.c.l.b16 %v158
  %v2606 = vunpack.c.h.b16 %v158
  %v2607 = vunpack.c.l.b16 %v159
  %v2608 = vunpack.c.h.b16 %v159
  %v2609 = vunpack.c.l.b16 %v160
  %v2610 = vunpack.c.h.b16 %v160
  %v2611 = vunpack.c.l.b16 %v161
  %v2612 = vunpack.c.h.b16 %v161
  %v2613 = vunpack.c.l.b16 %v162
  %v2614 = vunpack.c.h.b16 %v162
  %v2615 = vunpack.c.l.b16 %v163
  %v2616 = vunpack.c.h.b16 %v163
  %v2617 = vunpack.c.l.b16 %v164
  %v2618 = vunpack.c.h.b16 %v164
  %v2619 = vunpack.c.l.b16 %v165
  %v2620 = vunpack.c.h.b16 %v165
  %v2621 = vunpack.c.l.b16 %v166
  %v2622 = vunpack.c.h.b16 %v166
  %v2623 = vunpack.c.l.b16 %v167
  %v2624 = vunpack.c.h.b16 %v167
  %v2625 = vunpack.c.l.b16 %v168
  %v2626 = vunpack.c.h.b16 %v168
  %v2627 = vunpack.c.l.b16 %v169
  %v2628 = vunpack.c.h.b16 %v169
  %v2629 = vunpack.c.l.b16 %v170
  %v2630 = vunpack.c.h.b16 %v170
  %v2631 = vunpack.c.l.b16 %v171
  %v2632 = vunpack.c.h.b16 %v171
  %v2633 = vunpack.c.l.b16 %v172
  %v2634 = vunpack.c.h.b16 %v172
  %v2635 = vunpack.c.l.b16 %v173
  %v2636 = vunpack.c.h.b16 %v173
  %v2637 = vunpack.c.l.b16 %v174
  %v2638 = vunpack.c.h.b16 %v174
  %v2639 = vunpack.c.l.b16 %v175
  %v2640 = vunpack.c.h.b16 %v175
  %v2641 = vunpack.c.l.b16 %v176
  %v2642 = vunpack.c.h.b16 %v176
  %v2643 = vunpack.c.l.b16 %v177
  %v2644 = vunpack.c.h.b16 %v177
  %v2645 = vunpack.c.l.b16 %v178
  %v2646 = vunpack.c.h.b16 %v178
  %v2647 = vunpack.c.l.b16 %v179
  %v2648 = vunpack.c.h.b16 %v179
  %v2649 = vunpack.c.l.b16 %v180
  %v2650 = vunpack.c.h.b16 %v180
  %v2651 = vunpack.c.l.b16 %v181
  %v2652 = vunpack.c.h.b16 %v181
  %v2653 = vunpack.c.l.b16 %v182
  %v2654 = vunpack.c.h.b16 %v182
  %v2655 = vunpack.c.l.b16 %v183
  %v2656 = vunpack.c.h.b16 %v183
  %v2657 = vunpack.c.l.b16 %v184
  %v2658 = vunpack.c.h.b16 %v184
  %v2659 = vunpack.c.l.b16 %v185
  %v2660 = vunpack.c.h.b16 %v185
  %v2661 = vunpack.c.l.b16 %v186
  %v2662 = vunpack.c.h.b16 %v186
  %v2663 = vunpack.c.l.b16 %v187
  %v2664 = vunpack.c.h.b16 %v187
  %v2665 = vunpack.c.l.b16 %v188
  %v2666 = vunpack.c.h.b16 %v188
  %v2667 = vunpack.c.l.b16 %v189
  %v2668 = vunpack.c.h.b16 %v189
  %v2669 = vunpack.c.l.b16 %v190
  %v2670 = vunpack.c.h.b16 %v190
  %v2671 = vunpack.c.l.b16 %v191
  %v2672 = vunpack.c.h.b16 %v191
  %v2673 = vunpack.c.l.b16 %v192
  %v2674 = vunpack.c.h.b16 %v192
  %v2675 = vunpack.c.l.b16 %v193
  %v2676 = vunpack.c.h.b16 %v193
  %v2677 = vunpack.c.l.b16 %v194
  %v2678 = vunpack.c.h.b16 %v194
  %v2679 = vunpack.c.l.b16 %v195
  %v2680 = vunpack.c.h.b16 %v195
  %v2681 = vunpack.c.l.b16 %v196
  %v2682 = vunpack.c.h.b16 %v196
  %v2683 = vunpack.c.l.b16 %v197
  %v2684 = vunpack.c.h.b16 %v197
  %v2685 = vunpack.c.l.b16 %v198
  %v2686 = vunpack.c.h.b16 %v198
  %v2687 = vunpack.c.l.b16 %v199
  %v2688 = vunpack.c.h.b16 %v199
  %v2689 = vunpack.c.l.b16 %v200
  %v2690 = vunpack.c.h.b16 %v200
  %v2691 = vunpack.c.l.b16 %v201
  %v2692 = vunpack.c.h.b16 %v201
  %v2693 = vunpack.c.l.b16 %v202
  %v2694 = vunpack.c.h.b16 %v202
  %v2695 = vunpack.c.l.b16 %v203
  %v2696 = vunpack.c.h.b16 %v203
  %v2697 = vunpack.c.l.b16 %v204
  %v2698 = vunpack.c.h.b16 %v204
  %v2699 = vunpack.c.l.b16 %v205
  %v2700 = vunpack.c.h.b16 %v205
  %v2701 = vunpack.c.l.b16 %v206
  %v2702 = vunpack.c.h.b16 %v206
  %v2703 = vunpack.c.l.b16 %v207
  %v2704 = vunpack.c.h.b16 %v207
  %v2705 = vunpack.c.l.b16 %v208
  %v2706 = vunpack.c.h.b16 %v208
  %v2707 = vunpack.c.l.b16 %v209
  %v2708 = vunpack.c.h.b16 %v209
  %v2709 = vunpack.c.l.b16 %v210
  %v2710 = vunpack.c.h.b16 %v210
  %v2711 = vunpack.c.l.b16 %v211
  %v2712 = vunpack.c.h.b16 %v211
  %v2713 = vunpack.c.l.b16 %v212
  %v2714 = vunpack.c.h.b16 %v212
  %v2715 = vunpack.c.l.b16 %v213
  %v2716 = vunpack.c.h.b16 %v213
  %v2717 = vunpack.c.l.b16 %v214
  %v2718 = vunpack.c.h.b16 %v214
  %v2719 = vunpack.c.l.b16 %v215
  %v2720 = vunpack.c.h.b16 %v215
  %v2721 = vunpack.c.l.b16 %v216
  %v2722 = vunpack.c.h.b16 %v216
  %v2723 = vunpack.c.l.b16 %v217
  %v2724 = vunpack.c.h.b16 %v217
  %v2725 = vunpack.c.l.b16 %v218
  %v2726 = vunpack.c.h.b16 %v218
  %v2727 = vunpack.c.l.b16 %v219
  %v2728 = vunpack.c.h.b16 %v219
  %v2729 = vunpack.c.l.b16 %v220
  %v2730 = vunpack.c.h.b16 %v220
  %v2731 = vunpack.c.l.b16 %v221
  %v2732 = vunpack.c.h.b16 %v221
  %v2733 = vunpack.c.l.b16 %v222
  %v2734 = vunpack.c.h.b16 %v222
  %v2735 = vunpack.c.l.b16 %v223
  %v2736 = vunpack.c.h.b16 %v223
  %v2737 = vunpack.c.l.b16 %v224
  %v2738 = vunpack.c.h.b16 %v224
  %v2739 = vunpack.c.l.b16 %v225
  %v2740 = vunpack.c.h.b16 %v225
  %v2741 = vunpack.c.l.b16 %v226
  %v2742 = vunpack.c.h.b16 %v226
  %v2743 = vunpack.c.l.b16 %v227
  %v2744 = vunpack.c.h.b16 %v227
  %v2745 = vunpack.c.l.b16 %v228
  %v2746 = vunpack.c.h.b16 %v228
  %v2747 = vunpack.c.l.b16 %v229
  %v2748 = vunpack.c.h.b16 %v229
  %v2749 = vunpack.c.l.b16 %v230
  %v2750 = vunpack.c.h.b16 %v230
  %v2751 = vunpack.c.l.b16 %v231
  %v2752 = vunpack.c.h.b16 %v231
  %v2753 = vunpack.c.l.b16 %v232
  %v2754 = vunpack.c.h.b16 %v232
  %v2755 = vunpack.c.l.b16 %v233
  %v2756 = vunpack.c.h.b16 %v233
  %v2757 = vunpack.c.l.b16 %v234
  %v2758 = vunpack.c.h.b16 %v234
  %v2759 = vunpack.c.l.b16 %v235
  %v2760 = vunpack.c.h.b16 %v235
  %v2761 = vunpack.c.l.b16 %v236
  %v2762 = vunpack.c.h.b16 %v236
  %v2763 = vunpack.c.l.b16 %v237
  %v2764 = vunpack.c.h.b16 %v237
  %v2765 = vunpack.c.l.b16 %v238
  %v2766 = vunpack.c.h.b16 %v238
  %v2767 = vunpack.c.l.b16 %v239
  %v2768 = vunpack.c.h.b16 %v239
  %v2769 = vunpack.c.l.b16 %v240
  %v2770 = vunpack.c.h.b16 %v240
  %v2771 = vunpack.c.l.b16 %v241
  %v2772 = vunpack.c.h.b16 %v241
  %v2773 = vunpack.c.l.b16 %v242
  %v2774 = vunpack.c.h.b16 %v242
  %v2775 = vunpack.c.l.b16 %v243
  %v2776 = vunpack.c.h.b16 %v243
  %v2777 = vunpack.c.l.b16 %v244
  %v2778 = vunpack.c.h.b16 %v244
  %v2779 = vunpack.c.l.b16 %v245
  %v2780 = vunpack.c.h.b16 %v245
  %v2781 = vunpack.c.l.b16 %v246
  %v2782 = vunpack.c.h.b16 %v246
  %v2783 = vunpack.c.l.b16 %v247
  %v2784 = vunpack.c.h.b16 %v247
  %v2785 = vunpack.c.l.b16 %v248
  %v2786 = vunpack.c.h.b16 %v248
  %v2787 = vunpack.c.l.b16 %v249
  %v2788 = vunpack.c.h.b16 %v249
  %v2789 = vunpack.c.l.b16 %v250
  %v2790 = vunpack.c.h.b16 %v250
  %v2791 = vunpack.c.l.b16 %v251
  %v2792 = vunpack.c.h.b16 %v251
  %v2793 = vunpack.c.l.b16 %v252
  %v2794 = vunpack.c.h.b16 %v252
  %v2795 = vunpack.c.l.b16 %v253
  %v2796 = vunpack.c.h.b16 %v253
  %v2797 = vunpack.c.l.b16 %v254
  %v2798 = vunpack.c.h.b16 %v254
  %v2799 = vunpack.c.l.b16 %v255
  %v2800 = vunpack.c.h.b16 %v255
  %v2801 = vunpack.c.l.b16 %v256
  %v2802 = vunpack.c.h.b16 %v256
  %v2803 = vunpack.c.l.b16 %v257
  %v2804 = vunpack.c.h.b16 %v257
  %v2805 = vunpack.c.l.b16 %v258
  %v2806 = vunpack.c.h.b16 %v258
  %v2807 = vunpack.c.l.b16 %v259
  %v2808 = vunpack.c.h.b16 %v259
  %v2809 = vunpack.c.l.b16 %v260
  %v2810 = vunpack.c.h.b16 %v260
  %v2811 = vunpack.c.l.b16 %v261
  %v2812 = vunpack.c.h.b16 %v261
  %v2813 = vunpack.c.l.b16 %v262
  %v2814 = vunpack.c.h.b16 %v262
  %v2815 = vunpack.c.l.b16 %v263
  %v2816 = vunpack.c.h.b16 %v263
  %v2817 = vunpack.c.l.b16 %v264
  %v2818 = vunpack.c.h.b16 %v264
  %v2819 = vunpack.c.l.b16 %v265
  %v2820 = vunpack.c.h.b16 %v265
  %v2821 = vunpack.c.l.b16 %v266
  %v2822 = vunpack.c.h.b16 %v266
  %v2823 = vunpack.c.l.b16 %v267
  %v2824 = vunpack.c.h.b16 %v267
  %v2825 = vunpack.c.l.b16 %v268
  %v2826 = vunpack.c.h.b16 %v268
  %v2827 = vunpack.c.l.b16 %v269
  %v2828 = vunpack.c.h.b16 %v269
  %v2829 = vunpack.c.l.b16 %v270
  %v2830 = vunpack.c.h.b16 %v270
  %v2831 = vunpack.c.l.b16 %v271
  %v2832 = vunpack.c.h.b16 %v271
  %v2833 = vunpack.c.l.b16 %v272
  %v2834 = vunpack.c.h.b16 %v272
  %v2835 = vunpack.c.l.b16 %v273
  %v2836 = vunpack.c.h.b16 %v273
  %v2837 = vunpack.c.l.b16 %v274
  %v2838 = vunpack.c.h.b16 %v274
  %v2839 = vunpack.c.l.b16 %v275
  %v2840 = vunpack.c.h.b16 %v275
  %v2841 = vunpack.c.l.b16 %v276
  %v2842 = vunpack.c.h.b16 %v276
  %v2843 = vunpack.c.l.b16 %v277
  %v2844 = vunpack.c.h.b16 %v277
  %v2845 = vunpack.c.l.b16 %v278
  %v2846 = vunpack.c.h.b16 %v278
  %v2847 = vunpack.c.l.b16 %v279
  %v2848 = vunpack.c.h.b16 %v279
  %v2849 = vunpack.c.l.b16 %v280
  %v2850 = vunpack.c.h.b16 %v280
  %v2851 = vunpack.c.l.b16 %v281
  %v2852 = vunpack.c.h.b16 %v281
  %v2853 = vunpack.c.l.b16 %v282
  %v2854 = vunpack.c.h.b16 %v282
  %v2855 = vunpack.c.l.b16 %v283
  %v2856 = vunpack.c.h.b16 %v283
  %v2857 = vunpack.c.l.b16 %v284
  %v2858 = vunpack.c.h.b16 %v284
  %v2859 = vunpack.c.l.b16 %v285
  %v2860 = vunpack.c.h.b16 %v285
  %v2861 = vunpack.c.l.b16 %v286
  %v2862 = vunpack.c.h.b16 %v286
  %v2863 = vunpack.c.l.b16 %v287
  %v2864 = vunpack.c.h.b16 %v287
  %v2865 = vunpack.c.l.b16 %v288
  %v2866 = vunpack.c.h.b16 %v288
  %v2867 = vunpack.c.l.b16 %v289
  %v2868 = vunpack.c.h.b16 %v289
  %v2869 = vunpack.c.l.b16 %v290
  %v2870 = vunpack.c.h.b16 %v290
  %v2871 = vunpack.c.l.b16 %v291
  %v2872 = vunpack.c.h.b16 %v291
  %v2873 = vunpack.c.l.b16 %v292
  %v2874 = vunpack.c.h.b16 %v292
  %v2875 = vunpack.c.l.b16 %v293
  %v2876 = vunpack.c.h.b16 %v293
  %v2877 = vunpack.c.l.b16 %v294
  %v2878 = vunpack.c.h.b16 %v294
  %v2879 = vunpack.c.l.b16 %v295
  %v2880 = vunpack.c.h.b16 %v295
  %v2881 = vunpack.c.l.b16 %v296
  %v2882 = vunpack.c.h.b16 %v296
  %v2883 = vunpack.c.l.b16 %v297
  %v2884 = vunpack.c.h.b16 %v297
  %v2885 = vunpack.c.l.b16 %v298
  %v2886 = vunpack.c.h.b16 %v298
  %v2887 = vunpack.c.l.b16 %v299
  %v2888 = vunpack.c.h.b16 %v299
  %v2889 = vunpack.c.l.b16 %v300
  %v2890 = vunpack.c.h.b16 %v300
  %v2891 = vunpack.c.l.b16 %v301
  %v2892 = vunpack.c.h.b16 %v301
  %v2893 = vunpack.c.l.b16 %v302
  %v2894 = vunpack.c.h.b16 %v302
  %v2895 = vunpack.c.l.b16 %v303
  %v2896 = vunpack.c.h.b16 %v303
  %v2897 = vunpack.c.l.b16 %v304
  %v2898 = vunpack.c.h.b16 %v304
  %v2899 = vunpack.c.l.b16 %v305
  %v2900 = vunpack.c.h.b16 %v305
  %v2901 = vunpack.c.l.b16 %v306
  %v2902 = vunpack.c.h.b16 %v306
  %v2903 = vunpack.c.l.b16 %v307
  %v2904 = vunpack.c.h.b16 %v307
  %v2905 = vunpack.c.l.b16 %v308
  %v2906 = vunpack.c.h.b16 %v308
  %v2907 = vunpack.c.l.b16 %v309
  %v2908 = vunpack.c.h.b16 %v309
  %v2909 = vunpack.c.l.b16 %v310
  %v2910 = vunpack.c.h.b16 %v310
  %v2911 = vunpack.c.l.b16 %v311
  %v2912 = vunpack.c.h.b16 %v311
  %v2913 = vunpack.c.l.b16 %v312
  %v2914 = vunpack.c.h.b16 %v312
  %v2915 = vunpack.c.l.b16 %v313
  %v2916 = vunpack.c.h.b16 %v313
  %v2917 = vunpack.c.l.b16 %v314
  %v2918 = vunpack.c.h.b16 %v314
  %v2919 = vunpack.c.l.b16 %v315
  %v2920 = vunpack.c.h.b16 %v315
  %v2921 = vunpack.c.l.b16 %v316
  %v2922 = vunpack.c.h.b16 %v316
  %v2923 = vunpack.c.l.b16 %v317
  %v2924 = vunpack.c.h.b16 %v317
  %v2925 = vunpack.c.l.b16 %v318
  %v2926 = vunpack.c.h.b16 %v318
  %v2927 = vunpack.c.l.b16 %v319
  %v2928 = vunpack.c.h.b16 %v319
  %v2929 = vunpack.c.l.b16 %v320
  %v2930 = vunpack.c.h.b16 %v320
  %v2931 = vunpack.c.l.b16 %v321
  %v2932 = vunpack.c.h.b16 %v321
  %v2933 = vunpack.c.l.b16 %v322
  %v2934 = vunpack.c.h.b16 %v322
  %v2935 = vunpack.c.l.b16 %v323
  %v2936 = vunpack.c.h.b16 %v323
  %v2937 = vunpack.c.l.b16 %v324
  %v2938 = vunpack.c.h.b16 %v324
  %v2939 = vunpack.c.l.b16 %v325
  %v2940 = vunpack.c.h.b16 %v325
  %v2941 = vunpack.c.l.b16 %v326
  %v2942 = vunpack.c.h.b16 %v326
  %v2943 = vunpack.c.l.b16 %v327
  %v2944 = vunpack.c.h.b16 %v327
  %v2945 = vunpack.c.l.b16 %v328
  %v2946 = vunpack.c.h.b16 %v328
  %v2947 = vunpack.c.l.b16 %v329
  %v2948 = vunpack.c.h.b16 %v329
  %v2949 = vunpack.c.l.b16 %v330
  %v2950 = vunpack.c.h.b16 %v330
  %v2951 = vunpack.c.l.b16 %v331
  %v2952 = vunpack.c.h.b16 %v331
  %v2953 = vunpack.c.l.b16 %v332
  %v2954 = vunpack.c.h.b16 %v332
  %v2955 = vunpack.c.l.b16 %v333
  %v2956 = vunpack.c.h.b16 %v333
  %v2957 = vunpack.c.l.b16 %v334
  %v2958 = vunpack.c.h.b16 %v334
  %v2959 = vunpack.c.l.b16 %v335
  %v2960 = vunpack.c.h.b16 %v335
  %v2961 = vunpack.c.l.b16 %v336
  %v2962 = vunpack.c.h.b16 %v336
  %v2963 = vunpack.c.l.b16 %v337
  %v2964 = vunpack.c.h.b16 %v337
  %v2965 = vunpack.c.l.b16 %v338
  %v2966 = vunpack.c.h.b16 %v338
  %v2967 = vunpack.c.l.b16 %v339
  %v2968 = vunpack.c.h.b16 %v339
  %v2969 = vunpack.c.l.b16 %v340
  %v2970 = vunpack.c.h.b16 %v340
  %v2971 = vunpack.c.l.b16 %v341
  %v2972 = vunpack.c.h.b16 %v341
  %v2973 = vunpack.c.l.b16 %v342
  %v2974 = vunpack.c.h.b16 %v342
  %v2975 = vunpack.c.l.b16 %v343
  %v2976 = vunpack.c.h.b16 %v343
  %v2977 = vunpack.c.l.b16 %v344
  %v2978 = vunpack.c.h.b16 %v344
  %v2979 = vunpack.c.l.b16 %v345
  %v2980 = vunpack.c.h.b16 %v345
  %v2981 = vunpack.c.l.b16 %v346
  %v2982 = vunpack.c.h.b16 %v346
  %v2983 = vunpack.c.l.b16 %v347
  %v2984 = vunpack.c.h.b16 %v347
  %v2985 = vunpack.c.l.b16 %v348
  %v2986 = vunpack.c.h.b16 %v348
  %v2987 = vunpack.c.l.b16 %v349
  %v2988 = vunpack.c.h.b16 %v349
  %v2989 = vunpack.c.l.b16 %v350
  %v2990 = vunpack.c.h.b16 %v350
  %v2991 = vunpack.c.l.b16 %v351
  %v2992 = vunpack.c.h.b16 %v351
  %v2993 = vunpack.c.l.b16 %v352
  %v2994 = vunpack.c.h.b16 %v352
  %v2995 = vunpack.c.l.b16 %v353
  %v2996 = vunpack.c.h.b16 %v353
  %v2997 = vunpack.c.l.b16 %v354
  %v2998 = vunpack.c.h.b16 %v354
  %v2999 = vunpack.c.l.b16 %v355
  %v3000 = vunpack.c.h.b16 %v355
  %v3001 = vunpack.c.l.b16 %v356
  %v3002 = vunpack.c.h.b16 %v356
  %v3003 = vunpack.c.l.b16 %v357
  %v3004 = vunpack.c.h.b16 %v357
  %v3005 = vunpack.c.l.b16 %v358
  %v3006 = vunpack.c.h.b16 %v358
  %v3007 = vunpack.c.l.b16 %v359
  %v3008 = vunpack.c.h.b16 %v359
  %v3009 = vunpack.c.l.b16 %v360
  %v3010 = vunpack.c.h.b16 %v360
  %v3011 = vunpack.c.l.b16 %v361
  %v3012 = vunpack.c.h.b16 %v361
  %v3013 = vunpack.c.l.b16 %v362
  %v3014 = vunpack.c.h.b16 %v362
  %v3015 = vunpack.c.l.b16 %v363
  %v3016 = vunpack.c.h.b16 %v363
  %v3017 = vunpack.c.l.b16 %v364
  %v3018 = vunpack.c.h.b16 %v364
  %v3019 = vunpack.c.l.b16 %v365
  %v3020 = vunpack.c.h.b16 %v365
  %v3021 = vunpack.c.l.b16 %v366
  %v3022 = vunpack.c.h.b16 %v366
  %v3023 = vunpack.c.l.b16 %v367
  %v3024 = vunpack.c.h.b16 %v367
  %v3025 = vunpack.c.l.b16 %v368
  %v3026 = vunpack.c.h.b16 %v368
  %v3027 = vunpack.c.l.b16 %v369
  %v3028 = vunpack.c.h.b16 %v369
  %v3029 = vunpack.c.l.b16 %v370
  %v3030 = vunpack.c.h.b16 %v370
  %v3031 = vunpack.c.l.b16 %v371
  %v3032 = vunpack.c.h.b16 %v371
  %v3033 = vunpack.c.l.b16 %v372
  %v3034 = vunpack.c.h.b16 %v372
  %v3035 = vunpack.c.l.b16 %v373
  %v3036 = vunpack.c.h.b16 %v373
  %v3037 = vunpack.c.l.b16 %v374
  %v3038 = vunpack.c.h.b16 %v374
  %v3039 = vunpack.c.l.b16 %v375
  %v3040 = vunpack.c.h.b16 %v375
  %v3041 = vunpack.c.l.b16 %v376
  %v3042 = vunpack.c.h.b16 %v376
  %v3043 = vunpack.c.l.b16 %v377
  %v3044 = vunpack.c.h.b16 %v377
  %v3045 = vunpack.c.l.b16 %v378
  %v3046 = vunpack.c.h.b16 %v378
  %v3047 = vunpack.c.l.b16 %v379
  %v3048 = vunpack.c.h.b16 %v379
  %v3049 = vunpack.c.l.b16 %v380
  %v3050 = vunpack.c.h.b16 %v380
  %v3051 = vunpack.c.l.b16 %v381
  %v3052 = vunpack.c.h.b16 %v381
  %v3053 = vunpack.c.l.b16 %v382
  %v3054 = vunpack.c.h.b16 %v382
  %v3055 = vunpack.c.l.b16 %v383
  %v3056 = vunpack.c.h.b16 %v383
  %v3057 = vunpack.c.l.b16 %v384
  %v3058 = vunpack.c.h.b16 %v384
  %v3059 = vunpack.c.l.b16 %v385
  %v3060 = vunpack.c.h.b16 %v385
  %v3061 = vunpack.c.l.b16 %v386
  %v3062 = vunpack.c.h.b16 %v386
  %v3063 = vunpack.c.l.b16 %v387
  %v3064 = vunpack.c.h.b16 %v387
  %v3065 = vunpack.c.l.b16 %v388
  %v3066 = vunpack.c.h.b16 %v388
  %v3067 = vunpack.c.l.b16 %v389
  %v3068 = vunpack.c.h.b16 %v389
  %v3069 = vunpack.c.l.b16 %v390
  %v3070 = vunpack.c.h.b16 %v390
  %v3071 = vunpack.c.l.b16 %v391
  %v3072 = vunpack.c.h.b16 %v391
  %v3073 = vunpack.c.l.b16 %v392
  %v3074 = vunpack.c.h.b16 %v392
  %v3075 = vunpack.c.l.b16 %v393
  %v3076 = vunpack.c.h.b16 %v393
  %v3077 = vunpack.c.l.b16 %v394
  %v3078 = vunpack.c.h.b16 %v394
  %v3079 = vunpack.c.l.b16 %v395
  %v3080 = vunpack.c.h.b16 %v395
  %v3081 = vunpack.c.l.b16 %v396
  %v3082 = vunpack.c.h.b16 %v396
  %v3083 = vunpack.c.l.b16 %v397
  %v3084 = vunpack.c.h.b16 %v397
  %v3085 = vunpack.c.l.b16 %v398
  %v3086 = vunpack.c.h.b16 %v398
  %v3087 = vunpack.c.l.b16 %v399
  %v3088 = vunpack.c.h.b16 %v399
  %v3089 = vunpack.c.l.b16 %v400
  %v3090 = vunpack.c.h.b16 %v400
  %v3091 = vunpack.c.l.b16 %v401
  %v3092 = vunpack.c.h.b16 %v401
  %v3093 = vunpack.c.l.b16 %v402
  %v3094 = vunpack.c.h.b16 %v402
  %v3095 = vunpack.c.l.b16 %v403
  %v3096 = vunpack.c.h.b16 %v403
  %v3097 = vunpack.c.l.b16 %v404
  %v3098 = vunpack.c.h.b16 %v404
  %v3099 = vunpack.c.l.b16 %v405
  %v3100 = vunpack.c.h.b16 %v405
  %v3101 = vunpack.c.l.b16 %v406
  %v3102 = vunpack.c.h.b16 %v406
  %v3103 = vunpack.c.l.b16 %v407
  %v3104 = vunpack.c.h.b16 %v407
  %v3105 = vunpack.c.l.b16 %v408
  %v3106 = vunpack.c.h.b16 %v408
  %v3107 = vunpack.c.l.b16 %v409
  %v3108 = vunpack.c.h.b16 %v409
  %v3109 = vunpack.c.l.b16 %v410
  %v3110 = vunpack.c.h.b16 %v410
  %v3111 = vunpack.c.l.b16 %v411
  %v3112 = vunpack.c.h.b16 %v411
  %v3113 = vunpack.c.l.b16 %v412
  %v3114 = vunpack.c.h.b16 %v412
  %v3115 = vunpack.c.l.b16 %v413
  %v3116 = vunpack.c.h.b16 %v413
  %v3117 = vunpack.c.l.b16 %v414
  %v3118 = vunpack.c.h.b16 %v414
  %v3119 = vunpack.c.l.b16 %v415
  %v3120 = vunpack.c.h.b16 %v415
  %v3121 = vunpack.c.l.b16 %v416
  %v3122 = vunpack.c.h.b16 %v416
  %v3123 = vunpack.c.l.b16 %v417
  %v3124 = vunpack.c.h.b16 %v417
  %v3125 = vunpack.c.l.b16 %v418
  %v3126 = vunpack.c.h.b16 %v418
  %v3127 = vunpack.c.l.b16 %v419
  %v3128 = vunpack.c.h.b16 %v419
  %v3129 = vunpack.c.l.b16 %v420
  %v3130 = vunpack.c.h.b16 %v420
  %v3131 = vunpack.c.l.b16 %v421
  %v3132 = vunpack.c.h.b16 %v421
  %v3133 = vunpack.c.l.b16 %v422
  %v3134 = vunpack.c.h.b16 %v422
  %v3135 = vunpack.c.l.b16 %v423
  %v3136 = vunpack.c.h.b16 %v423
  %v3137 = vunpack.c.l.b16 %v424
  %v3138 = vunpack.c.h.b16 %v424
  %v3139 = vunpack.c.l.b16 %v425
  %v3140 = vunpack.c.h.b16 %v425
  %v3141 = vunpack.c.l.b16 %v426
  %v3142 = vunpack.c.h.b16 %v426
  %v3143 = vunpack.c.l.b16 %v427
  %v3144 = vunpack.c.h.b16 %v427
  %v3145 = vunpack.c.l.b16 %v428
  %v3146 = vunpack.c.h.b16 %v428
  %v3147 = vunpack.c.l.b16 %v429
  %v3148 = vunpack.c.h.b16 %v429
  %v3149 = vunpack.c.l.b16 %v430
  %v3150 = vunpack.c.h.b16 %v430
  %v3151 = vunpack.c.l.b16 %v431
  %v3152 = vunpack.c.h.b16 %v431
  %v3153 = vunpack.c.l.b16 %v432
  %v3154 = vunpack.c.h.b16 %v432
  %v3155 = vunpack.c.l.b16 %v433
  %v3156 = vunpack.c.h.b16 %v433
  %v3157 = vunpack.c.l.b16 %v434
  %v3158 = vunpack.c.h.b16 %v434
  %v3159 = vunpack.c.l.b16 %v435
  %v3160 = vunpack.c.h.b16 %v435
  %v3161 = vunpack.c.l.b16 %v436
  %v3162 = vunpack.c.h.b16 %v436
  %v3163 = vunpack.c.l.b16 %v437
  %v3164 = vunpack.c.h.b16 %v437
  %v3165 = vunpack.c.l.b16 %v438
  %v3166 = vunpack.c.h.b16 %v438
  %v3167 = vunpack.c.l.b16 %v439
  %v3168 = vunpack.c.h.b16 %v439
  %v3169 = vunpack.c.l.b16 %v440
  %v3170 = vunpack.c.h.b16 %v440
  %v3171 = vunpack.c.l.b16 %v441
  %v3172 = vunpack.c.h.b16 %v441
  %v3173 = vunpack.c.l.b16 %v442
  %v3174 = vunpack.c.h.b16 %v442
  %v3175 = vunpack.c.l.b16 %v443
  %v3176 = vunpack.c.h.b16 %v443
  %v3177 = vunpack.c.l.b16 %v444
  %v3178 = vunpack.c.h.b16 %v444
  %v3179 = vunpack.c.l.b16 %v445
  %v3180 = vunpack.c.h.b16 %v445
  %v3181 = vunpack.c.l.b16 %v446
  %v3182 = vunpack.c.h.b16 %v446
  %v3183 = vunpack.c.l.b16 %v447
  %v3184 = vunpack.c.h.b16 %v447
  %v3185 = vunpack.c.l.b16 %v448
  %v3186 = vunpack.c.h.b16 %v448
  %v3187 = vunpack.c.l.b16 %v449
  %v3188 = vunpack.c.h.b16 %v449
  %v3189 = vunpack.c.l.b16 %v450
  %v3190 = vunpack.c.h.b16 %v450
  %v3191 = vunpack.c.l.b16 %v451
  %v3192 = vunpack.c.h.b16 %v451
  %v3193 = vunpack.c.l.b16 %v452
  %v3194 = vunpack.c.h.b16 %v452
  %v3195 = vunpack.c.l.b16 %v453
  %v3196 = vunpack.c.h.b16 %v453
  %v3197 = vunpack.c.l.b16 %v454
  %v3198 = vunpack.c.h.b16 %v454
  %v3199 = vunpack.c.l.b16 %v455
  %v3200 = vunpack.c.h.b16 %v455
  %v3201 = vunpack.c.l.b16 %v456
  %v3202 = vunpack.c.h.b16 %v456
  %v3203 = vunpack.c.l.b16 %v457
  %v3204 = vunpack.c.h.b16 %v457
  %v3205 = vunpack.c.l.b16 %v458
  %v3206 = vunpack.c.h.b16 %v458
  %v3207 = vunpack.c.l.b16 %v459
  %v3208 = vunpack.c.h.b16 %v459
  %v3209 = vunpack.c.l.b16 %v460
  %v3210 = vunpack.c.h.b16 %v460
  %v3211 = vunpack.c.l.b16 %v461
  %v3212 = vunpack.c.h.b16 %v461
  %v3213 = vunpack.c.l.b16 %v462
  %v3214 = vunpack.c.h.b16 %v462
  %v3215 = vunpack.c.l.b16 %v463
  %v3216 = vunpack.c.h.b16 %v463
  %v3217 = vunpack.c.l.b16 %v464
  %v3218 = vunpack.c.h.b16 %v464
  %v3219 = vunpack.c.l.b16 %v465
  %v3220 = vunpack.c.h.b16 %v465
  %v3221 = vunpack.c.l.b16 %v466
  %v3222 = vunpack.c.h.b16 %v466
  %v3223 = vunpack.c.l.b16 %v467
  %v3224 = vunpack.c.h.b16 %v467
  %v3225 = vunpack.c.l.b16 %v468
  %v3226 = vunpack.c.h.b16 %v468
  %v3227 = vunpack.c.l.b16 %v469
  %v3228 = vunpack.c.h.b16 %v469
  %v3229 = vunpack.c.l.b16 %v470
  %v3230 = vunpack.c.h.b16 %v470
  %v3231 = vunpack.c.l.b16 %v471
  %v3232 = vunpack.c.h.b16 %v471
  %v3233 = vunpack.c.l.b16 %v472
  %v3234 = vunpack.c.h.b16 %v472
  %v3235 = vunpack.c.l.b16 %v473
  %v3236 = vunpack.c.h.b16 %v473
  %v3237 = vunpack.c.l.b16 %v474
  %v3238 = vunpack.c.h.b16 %v474
  %v3239 = vunpack.c.l.b16 %v475
  %v3240 = vunpack.c.h.b16 %v475
  %v3241 = vunpack.c.l.b16 %v476
  %v3242 = vunpack.c.h.b16 %v476
  %v3243 = vunpack.c.l.b16 %v477
  %v3244 = vunpack.c.h.b16 %v477
  %v3245 = vunpack.c.l.b16 %v478
  %v3246 = vunpack.c.h.b16 %v478
  %v3247 = vunpack.c.l.b16 %v479
  %v3248 = vunpack.c.h.b16 %v479
  %v3249 = vunpack.c.l.b16 %v480
  %v3250 = vunpack.c.h.b16 %v480
  %v3251 = vunpack.c.l.b16 %v481
  %v3252 = vunpack.c.h.b16 %v481
  %v3253 = vunpack.c.l.b16 %v482
  %v3254 = vunpack.c.h.b16 %v482
  %v3255 = vunpack.c.l.b16 %v483
  %v3256 = vunpack.c.h.b16 %v483
  %v3257 = vunpack.c.l.b16 %v484
  %v3258 = vunpack.c.h.b16 %v484
  %v3259 = vunpack.c.l.b16 %v485
  %v3260 = vunpack.c.h.b16 %v485
  %v3261 = vunpack.c.l.b16 %v486
  %v3262 = vunpack.c.h.b16 %v486
  %v3263 = vunpack.c.l.b16 %v487
  %v3264 = vunpack.c.h.b16 %v487
  %v3265 = vunpack.c.l.b16 %v488
  %v3266 = vunpack.c.h.b16 %v488
  %v3267 = vunpack.c.l.b16 %v489
  %v3268 = vunpack.c.h.b16 %v489
  %v3269 = vunpack.c.l.b16 %v490
  %v3270 = vunpack.c.h.b16 %v490
  %v3271 = vunpack.c.l.b16 %v491
  %v3272 = vunpack.c.h.b16 %v491
  %v3273 = vunpack.c.l.b16 %v492
  %v3274 = vunpack.c.h.b16 %v492
  %v3275 = vunpack.c.l.b16 %v493
  %v3276 = vunpack.c.h.b16 %v493
  %v3277 = vunpack.c.l.b16 %v494
  %v3278 = vunpack.c.h.b16 %v494
  %v3279 = vunpack.c.l.b16 %v495
  %v3280 = vunpack.c.h.b16 %v495
  %v3281 = vunpack.c.l.b16 %v496
  %v3282 = vunpack.c.h.b16 %v496
  %v3283 = vunpack.c.l.b16 %v497
  %v3284 = vunpack.c.h.b16 %v497
  %v3285 = vunpack.c.l.b16 %v498
  %v3286 = vunpack.c.h.b16 %v498
  %v3287 = vunpack.c.l.b16 %v499
  %v3288 = vunpack.c.h.b16 %v499
  %v3289 = vunpack.c.l.b16 %v500
  %v3290 = vunpack.c.h.b16 %v500
  %v3291 = vunpack.c.l.b16 %v501
  %v3292 = vunpack.c.h.b16 %v501
  %v3293 = vunpack.c.l.b16 %v502
  %v3294 = vunpack.c.h.b16 %v502
  %v3295 = vunpack.c.l.b16 %v503
  %v3296 = vunpack.c.h.b16 %v503
  %v3297 = vunpack.c.l.b16 %v504
  %v3298 = vunpack.c.h.b16 %v504
  %v3299 = vunpack.c.l.b16 %v505
  %v3300 = vunpack.c.h.b16 %v505
  %v3301 = vunpack.c.l.b16 %v506
  %v3302 = vunpack.c.h.b16 %v506
  %v3303 = vunpack.c.l.b16 %v507
  %v3304 = vunpack.c.h.b16 %v507
  %v3305 = vunpack.c.l.b16 %v508
  %v3306 = vunpack.c.h.b16 %v508
  %v3307 = vunpack.c.l.b16 %v509
  %v3308 = vunpack.c.h.b16 %v509
  %v3309 = vunpack.c.l.b16 %v510
  %v3310 = vunpack.c.h.b16 %v510
  %v3311 = vunpack.c.l.b16 %v511
  %v3312 = vunpack.c.h.b16 %v511
  %v3313 = vunpack.c.l.b16 %v512
  %v3314 = vunpack.c.h.b16 %v512
  %v3315 = vunpack.c.l.b16 %v513
  %v3316 = vunpack.c.h.b16 %v513
  %v3317 = vunpack.c.l.b16 %v514
  %v3318 = vunpack.c.h.b16 %v514
  %v3319 = vunpack.c.l.b16 %v515
  %v3320 = vunpack.c.h.b16 %v515
  %v3321 = vunpack.c.l.b16 %v516
  %v3322 = vunpack.c.h.b16 %v516
  %v3323 = vunpack.c.l.b16 %v517
  %v3324 = vunpack.c.h.b16 %v517
  %v3325 = vunpack.c.l.b16 %v518
  %v3326 = vunpack.c.h.b16 %v518
  %v3327 = vunpack.c.l.b16 %v519
  %v3328 = vunpack.c.h.b16 %v519
  %v3329 = vunpack.c.l.b16 %v520
  %v3330 = vunpack.c.h.b16 %v520
  %v3331 = vunpack.c.l.b16 %v521
  %v3332 = vunpack.c.h.b16 %v521
  %v3333 = vunpack.c.l.b16 %v522
  %v3334 = vunpack.c.h.b16 %v522
  %v3335 = vunpack.c.l.b16 %v523
  %v3336 = vunpack.c.h.b16 %v523
  %v3337 = vunpack.c.l.b16 %v524
  %v3338 = vunpack.c.h.b16 %v524
  %v3339 = vunpack.c.l.b16 %v525
  %v3340 = vunpack.c.h.b16 %v525
  %v3341 = vunpack.c.l.b16 %v526
  %v3342 = vunpack.c.h.b16 %v526
  %v3343 = vunpack.c.l.b16 %v527
  %v3344 = vunpack.c.h.b16 %v527
  %v3345 = vunpack.c.l.b16 %v528
  %v3346 = vunpack.c.h.b16 %v528
  %v3347 = vunpack.c.l.b16 %v529
  %v3348 = vunpack.c.h.b16 %v529
  %v3349 = vunpack.c.l.b16 %v530
  %v3350 = vunpack.c.h.b16 %v530
  %v3351 = vunpack.c.l.b16 %v531
  %v3352 = vunpack.c.h.b16 %v531
  %v3353 = vunpack.c.l.b16 %v532
  %v3354 = vunpack.c.h.b16 %v532
  %v3355 = vunpack.c.l.b16 %v533
  %v3356 = vunpack.c.h.b16 %v533
  %v3357 = vunpack.c.l.b16 %v534
  %v3358 = vunpack.c.h.b16 %v534
  %v3359 = vunpack.c.l.b16 %v535
  %v3360 = vunpack.c.h.b16 %v535
  %v3361 = vunpack.c.l.b16 %v536
  %v3362 = vunpack.c.h.b16 %v536
  %v3363 = vunpack.c.l.b16 %v537
  %v3364 = vunpack.c.h.b16 %v537
  %v3365 = vunpack.c.l.b16 %v538
  %v3366 = vunpack.c.h.b16 %v538
  %v3367 = vunpack.c.l.b16 %v539
  %v3368 = vunpack.c.h.b16 %v539
  %v3369 = vunpack.c.l.b16 %v540
  %v3370 = vunpack.c.h.b16 %v540
  %v3371 = vunpack.c.l.b16 %v541
  %v3372 = vunpack.c.h.b16 %v541
  %v3373 = vunpack.c.l.b16 %v542
  %v3374 = vunpack.c.h.b16 %v542
  %v3375 = vunpack.c.l.b16 %v543
  %v3376 = vunpack.c.h.b16 %v543
  %v3377 = vunpack.c.l.b16 %v544
  %v3378 = vunpack.c.h.b16 %v544
  %v3379 = vunpack.c.l.b16 %v545
  %v3380 = vunpack.c.h.b16 %v545
  %v3381 = vunpack.c.l.b16 %v546
  %v3382 = vunpack.c.h.b16 %v546
  %v3383 = vunpack.c.l.b16 %v547
  %v3384 = vunpack.c.h.b16 %v547
  %v3385 = vunpack.c.l.b16 %v548
  %v3386 = vunpack.c.h.b16 %v548
  %v3387 = vunpack.c.l.b16 %v549
  %v3388 = vunpack.c.h.b16 %v549
  %v3389 = vunpack.c.l.b16 %v550
  %v3390 = vunpack.c.h.b16 %v550
  %v3391 = vunpack.c.l.b16 %v551
  %v3392 = vunpack.c.h.b16 %v551
  %v3393 = vunpack.c.l.b16 %v552
  %v3394 = vunpack.c.h.b16 %v552
  %v3395 = vunpack.c.l.b16 %v553
  %v3396 = vunpack.c.h.b16 %v553
  %v3397 = vunpack.c.l.b16 %v554
  %v3398 = vunpack.c.h.b16 %v554
  %v3399 = vunpack.c.l.b16 %v555
  %v3400 = vunpack.c.h.b16 %v555
  %v3401 = vunpack.c.l.b16 %v556
  %v3402 = vunpack.c.h.b16 %v556
  %v3403 = vunpack.c.l.b16 %v557
  %v3404 = vunpack.c.h.b16 %v557
  %v3405 = vunpack.c.l.b16 %v558
  %v3406 = vunpack.c.h.b16 %v558
  %v3407 = vunpack.c.l.b16 %v559
  %v3408 = vunpack.c.h.b16 %v559
  %v3409 = vunpack.c.l.b16 %v560
  %v3410 = vunpack.c.h.b16 %v560
  %v3411 = vunpack.c.l.b16 %v561
  %v3412 = vunpack.c.h.b16 %v561
  %v3413 = vunpack.c.l.b16 %v562
  %v3414 = vunpack.c.h.b16 %v562
  %v3415 = vunpack.c.l.b16 %v563
  %v3416 = vunpack.c.h.b16 %v563
  %v3417 = vunpack.c.l.b16 %v564
  %v3418 = vunpack.c.h.b16 %v564
  %v3419 = vunpack.c.l.b16 %v565
  %v3420 = vunpack.c.h.b16 %v565
  %v3421 = vunpack.c.l.b16 %v566
  %v3422 = vunpack.c.h.b16 %v566
  %v3423 = vunpack.c.l.b16 %v567
  %v3424 = vunpack.c.h.b16 %v567
  %v3425 = vunpack.c.l.b16 %v568
  %v3426 = vunpack.c.h.b16 %v568
  %v3427 = vunpack.c.l.b16 %v569
  %v3428 = vunpack.c.h.b16 %v569
  %v3429 = vunpack.c.l.b16 %v570
  %v3430 = vunpack.c.h.b16 %v570
  %v3431 = vunpack.c.l.b16 %v571
  %v3432 = vunpack.c.h.b16 %v571
  %v3433 = vunpack.c.l.b16 %v572
  %v3434 = vunpack.c.h.b16 %v572
  %v3435 = vunpack.c.l.b16 %v573
  %v3436 = vunpack.c.h.b16 %v573
  %v3437 = vunpack.c.l.b16 %v574
  %v3438 = vunpack.c.h.b16 %v574
  %v3439 = vunpack.c.l.b16 %v575
  %v3440 = vunpack.c.h.b16 %v575
  %v3441 = vunpack.c.l.b16 %v576
  %v3442 = vunpack.c.h.b16 %v576
  %v3443 = vunpack.c.l.b16 %v577
  %v3444 = vunpack.c.h.b16 %v577
  %v3445 = vunpack.c.l.b16 %v578
  %v3446 = vunpack.c.h.b16 %v578
  %v3447 = vunpack.c.l.b16 %v579
  %v3448 = vunpack.c.h.b16 %v579
  %v3449 = vunpack.c.l.b16 %v580
  %v3450 = vunpack.c.h.b16 %v580
  %v3451 = vunpack.c.l.b16 %v581
  %v3452 = vunpack.c.h.b16 %v581
  %v3453 = vunpack.c.l.b16 %v582
  %v3454 = vunpack.c.h.b16 %v582
  %v3455 = vunpack.c.l.b16 %v583
  %v3456 = vunpack.c.h.b16 %v583
  %v3457 = vunpack.c.l.b16 %v584
  %v3458 = vunpack.c.h.b16 %v584
  %v3459 = vunpack.c.l.b16 %v585
  %v3460 = vunpack.c.h.b16 %v585
  %v3461 = vunpack.c.l.b16 %v586
  %v3462 = vunpack.c.h.b16 %v586
  %v3463 = vunpack.c.l.b16 %v587
  %v3464 = vunpack.c.h.b16 %v587
  %v3465 = vunpack.c.l.b16 %v588
  %v3466 = vunpack.c.h.b16 %v588
  %v3467 = vunpack.c.l.b16 %v589
  %v3468 = vunpack.c.h.b16 %v589
  %v3469 = vunpack.c.l.b16 %v590
  %v3470 = vunpack.c.h.b16 %v590
  %v3471 = vunpack.c.l.b16 %v591
  %v3472 = vunpack.c.h.b16 %v591
  %v3473 = vunpack.c.l.b16 %v592
  %v3474 = vunpack.c.h.b16 %v592
  %v3475 = vunpack.c.l.b16 %v593
  %v3476 = vunpack.c.h.b16 %v593
  %v3477 = vunpack.c.l.b16 %v594
  %v3478 = vunpack.c.h.b16 %v594
  %v3479 = vunpack.c.l.b16 %v595
  %v3480 = vunpack.c.h.b16 %v595
  %v3481 = vunpack.c.l.b16 %v596
  %v3482 = vunpack.c.h.b16 %v596
  %v3483 = vunpack.c.l.b16 %v597
  %v3484 = vunpack.c.h.b16 %v597
  %v3485 = vunpack.c.l.b16 %v598
  %v3486 = vunpack.c.h.b16 %v598
  %v3487 = vunpack.c.l.b16 %v599
  %v3488 = vunpack.c.h.b16 %v599
  %v3489 = vunpack.c.l.b16 %v600
  %v3490 = vunpack.c.h.b16 %v600
  %v3491 = vunpack.c.l.b16 %v601
  %v3492 = vunpack.c.h.b16 %v601
  %v3493 = vunpack.c.l.b16 %v602
  %v3494 = vunpack.c.h.b16 %v602
  %v3495 = vunpack.c.l.b16 %v603
  %v3496 = vunpack.c.h.b16 %v603
  %v3497 = vunpack.c.l.b16 %v604
  %v3498 = vunpack.c.h.b16 %v604
  %v3499 = vunpack.c.l.b16 %v605
  %v3500 = vunpack.c.h.b16 %v605
  %v3501 = vunpack.c.l.b16 %v606
  %v3502 = vunpack.c.h.b16 %v606
  %v3503 = vunpack.c.l.b16 %v607
  %v3504 = vunpack.c.h.b16 %v607
  %v3505 = vunpack.c.l.b16 %v608
  %v3506 = vunpack.c.h.b16 %v608
  %v3507 = vunpack.c.l.b16 %v609
  %v3508 = vunpack.c.h.b16 %v609
  %v3509 = vunpack.c.l.b16 %v610
  %v3510 = vunpack.c.h.b16 %v610
  %v3511 = vunpack.c.l.b16 %v611
  %v3512 = vunpack.c.h.b16 %v611
  %v3513 = vunpack.c.l.b16 %v612
  %v3514 = vunpack.c.h.b16 %v612
  %v3515 = vunpack.c.l.b16 %v613
  %v3516 = vunpack.c.h.b16 %v613
  %v3517 = vunpack.c.l.b16 %v614
  %v3518 = vunpack.c.h.b16 %v614
  %v3519 = vunpack.c.l.b16 %v615
  %v3520 = vunpack.c.h.b16 %v615
  %v3521 = vunpack.c.l.b16 %v616
  %v3522 = vunpack.c.h.b16 %v616
  %v3523 = vunpack.c.l.b16 %v617
  %v3524 = vunpack.c.h.b16 %v617
  %v3525 = vunpack.c.l.b16 %v618
  %v3526 = vunpack.c.h.b16 %v618
  %v3527 = vunpack.c.l.b16 %v619
  %v3528 = vunpack.c.h.b16 %v619
  %v3529 = vunpack.c.l.b16 %v620
  %v3530 = vunpack.c.h.b16 %v620
  %v3531 = vunpack.c.l.b16 %v621
  %v3532 = vunpack.c.h.b16 %v621
  %v3533 = vunpack.c.l.b16 %v622
  %v3534 = vunpack.c.h.b16 %v622
  %v3535 = vunpack.c.l.b16 %v623
  %v3536 = vunpack.c.h.b16 %v623
  %v3537 = vunpack.c.l.b16 %v624
  %v3538 = vunpack.c.h.b16 %v624
  %v3539 = vunpack.c.l.b16 %v625
  %v3540 = vunpack.c.h.b16 %v625
  %v3541 = vunpack.c.l.b16 %v626
  %v3542 = vunpack.c.h.b16 %v626
  %v3543 = vunpack.c.l.b16 %v627
  %v3544 = vunpack.c.h.b16 %v627
  %v3545 = vunpack.c.l.b16 %v628
  %v3546 = vunpack.c.h.b16 %v628
  %v3547 = vunpack.c.l.b16 %v629
  %v3548 = vunpack.c.h.b16 %v629
  %v3549 = vunpack.c.l.b16 %v630
  %v3550 = vunpack.c.h.b16 %v630
  %v3551 = vunpack.c.l.b16 %v631
  %v3552 = vunpack.c.h.b16 %v631
  %v3553 = vunpack.c.l.b16 %v632
  %v3554 = vunpack.c.h.b16 %v632
  %v3555 = vunpack.c.l.b16 %v633
  %v3556 = vunpack.c.h.b16 %v633
  %v3557 = vunpack.c.l.b16 %v634
  %v3558 = vunpack.c.h.b16 %v634
  %v3559 = vunpack.c.l.b16 %v635
  %v3560 = vunpack.c.h.b16 %v635
  %v3561 = vunpack.c.l.b16 %v636
  %v3562 = vunpack.c.h.b16 %v636
  %v3563 = vunpack.c.l.b16 %v637
  %v3564 = vunpack.c.h.b16 %v637
  %v3565 = vunpack.c.l.b16 %v638
  %v3566 = vunpack.c.h.b16 %v638
  %v3567 = vunpack.c.l.b16 %v639
  %v3568 = vunpack.c.h.b16 %v639
  %v3569 = vunpack.c.l.b16 %v640
  %v3570 = vunpack.c.h.b16 %v640
  %v3571 = vunpack.c.l.b16 %v641
  %v3572 = vunpack.c.h.b16 %v641
  %v3573 = vunpack.c.l.b16 %v642
  %v3574 = vunpack.c.h.b16 %v642
  %v3575 = vunpack.c.l.b16 %v643
  %v3576 = vunpack.c.h.b16 %v643
  %v3577 = vunpack.c.l.b16 %v644
  %v3578 = vunpack.c.h.b16 %v644
  %v3579 = vunpack.c.l.b16 %v645
  %v3580 = vunpack.c.h.b16 %v645
  %v3581 = vunpack.c.l.b16 %v646
  %v3582 = vunpack.c.h.b16 %v646
  %v3583 = vunpack.c.l.b16 %v647
  %v3584 = vunpack.c.h.b16 %v647
  %v3585 = vunpack.c.l.b16 %v648
  %v3586 = vunpack.c.h.b16 %v648
  %v3587 = vunpack.c.l.b16 %v649
  %v3588 = vunpack.c.h.b16 %v649
  %v3589 = vunpack.c.l.b16 %v650
  %v3590 = vunpack.c.h.b16 %v650
  %v3591 = vunpack.c.l.b16 %v651
  %v3592 = vunpack.c.h.b16 %v651
  %v3593 = vunpack.c.l.b16 %v652
  %v3594 = vunpack.c.h.b16 %v652
  %v3595 = vunpack.c.l.b16 %v653
  %v3596 = vunpack.c.h.b16 %v653
  %v3597 = vunpack.c.l.b16 %v654
  %v3598 = vunpack.c.h.b16 %v654
  %v3599 = vunpack.c.l.b16 %v655
  %v3600 = vunpack.c.h.b16 %v655
  %v3601 = vunpack.c.l.b16 %v656
  %v3602 = vunpack.c.h.b16 %v656
  %v3603 = vunpack.c.l.b16 %v657
  %v3604 = vunpack.c.h.b16 %v657
  %v3605 = vunpack.c.l.b16 %v658
  %v3606 = vunpack.c.h.b16 %v658
  %v3607 = vunpack.c.l.b16 %v659
  %v3608 = vunpack.c.h.b16 %v659
  %v3609 = vunpack.c.l.b16 %v660
  %v3610 = vunpack.c.h.b16 %v660
  %v3611 = vunpack.c.l.b16 %v661
  %v3612 = vunpack.c.h.b16 %v661
  %v3613 = vunpack.c.l.b16 %v662
  %v3614 = vunpack.c.h.b16 %v662
  %v3615 = vunpack.c.l.b16 %v663
  %v3616 = vunpack.c.h.b16 %v663
  %v3617 = vunpack.c.l.b16 %v664
  %v3618 = vunpack.c.h.b16 %v664
  %v3619 = vunpack.c.l.b16 %v665
  %v3620 = vunpack.c.h.b16 %v665
  %v3621 = vunpack.c.l.b16 %v666
  %v3622 = vunpack.c.h.b16 %v666
  %v3623 = vunpack.c.l.b16 %v667
  %v3624 = vunpack.c.h.b16 %v667
  %v3625 = vunpack.c.l.b16 %v668
  %v3626 = vunpack.c.h.b16 %v668
  %v3627 = vunpack.c.l.b16 %v669
  %v3628 = vunpack.c.h.b16 %v669
  %v3629 = vunpack.c.l.b16 %v670
  %v3630 = vunpack.c.h.b16 %v670
  %v3631 = vunpack.c.l.b16 %v671
  %v3632 = vunpack.c.h.b16 %v671
  %v3633 = vunpack.c.l.b16 %v672
  %v3634 = vunpack.c.h.b16 %v672
  %v3635 = vunpack.c.l.b16 %v673
  %v3636 = vunpack.c.h.b16 %v673
  %v3637 = vunpack.c.l.b16 %v674
  %v3638 = vunpack.c.h.b16 %v674
  %v3639 = vunpack.c.l.b16 %v675
  %v3640 = vunpack.c.h.b16 %v675
  %v3641 = vunpack.c.l.b16 %v676
  %v3642 = vunpack.c.h.b16 %v676
  %v3643 = vunpack.c.l.b16 %v677
  %v3644 = vunpack.c.h.b16 %v677
  %v3645 = vunpack.c.l.b16 %v678
  %v3646 = vunpack.c.h.b16 %v678
  %v3647 = vunpack.c.l.b16 %v679
  %v3648 = vunpack.c.h.b16 %v679
  %v3649 = vunpack.c.l.b16 %v680
  %v3650 = vunpack.c.h.b16 %v680
  %v3651 = vunpack.c.l.b16 %v681
  %v3652 = vunpack.c.h.b16 %v681
  %v3653 = vunpack.c.l.b16 %v682
  %v3654 = vunpack.c.h.b16 %v682
  %v3655 = vunpack.c.l.b16 %v683
  %v3656 = vunpack.c.h.b16 %v683
  %v3657 = vunpack.c.l.b16 %v684
  %v3658 = vunpack.c.h.b16 %v684
  %v3659 = vunpack.c.l.b16 %v685
  %v3660 = vunpack.c.h.b16 %v685
  %v3661 = vunpack.c.l.b16 %v686
  %v3662 = vunpack.c.h.b16 %v686
  %v3663 = vunpack.c.l.b16 %v687
  %v3664 = vunpack.c.h.b16 %v687
  %v3665 = vunpack.c.l.b16 %v688
  %v3666 = vunpack.c.h.b16 %v688
  %v3667 = vunpack.c.l.b16 %v689
  %v3668 = vunpack.c.h.b16 %v689
  %v3669 = vunpack.c.l.b16 %v690
  %v3670 = vunpack.c.h.b16 %v690
  %v3671 = vunpack.c.l.b16 %v691
  %v3672 = vunpack.c.h.b16 %v691
  %v3673 = vunpack.c.l.b16 %v692
  %v3674 = vunpack.c.h.b16 %v692
  %v3675 = vunpack.c.l.b16 %v693
  %v3676 = vunpack.c.h.b16 %v693
  %v3677 = vunpack.c.l.b16 %v694
  %v3678 = vunpack.c.h.b16 %v694
  %v3679 = vunpack.c.l.b16 %v695
  %v3680 = vunpack.c.h.b16 %v695
  %v3681 = vunpack.c.l.b16 %v696
  %v3682 = vunpack.c.h.b16 %v696
  %v3683 = vunpack.c.l.b16 %v697
  %v3684 = vunpack.c.h.b16 %v697
  %v3685 = vunpack.c.l.b16 %v698
  %v3686 = vunpack.c.h.b16 %v698
  %v3687 = vunpack.c.l.b16 %v699
  %v3688 = vunpack.c.h.b16 %v699
  %v3689 = vunpack.c.l.b16 %v700
  %v3690 = vunpack.c.h.b16 %v700
  %v3691 = vunpack.c.l.b16 %v701
  %v3692 = vunpack.c.h.b16 %v701
  %v3693 = vunpack.c.l.b16 %v702
  %v3694 = vunpack.c.h.b16 %v702
  %v3695 = vunpack.c.l.b16 %v703
  %v3696 = vunpack.c.h.b16 %v703
  %v3697 = vunpack.c.l.b16 %v704
  %v3698 = vunpack.c.h.b16 %v704
  %v3699 = vunpack.c.l.b16 %v705
  %v3700 = vunpack.c.h.b16 %v705
  %v3701 = vunpack.c.l.b16 %v706
  %v3702 = vunpack.c.h.b16 %v706
  %v3703 = vunpack.c.l.b16 %v707
  %v3704 = vunpack.c.h.b16 %v707
  %v3705 = vunpack.c.l.b16 %v708
  %v3706 = vunpack.c.h.b16 %v708
  %v3707 = vunpack.c.l.b16 %v709
  %v3708 = vunpack.c.h.b16 %v709
  %v3709 = vunpack.c.l.b16 %v710
  %v3710 = vunpack.c.h.b16 %v710
  %v3711 = vunpack.c.l.b16 %v711
  %v3712 = vunpack.c.h.b16 %v711
  %v3713 = vunpack.c.l.b16 %v712
  %v3714 = vunpack.c.h.b16 %v712
  %v3715 = vunpack.c.l.b16 %v713
  %v3716 = vunpack.c.h.b16 %v713
  %v3717 = vunpack.c.l.b16 %v714
  %v3718 = vunpack.c.h.b16 %v714
  %v3719 = vunpack.c.l.b16 %v715
  %v3720 = vunpack.c.h.b16 %v715
  %v3721 = vunpack.c.l.b16 %v716
  %v3722 = vunpack.c.h.b16 %v716
  %v3723 = vunpack.c.l.b16 %v717
  %v3724 = vunpack.c.h.b16 %v717
  %v3725 = vunpack.c.l.b16 %v718
  %v3726 = vunpack.c.h.b16 %v718
  %v3727 = vunpack.c.l.b16 %v719
  %v3728 = vunpack.c.h.b16 %v719
  %v3729 = vunpack.c.l.b16 %v720
  %v3730 = vunpack.c.h.b16 %v720
  %v3731 = vunpack.c.l.b16 %v721
  %v3732 = vunpack.c.h.b16 %v721
  %v3733 = vunpack.c.l.b16 %v722
  %v3734 = vunpack.c.h.b16 %v722
  %v3735 = vunpack.c.l.b16 %v723
  %v3736 = vunpack.c.h.b16 %v723
  %v3737 = vunpack.c.l.b16 %v724
  %v3738 = vunpack.c.h.b16 %v724
  %v3739 = vunpack.c.l.b16 %v725
  %v3740 = vunpack.c.h.b16 %v725
  %v3741 = vunpack.c.l.b16 %v726
  %v3742 = vunpack.c.h.b16 %v726
  %v3743 = vunpack.c.l.b16 %v727
  %v3744 = vunpack.c.h.b16 %v727
  %v3745 = vunpack.c.l.b16 %v728
  %v3746 = vunpack.c.h.b16 %v728
  %v3747 = vunpack.c.l.b16 %v729
  %v3748 = vunpack.c.h.b16 %v729
  %v3749 = vunpack.c.l.b16 %v730
  %v3750 = vunpack.c.h.b16 %v730
  %v3751 = vunpack.c.l.b16 %v731
  %v3752 = vunpack.c.h.b16 %v731
  %v3753 = vunpack.c.l.b16 %v732
  %v3754 = vunpack.c.h.b16 %v732
  %v3755 = vunpack.c.l.b16 %v733
  %v3756 = vunpack.c.h.b16 %v733
  %v3757 = vunpack.c.l.b16 %v734
  %v3758 = vunpack.c.h.b16 %v734
  %v3759 = vunpack.c.l.b16 %v735
  %v3760 = vunpack.c.h.b16 %v735
  %v3761 = vunpack.c.l.b16 %v736
  %v3762 = vunpack.c.h.b16 %v736
  %v3763 = vunpack.c.l.b16 %v737
  %v3764 = vunpack.c.h.b16 %v737
  %v3765 = vunpack.c.l.b16 %v738
  %v3766 = vunpack.c.h.b16 %v738
  %v3767 = vunpack.c.l.b16 %v739
  %v3768 = vunpack.c.h.b16 %v739
  %v3769 = vunpack.c.l.b16 %v740
  %v3770 = vunpack.c.h.b16 %v740
  %v3771 = vunpack.c.l.b16 %v741
  %v3772 = vunpack.c.h.b16 %v741
  %v3773 = vunpack.c.l.b16 %v742
  %v3774 = vunpack.c.h.b16 %v742
  %v3775 = vunpack.c.l.b16 %v743
  %v3776 = vunpack.c.h.b16 %v743
  %v3777 = vunpack.c.l.b16 %v744
  %v3778 = vunpack.c.h.b16 %v744
  %v3779 = vunpack.c.l.b16 %v745
  %v3780 = vunpack.c.h.b16 %v745
  %v3781 = vunpack.c.l.b16 %v746
  %v3782 = vunpack.c.h.b16 %v746
  %v3783 = vunpack.c.l.b16 %v747
  %v3784 = vunpack.c.h.b16 %v747
  %v3785 = vunpack.c.l.b16 %v748
  %v3786 = vunpack.c.h.b16 %v748
  %v3787 = vunpack.c.l.b16 %v749
  %v3788 = vunpack.c.h.b16 %v749
  %v3789 = vunpack.c.l.b16 %v750
  %v3790 = vunpack.c.h.b16 %v750
  %v3791 = vunpack.c.l.b16 %v751
  %v3792 = vunpack.c.h.b16 %v751
  %v3793 = vunpack.c.l.b16 %v752
  %v3794 = vunpack.c.h.b16 %v752
  %v3795 = vunpack.c.l.b16 %v753
  %v3796 = vunpack.c.h.b16 %v753
  %v3797 = vunpack.c.l.b16 %v754
  %v3798 = vunpack.c.h.b16 %v754
  %v3799 = vunpack.c.l.b16 %v755
  %v3800 = vunpack.c.h.b16 %v755
  %v3801 = vunpack.c.l.b16 %v756
  %v3802 = vunpack.c.h.b16 %v756
  %v3803 = vunpack.c.l.b16 %v757
  %v3804 = vunpack.c.h.b16 %v757
  %v3805 = vunpack.c.l.b16 %v758
  %v3806 = vunpack.c.h.b16 %v758
  %v3807 = vunpack.c.l.b16 %v759
  %v3808 = vunpack.c.h.b16 %v759
  %v3809 = vunpack.c.l.b16 %v760
  %v3810 = vunpack.c.h.b16 %v760
  %v3811 = vunpack.c.l.b16 %v761
  %v3812 = vunpack.c.h.b16 %v761
  %v3813 = vunpack.c.l.b16 %v762
  %v3814 = vunpack.c.h.b16 %v762
  %v3815 = vunpack.c.l.b16 %v763
  %v3816 = vunpack.c.h.b16 %v763
  %v3817 = vunpack.c.l.b16 %v764
  %v3818 = vunpack.c.h.b16 %v764
  %v3819 = vunpack.c.l.b16 %v765
  %v3820 = vunpack.c.h.b16 %v765
  %v3821 = vunpack.c.l.b16 %v766
  %v3822 = vunpack.c.h.b16 %v766
  %v3823 = vunpack.c.l.b16 %v767
  %v3824 = vunpack.c.h.b16 %v767
  %v3825 = vunpack.c.l.b16 %v768
  %v3826 = vunpack.c.h.b16 %v768
  %v3827 = vunpack.c.l.b16 %v769
  %v3828 = vunpack.c.h.b16 %v769
  %v3829 = vunpack.c.l.b16 %v770
  %v3830 = vunpack.c.h.b16 %v770
  %v3831 = vunpack.c.l.b16 %v771
  %v3832 = vunpack.c.h.b16 %v771
  %v3833 = vunpack.c.l.b16 %v772
  %v3834 = vunpack.c.h.b16 %v772
  %v3835 = vunpack.c.l.b16 %v773
  %v3836 = vunpack.c.h.b16 %v773
  %v3837 = vunpack.c.l.b16 %v774
  %v3838 = vunpack.c.h.b16 %v774
  %v3839 = vunpack.c.l.b16 %v775
  %v3840 = vunpack.c.h.b16 %v775
  %v3841 = vunpack.c.l.b16 %v776
  %v3842 = vunpack.c.h.b16 %v776
  %v3843 = vunpack.c.l.b16 %v777
  %v3844 = vunpack.c.h.b16 %v777
  %v3845 = vunpack.c.l.b16 %v778
  %v3846 = vunpack.c.h.b16 %v778
  %v3847 = vunpack.c.l.b16 %v779
  %v3848 = vunpack.c.h.b16 %v779
  %v3849 = vunpack.c.l.b16 %v780
  %v3850 = vunpack.c.h.b16 %v780
  %v3851 = vunpack.c.l.b16 %v781
  %v3852 = vunpack.c.h.b16 %v781
  %v3853 = vunpack.c.l.b16 %v782
  %v3854 = vunpack.c.h.b16 %v782
  %v3855 = vunpack.c.l.b16 %v783
  %v3856 = vunpack.c.h.b16 %v783
  %v3857 = vunpack.c.l.b16 %v784
  %v3858 = vunpack.c.h.b16 %v784
  %v3859 = vunpack.c.l.b16 %v785
  %v3860 = vunpack.c.h.b16 %v785
  %v3861 = vunpack.c.l.b16 %v786
  %v3862 = vunpack.c.h.b16 %v786
  %v3863 = vunpack.c.l.b16 %v787
  %v3864 = vunpack.c.h.b16 %v787
  %v3865 = vunpack.c.l.b16 %v788
  %v3866 = vunpack.c.h.b16 %v788
  %v3867 = vunpack.c.l.b16 %v789
  %v3868 = vunpack.c.h.b16 %v789
  %v3869 = vunpack.c.l.b16 %v790
  %v3870 = vunpack.c.h.b16 %v790
  %v3871 = vunpack.c.l.b16 %v791
  %v3872 = vunpack.c.h.b16 %v791
  %v3873 = vunpack.c.l.b16 %v792
  %v3874 = vunpack.c.h.b16 %v792
  %v3875 = vunpack.c.l.b16 %v793
  %v3876 = vunpack.c.h.b16 %v793
  %v3877 = vunpack.c.l.b16 %v794
  %v3878 = vunpack.c.h.b16 %v794
  %v3879 = vunpack.c.l.b16 %v795
  %v3880 = vunpack.c.h.b16 %v795
  %v3881 = vunpack.c.l.b16 %v796
  %v3882 = vunpack.c.h.b16 %v796
  %v3883 = vunpack.c.l.b16 %v797
  %v3884 = vunpack.c.h.b16 %v797
  %v3885 = vunpack.c.l.b16 %v798
  %v3886 = vunpack.c.h.b16 %v798
  %v3887 = vunpack.c.l.b16 %v799
  %v3888 = vunpack.c.h.b16 %v799
  %v3889 = vunpack.c.l.b16 %v800
  %v3890 = vunpack.c.h.b16 %v800
  %v3891 = vunpack.c.l.b16 %v801
  %v3892 = vunpack.c.h.b16 %v801
  %v3893 = vunpack.c.l.b16 %v802
  %v3894 = vunpack.c.h.b16 %v802
  %v3895 = vunpack.c.l.b16 %v803
  %v3896 = vunpack.c.h.b16 %v803
  %v3897 = vunpack.c.l.b16 %v804
  %v3898 = vunpack.c.h.b16 %v804
  %v3899 = vunpack.c.l.b16 %v805
  %v3900 = vunpack.c.h.b16 %v805
  %v3901 = vunpack.c.l.b16 %v806
  %v3902 = vunpack.c.h.b16 %v806
  %v3903 = vunpack.c.l.b16 %v807
  %v3904 = vunpack.c.h.b16 %v807
  %v3905 = vunpack.c.l.b16 %v808
  %v3906 = vunpack.c.h.b16 %v808
  %v3907 = vunpack.c.l.b16 %v809
  %v3908 = vunpack.c.h.b16 %v809
  %v3909 = vunpack.c.l.b16 %v810
  %v3910 = vunpack.c.h.b16 %v810
  %v3911 = vunpack.c.l.b16 %v811
  %v3912 = vunpack.c.h.b16 %v811
  %v3913 = vunpack.c.l.b16 %v812
  %v3914 = vunpack.c.h.b16 %v812
  %v3915 = vunpack.c.l.b16 %v813
  %v3916 = vunpack.c.h.b16 %v813
  %v3917 = vunpack.c.l.b16 %v814
  %v3918 = vunpack.c.h.b16 %v814
  %v3919 = vunpack.c.l.b16 %v815
  %v3920 = vunpack.c.h.b16 %v815
  %v3921 = vunpack.c.l.b16 %v816
  %v3922 = vunpack.c.h.b16 %v816
  %v3923 = vunpack.c.l.b16 %v817
  %v3924 = vunpack.c.h.b16 %v817
  %v3925 = vunpack.c.l.b16 %v818
  %v3926 = vunpack.c.h.b16 %v818
  %v3927 = vunpack.c.l.b16 %v819
  %v3928 = vunpack.c.h.b16 %v819
  %v3929 = vunpack.c.l.b16 %v820
  %v3930 = vunpack.c.h.b16 %v820
  %v3931 = vunpack.c.l.b16 %v821
  %v3932 = vunpack.c.h.b16 %v821
  %v3933 = vunpack.c.l.b16 %v822
  %v3934 = vunpack.c.h.b16 %v822
  %v3935 = vunpack.c.l.b16 %v823
  %v3936 = vunpack.c.h.b16 %v823
  %v3937 = vunpack.c.l.b16 %v824
  %v3938 = vunpack.c.h.b16 %v824
  %v3939 = vunpack.c.l.b16 %v825
  %v3940 = vunpack.c.h.b16 %v825
  %v3941 = vunpack.c.l.b16 %v826
  %v3942 = vunpack.c.h.b16 %v826
  %v3943 = vunpack.c.l.b16 %v827
  %v3944 = vunpack.c.h.b16 %v827
  %v3945 = vunpack.c.l.b16 %v828
  %v3946 = vunpack.c.h.b16 %v828
  %v3947 = vunpack.c.l.b16 %v829
  %v3948 = vunpack.c.h.b16 %v829
  %v3949 = vunpack.c.l.b16 %v830
  %v3950 = vunpack.c.h.b16 %v830
  %v3951 = vunpack.c.l.b16 %v831
  %v3952 = vunpack.c.h.b16 %v831
  %v3953 = vunpack.c.l.b16 %v832
  %v3954 = vunpack.c.h.b16 %v832
  %v3955 = vunpack.c.l.b16 %v833
  %v3956 = vunpack.c.h.b16 %v833
  %v3957 = vunpack.c.l.b16 %v834
  %v3958 = vunpack.c.h.b16 %v834
  %v3959 = vunpack.c.l.b16 %v835
  %v3960 = vunpack.c.h.b16 %v835
  %v3961 = vunpack.c.l.b16 %v836
  %v3962 = vunpack.c.h.b16 %v836
  %v3963 = vunpack.c.l.b16 %v837
  %v3964 = vunpack.c.h.b16 %v837
  %v3965 = vunpack.c.l.b16 %v838
  %v3966 = vunpack.c.h.b16 %v838
  %v3967 = vunpack.c.l.b16 %v839
  %v3968 = vunpack.c.h.b16 %v839
  %v3969 = vunpack.c.l.b16 %v840
  %v3970 = vunpack.c.h.b16 %v840
  %v3971 = vunpack.c.l.b16 %v841
  %v3972 = vunpack.c.h.b16 %v841
  %v3973 = vunpack.c.l.b16 %v842
  %v3974 = vunpack.c.h.b16 %v842
  %v3975 = vunpack.c.l.b16 %v843
  %v3976 = vunpack.c.h.b16 %v843
  %v3977 = vunpack.c.l.b16 %v844
  %v3978 = vunpack.c.h.b16 %v844
  %v3979 = vunpack.c.l.b16 %v845
  %v3980 = vunpack.c.h.b16 %v845
  %v3981 = vunpack.c.l.b16 %v846
  %v3982 = vunpack.c.h.b16 %v846
  %v3983 = vunpack.c.l.b16 %v847
  %v3984 = vunpack.c.h.b16 %v847
  %v3985 = vunpack.c.l.b16 %v848
  %v3986 = vunpack.c.h.b16 %v848
  %v3987 = vunpack.c.l.b16 %v849
  %v3988 = vunpack.c.h.b16 %v849
  %v3989 = vunpack.c.l.b16 %v850
  %v3990 = vunpack.c.h.b16 %v850
  %v3991 = vunpack.c.l.b16 %v851
  %v3992 = vunpack.c.h.b16 %v851
  %v3993 = vunpack.c.l.b16 %v852
  %v3994 = vunpack.c.h.b16 %v852
  %v3995 = vunpack.c.l.b16 %v853
  %v3996 = vunpack.c.h.b16 %v853
  %v3997 = vunpack.c.l.b16 %v854
  %v3998 = vunpack.c.h.b16 %v854
  %v3999 = vunpack.c.l.b16 %v855
  %v4000 = vunpack.c.h.b16 %v855
  %v4001 = vunpack.c.l.b16 %v856
  %v4002 = vunpack.c.h.b16 %v856
  %v4003 = vunpack.c.l.b16 %v857
  %v4004 = vunpack.c.h.b16 %v857
  %v4005 = vunpack.c.l.b16 %v858
  %v4006 = vunpack.c.h.b16 %v858
  %v4007 = vunpack.c.l.b16 %v859
  %v4008 = vunpack.c.h.b16 %v859
  %v4009 = vunpack.c.l.b16 %v860
  %v4010 = vunpack.c.h.b16 %v860
  %v4011 = vunpack.c.l.b16 %v861
  %v4012 = vunpack.c.h.b16 %v861
  %v4013 = vunpack.c.l.b16 %v862
  %v4014 = vunpack.c.h.b16 %v862
  %v4015 = vunpack.c.l.b16 %v863
  %v4016 = vunpack.c.h.b16 %v863
  %v4017 = vunpack.c.l.b16 %v864
  %v4018 = vunpack.c.h.b16 %v864
  %v4019 = vunpack.c.l.b16 %v865
  %v4020 = vunpack.c.h.b16 %v865
  %v4021 = vunpack.c.l.b16 %v866
  %v4022 = vunpack.c.h.b16 %v866
  %v4023 = vunpack.c.l.b16 %v867
  %v4024 = vunpack.c.h.b16 %v867
  %v4025 = vunpack.c.l.b16 %v868
  %v4026 = vunpack.c.h.b16 %v868
  %v4027 = vunpack.c.l.b16 %v869
  %v4028 = vunpack.c.h.b16 %v869
  %v4029 = vunpack.c.l.b16 %v870
  %v4030 = vunpack.c.h.b16 %v870
  %v4031 = vunpack.c.l.b16 %v871
  %v4032 = vunpack.c.h.b16 %v871
  %v4033 = vunpack.c.l.b16 %v872
  %v4034 = vunpack.c.h.b16 %v872
  %v4035 = vunpack.c.l.b16 %v873
  %v4036 = vunpack.c.h.b16 %v873
  %v4037 = vunpack.c.l.b16 %v874
  %v4038 = vunpack.c.h.b16 %v874
  %v4039 = vunpack.c.l.b16 %v875
  %v4040 = vunpack.c.h.b16 %v875
  %v4041 = vunpack.c.l.b16 %v876
  %v4042 = vunpack.c.h.b16 %v876
  %v4043 = vunpack.c.l.b16 %v877
  %v4044 = vunpack.c.h.b16 %v877
  %v4045 = vunpack.c.l.b16 %v878
  %v4046 = vunpack.c.h.b16 %v878
  %v4047 = vunpack.c.l.b16 %v879
  %v4048 = vunpack.c.h.b16 %v879
  %v4049 = vunpack.c.l.b16 %v880
  %v4050 = vunpack.c.h.b16 %v880
  %v4051 = vunpack.c.l.b16 %v881
  %v4052 = vunpack.c.h.b16 %v881
  %v4053 = vunpack.c.l.b16 %v882
  %v4054 = vunpack.c.h.b16 %v882
  %v4055 = vunpack.c.l.b16 %v883
  %v4056 = vunpack.c.h.b16 %v883
  %v4057 = vunpack.c.l.b16 %v884
  %v4058 = vunpack.c.h.b16 %v884
  %v4059 = vunpack.c.l.b16 %v885
  %v4060 = vunpack.c.h.b16 %v885
  %v4061 = vunpack.c.l.b16 %v886
  %v4062 = vunpack.c.h.b16 %v886
  %v4063 = vunpack.c.l.b16 %v887
  %v4064 = vunpack.c.h.b16 %v887
  %v4065 = vunpack.c.l.b16 %v888
  %v4066 = vunpack.c.h.b16 %v888
  %v4067 = vunpack.c.l.b16 %v889
  %v4068 = vunpack.c.h.b16 %v889
  %v4069 = vunpack.c.l.b16 %v890
  %v4070 = vunpack.c.h.b16 %v890
  %v4071 = vunpack.c.l.b16 %v891
  %v4072 = vunpack.c.h.b16 %v891
  %v4073 = vunpack.c.l.b16 %v892
  %v4074 = vunpack.c.h.b16 %v892
  %v4075 = vunpack.c.l.b16 %v893
  %v4076 = vunpack.c.h.b16 %v893
  %v4077 = vunpack.c.l.b16 %v894
  %v4078 = vunpack.c.h.b16 %v894
  %v4079 = vunpack.c.l.b16 %v895
  %v4080 = vunpack.c.h.b16 %v895
  %v4081 = vunpack.c.l.b16 %v896
  %v4082 = vunpack.c.h.b16 %v896
  %v4083 = vunpack.c.l.b16 %v897
  %v4084 = vunpack.c.h.b16 %v897
  %v4085 = vunpack.c.l.b16 %v898
  %v4086 = vunpack.c.h.b16 %v898
  %v4087 = vunpack.c.l.b16 %v899
  %v4088 = vunpack.c.h.b16 %v899
  %v4089 = vunpack.c.l.b16 %v900
  %v4090 = vunpack.c.h.b16 %v900
  %v4091 = vunpack.c.l.b16 %v901
  %v4092 = vunpack.c.h.b16 %v901
  %v4093 = vunpack.c.l.b16 %v902
  %v4094 = vunpack.c.h.b16 %v902
  %v4095 = vunpack.c.l.b16 %v903
  %v4096 = vunpack.c.h.b16 %v903
  %v4097 = vunpack.c.l.b16 %v904
  %v4098 = vunpack.c.h.b16 %v904
  %v4099 = vunpack.c.l.b16 %v905
  %v4100 = vunpack.c.h.b16 %v905
  %v4101 = vunpack.c.l.b16 %v906
  %v4102 = vunpack.c.h.b16 %v906
  %v4103 = vunpack.c.l.b16 %v907
  %v4104 = vunpack.c.h.b16 %v907
  %v4105 = vunpack.c.l.b16 %v908
  %v4106 = vunpack.c.h.b16 %v908
  %v4107 = vunpack.c.l.b16 %v909
  %v4108 = vunpack.c.h.b16 %v909
  %v4109 = vunpack.c.l.b16 %v910
  %v4110 = vunpack.c.h.b16 %v910
  %v4111 = vunpack.c.l.b16 %v911
  %v4112 = vunpack.c.h.b16 %v911
  %v4113 = vunpack.c.l.b16 %v912
  %v4114 = vunpack.c.h.b16 %v912
  %v4115 = vunpack.c.l.b16 %v913
  %v4116 = vunpack.c.h.b16 %v913
  %v4117 = vunpack.c.l.b16 %v914
  %v4118 = vunpack.c.h.b16 %v914
  %v4119 = vunpack.c.l.b16 %v915
  %v4120 = vunpack.c.h.b16 %v915
  %v4121 = vunpack.c.l.b16 %v916
  %v4122 = vunpack.c.h.b16 %v916
  %v4123 = vunpack.c.l.b16 %v917
  %v4124 = vunpack.c.h.b16 %v917
  %v4125 = vunpack.c.l.b16 %v918
  %v4126 = vunpack.c.h.b16 %v918
  %v4127 = vunpack.c.l.b16 %v919
  %v4128 = vunpack.c.h.b16 %v919
  %v4129 = vunpack.c.l.b16 %v920
  %v4130 = vunpack.c.h.b16 %v920
  %v4131 = vunpack.c.l.b16 %v921
  %v4132 = vunpack.c.h.b16 %v921
  %v4133 = vunpack.c.l.b16 %v922
  %v4134 = vunpack.c.h.b16 %v922
  %v4135 = vunpack.c.l.b16 %v923
  %v4136 = vunpack.c.h.b16 %v923
  %v4137 = vunpack.c.l.b16 %v924
  %v4138 = vunpack.c.h.b16 %v924
  %v4139 = vunpack.c.l.b16 %v925
  %v4140 = vunpack.c.h.b16 %v925
  %v4141 = vunpack.c.l.b16 %v926
  %v4142 = vunpack.c.h.b16 %v926
  %v4143 = vunpack.c.l.b16 %v927
  %v4144 = vunpack.c.h.b16 %v927
  %v4145 = vunpack.c.l.b16 %v928
  %v4146 = vunpack.c.h.b16 %v928
  %v4147 = vunpack.c.l.b16 %v929
  %v4148 = vunpack.c.h.b16 %v929
  %v4149 = vunpack.c.l.b16 %v930
  %v4150 = vunpack.c.h.b16 %v930
  %v4151 = vunpack.c.l.b16 %v931
  %v4152 = vunpack.c.h.b16 %v931
  %v4153 = vunpack.c.l.b16 %v932
  %v4154 = vunpack.c.h.b16 %v932
  %v4155 = vunpack.c.l.b16 %v933
  %v4156 = vunpack.c.h.b16 %v933
  %v4157 = vunpack.c.l.b16 %v934
  %v4158 = vunpack.c.h.b16 %v934
  %v4159 = vunpack.c.l.b16 %v935
  %v4160 = vunpack.c.h.b16 %v935
  %v4161 = vunpack.c.l.b16 %v936
  %v4162 = vunpack.c.h.b16 %v936
  %v4163 = vunpack.c.l.b16 %v937
  %v4164 = vunpack.c.h.b16 %v937
  %v4165 = vunpack.c.l.b16 %v938
  %v4166 = vunpack.c.h.b16 %v938
  %v4167 = vunpack.c.l.b16 %v939
  %v4168 = vunpack.c.h.b16 %v939
  %v4169 = vunpack.c.l.b16 %v940
  %v4170 = vunpack.c.h.b16 %v940
  %v4171 = vunpack.c.l.b16 %v941
  %v4172 = vunpack.c.h.b16 %v941
  %v4173 = vunpack.c.l.b16 %v942
  %v4174 = vunpack.c.h.b16 %v942
  %v4175 = vunpack.c.l.b16 %v943
  %v4176 = vunpack.c.h.b16 %v943
  %v4177 = vunpack.c.l.b16 %v944
  %v4178 = vunpack.c.h.b16 %v944
  %v4179 = vunpack.c.l.b16 %v945
  %v4180 = vunpack.c.h.b16 %v945
  %v4181 = vunpack.c.l.b16 %v946
  %v4182 = vunpack.c.h.b16 %v946
  %v4183 = vunpack.c.l.b16 %v947
  %v4184 = vunpack.c.h.b16 %v947
  %v4185 = vunpack.c.l.b16 %v948
  %v4186 = vunpack.c.h.b16 %v948
  %v4187 = vunpack.c.l.b16 %v949
  %v4188 = vunpack.c.h.b16 %v949
  %v4189 = vunpack.c.l.b16 %v950
  %v4190 = vunpack.c.h.b16 %v950
  %v4191 = vunpack.c.l.b16 %v951
  %v4192 = vunpack.c.h.b16 %v951
  %v4193 = vunpack.c.l.b16 %v952
  %v4194 = vunpack.c.h.b16 %v952
  %v4195 = vunpack.c.l.b16 %v953
  %v4196 = vunpack.c.h.b16 %v953
  %v4197 = vunpack.c.l.b16 %v954
  %v4198 = vunpack.c.h.b16 %v954
  %v4199 = vunpack.c.l.b16 %v955
  %v4200 = vunpack.c.h.b16 %v955
  %v4201 = vunpack.c.l.b16 %v956
  %v4202 = vunpack.c.h.b16 %v956
  %v4203 = vunpack.c.l.b16 %v957
  %v4204 = vunpack.c.h.b16 %v957
  %v4205 = vunpack.c.l.b16 %v958
  %v4206 = vunpack.c.h.b16 %v958
  %v4207 = vunpack.c.l.b16 %v959
  %v4208 = vunpack.c.h.b16 %v959
  %v4209 = vunpack.c.l.b16 %v960
  %v4210 = vunpack.c.h.b16 %v960
  %v4211 = vunpack.c.l.b16 %v961
  %v4212 = vunpack.c.h.b16 %v961
  %v4213 = vunpack.c.l.b16 %v962
  %v4214 = vunpack.c.h.b16 %v962
  %v4215 = vunpack.c.l.b16 %v963
  %v4216 = vunpack.c.h.b16 %v963
  %v4217 = vunpack.c.l.b16 %v964
  %v4218 = vunpack.c.h.b16 %v964
  %v4219 = vunpack.c.l.b16 %v965
  %v4220 = vunpack.c.h.b16 %v965
  %v4221 = vunpack.c.l.b16 %v966
  %v4222 = vunpack.c.h.b16 %v966
  %v4223 = vunpack.c.l.b16 %v967
  %v4224 = vunpack.c.h.b16 %v967
  %v4225 = vunpack.c.l.b16 %v968
  %v4226 = vunpack.c.h.b16 %v968
  %v4227 = vunpack.c.l.b16 %v969
  %v4228 = vunpack.c.h.b16 %v969
  %v4229 = vunpack.c.l.b16 %v970
  %v4230 = vunpack.c.h.b16 %v970
  %v4231 = vunpack.c.l.b16 %v971
  %v4232 = vunpack.c.h.b16 %v971
  %v4233 = vunpack.c.l.b16 %v972
  %v4234 = vunpack.c.h.b16 %v972
  %v4235 = vunpack.c.l.b16 %v973
  %v4236 = vunpack.c.h.b16 %v973
  %v4237 = vunpack.c.l.b16 %v974
  %v4238 = vunpack.c.h.b16 %v974
  %v4239 = vunpack.c.l.b16 %v975
  %v4240 = vunpack.c.h.b16 %v975
  %v4241 = vunpack.c.l.b16 %v976
  %v4242 = vunpack.c.h.b16 %v976
  %v4243 = vunpack.c.l.b16 %v977
  %v4244 = vunpack.c.h.b16 %v977
  %v4245 = vunpack.c.l.b16 %v978
  %v4246 = vunpack.c.h.b16 %v978
  %v4247 = vunpack.c.l.b16 %v979
  %v4248 = vunpack.c.h.b16 %v979
  %v4249 = vunpack.c.l.b16 %v980
  %v4250 = vunpack.c.h.b16 %v980
  %v4251 = vunpack.c.l.b16 %v981
  %v4252 = vunpack.c.h.b16 %v981
  %v4253 = vunpack.c.l.b16 %v982
  %v4254 = vunpack.c.h.b16 %v982
  %v4255 = vunpack.c.l.b16 %v983
  %v4256 = vunpack.c.h.b16 %v983
  %v4257 = vunpack.c.l.b16 %v984
  %v4258 = vunpack.c.h.b16 %v984
  %v4259 = vunpack.c.l.b16 %v985
  %v4260 = vunpack.c.h.b16 %v985
  %v4261 = vunpack.c.l.b16 %v986
  %v4262 = vunpack.c.h.b16 %v986
  %v4263 = vunpack.c.l.b16 %v987
  %v4264 = vunpack.c.h.b16 %v987
  %v4265 = vunpack.c.l.b16 %v988
  %v4266 = vunpack.c.h.b16 %v988
  %v4267 = vunpack.c.l.b16 %v989
  %v4268 = vunpack.c.h.b16 %v989
  %v4269 = vunpack.c.l.b16 %v990
  %v4270 = vunpack.c.h.b16 %v990
  %v4271 = vunpack.c.l.b16 %v991
  %v4272 = vunpack.c.h.b16 %v991
  %v4273 = vunpack.c.l.b16 %v992
  %v4274 = vunpack.c.h.b16 %v992
  %v4275 = vunpack.c.l.b16 %v993
  %v4276 = vunpack.c.h.b16 %v993
  %v4277 = vunpack.c.l.b16 %v994
  %v4278 = vunpack.c.h.b16 %v994
  %v4279 = vunpack.c.l.b16 %v995
  %v4280 = vunpack.c.h.b16 %v995
  %v4281 = vunpack.c.l.b16 %v996
  %v4282 = vunpack.c.h.b16 %v996
  %v4283 = vunpack.c.l.b16 %v997
  %v4284 = vunpack.c.h.b16 %v997
  %v4285 = vunpack.c.l.b16 %v998
  %v4286 = vunpack.c.h.b16 %v998
  %v4287 = vunpack.c.l.b16 %v999
  %v4288 = vunpack.c.h.b16 %v999
  %v4289 = vunpack.c.l.b16 %v1000
  %v4290 = vunpack.c.h.b16 %v1000
  %v4291 = vunpack.c.l.b16 %v1001
  %v4292 = vunpack.c.h.b16 %v1001
  %v4293 = vunpack.c.l.b16 %v1002
  %v4294 = vunpack.c.h.b16 %v1002
  %v4295 = vunpack.c.l.b16 %v1003
  %v4296 = vunpack.c.h.b16 %v1003
  %v4297 = vunpack.c.l.b16 %v1004
  %v4298 = vunpack.c.h.b16 %v1004
  %v4299 = vunpack.c.l.b16 %v1005
  %v4300 = vunpack.c.h.b16 %v1005
  %v4301 = vunpack.c.l.b16 %v1006
  %v4302 = vunpack.c.h.b16 %v1006
  %v4303 = vunpack.c.l.b16 %v1007
  %v4304 = vunpack.c.h.b16 %v1007
  %v4305 = vunpack.c.l.b16 %v1008
  %v4306 = vunpack.c.h.b16 %v1008
  %v4307 = vunpack.c.l.b16 %v1009
  %v4308 = vunpack.c.h.b16 %v1009
  %v4309 = vunpack.c.l.b16 %v1010
  %v4310 = vunpack.c.h.b16 %v1010
  %v4311 = vunpack.c.l.b16 %v1011
  %v4312 = vunpack.c.h.b16 %v1011
  %v4313 = vunpack.c.l.b16 %v1012
  %v4314 = vunpack.c.h.b16 %v1012
  %v4315 = vunpack.c.l.b16 %v1013
  %v4316 = vunpack.c.h.b16 %v1013
  %v4317 = vunpack.c.l.b16 %v1014
  %v4318 = vunpack.c.h.b16 %v1014
  %v4319 = vunpack.c.l.b16 %v1015
  %v4320 = vunpack.c.h.b16 %v1015
  %v4321 = vunpack.c.l.b16 %v1016
  %v4322 = vunpack.c.h.b16 %v1016
  %v4323 = vunpack.c.l.b16 %v1017
  %v4324 = vunpack.c.h.b16 %v1017
  %v4325 = vunpack.c.l.b16 %v1018
  %v4326 = vunpack.c.h.b16 %v1018
  %v4327 = vunpack.c.l.b16 %v1019
  %v4328 = vunpack.c.h.b16 %v1019
  %v4329 = vunpack.c.l.b16 %v1020
  %v4330 = vunpack.c.h.b16 %v1020
  %v4331 = vunpack.c.l.b16 %v1021
  %v4332 = vunpack.c.h.b16 %v1021
  %v4333 = vunpack.c.l.b16 %v1022
  %v4334 = vunpack.c.h.b16 %v1022
  %v4335 = vunpack.c.l.b16 %v1023
  %v4336 = vunpack.c.h.b16 %v1023
  %v4337 = vunpack.c.l.b16 %v1024
  %v4338 = vunpack.c.h.b16 %v1024
  %v4339 = vunpack.c.l.b16 %v1025
  %v4340 = vunpack.c.h.b16 %v1025
  %v4341 = vunpack.c.l.b16 %v1026
  %v4342 = vunpack.c.h.b16 %v1026
  %v4343 = vunpack.c.l.b16 %v1027
  %v4344 = vunpack.c.h.b16 %v1027
  %v4345 = vunpack.c.l.b16 %v1028
  %v4346 = vunpack.c.h.b16 %v1028
  %v4347 = vunpack.c.l.b16 %v1029
  %v4348 = vunpack.c.h.b16 %v1029
  %v4349 = vunpack.c.l.b16 %v1030
  %v4350 = vunpack.c.h.b16 %v1030
  %v4351 = vunpack.c.l.b16 %v1031
  %v4352 = vunpack.c.h.b16 %v1031
  %v4353 = vunpack.c.l.b16 %v1032
  %v4354 = vunpack.c.h.b16 %v1032
  %v4355 = vunpack.c.l.b16 %v1033
  %v4356 = vunpack.c.h.b16 %v1033
  %v4357 = vunpack.c.l.b16 %v1034
  %v4358 = vunpack.c.h.b16 %v1034
  %v4359 = vunpack.c.l.b16 %v1035
  %v4360 = vunpack.c.h.b16 %v1035
  %v4361 = vunpack.c.l.b16 %v1036
  %v4362 = vunpack.c.h.b16 %v1036
  %v4363 = vunpack.c.l.b16 %v1037
  %v4364 = vunpack.c.h.b16 %v1037
  %v4365 = vunpack.c.l.b16 %v1038
  %v4366 = vunpack.c.h.b16 %v1038
  %v4367 = vunpack.c.l.b16 %v1039
  %v4368 = vunpack.c.h.b16 %v1039
  %v4369 = vunpack.c.l.b16 %v1040
  %v4370 = vunpack.c.h.b16 %v1040
  %v4371 = vunpack.c.l.b16 %v1041
  %v4372 = vunpack.c.h.b16 %v1041
  %v4373 = vunpack.c.l.b16 %v1042
  %v4374 = vunpack.c.h.b16 %v1042
  %v4375 = vunpack.c.l.b16 %v1043
  %v4376 = vunpack.c.h.b16 %v1043
  %v4377 = vunpack.c.l.b16 %v1044
  %v4378 = vunpack.c.h.b16 %v1044
  %v4379 = vunpack.c.l.b16 %v1045
  %v4380 = vunpack.c.h.b16 %v1045
  %v4381 = vunpack.c.l.b16 %v1046
  %v4382 = vunpack.c.h.b16 %v1046
  %v4383 = vunpack.c.l.b16 %v1047
  %v4384 = vunpack.c.h.b16 %v1047
  %v4385 = vunpack.c.l.b16 %v1048
  %v4386 = vunpack.c.h.b16 %v1048
  %v4387 = vunpack.c.l.b16 %v1049
  %v4388 = vunpack.c.h.b16 %v1049
  %v4389 = vunpack.c.l.b16 %v1050
  %v4390 = vunpack.c.h.b16 %v1050
  %v4391 = vunpack.c.l.b16 %v1051
  %v4392 = vunpack.c.h.b16 %v1051
  %v4393 = vunpack.c.l.b16 %v1052
  %v4394 = vunpack.c.h.b16 %v1052
  %v4395 = vunpack.c.l.b16 %v1053
  %v4396 = vunpack.c.h.b16 %v1053
  %v4397 = vunpack.c.l.b16 %v1054
  %v4398 = vunpack.c.h.b16 %v1054
  %v4399 = vunpack.c.l.b16 %v1055
  %v4400 = vunpack.c.h.b16 %v1055
  %v4401 = vunpack.c.l.b16 %v1056
  %v4402 = vunpack.c.h.b16 %v1056
  %v4403 = vunpack.c.l.b16 %v1057
  %v4404 = vunpack.c.h.b16 %v1057
  %v4405 = vunpack.c.l.b16 %v1058
  %v4406 = vunpack.c.h.b16 %v1058
  %v4407 = vunpack.c.l.b16 %v1059
  %v4408 = vunpack.c.h.b16 %v1059
  %v4409 = vunpack.c.l.b16 %v1060
  %v4410 = vunpack.c.h.b16 %v1060
  %v4411 = vunpack.c.l.b16 %v1061
  %v4412 = vunpack.c.h.b16 %v1061
  %v4413 = vunpack.c.l.b16 %v1062
  %v4414 = vunpack.c.h.b16 %v1062
  %v4415 = vunpack.c.l.b16 %v1063
  %v4416 = vunpack.c.h.b16 %v1063
  %v4417 = vunpack.c.l.b16 %v1064
  %v4418 = vunpack.c.h.b16 %v1064
  %v4419 = vunpack.c.l.b16 %v1065
  %v4420 = vunpack.c.h.b16 %v1065
  %v4421 = vunpack.c.l.b16 %v1066
  %v4422 = vunpack.c.h.b16 %v1066
  %v4423 = vunpack.c.l.b16 %v1067
  %v4424 = vunpack.c.h.b16 %v1067
  %v4425 = vunpack.c.l.b16 %v1068
  %v4426 = vunpack.c.h.b16 %v1068
  %v4427 = vunpack.c.l.b16 %v1069
  %v4428 = vunpack.c.h.b16 %v1069
  %v4429 = vunpack.c.l.b16 %v1070
  %v4430 = vunpack.c.h.b16 %v1070
  %v4431 = vunpack.c.l.b16 %v1071
  %v4432 = vunpack.c.h.b16 %v1071
  %v4433 = vunpack.c.l.b16 %v1072
  %v4434 = vunpack.c.h.b16 %v1072
  %v4435 = vunpack.c.l.b16 %v1073
  %v4436 = vunpack.c.h.b16 %v1073
  %v4437 = vunpack.c.l.b16 %v1074
  %v4438 = vunpack.c.h.b16 %v1074
  %v4439 = vunpack.c.l.b16 %v1075
  %v4440 = vunpack.c.h.b16 %v1075
  %v4441 = vunpack.c.l.b16 %v1076
  %v4442 = vunpack.c.h.b16 %v1076
  %v4443 = vunpack.c.l.b16 %v1077
  %v4444 = vunpack.c.h.b16 %v1077
  %v4445 = vunpack.c.l.b16 %v1078
  %v4446 = vunpack.c.h.b16 %v1078
  %v4447 = vunpack.c.l.b16 %v1079
  %v4448 = vunpack.c.h.b16 %v1079
  %v4449 = vunpack.c.l.b16 %v1080
  %v4450 = vunpack.c.h.b16 %v1080
  %v4451 = vunpack.c.l.b16 %v1081
  %v4452 = vunpack.c.h.b16 %v1081
  %v4453 = vunpack.c.l.b16 %v1082
  %v4454 = vunpack.c.h.b16 %v1082
  %v4455 = vunpack.c.l.b16 %v1083
  %v4456 = vunpack.c.h.b16 %v1083
  %v4457 = vunpack.c.l.b16 %v1084
  %v4458 = vunpack.c.h.b16 %v1084
  %v4459 = vunpack.c.l.b16 %v1085
  %v4460 = vunpack.c.h.b16 %v1085
  %v4461 = vunpack.c.l.b16 %v1086
  %v4462 = vunpack.c.h.b16 %v1086
  %v4463 = vunpack.c.l.b16 %v1087
  %v4464 = vunpack.c.h.b16 %v1087
  %v4465 = vunpack.c.l.b16 %v1088
  %v4466 = vunpack.c.h.b16 %v1088
  %v4467 = vunpack.c.l.b16 %v1089
  %v4468 = vunpack.c.h.b16 %v1089
  %v4469 = vunpack.c.l.b16 %v1090
  %v4470 = vunpack.c.h.b16 %v1090
  %v4471 = vunpack.c.l.b16 %v1091
  %v4472 = vunpack.c.h.b16 %v1091
  %v4473 = vunpack.c.l.b16 %v1092
  %v4474 = vunpack.c.h.b16 %v1092
  %v4475 = vunpack.c.l.b16 %v1093
  %v4476 = vunpack.c.h.b16 %v1093
  %v4477 = vunpack.c.l.b16 %v1094
  %v4478 = vunpack.c.h.b16 %v1094
  %v4479 = vunpack.c.l.b16 %v1095
  %v4480 = vunpack.c.h.b16 %v1095
  %v4481 = vunpack.c.l.b16 %v1096
  %v4482 = vunpack.c.h.b16 %v1096
  %v4483 = vunpack.c.l.b16 %v1097
  %v4484 = vunpack.c.h.b16 %v1097
  %v4485 = vunpack.c.l.b16 %v1098
  %v4486 = vunpack.c.h.b16 %v1098
  %v4487 = vunpack.c.l.b16 %v1099
  %v4488 = vunpack.c.h.b16 %v1099
  %v4489 = vunpack.c.l.b16 %v1100
  %v4490 = vunpack.c.h.b16 %v1100
  %v4491 = vunpack.c.l.b16 %v1101
  %v4492 = vunpack.c.h.b16 %v1101
  %v4493 = vunpack.c.l.b16 %v1102
  %v4494 = vunpack.c.h.b16 %v1102
  %v4495 = vunpack.c.l.b16 %v1103
  %v4496 = vunpack.c.h.b16 %v1103
  %v4497 = vunpack.c.l.b16 %v1104
  %v4498 = vunpack.c.h.b16 %v1104
  %v4499 = vunpack.c.l.b16 %v1105
  %v4500 = vunpack.c.h.b16 %v1105
  %v4501 = vunpack.c.l.b16 %v1106
  %v4502 = vunpack.c.h.b16 %v1106
  %v4503 = vunpack.c.l.b16 %v1107
  %v4504 = vunpack.c.h.b16 %v1107
  %v4505 = vunpack.c.l.b16 %v1108
  %v4506 = vunpack.c.h.b16 %v1108
  %v4507 = vunpack.c.l.b16 %v1109
  %v4508 = vunpack.c.h.b16 %v1109
  %v4509 = vunpack.c.l.b16 %v1110
  %v4510 = vunpack.c.h.b16 %v1110
  %v4511 = vunpack.c.l.b16 %v1111
  %v4512 = vunpack.c.h.b16 %v1111
  %v4513 = vunpack.c.l.b16 %v1112
  %v4514 = vunpack.c.h.b16 %v1112
  %v4515 = vunpack.c.l.b16 %v1113
  %v4516 = vunpack.c.h.b16 %v1113
  %v4517 = vunpack.c.l.b16 %v1114
  %v4518 = vunpack.c.h.b16 %v1114
  %v4519 = vunpack.c.l.b16 %v1115
  %v4520 = vunpack.c.h.b16 %v1115
  %v4521 = vunpack.c.l.b16 %v1116
  %v4522 = vunpack.c.h.b16 %v1116
  %v4523 = vunpack.c.l.b16 %v1117
  %v4524 = vunpack.c.h.b16 %v1117
  %v4525 = vunpack.c.l.b16 %v1118
  %v4526 = vunpack.c.h.b16 %v1118
  %v4527 = vunpack.c.l.b16 %v1119
  %v4528 = vunpack.c.h.b16 %v1119
  %v4529 = vunpack.c.l.b16 %v1120
  %v4530 = vunpack.c.h.b16 %v1120
  %v4531 = vunpack.c.l.b16 %v1121
  %v4532 = vunpack.c.h.b16 %v1121
  %v4533 = vunpack.c.l.b16 %v1122
  %v4534 = vunpack.c.h.b16 %v1122
  %v4535 = vunpack.c.l.b16 %v1123
  %v4536 = vunpack.c.h.b16 %v1123
  %v4537 = vunpack.c.l.b16 %v1124
  %v4538 = vunpack.c.h.b16 %v1124
  %v4539 = vunpack.c.l.b16 %v1125
  %v4540 = vunpack.c.h.b16 %v1125
  %v4541 = vunpack.c.l.b16 %v1126
  %v4542 = vunpack.c.h.b16 %v1126
  %v4543 = vunpack.c.l.b16 %v1127
  %v4544 = vunpack.c.h.b16 %v1127
  %v4545 = vunpack.c.l.b16 %v1128
  %v4546 = vunpack.c.h.b16 %v1128
  %v4547 = vunpack.c.l.b16 %v1129
  %v4548 = vunpack.c.h.b16 %v1129
  %v4549 = vunpack.c.l.b16 %v1130
  %v4550 = vunpack.c.h.b16 %v1130
  %v4551 = vunpack.c.l.b16 %v1131
  %v4552 = vunpack.c.h.b16 %v1131
  %v4553 = vunpack.c.l.b16 %v1132
  %v4554 = vunpack.c.h.b16 %v1132
  %v4555 = vunpack.c.l.b16 %v1133
  %v4556 = vunpack.c.h.b16 %v1133
  %v4557 = vunpack.c.l.b16 %v1134
  %v4558 = vunpack.c.h.b16 %v1134
  %v4559 = vunpack.c.l.b16 %v1135
  %v4560 = vunpack.c.h.b16 %v1135
  %v4561 = vunpack.c.l.b16 %v1136
  %v4562 = vunpack.c.h.b16 %v1136
  %v4563 = vunpack.c.l.b16 %v1137
  %v4564 = vunpack.c.h.b16 %v1137
  %v4565 = vunpack.c.l.b16 %v1138
  %v4566 = vunpack.c.h.b16 %v1138
  %v4567 = vunpack.c.l.b16 %v1139
  %v4568 = vunpack.c.h.b16 %v1139
  %v4569 = vunpack.c.l.b16 %v1140
  %v4570 = vunpack.c.h.b16 %v1140
  %v4571 = vunpack.c.l.b16 %v1141
  %v4572 = vunpack.c.h.b16 %v1141
  %v4573 = vunpack.c.l.b16 %v1142
  %v4574 = vunpack.c.h.b16 %v1142
  %v4575 = vunpack.c.l.b16 %v1143
  %v4576 = vunpack.c.h.b16 %v1143
  %v4577 = vunpack.c.l.b16 %v1144
  %v4578 = vunpack.c.h.b16 %v1144
  %v4579 = vunpack.c.l.b16 %v1145
  %v4580 = vunpack.c.h.b16 %v1145
  %v4581 = vunpack.c.l.b16 %v1146
  %v4582 = vunpack.c.h.b16 %v1146
  %v4583 = vunpack.c.l.b16 %v1147
  %v4584 = vunpack.c.h.b16 %v1147
  %v4585 = vunpack.c.l.b16 %v1148
  %v4586 = vunpack.c.h.b16 %v1148
  %v4587 = vunpack.c.l.b16 %v1149
  %v4588 = vunpack.c.h.b16 %v1149
  %v4589 = vunpack.c.l.b16 %v1150
  %v4590 = vunpack.c.h.b16 %v1150
  %v4591 = vunpack.c.l.b16 %v1151
  %v4592 = vunpack.c.h.b16 %v1151
  %v4593 = vunpack.c.l.b16 %v1152
  %v4594 = vunpack.c.h.b16 %v1152
  %v4595 = vunpack.c.l.b16 %v1153
  %v4596 = vunpack.c.h.b16 %v1153
  %v4597 = vunpack.c.l.b16 %v1154
  %v4598 = vunpack.c.h.b16 %v1154
  %v4599 = vunpack.c.l.b16 %v1155
  %v4600 = vunpack.c.h.b16 %v1155
  %v4601 = vunpack.c.l.b16 %v1156
  %v4602 = vunpack.c.h.b16 %v1156
  %v4603 = vunpack.c.l.b16 %v1157
  %v4604 = vunpack.c.h.b16 %v1157
  %v4605 = vunpack.c.l.b16 %v1158
  %v4606 = vunpack.c.h.b16 %v1158
  %v4607 = vunpack.c.l.b16 %v1159
  %v4608 = vunpack.c.h.b16 %v1159
  %v4609 = vunpack.c.l.b16 %v1160
  %v4610 = vunpack.c.h.b16 %v1160
  %v4611 = vunpack.c.l.b16 %v1161
  %v4612 = vunpack.c.h.b16 %v1161
  %v4613 = vunpack.c.l.b16 %v1162
  %v4614 = vunpack.c.h.b16 %v1162
  %v4615 = vunpack.c.l.b16 %v1163
  %v4616 = vunpack.c.h.b16 %v1163
  %v4617 = vunpack.c.l.b16 %v1164
  %v4618 = vunpack.c.h.b16 %v1164
  %v4619 = vunpack.c.l.b16 %v1165
  %v4620 = vunpack.c.h.b16 %v1165
  %v4621 = vunpack.c.l.b16 %v1166
  %v4622 = vunpack.c.h.b16 %v1166
  %v4623 = vunpack.c.l.b16 %v1167
  %v4624 = vunpack.c.h.b16 %v1167
  %v4625 = vunpack.c.l.b16 %v1168
  %v4626 = vunpack.c.h.b16 %v1168
  %v4627 = vunpack.c.l.b16 %v1169
  %v4628 = vunpack.c.h.b16 %v1169
  %v4629 = vunpack.c.l.b16 %v1170
  %v4630 = vunpack.c.h.b16 %v1170
  %v4631 = vunpack.c.l.b16 %v1171
  %v4632 = vunpack.c.h.b16 %v1171
  %v4633 = vunpack.c.l.b16 %v1172
  %v4634 = vunpack.c.h.b16 %v1172
  %v4635 = vunpack.c.l.b16 %v1173
  %v4636 = vunpack.c.h.b16 %v1173
  %v4637 = vunpack.c.l.b16 %v1174
  %v4638 = vunpack.c.h.b16 %v1174
  %v4639 = vunpack.c.l.b16 %v1175
  %v4640 = vunpack.c.h.b16 %v1175
  %v4641 = vunpack.c.l.b16 %v1176
  %v4642 = vunpack.c.h.b16 %v1176
  %v4643 = vunpack.c.l.b16 %v1177
  %v4644 = vunpack.c.h.b16 %v1177
  %v4645 = vunpack.c.l.b16 %v1178
  %v4646 = vunpack.c.h.b16 %v1178
  %v4647 = vunpack.c.l.b16 %v1179
  %v4648 = vunpack.c.h.b16 %v1179
  %v4649 = vunpack.c.l.b16 %v1180
  %v4650 = vunpack.c.h.b16 %v1180
  %v4651 = vunpack.c.l.b16 %v1181
  %v4652 = vunpack.c.h.b16 %v1181
  %v4653 = vunpack.c.l.b16 %v1182
  %v4654 = vunpack.c.h.b16 %v1182
  %v4655 = vunpack.c.l.b16 %v1183
  %v4656 = vunpack.c.h.b16 %v1183
  %v4657 = vunpack.c.l.b16 %v1184
  %v4658 = vunpack.c.h.b16 %v1184
  %v4659 = vunpack.c.l.b16 %v1185
  %v4660 = vunpack.c.h.b16 %v1185
  %v4661 = vunpack.c.l.b16 %v1186
  %v4662 = vunpack.c.h.b16 %v1186
  %v4663 = vunpack.c.l.b16 %v1187
  %v4664 = vunpack.c.h.b16 %v1187
  %v4665 = vunpack.c.l.b16 %v1188
  %v4666 = vunpack.c.h.b16 %v1188
  %v4667 = vunpack.c.l.b16 %v1189
  %v4668 = vunpack.c.h.b16 %v1189
  %v4669 = vunpack.c.l.b16 %v1190
  %v4670 = vunpack.c.h.b16 %v1190
  %v4671 = vunpack.c.l.b16 %v1191
  %v4672 = vunpack.c.h.b16 %v1191
  %v4673 = vunpack.c.l.b16 %v1192
  %v4674 = vunpack.c.h.b16 %v1192
  %v4675 = vunpack.c.l.b16 %v1193
  %v4676 = vunpack.c.h.b16 %v1193
  %v4677 = vunpack.c.l.b16 %v1194
  %v4678 = vunpack.c.h.b16 %v1194
  %v4679 = vunpack.c.l.b16 %v1195
  %v4680 = vunpack.c.h.b16 %v1195
  %v4681 = vunpack.c.l.b16 %v1196
  %v4682 = vunpack.c.h.b16 %v1196
  %v4683 = vunpack.c.l.b16 %v1197
  %v4684 = vunpack.c.h.b16 %v1197
  %v4685 = vunpack.c.l.b16 %v1198
  %v4686 = vunpack.c.h.b16 %v1198
  %v4687 = vunpack.c.l.b16 %v1199
  %v4688 = vunpack.c.h.b16 %v1199
  %v4689 = vunpack.c.l.b16 %v1200
  %v4690 = vunpack.c.h.b16 %v1200
  %v4691 = vunpack.c.l.b16 %v1201
  %v4692 = vunpack.c.h.b16 %v1201
  %v4693 = vunpack.c.l.b16 %v1202
  %v4694 = vunpack.c.h.b16 %v1202
  %v4695 = vunpack.c.l.b16 %v1203
  %v4696 = vunpack.c.h.b16 %v1203
  %v4697 = vunpack.c.l.b16 %v1204
  %v4698 = vunpack.c.h.b16 %v1204
  %v4699 = vunpack.c.l.b16 %v1205
  %v4700 = vunpack.c.h.b16 %v1205
  %v4701 = vunpack.c.l.b16 %v1206
  %v4702 = vunpack.c.h.b16 %v1206
  %v4703 = vunpack.c.l.b16 %v1207
  %v4704 = vunpack.c.h.b16 %v1207
  %v4705 = vunpack.c.l.b16 %v1208
  %v4706 = vunpack.c.h.b16 %v1208
  %v4707 = vpack.c.b16 %v2411, %v2403
  %v4708 = vpack.c.b16 %v2412, %v2404
  %v4709 = vpack.c.b16 %v2413, %v2405
  %v4710 = vpack.c.b16 %v2414, %v2406
  %v4711 = vpack.c.b16 %v2415, %v2407
  %v4712 = vpack.c.b16 %v2416, %v2408
  %v4713 = vpack.c.b16 %v2417, %v2409
  %v4714 = vpack.c.b16 %v2418, %v2410
  %v4715 = vpack.c.b16 %v2427, %v2419
  %v4716 = vpack.c.b16 %v2428, %v2420
  %v4717 = vpack.c.b16 %v2429, %v2421
  %v4718 = vpack.c.b16 %v2430, %v2422
  %v4719 = vpack.c.b16 %v2431, %v2423
  %v4720 = vpack.c.b16 %v2432, %v2424
  %v4721 = vpack.c.b16 %v2433, %v2425
  %v4722 = vpack.c.b16 %v2434, %v2426
  %v4723 = vpack.c.b16 %v2443, %v2435
  %v4724 = vpack.c.b16 %v2444, %v2436
  %v4725 = vpack.c.b16 %v2445, %v2437
  %v4726 = vpack.c.b16 %v2446, %v2438
  %v4727 = vpack.c.b16 %v2447, %v2439
  %v4728 = vpack.c.b16 %v2448, %v2440
  %v4729 = vpack.c.b16 %v2449, %v2441
  %v4730 = vpack.c.b16 %v2450, %v2442
  %v4731 = vpack.c.b16 %v2459, %v2451
  %v4732 = vpack.c.b16 %v2460, %v2452
  %v4733 = vpack.c.b16 %v2461, %v2453
  %v4734 = vpack.c.b16 %v2462, %v2454
  %v4735 = vpack.c.b16 %v2463, %v2455
  %v4736 = vpack.c.b16 %v2464, %v2456
  %v4737 = vpack.c.b16 %v2465, %v2457
  %v4738 = vpack.c.b16 %v2466, %v2458
  %v4739 = vpack.c.b16 %v2475, %v2467
  %v4740 = vpack.c.b16 %v2476, %v2468
  %v4741 = vpack.c.b16 %v2477, %v2469
  %v4742 = vpack.c.b16 %v2478, %v2470
  %v4743 = vpack.c.b16 %v2479, %v2471
  %v4744 = vpack.c.b16 %v2480, %v2472
  %v4745 = vpack.c.b16 %v2481, %v2473
  %v4746 = vpack.c.b16 %v2482, %v2474
  %v4747 = vpack.c.b16 %v2491, %v2483
  %v4748 = vpack.c.b16 %v2492, %v2484
  %v4749 = vpack.c.b16 %v2493, %v2485
  %v4750 = vpack.c.b16 %v2494, %v2486
  %v4751 = vpack.c.b16 %v2495, %v2487
  %v4752 = vpack.c.b16 %v2496, %v2488
  %v4753 = vpack.c.b16 %v2497, %v2489
  %v4754 = vpack.c.b16 %v2498, %v2490
  %v4755 = vpack.c.b16 %v2507, %v2499
  %v4756 = vpack.c.b16 %v2508, %v2500
  %v4757 = vpack.c.b16 %v2509, %v2501
  %v4758 = vpack.c.b16 %v2510, %v2502
  %v4759 = vpack.c.b16 %v2511, %v2503
  %v4760 = vpack.c.b16 %v2512, %v2504
  %v4761 = vpack.c.b16 %v2513, %v2505
  %v4762 = vpack.c.b16 %v2514, %v2506
  %v4763 = vpack.c.b16 %v2523, %v2515
  %v4764 = vpack.c.b16 %v2524, %v2516
  %v4765 = vpack.c.b16 %v2525, %v2517
  %v4766 = vpack.c.b16 %v2526, %v2518
  %v4767 = vpack.c.b16 %v2527, %v2519
  %v4768 = vpack.c.b16 %v2528, %v2520
  %v4769 = vpack.c.b16 %v2529, %v2521
  %v4770 = vpack.c.b16 %v2530, %v2522
  %v4771 = vpack.c.b16 %v2539, %v2531
  %v4772 = vpack.c.b16 %v2540, %v2532
  %v4773 = vpack.c.b16 %v2541, %v2533
  %v4774 = vpack.c.b16 %v2542, %v2534
  %v4775 = vpack.c.b16 %v2543, %v2535
  %v4776 = vpack.c.b16 %v2544, %v2536
  %v4777 = vpack.c.b16 %v2545, %v2537
  %v4778 = vpack.c.b16 %v2546, %v2538
  %v4779 = vpack.c.b16 %v2555, %v2547
  %v4780 = vpack.c.b16 %v2556, %v2548
  %v4781 = vpack.c.b16 %v2557, %v2549
  %v4782 = vpack.c.b16 %v2558, %v2550
  %v4783 = vpack.c.b16 %v2559, %v2551
  %v4784 = vpack.c.b16 %v2560, %v2552
  %v4785 = vpack.c.b16 %v2561, %v2553
  %v4786 = vpack.c.b16 %v2562, %v2554
  %v4787 = vpack.c.b16 %v2571, %v2563
  %v4788 = vpack.c.b16 %v2572, %v2564
  %v4789 = vpack.c.b16 %v2573, %v2565
  %v4790 = vpack.c.b16 %v2574, %v2566
  %v4791 = vpack.c.b16 %v2575, %v2567
  %v4792 = vpack.c.b16 %v2576, %v2568
  %v4793 = vpack.c.b16 %v2577, %v2569
  %v4794 = vpack.c.b16 %v2578, %v2570
  %v4795 = vpack.c.b16 %v2587, %v2579
  %v4796 = vpack.c.b16 %v2588, %v2580
  %v4797 = vpack.c.b16 %v2589, %v2581
  %v4798 = vpack.c.b16 %v2590, %v2582
  %v4799 = vpack.c.b16 %v2591, %v2583
  %v4800 = vpack.c.b16 %v2592, %v2584
  %v4801 = vpack.c.b16 %v2593, %v2585
  %v4802 = vpack.c.b16 %v2594, %v2586
  %v4803 = vpack.c.b16 %v2603, %v2595
  %v4804 = vpack.c.b16 %v2604, %v2596
  %v4805 = vpack.c.b16 %v2605, %v2597
  %v4806 = vpack.c.b16 %v2606, %v2598
  %v4807 = vpack.c.b16 %v2607, %v2599
  %v4808 = vpack.c.b16 %v2608, %v2600
  %v4809 = vpack.c.b16 %v2609, %v2601
  %v4810 = vpack.c.b16 %v2610, %v2602
  %v4811 = vpack.c.b16 %v2619, %v2611
  %v4812 = vpack.c.b16 %v2620, %v2612
  %v4813 = vpack.c.b16 %v2621, %v2613
  %v4814 = vpack.c.b16 %v2622, %v2614
  %v4815 = vpack.c.b16 %v2623, %v2615
  %v4816 = vpack.c.b16 %v2624, %v2616
  %v4817 = vpack.c.b16 %v2625, %v2617
  %v4818 = vpack.c.b16 %v2626, %v2618
  %v4819 = vpack.c.b16 %v2635, %v2627
  %v4820 = vpack.c.b16 %v2636, %v2628
  %v4821 = vpack.c.b16 %v2637, %v2629
  %v4822 = vpack.c.b16 %v2638, %v2630
  %v4823 = vpack.c.b16 %v2639, %v2631
  %v4824 = vpack.c.b16 %v2640, %v2632
  %v4825 = vpack.c.b16 %v2641, %v2633
  %v4826 = vpack.c.b16 %v2642, %v2634
  %v4827 = vpack.c.b16 %v2651, %v2643
  %v4828 = vpack.c.b16 %v2652, %v2644
  %v4829 = vpack.c.b16 %v2653, %v2645
  %v4830 = vpack.c.b16 %v2654, %v2646
  %v4831 = vpack.c.b16 %v2655, %v2647
  %v4832 = vpack.c.b16 %v2656, %v2648
  %v4833 = vpack.c.b16 %v2657, %v2649
  %v4834 = vpack.c.b16 %v2658, %v2650
  %v4835 = vpack.c.b16 %v2667, %v2659
  %v4836 = vpack.c.b16 %v2668, %v2660
  %v4837 = vpack.c.b16 %v2669, %v2661
  %v4838 = vpack.c.b16 %v2670, %v2662
  %v4839 = vpack.c.b16 %v2671, %v2663
  %v4840 = vpack.c.b16 %v2672, %v2664
  %v4841 = vpack.c.b16 %v2673, %v2665
  %v4842 = vpack.c.b16 %v2674, %v2666
  %v4843 = vpack.c.b16 %v2683, %v2675
  %v4844 = vpack.c.b16 %v2684, %v2676
  %v4845 = vpack.c.b16 %v2685, %v2677
  %v4846 = vpack.c.b16 %v2686, %v2678
  %v4847 = vpack.c.b16 %v2687, %v2679
  %v4848 = vpack.c.b16 %v2688, %v2680
  %v4849 = vpack.c.b16 %v2689, %v2681
  %v4850 = vpack.c.b16 %v2690, %v2682
  %v4851 = vpack.c.b16 %v2699, %v2691
  %v4852 = vpack.c.b16 %v2700, %v2692
  %v4853 = vpack.c.b16 %v2701, %v2693
  %v4854 = vpack.c.b16 %v2702, %v2694
  %v4855 = vpack.c.b16 %v2703, %v2695
  %v4856 = vpack.c.b16 %v2704, %v2696
  %v4857 = vpack.c.b16 %v2705, %v2697
  %v4858 = vpack.c.b16 %v2706, %v2698
  %v4859 = vpack.c.b16 %v2715, %v2707
  %v4860 = vpack.c.b16 %v2716, %v2708
  %v4861 = vpack.c.b16 %v2717, %v2709
  %v4862 = vpack.c.b16 %v2718, %v2710
  %v4863 = vpack.c.b16 %v2719, %v2711
  %v4864 = vpack.c.b16 %v2720, %v2712
  %v4865 = vpack.c.b16 %v2721, %v2713
  %v4866 = vpack.c.b16 %v2722, %v2714
  %v4867 = vpack.c.b16 %v2731, %v2723
  %v4868 = vpack.c.b16 %v2732, %v2724
  %v4869 = vpack.c.b16 %v2733, %v2725
  %v4870 = vpack.c.b16 %v2734, %v2726
  %v4871 = vpack.c.b16 %v2735, %v2727
  %v4872 = vpack.c.b16 %v2736, %v2728
  %v4873 = vpack.c.b16 %v2737, %v2729
  %v4874 = vpack.c.b16 %v2738, %v2730
  %v4875 = vpack.c.b16 %v2747, %v2739
  %v4876 = vpack.c.b16 %v2748, %v2740
  %v4877 = vpack.c.b16 %v2749, %v2741
  %v4878 = vpack.c.b16 %v2750, %v2742
  %v4879 = vpack.c.b16 %v2751, %v2743
  %v4880 = vpack.c.b16 %v2752, %v2744
  %v4881 = vpack.c.b16 %v2753, %v2745
  %v4882 = vpack.c.b16 %v2754, %v2746
  %v4883 = vpack.c.b16 %v2763, %v2755
  %v4884 = vpack.c.b16 %v2764, %v2756
  %v4885 = vpack.c.b16 %v2765, %v2757
  %v4886 = vpack.c.b16 %v2766, %v2758
  %v4887 = vpack.c.b16 %v2767, %v2759
  %v4888 = vpack.c.b16 %v2768, %v2760
  %v4889 = vpack.c.b16 %v2769, %v2761
  %v4890 = vpack.c.b16 %v2770, %v2762
  %v4891 = vpack.c.b16 %v2779, %v2771
  %v4892 = vpack.c.b16 %v2780, %v2772
  %v4893 = vpack.c.b16 %v2781, %v2773
  %v4894 = vpack.c.b16 %v2782, %v2774
  %v4895 = vpack.c.b16 %v2783, %v2775
  %v4896 = vpack.c.b16 %v2784, %v2776
  %v4897 = vpack.c.b16 %v2785, %v2777
  %v4898 = vpack.c.b16 %v2786, %v2778
  %v4899 = vpack.c.b16 %v2795, %v2787
  %v4900 = vpack.c.b16 %v2796, %v2788
  %v4901 = vpack.c.b16 %v2797, %v2789
  %v4902 = vpack.c.b16 %v2798, %v2790
  %v4903 = vpack.c.b16 %v2799, %v2791
  %v4904 = vpack.c.b16 %v2800, %v2792
  %v4905 = vpack.c.b16 %v2801, %v2793
  %v4906 = vpack.c.b16 %v2802, %v2794
  %v4907 = vpack.c.b16 %v2811, %v2803
  %v4908 = vpack.c.b16 %v2812, %v2804
  %v4909 = vpack.c.b16 %v2813, %v2805
  %v4910 = vpack.c.b16 %v2814, %v2806
  %v4911 = vpack.c.b16 %v2815, %v2807
  %v4912 = vpack.c.b16 %v2816, %v2808
  %v4913 = vpack.c.b16 %v2817, %v2809
  %v4914 = vpack.c.b16 %v2818, %v2810
  %v4915 = vpack.c.b16 %v2827, %v2819
  %v4916 = vpack.c.b16 %v2828, %v2820
  %v4917 = vpack.c.b16 %v2829, %v2821
  %v4918 = vpack.c.b16 %v2830, %v2822
  %v4919 = vpack.c.b16 %v2831, %v2823
  %v4920 = vpack.c.b16 %v2832, %v2824
  %v4921 = vpack.c.b16 %v2833, %v2825
  %v4922 = vpack.c.b16 %v2834, %v2826
  %v4923 = vpack.c.b16 %v2843, %v2835
  %v4924 = vpack.c.b16 %v2844, %v2836
  %v4925 = vpack.c.b16 %v2845, %v2837
  %v4926 = vpack.c.b16 %v2846, %v2838
  %v4927 = vpack.c.b16 %v2847, %v2839
  %v4928 = vpack.c.b16 %v2848, %v2840
  %v4929 = vpack.c.b16 %v2849, %v2841
  %v4930 = vpack.c.b16 %v2850, %v2842
  %v4931 = vpack.c.b16 %v2859, %v2851
  %v4932 = vpack.c.b16 %v2860, %v2852
  %v4933 = vpack.c.b16 %v2861, %v2853
  %v4934 = vpack.c.b16 %v2862, %v2854
  %v4935 = vpack.c.b16 %v2863, %v2855
  %v4936 = vpack.c.b16 %v2864, %v2856
  %v4937 = vpack.c.b16 %v2865, %v2857
  %v4938 = vpack.c.b16 %v2866, %v2858
  %v4939 = vpack.c.b16 %v2875, %v2867
  %v4940 = vpack.c.b16 %v2876, %v2868
  %v4941 = vpack.c.b16 %v2877, %v2869
  %v4942 = vpack.c.b16 %v2878, %v2870
  %v4943 = vpack.c.b16 %v2879, %v2871
  %v4944 = vpack.c.b16 %v2880, %v2872
  %v4945 = vpack.c.b16 %v2881, %v2873
  %v4946 = vpack.c.b16 %v2882, %v2874
  %v4947 = vpack.c.b16 %v2891, %v2883
  %v4948 = vpack.c.b16 %v2892, %v2884
  %v4949 = vpack.c.b16 %v2893, %v2885
  %v4950 = vpack.c.b16 %v2894, %v2886
  %v4951 = vpack.c.b16 %v2895, %v2887
  %v4952 = vpack.c.b16 %v2896, %v2888
  %v4953 = vpack.c.b16 %v2897, %v2889
  %v4954 = vpack.c.b16 %v2898, %v2890
  %v4955 = vpack.c.b16 %v2907, %v2899
  %v4956 = vpack.c.b16 %v2908, %v2900
  %v4957 = vpack.c.b16 %v2909, %v2901
  %v4958 = vpack.c.b16 %v2910, %v2902
  %v4959 = vpack.c.b16 %v2911, %v2903
  %v4960 = vpack.c.b16 %v2912, %v2904
  %v4961 = vpack.c.b16 %v2913, %v2905
  %v4962 = vpack.c.b16 %v2914, %v2906
  %v4963 = vpack.c.b16 %v2923, %v2915
  %v4964 = vpack.c.b16 %v2924, %v2916
  %v4965 = vpack.c.b16 %v2925, %v2917
  %v4966 = vpack.c.b16 %v2926, %v2918
  %v4967 = vpack.c.b16 %v2927, %v2919
  %v4968 = vpack.c.b16 %v2928, %v2920
  %v4969 = vpack.c.b16 %v2929, %v2921
  %v4970 = vpack.c.b16 %v2930, %v2922
  %v4971 = vpack.c.b16 %v2939, %v2931
  %v4972 = vpack.c.b16 %v2940, %v2932
  %v4973 = vpack.c.b16 %v2941, %v2933
  %v4974 = vpack.c.b16 %v2942, %v2934
  %v4975 = vpack.c.b16 %v2943, %v2935
  %v4976 = vpack.c.b16 %v2944, %v2936
  %v4977 = vpack.c.b16 %v2945, %v2937
  %v4978 = vpack.c.b16 %v2946, %v2938
  %v4979 = vpack.c.b16 %v2955, %v2947
  %v4980 = vpack.c.b16 %v2956, %v2948
  %v4981 = vpack.c.b16 %v2957, %v2949
  %v4982 = vpack.c.b16 %v2958, %v2950
  %v4983 = vpack.c.b16 %v2959, %v2951
  %v4984 = vpack.c.b16 %v2960, %v2952
  %v4985 = vpack.c.b16 %v2961, %v2953
  %v4986 = vpack.c.b16 %v2962, %v2954
  %v4987 = vpack.c.b16 %v2971, %v2963
  %v4988 = vpack.c.b16 %v2972, %v2964
  %v4989 = vpack.c.b16 %v2973, %v2965
  %v4990 = vpack.c.b16 %v2974, %v2966
  %v4991 = vpack.c.b16 %v2975, %v2967
  %v4992 = vpack.c.b16 %v2976, %v2968
  %v4993 = vpack.c.b16 %v2977, %v2969
  %v4994 = vpack.c.b16 %v2978, %v2970
  %v4995 = vpack.c.b16 %v2987, %v2979
  %v4996 = vpack.c.b16 %v2988, %v2980
  %v4997 = vpack.c.b16 %v2989, %v2981
  %v4998 = vpack.c.b16 %v2990, %v2982
  %v4999 = vpack.c.b16 %v2991, %v2983
  %v5000 = vpack.c.b16 %v2992, %v2984
  %v5001 = vpack.c.b16 %v2993, %v2985
  %v5002 = vpack.c.b16 %v2994, %v2986
  %v5003 = vpack.c.b16 %v3003, %v2995
  %v5004 = vpack.c.b16 %v3004, %v2996
  %v5005 = vpack.c.b16 %v3005, %v2997
  %v5006 = vpack.c.b16 %v3006, %v2998
  %v5007 = vpack.c.b16 %v3007, %v2999
  %v5008 = vpack.c.b16 %v3008, %v3000
  %v5009 = vpack.c.b16 %v3009, %v3001
  %v5010 = vpack.c.b16 %v3010, %v3002
  %v5011 = vpack.c.b16 %v3019, %v3011
  %v5012 = vpack.c.b16 %v3020, %v3012
  %v5013 = vpack.c.b16 %v3021, %v3013
  %v5014 = vpack.c.b16 %v3022, %v3014
  %v5015 = vpack.c.b16 %v3023, %v3015
  %v5016 = vpack.c.b16 %v3024, %v3016
  %v5017 = vpack.c.b16 %v3025, %v3017
  %v5018 = vpack.c.b16 %v3026, %v3018
  %v5019 = vpack.c.b16 %v3035, %v3027
  %v5020 = vpack.c.b16 %v3036, %v3028
  %v5021 = vpack.c.b16 %v3037, %v3029
  %v5022 = vpack.c.b16 %v3038, %v3030
  %v5023 = vpack.c.b16 %v3039, %v3031
  %v5024 = vpack.c.b16 %v3040, %v3032
  %v5025 = vpack.c.b16 %v3041, %v3033
  %v5026 = vpack.c.b16 %v3042, %v3034
  %v5027 = vpack.c.b16 %v3051, %v3043
  %v5028 = vpack.c.b16 %v3052, %v3044
  %v5029 = vpack.c.b16 %v3053, %v3045
  %v5030 = vpack.c.b16 %v3054, %v3046
  %v5031 = vpack.c.b16 %v3055, %v3047
  %v5032 = vpack.c.b16 %v3056, %v3048
  %v5033 = vpack.c.b16 %v3057, %v3049
  %v5034 = vpack.c.b16 %v3058, %v3050
  %v5035 = vpack.c.b16 %v3067, %v3059
  %v5036 = vpack.c.b16 %v3068, %v3060
  %v5037 = vpack.c.b16 %v3069, %v3061
  %v5038 = vpack.c.b16 %v3070, %v3062
  %v5039 = vpack.c.b16 %v3071, %v3063
  %v5040 = vpack.c.b16 %v3072, %v3064
  %v5041 = vpack.c.b16 %v3073, %v3065
  %v5042 = vpack.c.b16 %v3074, %v3066
  %v5043 = vpack.c.b16 %v3083, %v3075
  %v5044 = vpack.c.b16 %v3084, %v3076
  %v5045 = vpack.c.b16 %v3085, %v3077
  %v5046 = vpack.c.b16 %v3086, %v3078
  %v5047 = vpack.c.b16 %v3087, %v3079
  %v5048 = vpack.c.b16 %v3088, %v3080
  %v5049 = vpack.c.b16 %v3089, %v3081
  %v5050 = vpack.c.b16 %v3090, %v3082
  %v5051 = vpack.c.b16 %v3099, %v3091
  %v5052 = vpack.c.b16 %v3100, %v3092
  %v5053 = vpack.c.b16 %v3101, %v3093
  %v5054 = vpack.c.b16 %v3102, %v3094
  %v5055 = vpack.c.b16 %v3103, %v3095
  %v5056 = vpack.c.b16 %v3104, %v3096
  %v5057 = vpack.c.b16 %v3105, %v3097
  %v5058 = vpack.c.b16 %v3106, %v3098
  %v5059 = vpack.c.b16 %v3115, %v3107
  %v5060 = vpack.c.b16 %v3116, %v3108
  %v5061 = vpack.c.b16 %v3117, %v3109
  %v5062 = vpack.c.b16 %v3118, %v3110
  %v5063 = vpack.c.b16 %v3119, %v3111
  %v5064 = vpack.c.b16 %v3120, %v3112
  %v5065 = vpack.c.b16 %v3121, %v3113
  %v5066 = vpack.c.b16 %v3122, %v3114
  %v5067 = vpack.c.b16 %v3131, %v3123
  %v5068 = vpack.c.b16 %v3132, %v3124
  %v5069 = vpack.c.b16 %v3133, %v3125
  %v5070 = vpack.c.b16 %v3134, %v3126
  %v5071 = vpack.c.b16 %v3135, %v3127
  %v5072 = vpack.c.b16 %v3136, %v3128
  %v5073 = vpack.c.b16 %v3137, %v3129
  %v5074 = vpack.c.b16 %v3138, %v3130
  %v5075 = vpack.c.b16 %v3147, %v3139
  %v5076 = vpack.c.b16 %v3148, %v3140
  %v5077 = vpack.c.b16 %v3149, %v3141
  %v5078 = vpack.c.b16 %v3150, %v3142
  %v5079 = vpack.c.b16 %v3151, %v3143
  %v5080 = vpack.c.b16 %v3152, %v3144
  %v5081 = vpack.c.b16 %v3153, %v3145
  %v5082 = vpack.c.b16 %v3154, %v3146
  %v5083 = vpack.c.b16 %v3163, %v3155
  %v5084 = vpack.c.b16 %v3164, %v3156
  %v5085 = vpack.c.b16 %v3165, %v3157
  %v5086 = vpack.c.b16 %v3166, %v3158
  %v5087 = vpack.c.b16 %v3167, %v3159
  %v5088 = vpack.c.b16 %v3168, %v3160
  %v5089 = vpack.c.b16 %v3169, %v3161
  %v5090 = vpack.c.b16 %v3170, %v3162
  %v5091 = vpack.c.b16 %v3179, %v3171
  %v5092 = vpack.c.b16 %v3180, %v3172
  %v5093 = vpack.c.b16 %v3181, %v3173
  %v5094 = vpack.c.b16 %v3182, %v3174
  %v5095 = vpack.c.b16 %v3183, %v3175
  %v5096 = vpack.c.b16 %v3184, %v3176
  %v5097 = vpack.c.b16 %v3185, %v3177
  %v5098 = vpack.c.b16 %v3186, %v3178
  %v5099 = vpack.c.b16 %v3195, %v3187
  %v5100 = vpack.c.b16 %v3196, %v3188
  %v5101 = vpack.c.b16 %v3197, %v3189
  %v5102 = vpack.c.b16 %v3198, %v3190
  %v5103 = vpack.c.b16 %v3199, %v3191
  %v5104 = vpack.c.b16 %v3200, %v3192
  %v5105 = vpack.c.b16 %v3201, %v3193
  %v5106 = vpack.c.b16 %v3202, %v3194
  %v5107 = vpack.c.b16 %v3211, %v3203
  %v5108 = vpack.c.b16 %v3212, %v3204
  %v5109 = vpack.c.b16 %v3213, %v3205
  %v5110 = vpack.c.b16 %v3214, %v3206
  %v5111 = vpack.c.b16 %v3215, %v3207
  %v5112 = vpack.c.b16 %v3216, %v3208
  %v5113 = vpack.c.b16 %v3217, %v3209
  %v5114 = vpack.c.b16 %v3218, %v3210
  %v5115 = vpack.c.b16 %v3227, %v3219
  %v5116 = vpack.c.b16 %v3228, %v3220
  %v5117 = vpack.c.b16 %v3229, %v3221
  %v5118 = vpack.c.b16 %v3230, %v3222
  %v5119 = vpack.c.b16 %v3231, %v3223
  %v5120 = vpack.c.b16 %v3232, %v3224
  %v5121 = vpack.c.b16 %v3233, %v3225
  %v5122 = vpack.c.b16 %v3234, %v3226
  %v5123 = vpack.c.b16 %v3243, %v3235
  %v5124 = vpack.c.b16 %v3244, %v3236
  %v5125 = vpack.c.b16 %v3245, %v3237
  %v5126 = vpack.c.b16 %v3246, %v3238
  %v5127 = vpack.c.b16 %v3247, %v3239
  %v5128 = vpack.c.b16 %v3248, %v3240
  %v5129 = vpack.c.b16 %v3249, %v3241
  %v5130 = vpack.c.b16 %v3250, %v3242
  %v5131 = vpack.c.b16 %v3259, %v3251
  %v5132 = vpack.c.b16 %v3260, %v3252
  %v5133 = vpack.c.b16 %v3261, %v3253
  %v5134 = vpack.c.b16 %v3262, %v3254
  %v5135 = vpack.c.b16 %v3263, %v3255
  %v5136 = vpack.c.b16 %v3264, %v3256
  %v5137 = vpack.c.b16 %v3265, %v3257
  %v5138 = vpack.c.b16 %v3266, %v3258
  %v5139 = vpack.c.b16 %v3275, %v3267
  %v5140 = vpack.c.b16 %v3276, %v3268
  %v5141 = vpack.c.b16 %v3277, %v3269
  %v5142 = vpack.c.b16 %v3278, %v3270
  %v5143 = vpack.c.b16 %v3279, %v3271
  %v5144 = vpack.c.b16 %v3280, %v3272
  %v5145 = vpack.c.b16 %v3281, %v3273
  %v5146 = vpack.c.b16 %v3282, %v3274
  %v5147 = vpack.c.b16 %v3291, %v3283
  %v5148 = vpack.c.b16 %v3292, %v3284
  %v5149 = vpack.c.b16 %v3293, %v3285
  %v5150 = vpack.c.b16 %v3294, %v3286
  %v5151 = vpack.c.b16 %v3295, %v3287
  %v5152 = vpack.c.b16 %v3296, %v3288
  %v5153 = vpack.c.b16 %v3297, %v3289
  %v5154 = vpack.c.b16 %v3298, %v3290
  %v5155 = vpack.c.b16 %v3307, %v3299
  %v5156 = vpack.c.b16 %v3308, %v3300
  %v5157 = vpack.c.b16 %v3309, %v3301
  %v5158 = vpack.c.b16 %v3310, %v3302
  %v5159 = vpack.c.b16 %v3311, %v3303
  %v5160 = vpack.c.b16 %v3312, %v3304
  %v5161 = vpack.c.b16 %v3313, %v3305
  %v5162 = vpack.c.b16 %v3314, %v3306
  %v5163 = vpack.c.b16 %v3323, %v3315
  %v5164 = vpack.c.b16 %v3324, %v3316
  %v5165 = vpack.c.b16 %v3325, %v3317
  %v5166 = vpack.c.b16 %v3326, %v3318
  %v5167 = vpack.c.b16 %v3327, %v3319
  %v5168 = vpack.c.b16 %v3328, %v3320
  %v5169 = vpack.c.b16 %v3329, %v3321
  %v5170 = vpack.c.b16 %v3330, %v3322
  %v5171 = vpack.c.b16 %v3339, %v3331
  %v5172 = vpack.c.b16 %v3340, %v3332
  %v5173 = vpack.c.b16 %v3341, %v3333
  %v5174 = vpack.c.b16 %v3342, %v3334
  %v5175 = vpack.c.b16 %v3343, %v3335
  %v5176 = vpack.c.b16 %v3344, %v3336
  %v5177 = vpack.c.b16 %v3345, %v3337
  %v5178 = vpack.c.b16 %v3346, %v3338
  %v5179 = vpack.c.b16 %v3355, %v3347
  %v5180 = vpack.c.b16 %v3356, %v3348
  %v5181 = vpack.c.b16 %v3357, %v3349
  %v5182 = vpack.c.b16 %v3358, %v3350
  %v5183 = vpack.c.b16 %v3359, %v3351
  %v5184 = vpack.c.b16 %v3360, %v3352
  %v5185 = vpack.c.b16 %v3361, %v3353
  %v5186 = vpack.c.b16 %v3362, %v3354
  %v5187 = vpack.c.b16 %v3371, %v3363
  %v5188 = vpack.c.b16 %v3372, %v3364
  %v5189 = vpack.c.b16 %v3373, %v3365
  %v5190 = vpack.c.b16 %v3374, %v3366
  %v5191 = vpack.c.b16 %v3375, %v3367
  %v5192 = vpack.c.b16 %v3376, %v3368
  %v5193 = vpack.c.b16 %v3377, %v3369
  %v5194 = vpack.c.b16 %v3378, %v3370
  %v5195 = vpack.c.b16 %v3387, %v3379
  %v5196 = vpack.c.b16 %v3388, %v3380
  %v5197 = vpack.c.b16 %v3389, %v3381
  %v5198 = vpack.c.b16 %v3390, %v3382
  %v5199 = vpack.c.b16 %v3391, %v3383
  %v5200 = vpack.c.b16 %v3392, %v3384
  %v5201 = vpack.c.b16 %v3393, %v3385
  %v5202 = vpack.c.b16 %v3394, %v3386
  %v5203 = vpack.c.b16 %v3403, %v3395
  %v5204 = vpack.c.b16 %v3404, %v3396
  %v5205 = vpack.c.b16 %v3405, %v3397
  %v5206 = vpack.c.b16 %v3406, %v3398
  %v5207 = vpack.c.b16 %v3407, %v3399
  %v5208 = vpack.c.b16 %v3408, %v3400
  %v5209 = vpack.c.b16 %v3409, %v3401
  %v5210 = vpack.c.b16 %v3410, %v3402
  %v5211 = vpack.c.b16 %v3419, %v3411
  %v5212 = vpack.c.b16 %v3420, %v3412
  %v5213 = vpack.c.b16 %v3421, %v3413
  %v5214 = vpack.c.b16 %v3422, %v3414
  %v5215 = vpack.c.b16 %v3423, %v3415
  %v5216 = vpack.c.b16 %v3424, %v3416
  %v5217 = vpack.c.b16 %v3425, %v3417
  %v5218 = vpack.c.b16 %v3426, %v3418
  %v5219 = vpack.c.b16 %v3435, %v3427
  %v5220 = vpack.c.b16 %v3436, %v3428
  %v5221 = vpack.c.b16 %v3437, %v3429
  %v5222 = vpack.c.b16 %v3438, %v3430
  %v5223 = vpack.c.b16 %v3439, %v3431
  %v5224 = vpack.c.b16 %v3440, %v3432
  %v5225 = vpack.c.b16 %v3441, %v3433
  %v5226 = vpack.c.b16 %v3442, %v3434
  %v5227 = vpack.c.b16 %v3451, %v3443
  %v5228 = vpack.c.b16 %v3452, %v3444
  %v5229 = vpack.c.b16 %v3453, %v3445
  %v5230 = vpack.c.b16 %v3454, %v3446
  %v5231 = vpack.c.b16 %v3455, %v3447
  %v5232 = vpack.c.b16 %v3456, %v3448
  %v5233 = vpack.c.b16 %v3457, %v3449
  %v5234 = vpack.c.b16 %v3458, %v3450
  %v5235 = vpack.c.b16 %v3467, %v3459
  %v5236 = vpack.c.b16 %v3468, %v3460
  %v5237 = vpack.c.b16 %v3469, %v3461
  %v5238 = vpack.c.b16 %v3470, %v3462
  %v5239 = vpack.c.b16 %v3471, %v3463
  %v5240 = vpack.c.b16 %v3472, %v3464
  %v5241 = vpack.c.b16 %v3473, %v3465
  %v5242 = vpack.c.b16 %v3474, %v3466
  %v5243 = vpack.c.b16 %v3483, %v3475
  %v5244 = vpack.c.b16 %v3484, %v3476
  %v5245 = vpack.c.b16 %v3485, %v3477
  %v5246 = vpack.c.b16 %v3486, %v3478
  %v5247 = vpack.c.b16 %v3487, %v3479
  %v5248 = vpack.c.b16 %v3488, %v3480
  %v5249 = vpack.c.b16 %v3489, %v3481
  %v5250 = vpack.c.b16 %v3490, %v3482
  %v5251 = vpack.c.b16 %v3499, %v3491
  %v5252 = vpack.c.b16 %v3500, %v3492
  %v5253 = vpack.c.b16 %v3501, %v3493
  %v5254 = vpack.c.b16 %v3502, %v3494
  %v5255 = vpack.c.b16 %v3503, %v3495
  %v5256 = vpack.c.b16 %v3504, %v3496
  %v5257 = vpack.c.b16 %v3505, %v3497
  %v5258 = vpack.c.b16 %v3506, %v3498
  %v5259 = vpack.c.b16 %v3515, %v3507
  %v5260 = vpack.c.b16 %v3516, %v3508
  %v5261 = vpack.c.b16 %v3517, %v3509
  %v5262 = vpack.c.b16 %v3518, %v3510
  %v5263 = vpack.c.b16 %v3519, %v3511
  %v5264 = vpack.c.b16 %v3520, %v3512
  %v5265 = vpack.c.b16 %v3521, %v3513
  %v5266 = vpack.c.b16 %v3522, %v3514
  %v5267 = vpack.c.b16 %v3531, %v3523
  %v5268 = vpack.c.b16 %v3532, %v3524
  %v5269 = vpack.c.b16 %v3533, %v3525
  %v5270 = vpack.c.b16 %v3534, %v3526
  %v5271 = vpack.c.b16 %v3535, %v3527
  %v5272 = vpack.c.b16 %v3536, %v3528
  %v5273 = vpack.c.b16 %v3537, %v3529
  %v5274 = vpack.c.b16 %v3538, %v3530
  %v5275 = vpack.c.b16 %v3547, %v3539
  %v5276 = vpack.c.b16 %v3548, %v3540
  %v5277 = vpack.c.b16 %v3549, %v3541
  %v5278 = vpack.c.b16 %v3550, %v3542
  %v5279 = vpack.c.b16 %v3551, %v3543
  %v5280 = vpack.c.b16 %v3552, %v3544
  %v5281 = vpack.c.b16 %v3553, %v3545
  %v5282 = vpack.c.b16 %v3554, %v3546
  %v5283 = vpack.c.b16 %v3563, %v3555
  %v5284 = vpack.c.b16 %v3564, %v3556
  %v5285 = vpack.c.b16 %v3565, %v3557
  %v5286 = vpack.c.b16 %v3566, %v3558
  %v5287 = vpack.c.b16 %v3567, %v3559
  %v5288 = vpack.c.b16 %v3568, %v3560
  %v5289 = vpack.c.b16 %v3569, %v3561
  %v5290 = vpack.c.b16 %v3570, %v3562
  %v5291 = vpack.c.b16 %v3579, %v3571
  %v5292 = vpack.c.b16 %v3580, %v3572
  %v5293 = vpack.c.b16 %v3581, %v3573
  %v5294 = vpack.c.b16 %v3582, %v3574
  %v5295 = vpack.c.b16 %v3583, %v3575
  %v5296 = vpack.c.b16 %v3584, %v3576
  %v5297 = vpack.c.b16 %v3585, %v3577
  %v5298 = vpack.c.b16 %v3586, %v3578
  %v5299 = vpack.c.b16 %v3595, %v3587
  %v5300 = vpack.c.b16 %v3596, %v3588
  %v5301 = vpack.c.b16 %v3597, %v3589
  %v5302 = vpack.c.b16 %v3598, %v3590
  %v5303 = vpack.c.b16 %v3599, %v3591
  %v5304 = vpack.c.b16 %v3600, %v3592
  %v5305 = vpack.c.b16 %v3601, %v3593
  %v5306 = vpack.c.b16 %v3602, %v3594
  %v5307 = vpack.c.b16 %v3611, %v3603
  %v5308 = vpack.c.b16 %v3612, %v3604
  %v5309 = vpack.c.b16 %v3613, %v3605
  %v5310 = vpack.c.b16 %v3614, %v3606
  %v5311 = vpack.c.b16 %v3615, %v3607
  %v5312 = vpack.c.b16 %v3616, %v3608
  %v5313 = vpack.c.b16 %v3617, %v3609
  %v5314 = vpack.c.b16 %v3618, %v3610
  %v5315 = vpack.c.b16 %v3627, %v3619
  %v5316 = vpack.c.b16 %v3628, %v3620
  %v5317 = vpack.c.b16 %v3629, %v3621
  %v5318 = vpack.c.b16 %v3630, %v3622
  %v5319 = vpack.c.b16 %v3631, %v3623
  %v5320 = vpack.c.b16 %v3632, %v3624
  %v5321 = vpack.c.b16 %v3633, %v3625
  %v5322 = vpack.c.b16 %v3634, %v3626
  %v5323 = vpack.c.b16 %v3643, %v3635
  %v5324 = vpack.c.b16 %v3644, %v3636
  %v5325 = vpack.c.b16 %v3645, %v3637
  %v5326 = vpack.c.b16 %v3646, %v3638
  %v5327 = vpack.c.b16 %v3647, %v3639
  %v5328 = vpack.c.b16 %v3648, %v3640
  %v5329 = vpack.c.b16 %v3649, %v3641
  %v5330 = vpack.c.b16 %v3650, %v3642
  %v5331 = vpack.c.b16 %v3659, %v3651
  %v5332 = vpack.c.b16 %v3660, %v3652
  %v5333 = vpack.c.b16 %v3661, %v3653
  %v5334 = vpack.c.b16 %v3662, %v3654
  %v5335 = vpack.c.b16 %v3663, %v3655
  %v5336 = vpack.c.b16 %v3664, %v3656
  %v5337 = vpack.c.b16 %v3665, %v3657
  %v5338 = vpack.c.b16 %v3666, %v3658
  %v5339 = vpack.c.b16 %v3675, %v3667
  %v5340 = vpack.c.b16 %v3676, %v3668
  %v5341 = vpack.c.b16 %v3677, %v3669
  %v5342 = vpack.c.b16 %v3678, %v3670
  %v5343 = vpack.c.b16 %v3679, %v3671
  %v5344 = vpack.c.b16 %v3680, %v3672
  %v5345 = vpack.c.b16 %v3681, %v3673
  %v5346 = vpack.c.b16 %v3682, %v3674
  %v5347 = vpack.c.b16 %v3691, %v3683
  %v5348 = vpack.c.b16 %v3692, %v3684
  %v5349 = vpack.c.b16 %v3693, %v3685
  %v5350 = vpack.c.b16 %v3694, %v3686
  %v5351 = vpack.c.b16 %v3695, %v3687
  %v5352 = vpack.c.b16 %v3696, %v3688
  %v5353 = vpack.c.b16 %v3697, %v3689
  %v5354 = vpack.c.b16 %v3698, %v3690
  %v5355 = vpack.c.b16 %v3707, %v3699
  %v5356 = vpack.c.b16 %v3708, %v3700
  %v5357 = vpack.c.b16 %v3709, %v3701
  %v5358 = vpack.c.b16 %v3710, %v3702
  %v5359 = vpack.c.b16 %v3711, %v3703
  %v5360 = vpack.c.b16 %v3712, %v3704
  %v5361 = vpack.c.b16 %v3713, %v3705
  %v5362 = vpack.c.b16 %v3714, %v3706
  %v5363 = vpack.c.b16 %v3723, %v3715
  %v5364 = vpack.c.b16 %v3724, %v3716
  %v5365 = vpack.c.b16 %v3725, %v3717
  %v5366 = vpack.c.b16 %v3726, %v3718
  %v5367 = vpack.c.b16 %v3727, %v3719
  %v5368 = vpack.c.b16 %v3728, %v3720
  %v5369 = vpack.c.b16 %v3729, %v3721
  %v5370 = vpack.c.b16 %v3730, %v3722
  %v5371 = vpack.c.b16 %v3739, %v3731
  %v5372 = vpack.c.b16 %v3740, %v3732
  %v5373 = vpack.c.b16 %v3741, %v3733
  %v5374 = vpack.c.b16 %v3742, %v3734
  %v5375 = vpack.c.b16 %v3743, %v3735
  %v5376 = vpack.c.b16 %v3744, %v3736
  %v5377 = vpack.c.b16 %v3745, %v3737
  %v5378 = vpack.c.b16 %v3746, %v3738
  %v5379 = vpack.c.b16 %v3755, %v3747
  %v5380 = vpack.c.b16 %v3756, %v3748
  %v5381 = vpack.c.b16 %v3757, %v3749
  %v5382 = vpack.c.b16 %v3758, %v3750
  %v5383 = vpack.c.b16 %v3759, %v3751
  %v5384 = vpack.c.b16 %v3760, %v3752
  %v5385 = vpack.c.b16 %v3761, %v3753
  %v5386 = vpack.c.b16 %v3762, %v3754
  %v5387 = vpack.c.b16 %v3771, %v3763
  %v5388 = vpack.c.b16 %v3772, %v3764
  %v5389 = vpack.c.b16 %v3773, %v3765
  %v5390 = vpack.c.b16 %v3774, %v3766
  %v5391 = vpack.c.b16 %v3775, %v3767
  %v5392 = vpack.c.b16 %v3776, %v3768
  %v5393 = vpack.c.b16 %v3777, %v3769
  %v5394 = vpack.c.b16 %v3778, %v3770
  %v5395 = vpack.c.b16 %v3787, %v3779
  %v5396 = vpack.c.b16 %v3788, %v3780
  %v5397 = vpack.c.b16 %v3789, %v3781
  %v5398 = vpack.c.b16 %v3790, %v3782
  %v5399 = vpack.c.b16 %v3791, %v3783
  %v5400 = vpack.c.b16 %v3792, %v3784
  %v5401 = vpack.c.b16 %v3793, %v3785
  %v5402 = vpack.c.b16 %v3794, %v3786
  %v5403 = vpack.c.b16 %v3803, %v3795
  %v5404 = vpack.c.b16 %v3804, %v3796
  %v5405 = vpack.c.b16 %v3805, %v3797
  %v5406 = vpack.c.b16 %v3806, %v3798
  %v5407 = vpack.c.b16 %v3807, %v3799
  %v5408 = vpack.c.b16 %v3808, %v3800
  %v5409 = vpack.c.b16 %v3809, %v3801
  %v5410 = vpack.c.b16 %v3810, %v3802
  %v5411 = vpack.c.b16 %v3819, %v3811
  %v5412 = vpack.c.b16 %v3820, %v3812
  %v5413 = vpack.c.b16 %v3821, %v3813
  %v5414 = vpack.c.b16 %v3822, %v3814
  %v5415 = vpack.c.b16 %v3823, %v3815
  %v5416 = vpack.c.b16 %v3824, %v3816
  %v5417 = vpack.c.b16 %v3825, %v3817
  %v5418 = vpack.c.b16 %v3826, %v3818
  %v5419 = vpack.c.b16 %v3835, %v3827
  %v5420 = vpack.c.b16 %v3836, %v3828
  %v5421 = vpack.c.b16 %v3837, %v3829
  %v5422 = vpack.c.b16 %v3838, %v3830
  %v5423 = vpack.c.b16 %v3839, %v3831
  %v5424 = vpack.c.b16 %v3840, %v3832
  %v5425 = vpack.c.b16 %v3841, %v3833
  %v5426 = vpack.c.b16 %v3842, %v3834
  %v5427 = vpack.c.b16 %v3851, %v3843
  %v5428 = vpack.c.b16 %v3852, %v3844
  %v5429 = vpack.c.b16 %v3853, %v3845
  %v5430 = vpack.c.b16 %v3854, %v3846
  %v5431 = vpack.c.b16 %v3855, %v3847
  %v5432 = vpack.c.b16 %v3856, %v3848
  %v5433 = vpack.c.b16 %v3857, %v3849
  %v5434 = vpack.c.b16 %v3858, %v3850
  %v5435 = vpack.c.b16 %v3867, %v3859
  %v5436 = vpack.c.b16 %v3868, %v3860
  %v5437 = vpack.c.b16 %v3869, %v3861
  %v5438 = vpack.c.b16 %v3870, %v3862
  %v5439 = vpack.c.b16 %v3871, %v3863
  %v5440 = vpack.c.b16 %v3872, %v3864
  %v5441 = vpack.c.b16 %v3873, %v3865
  %v5442 = vpack.c.b16 %v3874, %v3866
  %v5443 = vpack.c.b16 %v3883, %v3875
  %v5444 = vpack.c.b16 %v3884, %v3876
  %v5445 = vpack.c.b16 %v3885, %v3877
  %v5446 = vpack.c.b16 %v3886, %v3878
  %v5447 = vpack.c.b16 %v3887, %v3879
  %v5448 = vpack.c.b16 %v3888, %v3880
  %v5449 = vpack.c.b16 %v3889, %v3881
  %v5450 = vpack.c.b16 %v3890, %v3882
  %v5451 = vpack.c.b16 %v3899, %v3891
  %v5452 = vpack.c.b16 %v3900, %v3892
  %v5453 = vpack.c.b16 %v3901, %v3893
  %v5454 = vpack.c.b16 %v3902, %v3894
  %v5455 = vpack.c.b16 %v3903, %v3895
  %v5456 = vpack.c.b16 %v3904, %v3896
  %v5457 = vpack.c.b16 %v3905, %v3897
  %v5458 = vpack.c.b16 %v3906, %v3898
  %v5459 = vpack.c.b16 %v3915, %v3907
  %v5460 = vpack.c.b16 %v3916, %v3908
  %v5461 = vpack.c.b16 %v3917, %v3909
  %v5462 = vpack.c.b16 %v3918, %v3910
  %v5463 = vpack.c.b16 %v3919, %v3911
  %v5464 = vpack.c.b16 %v3920, %v3912
  %v5465 = vpack.c.b16 %v3921, %v3913
  %v5466 = vpack.c.b16 %v3922, %v3914
  %v5467 = vpack.c.b16 %v3931, %v3923
  %v5468 = vpack.c.b16 %v3932, %v3924
  %v5469 = vpack.c.b16 %v3933, %v3925
  %v5470 = vpack.c.b16 %v3934, %v3926
  %v5471 = vpack.c.b16 %v3935, %v3927
  %v5472 = vpack.c.b16 %v3936, %v3928
  %v5473 = vpack.c.b16 %v3937, %v3929
  %v5474 = vpack.c.b16 %v3938, %v3930
  %v5475 = vpack.c.b16 %v3947, %v3939
  %v5476 = vpack.c.b16 %v3948, %v3940
  %v5477 = vpack.c.b16 %v3949, %v3941
  %v5478 = vpack.c.b16 %v3950, %v3942
  %v5479 = vpack.c.b16 %v3951, %v3943
  %v5480 = vpack.c.b16 %v3952, %v3944
  %v5481 = vpack.c.b16 %v3953, %v3945
  %v5482 = vpack.c.b16 %v3954, %v3946
  %v5483 = vpack.c.b16 %v3963, %v3955
  %v5484 = vpack.c.b16 %v3964, %v3956
  %v5485 = vpack.c.b16 %v3965, %v3957
  %v5486 = vpack.c.b16 %v3966, %v3958
  %v5487 = vpack.c.b16 %v3967, %v3959
  %v5488 = vpack.c.b16 %v3968, %v3960
  %v5489 = vpack.c.b16 %v3969, %v3961
  %v5490 = vpack.c.b16 %v3970, %v3962
  %v5491 = vpack.c.b16 %v3979, %v3971
  %v5492 = vpack.c.b16 %v3980, %v3972
  %v5493 = vpack.c.b16 %v3981, %v3973
  %v5494 = vpack.c.b16 %v3982, %v3974
  %v5495 = vpack.c.b16 %v3983, %v3975
  %v5496 = vpack.c.b16 %v3984, %v3976
  %v5497 = vpack.c.b16 %v3985, %v3977
  %v5498 = vpack.c.b16 %v3986, %v3978
  %v5499 = vpack.c.b16 %v3995, %v3987
  %v5500 = vpack.c.b16 %v3996, %v3988
  %v5501 = vpack.c.b16 %v3997, %v3989
  %v5502 = vpack.c.b16 %v3998, %v3990
  %v5503 = vpack.c.b16 %v3999, %v3991
  %v5504 = vpack.c.b16 %v4000, %v3992
  %v5505 = vpack.c.b16 %v4001, %v3993
  %v5506 = vpack.c.b16 %v4002, %v3994
  %v5507 = vpack.c.b16 %v4011, %v4003
  %v5508 = vpack.c.b16 %v4012, %v4004
  %v5509 = vpack.c.b16 %v4013, %v4005
  %v5510 = vpack.c.b16 %v4014, %v4006
  %v5511 = vpack.c.b16 %v4015, %v4007
  %v5512 = vpack.c.b16 %v4016, %v4008
  %v5513 = vpack.c.b16 %v4017, %v4009
  %v5514 = vpack.c.b16 %v4018, %v4010
  %v5515 = vpack.c.b16 %v4027, %v4019
  %v5516 = vpack.c.b16 %v4028, %v4020
  %v5517 = vpack.c.b16 %v4029, %v4021
  %v5518 = vpack.c.b16 %v4030, %v4022
  %v5519 = vpack.c.b16 %v4031, %v4023
  %v5520 = vpack.c.b16 %v4032, %v4024
  %v5521 = vpack.c.b16 %v4033, %v4025
  %v5522 = vpack.c.b16 %v4034, %v4026
  %v5523 = vpack.c.b16 %v4043, %v4035
  %v5524 = vpack.c.b16 %v4044, %v4036
  %v5525 = vpack.c.b16 %v4045, %v4037
  %v5526 = vpack.c.b16 %v4046, %v4038
  %v5527 = vpack.c.b16 %v4047, %v4039
  %v5528 = vpack.c.b16 %v4048, %v4040
  %v5529 = vpack.c.b16 %v4049, %v4041
  %v5530 = vpack.c.b16 %v4050, %v4042
  %v5531 = vpack.c.b16 %v4059, %v4051
  %v5532 = vpack.c.b16 %v4060, %v4052
  %v5533 = vpack.c.b16 %v4061, %v4053
  %v5534 = vpack.c.b16 %v4062, %v4054
  %v5535 = vpack.c.b16 %v4063, %v4055
  %v5536 = vpack.c.b16 %v4064, %v4056
  %v5537 = vpack.c.b16 %v4065, %v4057
  %v5538 = vpack.c.b16 %v4066, %v4058
  %v5539 = vpack.c.b16 %v4075, %v4067
  %v5540 = vpack.c.b16 %v4076, %v4068
  %v5541 = vpack.c.b16 %v4077, %v4069
  %v5542 = vpack.c.b16 %v4078, %v4070
  %v5543 = vpack.c.b16 %v4079, %v4071
  %v5544 = vpack.c.b16 %v4080, %v4072
  %v5545 = vpack.c.b16 %v4081, %v4073
  %v5546 = vpack.c.b16 %v4082, %v4074
  %v5547 = vpack.c.b16 %v4091, %v4083
  %v5548 = vpack.c.b16 %v4092, %v4084
  %v5549 = vpack.c.b16 %v4093, %v4085
  %v5550 = vpack.c.b16 %v4094, %v4086
  %v5551 = vpack.c.b16 %v4095, %v4087
  %v5552 = vpack.c.b16 %v4096, %v4088
  %v5553 = vpack.c.b16 %v4097, %v4089
  %v5554 = vpack.c.b16 %v4098, %v4090
  %v5555 = vpack.c.b16 %v4107, %v4099
  %v5556 = vpack.c.b16 %v4108, %v4100
  %v5557 = vpack.c.b16 %v4109, %v4101
  %v5558 = vpack.c.b16 %v4110, %v4102
  %v5559 = vpack.c.b16 %v4111, %v4103
  %v5560 = vpack.c.b16 %v4112, %v4104
  %v5561 = vpack.c.b16 %v4113, %v4105
  %v5562 = vpack.c.b16 %v4114, %v4106
  %v5563 = vpack.c.b16 %v4123, %v4115
  %v5564 = vpack.c.b16 %v4124, %v4116
  %v5565 = vpack.c.b16 %v4125, %v4117
  %v5566 = vpack.c.b16 %v4126, %v4118
  %v5567 = vpack.c.b16 %v4127, %v4119
  %v5568 = vpack.c.b16 %v4128, %v4120
  %v5569 = vpack.c.b16 %v4129, %v4121
  %v5570 = vpack.c.b16 %v4130, %v4122
  %v5571 = vpack.c.b16 %v4139, %v4131
  %v5572 = vpack.c.b16 %v4140, %v4132
  %v5573 = vpack.c.b16 %v4141, %v4133
  %v5574 = vpack.c.b16 %v4142, %v4134
  %v5575 = vpack.c.b16 %v4143, %v4135
  %v5576 = vpack.c.b16 %v4144, %v4136
  %v5577 = vpack.c.b16 %v4145, %v4137
  %v5578 = vpack.c.b16 %v4146, %v4138
  %v5579 = vpack.c.b16 %v4155, %v4147
  %v5580 = vpack.c.b16 %v4156, %v4148
  %v5581 = vpack.c.b16 %v4157, %v4149
  %v5582 = vpack.c.b16 %v4158, %v4150
  %v5583 = vpack.c.b16 %v4159, %v4151
  %v5584 = vpack.c.b16 %v4160, %v4152
  %v5585 = vpack.c.b16 %v4161, %v4153
  %v5586 = vpack.c.b16 %v4162, %v4154
  %v5587 = vpack.c.b16 %v4171, %v4163
  %v5588 = vpack.c.b16 %v4172, %v4164
  %v5589 = vpack.c.b16 %v4173, %v4165
  %v5590 = vpack.c.b16 %v4174, %v4166
  %v5591 = vpack.c.b16 %v4175, %v4167
  %v5592 = vpack.c.b16 %v4176, %v4168
  %v5593 = vpack.c.b16 %v4177, %v4169
  %v5594 = vpack.c.b16 %v4178, %v4170
  %v5595 = vpack.c.b16 %v4187, %v4179
  %v5596 = vpack.c.b16 %v4188, %v4180
  %v5597 = vpack.c.b16 %v4189, %v4181
  %v5598 = vpack.c.b16 %v4190, %v4182
  %v5599 = vpack.c.b16 %v4191, %v4183
  %v5600 = vpack.c.b16 %v4192, %v4184
  %v5601 = vpack.c.b16 %v4193, %v4185
  %v5602 = vpack.c.b16 %v4194, %v4186
  %v5603 = vpack.c.b16 %v4203, %v4195
  %v5604 = vpack.c.b16 %v4204, %v4196
  %v5605 = vpack.c.b16 %v4205, %v4197
  %v5606 = vpack.c.b16 %v4206, %v4198
  %v5607 = vpack.c.b16 %v4207, %v4199
  %v5608 = vpack.c.b16 %v4208, %v4200
  %v5609 = vpack.c.b16 %v4209, %v4201
  %v5610 = vpack.c.b16 %v4210, %v4202
  %v5611 = vpack.c.b16 %v4219, %v4211
  %v5612 = vpack.c.b16 %v4220, %v4212
  %v5613 = vpack.c.b16 %v4221, %v4213
  %v5614 = vpack.c.b16 %v4222, %v4214
  %v5615 = vpack.c.b16 %v4223, %v4215
  %v5616 = vpack.c.b16 %v4224, %v4216
  %v5617 = vpack.c.b16 %v4225, %v4217
  %v5618 = vpack.c.b16 %v4226, %v4218
  %v5619 = vpack.c.b16 %v4235, %v4227
  %v5620 = vpack.c.b16 %v4236, %v4228
  %v5621 = vpack.c.b16 %v4237, %v4229
  %v5622 = vpack.c.b16 %v4238, %v4230
  %v5623 = vpack.c.b16 %v4239, %v4231
  %v5624 = vpack.c.b16 %v4240, %v4232
  %v5625 = vpack.c.b16 %v4241, %v4233
  %v5626 = vpack.c.b16 %v4242, %v4234
  %v5627 = vpack.c.b16 %v4251, %v4243
  %v5628 = vpack.c.b16 %v4252, %v4244
  %v5629 = vpack.c.b16 %v4253, %v4245
  %v5630 = vpack.c.b16 %v4254, %v4246
  %v5631 = vpack.c.b16 %v4255, %v4247
  %v5632 = vpack.c.b16 %v4256, %v4248
  %v5633 = vpack.c.b16 %v4257, %v4249
  %v5634 = vpack.c.b16 %v4258, %v4250
  %v5635 = vpack.c.b16 %v4267, %v4259
  %v5636 = vpack.c.b16 %v4268, %v4260
  %v5637 = vpack.c.b16 %v4269, %v4261
  %v5638 = vpack.c.b16 %v4270, %v4262
  %v5639 = vpack.c.b16 %v4271, %v4263
  %v5640 = vpack.c.b16 %v4272, %v4264
  %v5641 = vpack.c.b16 %v4273, %v4265
  %v5642 = vpack.c.b16 %v4274, %v4266
  %v5643 = vpack.c.b16 %v4283, %v4275
  %v5644 = vpack.c.b16 %v4284, %v4276
  %v5645 = vpack.c.b16 %v4285, %v4277
  %v5646 = vpack.c.b16 %v4286, %v4278
  %v5647 = vpack.c.b16 %v4287, %v4279
  %v5648 = vpack.c.b16 %v4288, %v4280
  %v5649 = vpack.c.b16 %v4289, %v4281
  %v5650 = vpack.c.b16 %v4290, %v4282
  %v5651 = vpack.c.b16 %v4299, %v4291
  %v5652 = vpack.c.b16 %v4300, %v4292
  %v5653 = vpack.c.b16 %v4301, %v4293
  %v5654 = vpack.c.b16 %v4302, %v4294
  %v5655 = vpack.c.b16 %v4303, %v4295
  %v5656 = vpack.c.b16 %v4304, %v4296
  %v5657 = vpack.c.b16 %v4305, %v4297
  %v5658 = vpack.c.b16 %v4306, %v4298
  %v5659 = vpack.c.b16 %v4315, %v4307
  %v5660 = vpack.c.b16 %v4316, %v4308
  %v5661 = vpack.c.b16 %v4317, %v4309
  %v5662 = vpack.c.b16 %v4318, %v4310
  %v5663 = vpack.c.b16 %v4319, %v4311
  %v5664 = vpack.c.b16 %v4320, %v4312
  %v5665 = vpack.c.b16 %v4321, %v4313
  %v5666 = vpack.c.b16 %v4322, %v4314
  %v5667 = vpack.c.b16 %v4331, %v4323
  %v5668 = vpack.c.b16 %v4332, %v4324
  %v5669 = vpack.c.b16 %v4333, %v4325
  %v5670 = vpack.c.b16 %v4334, %v4326
  %v5671 = vpack.c.b16 %v4335, %v4327
  %v5672 = vpack.c.b16 %v4336, %v4328
  %v5673 = vpack.c.b16 %v4337, %v4329
  %v5674 = vpack.c.b16 %v4338, %v4330
  %v5675 = vpack.c.b16 %v4347, %v4339
  %v5676 = vpack.c.b16 %v4348, %v4340
  %v5677 = vpack.c.b16 %v4349, %v4341
  %v5678 = vpack.c.b16 %v4350, %v4342
  %v5679 = vpack.c.b16 %v4351, %v4343
  %v5680 = vpack.c.b16 %v4352, %v4344
  %v5681 = vpack.c.b16 %v4353, %v4345
  %v5682 = vpack.c.b16 %v4354, %v4346
  %v5683 = vpack.c.b16 %v4363, %v4355
  %v5684 = vpack.c.b16 %v4364, %v4356
  %v5685 = vpack.c.b16 %v4365, %v4357
  %v5686 = vpack.c.b16 %v4366, %v4358
  %v5687 = vpack.c.b16 %v4367, %v4359
  %v5688 = vpack.c.b16 %v4368, %v4360
  %v5689 = vpack.c.b16 %v4369, %v4361
  %v5690 = vpack.c.b16 %v4370, %v4362
  %v5691 = vpack.c.b16 %v4379, %v4371
  %v5692 = vpack.c.b16 %v4380, %v4372
  %v5693 = vpack.c.b16 %v4381, %v4373
  %v5694 = vpack.c.b16 %v4382, %v4374
  %v5695 = vpack.c.b16 %v4383, %v4375
  %v5696 = vpack.c.b16 %v4384, %v4376
  %v5697 = vpack.c.b16 %v4385, %v4377
  %v5698 = vpack.c.b16 %v4386, %v4378
  %v5699 = vpack.c.b16 %v4395, %v4387
  %v5700 = vpack.c.b16 %v4396, %v4388
  %v5701 = vpack.c.b16 %v4397, %v4389
  %v5702 = vpack.c.b16 %v4398, %v4390
  %v5703 = vpack.c.b16 %v4399, %v4391
  %v5704 = vpack.c.b16 %v4400, %v4392
  %v5705 = vpack.c.b16 %v4401, %v4393
  %v5706 = vpack.c.b16 %v4402, %v4394
  %v5707 = vpack.c.b16 %v4411, %v4403
  %v5708 = vpack.c.b16 %v4412, %v4404
  %v5709 = vpack.c.b16 %v4413, %v4405
  %v5710 = vpack.c.b16 %v4414, %v4406
  %v5711 = vpack.c.b16 %v4415, %v4407
  %v5712 = vpack.c.b16 %v4416, %v4408
  %v5713 = vpack.c.b16 %v4417, %v4409
  %v5714 = vpack.c.b16 %v4418, %v4410
  %v5715 = vpack.c.b16 %v4427, %v4419
  %v5716 = vpack.c.b16 %v4428, %v4420
  %v5717 = vpack.c.b16 %v4429, %v4421
  %v5718 = vpack.c.b16 %v4430, %v4422
  %v5719 = vpack.c.b16 %v4431, %v4423
  %v5720 = vpack.c.b16 %v4432, %v4424
  %v5721 = vpack.c.b16 %v4433, %v4425
  %v5722 = vpack.c.b16 %v4434, %v4426
  %v5723 = vpack.c.b16 %v4443, %v4435
  %v5724 = vpack.c.b16 %v4444, %v4436
  %v5725 = vpack.c.b16 %v4445, %v4437
  %v5726 = vpack.c.b16 %v4446, %v4438
  %v5727 = vpack.c.b16 %v4447, %v4439
  %v5728 = vpack.c.b16 %v4448, %v4440
  %v5729 = vpack.c.b16 %v4449, %v4441
  %v5730 = vpack.c.b16 %v4450, %v4442
  %v5731 = vpack.c.b16 %v4459, %v4451
  %v5732 = vpack.c.b16 %v4460, %v4452
  %v5733 = vpack.c.b16 %v4461, %v4453
  %v5734 = vpack.c.b16 %v4462, %v4454
  %v5735 = vpack.c.b16 %v4463, %v4455
  %v5736 = vpack.c.b16 %v4464, %v4456
  %v5737 = vpack.c.b16 %v4465, %v4457
  %v5738 = vpack.c.b16 %v4466, %v4458
  %v5739 = vpack.c.b16 %v4475, %v4467
  %v5740 = vpack.c.b16 %v4476, %v4468
  %v5741 = vpack.c.b16 %v4477, %v4469
  %v5742 = vpack.c.b16 %v4478, %v4470
  %v5743 = vpack.c.b16 %v4479, %v4471
  %v5744 = vpack.c.b16 %v4480, %v4472
  %v5745 = vpack.c.b16 %v4481, %v4473
  %v5746 = vpack.c.b16 %v4482, %v4474
  %v5747 = vpack.c.b16 %v4491, %v4483
  %v5748 = vpack.c.b16 %v4492, %v4484
  %v5749 = vpack.c.b16 %v4493, %v4485
  %v5750 = vpack.c.b16 %v4494, %v4486
  %v5751 = vpack.c.b16 %v4495, %v4487
  %v5752 = vpack.c.b16 %v4496, %v4488
  %v5753 = vpack.c.b16 %v4497, %v4489
  %v5754 = vpack.c.b16 %v4498, %v4490
  %v5755 = vpack.c.b16 %v4507, %v4499
  %v5756 = vpack.c.b16 %v4508, %v4500
  %v5757 = vpack.c.b16 %v4509, %v4501
  %v5758 = vpack.c.b16 %v4510, %v4502
  %v5759 = vpack.c.b16 %v4511, %v4503
  %v5760 = vpack.c.b16 %v4512, %v4504
  %v5761 = vpack.c.b16 %v4513, %v4505
  %v5762 = vpack.c.b16 %v4514, %v4506
  %v5763 = vpack.c.b16 %v4523, %v4515
  %v5764 = vpack.c.b16 %v4524, %v4516
  %v5765 = vpack.c.b16 %v4525, %v4517
  %v5766 = vpack.c.b16 %v4526, %v4518
  %v5767 = vpack.c.b16 %v4527, %v4519
  %v5768 = vpack.c.b16 %v4528, %v4520
  %v5769 = vpack.c.b16 %v4529, %v4521
  %v5770 = vpack.c.b16 %v4530, %v4522
  %v5771 = vpack.c.b16 %v4539, %v4531
  %v5772 = vpack.c.b16 %v4540, %v4532
  %v5773 = vpack.c.b16 %v4541, %v4533
  %v5774 = vpack.c.b16 %v4542, %v4534
  %v5775 = vpack.c.b16 %v4543, %v4535
  %v5776 = vpack.c.b16 %v4544, %v4536
  %v5777 = vpack.c.b16 %v4545, %v4537
  %v5778 = vpack.c.b16 %v4546, %v4538
  %v5779 = vpack.c.b16 %v4555, %v4547
  %v5780 = vpack.c.b16 %v4556, %v4548
  %v5781 = vpack.c.b16 %v4557, %v4549
  %v5782 = vpack.c.b16 %v4558, %v4550
  %v5783 = vpack.c.b16 %v4559, %v4551
  %v5784 = vpack.c.b16 %v4560, %v4552
  %v5785 = vpack.c.b16 %v4561, %v4553
  %v5786 = vpack.c.b16 %v4562, %v4554
  %v5787 = vpack.c.b16 %v4571, %v4563
  %v5788 = vpack.c.b16 %v4572, %v4564
  %v5789 = vpack.c.b16 %v4573, %v4565
  %v5790 = vpack.c.b16 %v4574, %v4566
  %v5791 = vpack.c.b16 %v4575, %v4567
  %v5792 = vpack.c.b16 %v4576, %v4568
  %v5793 = vpack.c.b16 %v4577, %v4569
  %v5794 = vpack.c.b16 %v4578, %v4570
  %v5795 = vpack.c.b16 %v4587, %v4579
  %v5796 = vpack.c.b16 %v4588, %v4580
  %v5797 = vpack.c.b16 %v4589, %v4581
  %v5798 = vpack.c.b16 %v4590, %v4582
  %v5799 = vpack.c.b16 %v4591, %v4583
  %v5800 = vpack.c.b16 %v4592, %v4584
  %v5801 = vpack.c.b16 %v4593, %v4585
  %v5802 = vpack.c.b16 %v4594, %v4586
  %v5803 = vpack.c.b16 %v4603, %v4595
  %v5804 = vpack.c.b16 %v4604, %v4596
  %v5805 = vpack.c.b16 %v4605, %v4597
  %v5806 = vpack.c.b16 %v4606, %v4598
  %v5807 = vpack.c.b16 %v4607, %v4599
  %v5808 = vpack.c.b16 %v4608, %v4600
  %v5809 = vpack.c.b16 %v4609, %v4601
  %v5810 = vpack.c.b16 %v4610, %v4602
  %v5811 = vpack.c.b16 %v4619, %v4611
  %v5812 = vpack.c.b16 %v4620, %v4612
  %v5813 = vpack.c.b16 %v4621, %v4613
  %v5814 = vpack.c.b16 %v4622, %v4614
  %v5815 = vpack.c.b16 %v4623, %v4615
  %v5816 = vpack.c.b16 %v4624, %v4616
  %v5817 = vpack.c.b16 %v4625, %v4617
  %v5818 = vpack.c.b16 %v4626, %v4618
  %v5819 = vpack.c.b16 %v4635, %v4627
  %v5820 = vpack.c.b16 %v4636, %v4628
  %v5821 = vpack.c.b16 %v4637, %v4629
  %v5822 = vpack.c.b16 %v4638, %v4630
  %v5823 = vpack.c.b16 %v4639, %v4631
  %v5824 = vpack.c.b16 %v4640, %v4632
  %v5825 = vpack.c.b16 %v4641, %v4633
  %v5826 = vpack.c.b16 %v4642, %v4634
  %v5827 = vpack.c.b16 %v4651, %v4643
  %v5828 = vpack.c.b16 %v4652, %v4644
  %v5829 = vpack.c.b16 %v4653, %v4645
  %v5830 = vpack.c.b16 %v4654, %v4646
  %v5831 = vpack.c.b16 %v4655, %v4647
  %v5832 = vpack.c.b16 %v4656, %v4648
  %v5833 = vpack.c.b16 %v4657, %v4649
  %v5834 = vpack.c.b16 %v4658, %v4650
  %v5835 = vpack.c.b16 %v4667, %v4659
  %v5836 = vpack.c.b16 %v4668, %v4660
  %v5837 = vpack.c.b16 %v4669, %v4661
  %v5838 = vpack.c.b16 %v4670, %v4662
  %v5839 = vpack.c.b16 %v4671, %v4663
  %v5840 = vpack.c.b16 %v4672, %v4664
  %v5841 = vpack.c.b16 %v4673, %v4665
  %v5842 = vpack.c.b16 %v4674, %v4666
  %v5843 = vpack.c.b16 %v4683, %v4675
  %v5844 = vpack.c.b16 %v4684, %v4676
  %v5845 = vpack.c.b16 %v4685, %v4677
  %v5846 = vpack.c.b16 %v4686, %v4678
  %v5847 = vpack.c.b16 %v4687, %v4679
  %v5848 = vpack.c.b16 %v4688, %v4680
  %v5849 = vpack.c.b16 %v4689, %v4681
  %v5850 = vpack.c.b16 %v4690, %v4682
  %v5851 = vpack.c.b16 %v4699, %v4691
  %v5852 = vpack.c.b16 %v4700, %v4692
  %v5853 = vpack.c.b16 %v4701, %v4693
  %v5854 = vpack.c.b16 %v4702, %v4694
  %v5855 = vpack.c.b16 %v4703, %v4695
  %v5856 = vpack.c.b16 %v4704, %v4696
  %v5857 = vpack.c.b16 %v4705, %v4697
  %v5858 = vpack.c.b16 %v4706, %v4698
  %7011 = vmatprep.subr.bf16.mxu0 %v4708
  %7012 = vmatpush1.bf16.msra.mxu0 %v4707
  %7013 = vmatprep.subr.bf16.mxu0 %v4716
  %7014 = vmatpush1.bf16.msra.mxu0 %v4715
  %7015 = vmatprep.subr.bf16.mxu0 %v4724
  %7016 = vmatpush1.bf16.msra.mxu0 %v4723
  %7017 = vmatprep.subr.bf16.mxu0 %v4732
  %7018 = vmatpush1.bf16.msra.mxu0 %v4731
  %7019 = vmatprep.subr.bf16.mxu0 %v4740
  %7020 = vmatpush1.bf16.msra.mxu0 %v4739
  %7021 = vmatprep.subr.bf16.mxu0 %v4748
  %7022 = vmatpush1.bf16.msra.mxu0 %v4747
  %7023 = vmatprep.subr.bf16.mxu0 %v4756
  %7024 = vmatpush1.bf16.msra.mxu0 %v4755
  %7025 = vmatprep.subr.bf16.mxu0 %v4764
  %7026 = vmatpush1.bf16.msra.mxu0 %v4763
  %7027 = vmatprep.subr.bf16.mxu0 %v4772
  %7028 = vmatpush1.bf16.msra.mxu0 %v4771
  %7029 = vmatprep.subr.bf16.mxu0 %v4780
  %7030 = vmatpush1.bf16.msra.mxu0 %v4779
  %7031 = vmatprep.subr.bf16.mxu0 %v4788
  %7032 = vmatpush1.bf16.msra.mxu0 %v4787
  %7033 = vmatprep.subr.bf16.mxu0 %v4796
  %7034 = vmatpush1.bf16.msra.mxu0 %v4795
  %7035 = vmatprep.subr.bf16.mxu0 %v4804
  %7036 = vmatpush1.bf16.msra.mxu0 %v4803
  %7037 = vmatprep.subr.bf16.mxu0 %v4812
  %7038 = vmatpush1.bf16.msra.mxu0 %v4811
  %7039 = vmatprep.subr.bf16.mxu0 %v4820
  %7040 = vmatpush1.bf16.msra.mxu0 %v4819
  %7041 = vmatprep.subr.bf16.mxu0 %v4828
  %7042 = vmatpush1.bf16.msra.mxu0 %v4827
  %7043 = vmatprep.mubr.bf16.mxu0 %v40
  %7044 = vmatmul.mubr.bf16.gmra.mrb[0].mxu0 %v39
  %v7045 = vpop.f32.mrb[0].mxu0
  %v7046 = vadd.f32 %v1214, %v7045
  %v7047 = vpop.f32.mrb[0].mxu0
  %v7048 = vadd.f32 %v1218, %v7047
  %v7049 = vpop.f32.mrb[0].mxu0
  %v7050 = vpop.f32.mrb[0].mxu0
  %7051 = vdwg.mxu0
  %7052 = vmatprep.subr.bf16.mxu0 %v4836
  %7053 = vmatpush1.bf16.msra.mxu0 %v4835
  %7054 = vmatprep.subr.bf16.mxu0 %v4844
  %7055 = vmatpush1.bf16.msra.mxu0 %v4843
  %7056 = vmatprep.subr.bf16.mxu0 %v4852
  %7057 = vmatpush1.bf16.msra.mxu0 %v4851
  %7058 = vmatprep.subr.bf16.mxu0 %v4860
  %7059 = vmatpush1.bf16.msra.mxu0 %v4859
  %7060 = vmatprep.subr.bf16.mxu0 %v4868
  %7061 = vmatpush1.bf16.msra.mxu0 %v4867
  %7062 = vmatprep.subr.bf16.mxu0 %v4876
  %7063 = vmatpush1.bf16.msra.mxu0 %v4875
  %7064 = vmatprep.subr.bf16.mxu0 %v4884
  %7065 = vmatpush1.bf16.msra.mxu0 %v4883
  %7066 = vmatprep.subr.bf16.mxu0 %v4892
  %7067 = vmatpush1.bf16.msra.mxu0 %v4891
  %7068 = vmatprep.subr.bf16.mxu0 %v4900
  %7069 = vmatpush1.bf16.msra.mxu0 %v4899
  %7070 = vmatprep.subr.bf16.mxu0 %v4908
  %7071 = vmatpush1.bf16.msra.mxu0 %v4907
  %7072 = vmatprep.subr.bf16.mxu0 %v4916
  %7073 = vmatpush1.bf16.msra.mxu0 %v4915
  %7074 = vmatprep.subr.bf16.mxu0 %v4924
  %7075 = vmatpush1.bf16.msra.mxu0 %v4923
  %7076 = vmatprep.subr.bf16.mxu0 %v4932
  %7077 = vmatpush1.bf16.msra.mxu0 %v4931
  %7078 = vmatprep.subr.bf16.mxu0 %v4940
  %7079 = vmatpush1.bf16.msra.mxu0 %v4939
  %7080 = vmatprep.subr.bf16.mxu0 %v4948
  %7081 = vmatpush1.bf16.msra.mxu0 %v4947
  %7082 = vmatprep.subr.bf16.mxu0 %v4956
  %7083 = vmatpush1.bf16.msra.mxu0 %v4955
  %7084 = vmatprep.mubr.bf16.mxu0 %v42
  %7085 = vmatmul.mubr.bf16.gmra.mrb[0].mxu0 %v41
  %v7086 = vpop.f32.mrb[0].mxu0
  %v7087 = vadd.f32 %v7046, %v7086
  %v7088 = vpop.f32.mrb[0].mxu0
  %v7089 = vadd.f32 %v7048, %v7088
  %v7090 = vpop.f32.mrb[0].mxu0
  %v7091 = vpop.f32.mrb[0].mxu0
  %7092 = vdwg.mxu0
  %7093 = vmatprep.subr.bf16.mxu0 %v4964
  %7094 = vmatpush1.bf16.msra.mxu0 %v4963
  %7095 = vmatprep.subr.bf16.mxu0 %v4972
  %7096 = vmatpush1.bf16.msra.mxu0 %v4971
  %7097 = vmatprep.subr.bf16.mxu0 %v4980
  %7098 = vmatpush1.bf16.msra.mxu0 %v4979
  %7099 = vmatprep.subr.bf16.mxu0 %v4988
  %7100 = vmatpush1.bf16.msra.mxu0 %v4987
  %7101 = vmatprep.subr.bf16.mxu0 %v4996
  %7102 = vmatpush1.bf16.msra.mxu0 %v4995
  %7103 = vmatprep.subr.bf16.mxu0 %v5004
  %7104 = vmatpush1.bf16.msra.mxu0 %v5003
  %7105 = vmatprep.subr.bf16.mxu0 %v5012
  %7106 = vmatpush1.bf16.msra.mxu0 %v5011
  %7107 = vmatprep.subr.bf16.mxu0 %v5020
  %7108 = vmatpush1.bf16.msra.mxu0 %v5019
  %7109 = vmatprep.subr.bf16.mxu0 %v5028
  %7110 = vmatpush1.bf16.msra.mxu0 %v5027
  %7111 = vmatprep.subr.bf16.mxu0 %v5036
  %7112 = vmatpush1.bf16.msra.mxu0 %v5035
  %7113 = vmatprep.subr.bf16.mxu0 %v5044
  %7114 = vmatpush1.bf16.msra.mxu0 %v5043
  %7115 = vmatprep.subr.bf16.mxu0 %v5052
  %7116 = vmatpush1.bf16.msra.mxu0 %v5051
  %7117 = vmatprep.subr.bf16.mxu0 %v5060
  %7118 = vmatpush1.bf16.msra.mxu0 %v5059
  %7119 = vmatprep.subr.bf16.mxu0 %v5068
  %7120 = vmatpush1.bf16.msra.mxu0 %v5067
  %7121 = vmatprep.subr.bf16.mxu0 %v5076
  %7122 = vmatpush1.bf16.msra.mxu0 %v5075
  %7123 = vmatprep.subr.bf16.mxu0 %v5084
  %7124 = vmatpush1.bf16.msra.mxu0 %v5083
  %7125 = vmatprep.mubr.bf16.mxu0 %v44
  %7126 = vmatmul.mubr.bf16.gmra.mrb[0].mxu0 %v43
  %v7127 = vpop.f32.mrb[0].mxu0
  %v7128 = vadd.f32 %v7087, %v7127
  %v7129 = vpop.f32.mrb[0].mxu0
  %v7130 = vadd.f32 %v7089, %v7129
  %v7131 = vpop.f32.mrb[0].mxu0
  %v7132 = vpop.f32.mrb[0].mxu0
  %7133 = vdwg.mxu0
  %7134 = vmatprep.subr.bf16.mxu0 %v5092
  %7135 = vmatpush1.bf16.msra.mxu0 %v5091
  %7136 = vmatprep.subr.bf16.mxu0 %v5100
  %7137 = vmatpush1.bf16.msra.mxu0 %v5099
  %7138 = vmatprep.subr.bf16.mxu0 %v5108
  %7139 = vmatpush1.bf16.msra.mxu0 %v5107
  %7140 = vmatprep.subr.bf16.mxu0 %v5116
  %7141 = vmatpush1.bf16.msra.mxu0 %v5115
  %7142 = vmatprep.subr.bf16.mxu0 %v5124
  %7143 = vmatpush1.bf16.msra.mxu0 %v5123
  %7144 = vmatprep.subr.bf16.mxu0 %v5132
  %7145 = vmatpush1.bf16.msra.mxu0 %v5131
  %7146 = vmatprep.subr.bf16.mxu0 %v5140
  %7147 = vmatpush1.bf16.msra.mxu0 %v5139
  %7148 = vmatprep.subr.bf16.mxu0 %v5148
  %7149 = vmatpush1.bf16.msra.mxu0 %v5147
  %7150 = vmatprep.subr.bf16.mxu0 %v5156
  %7151 = vmatpush1.bf16.msra.mxu0 %v5155
  %7152 = vmatprep.subr.bf16.mxu0 %v5164
  %7153 = vmatpush1.bf16.msra.mxu0 %v5163
  %7154 = vmatprep.subr.bf16.mxu0 %v5172
  %7155 = vmatpush1.bf16.msra.mxu0 %v5171
  %7156 = vmatprep.subr.bf16.mxu0 %v5180
  %7157 = vmatpush1.bf16.msra.mxu0 %v5179
  %7158 = vmatprep.subr.bf16.mxu0 %v5188
  %7159 = vmatpush1.bf16.msra.mxu0 %v5187
  %7160 = vmatprep.subr.bf16.mxu0 %v5196
  %7161 = vmatpush1.bf16.msra.mxu0 %v5195
  %7162 = vmatprep.subr.bf16.mxu0 %v5204
  %7163 = vmatpush1.bf16.msra.mxu0 %v5203
  %7164 = vmatprep.subr.bf16.mxu0 %v5212
  %7165 = vmatpush1.bf16.msra.mxu0 %v5211
  %7166 = vmatprep.mubr.bf16.mxu0 %v46
  %7167 = vmatmul.mubr.bf16.gmra.mrb[0].mxu0 %v45
  %v7168 = vpop.f32.mrb[0].mxu0
  %v7169 = vadd.f32 %v7128, %v7168
  %v7170 = vpop.f32.mrb[0].mxu0
  %v7171 = vadd.f32 %v7130, %v7170
  %v7172 = vpop.f32.mrb[0].mxu0
  %v7173 = vpop.f32.mrb[0].mxu0
  %7174 = vdwg.mxu0
  %7175 = vmatprep.subr.bf16.mxu0 %v5220
  %7176 = vmatpush1.bf16.msra.mxu0 %v5219
  %7177 = vmatprep.subr.bf16.mxu0 %v5228
  %7178 = vmatpush1.bf16.msra.mxu0 %v5227
  %7179 = vmatprep.subr.bf16.mxu0 %v5236
  %7180 = vmatpush1.bf16.msra.mxu0 %v5235
  %7181 = vmatprep.subr.bf16.mxu0 %v5244
  %7182 = vmatpush1.bf16.msra.mxu0 %v5243
  %7183 = vmatprep.subr.bf16.mxu0 %v5252
  %7184 = vmatpush1.bf16.msra.mxu0 %v5251
  %7185 = vmatprep.subr.bf16.mxu0 %v5260
  %7186 = vmatpush1.bf16.msra.mxu0 %v5259
  %7187 = vmatprep.subr.bf16.mxu0 %v5268
  %7188 = vmatpush1.bf16.msra.mxu0 %v5267
  %7189 = vmatprep.subr.bf16.mxu0 %v5276
  %7190 = vmatpush1.bf16.msra.mxu0 %v5275
  %7191 = vmatprep.subr.bf16.mxu0 %v5284
  %7192 = vmatpush1.bf16.msra.mxu0 %v5283
  %7193 = vmatprep.subr.bf16.mxu0 %v5292
  %7194 = vmatpush1.bf16.msra.mxu0 %v5291
  %7195 = vmatprep.subr.bf16.mxu0 %v5300
  %7196 = vmatpush1.bf16.msra.mxu0 %v5299
  %7197 = vmatprep.subr.bf16.mxu0 %v5308
  %7198 = vmatpush1.bf16.msra.mxu0 %v5307
  %7199 = vmatprep.subr.bf16.mxu0 %v5316
  %7200 = vmatpush1.bf16.msra.mxu0 %v5315
  %7201 = vmatprep.subr.bf16.mxu0 %v5324
  %7202 = vmatpush1.bf16.msra.mxu0 %v5323
  %7203 = vmatprep.subr.bf16.mxu0 %v5332
  %7204 = vmatpush1.bf16.msra.mxu0 %v5331
  %7205 = vmatprep.subr.bf16.mxu0 %v5340
  %7206 = vmatpush1.bf16.msra.mxu0 %v5339
  %7207 = vmatprep.mubr.bf16.mxu0 %v48
  %7208 = vmatmul.mubr.bf16.gmra.mrb[0].mxu0 %v47
  %v7209 = vpop.f32.mrb[0].mxu0
  %v7210 = vadd.f32 %v7169, %v7209
  %v7211 = vpop.f32.mrb[0].mxu0
  %v7212 = vadd.f32 %v7171, %v7211
  %v7213 = vpop.f32.mrb[0].mxu0
  %v7214 = vpop.f32.mrb[0].mxu0
  %7215 = vdwg.mxu0
  %7216 = vmatprep.subr.bf16.mxu0 %v5348
  %7217 = vmatpush1.bf16.msra.mxu0 %v5347
  %7218 = vmatprep.subr.bf16.mxu0 %v5356
  %7219 = vmatpush1.bf16.msra.mxu0 %v5355
  %7220 = vmatprep.subr.bf16.mxu0 %v5364
  %7221 = vmatpush1.bf16.msra.mxu0 %v5363
  %7222 = vmatprep.subr.bf16.mxu0 %v5372
  %7223 = vmatpush1.bf16.msra.mxu0 %v5371
  %7224 = vmatprep.subr.bf16.mxu0 %v5380
  %7225 = vmatpush1.bf16.msra.mxu0 %v5379
  %7226 = vmatprep.subr.bf16.mxu0 %v5388
  %7227 = vmatpush1.bf16.msra.mxu0 %v5387
  %7228 = vmatprep.subr.bf16.mxu0 %v5396
  %7229 = vmatpush1.bf16.msra.mxu0 %v5395
  %7230 = vmatprep.subr.bf16.mxu0 %v5404
  %7231 = vmatpush1.bf16.msra.mxu0 %v5403
  %7232 = vmatprep.subr.bf16.mxu0 %v5412
  %7233 = vmatpush1.bf16.msra.mxu0 %v5411
  %7234 = vmatprep.subr.bf16.mxu0 %v5420
  %7235 = vmatpush1.bf16.msra.mxu0 %v5419
  %7236 = vmatprep.subr.bf16.mxu0 %v5428
  %7237 = vmatpush1.bf16.msra.mxu0 %v5427
  %7238 = vmatprep.subr.bf16.mxu0 %v5436
  %7239 = vmatpush1.bf16.msra.mxu0 %v5435
  %7240 = vmatprep.subr.bf16.mxu0 %v5444
  %7241 = vmatpush1.bf16.msra.mxu0 %v5443
  %7242 = vmatprep.subr.bf16.mxu0 %v5452
  %7243 = vmatpush1.bf16.msra.mxu0 %v5451
  %7244 = vmatprep.subr.bf16.mxu0 %v5460
  %7245 = vmatpush1.bf16.msra.mxu0 %v5459
  %7246 = vmatprep.subr.bf16.mxu0 %v5468
  %7247 = vmatpush1.bf16.msra.mxu0 %v5467
  %7248 = vmatprep.mubr.bf16.mxu0 %v50
  %7249 = vmatmul.mubr.bf16.gmra.mrb[0].mxu0 %v49
  %v7250 = vpop.f32.mrb[0].mxu0
  %v7251 = vadd.f32 %v7210, %v7250
  %v7252 = vpop.f32.mrb[0].mxu0
  %v7253 = vadd.f32 %v7212, %v7252
  %v7254 = vpop.f32.mrb[0].mxu0
  %v7255 = vpop.f32.mrb[0].mxu0
  %7256 = vdwg.mxu0
  %7257 = vmatprep.subr.bf16.mxu0 %v5476
  %7258 = vmatpush1.bf16.msra.mxu0 %v5475
  %7259 = vmatprep.subr.bf16.mxu0 %v5484
  %7260 = vmatpush1.bf16.msra.mxu0 %v5483
  %7261 = vmatprep.subr.bf16.mxu0 %v5492
  %7262 = vmatpush1.bf16.msra.mxu0 %v5491
  %7263 = vmatprep.subr.bf16.mxu0 %v5500
  %7264 = vmatpush1.bf16.msra.mxu0 %v5499
  %7265 = vmatprep.subr.bf16.mxu0 %v5508
  %7266 = vmatpush1.bf16.msra.mxu0 %v5507
  %7267 = vmatprep.subr.bf16.mxu0 %v5516
  %7268 = vmatpush1.bf16.msra.mxu0 %v5515
  %7269 = vmatprep.subr.bf16.mxu0 %v5524
  %7270 = vmatpush1.bf16.msra.mxu0 %v5523
  %7271 = vmatprep.subr.bf16.mxu0 %v5532
  %7272 = vmatpush1.bf16.msra.mxu0 %v5531
  %7273 = vmatprep.subr.bf16.mxu0 %v5540
  %7274 = vmatpush1.bf16.msra.mxu0 %v5539
  %7275 = vmatprep.subr.bf16.mxu0 %v5548
  %7276 = vmatpush1.bf16.msra.mxu0 %v5547
  %7277 = vmatprep.subr.bf16.mxu0 %v5556
  %7278 = vmatpush1.bf16.msra.mxu0 %v5555
  %7279 = vmatprep.subr.bf16.mxu0 %v5564
  %7280 = vmatpush1.bf16.msra.mxu0 %v5563
  %7281 = vmatprep.subr.bf16.mxu0 %v5572
  %7282 = vmatpush1.bf16.msra.mxu0 %v5571
  %7283 = vmatprep.subr.bf16.mxu0 %v5580
  %7284 = vmatpush1.bf16.msra.mxu0 %v5579
  %7285 = vmatprep.subr.bf16.mxu0 %v5588
  %7286 = vmatpush1.bf16.msra.mxu0 %v5587
  %7287 = vmatprep.subr.bf16.mxu0 %v5596
  %7288 = vmatpush1.bf16.msra.mxu0 %v5595
  %7289 = vmatprep.mubr.bf16.mxu0 %v52
  %7290 = vmatmul.mubr.bf16.gmra.mrb[0].mxu0 %v51
  %v7291 = vpop.f32.mrb[0].mxu0
  %v7292 = vadd.f32 %v7251, %v7291
  %v7293 = vpop.f32.mrb[0].mxu0
  %v7294 = vadd.f32 %v7253, %v7293
  %v7295 = vpop.f32.mrb[0].mxu0
  %v7296 = vpop.f32.mrb[0].mxu0
  %7297 = vdwg.mxu0
  %7298 = vmatprep.subr.bf16.mxu0 %v5604
  %7299 = vmatpush1.bf16.msra.mxu0 %v5603
  %7300 = vmatprep.subr.bf16.mxu0 %v5612
  %7301 = vmatpush1.bf16.msra.mxu0 %v5611
  %7302 = vmatprep.subr.bf16.mxu0 %v5620
  %7303 = vmatpush1.bf16.msra.mxu0 %v5619
  %7304 = vmatprep.subr.bf16.mxu0 %v5628
  %7305 = vmatpush1.bf16.msra.mxu0 %v5627
  %7306 = vmatprep.subr.bf16.mxu0 %v5636
  %7307 = vmatpush1.bf16.msra.mxu0 %v5635
  %7308 = vmatprep.subr.bf16.mxu0 %v5644
  %7309 = vmatpush1.bf16.msra.mxu0 %v5643
  %7310 = vmatprep.subr.bf16.mxu0 %v5652
  %7311 = vmatpush1.bf16.msra.mxu0 %v5651
  %7312 = vmatprep.subr.bf16.mxu0 %v5660
  %7313 = vmatpush1.bf16.msra.mxu0 %v5659
  %7314 = vmatprep.subr.bf16.mxu0 %v5668
  %7315 = vmatpush1.bf16.msra.mxu0 %v5667
  %7316 = vmatprep.subr.bf16.mxu0 %v5676
  %7317 = vmatpush1.bf16.msra.mxu0 %v5675
  %7318 = vmatprep.subr.bf16.mxu0 %v5684
  %7319 = vmatpush1.bf16.msra.mxu0 %v5683
  %7320 = vmatprep.subr.bf16.mxu0 %v5692
  %7321 = vmatpush1.bf16.msra.mxu0 %v5691
  %7322 = vmatprep.subr.bf16.mxu0 %v5700
  %7323 = vmatpush1.bf16.msra.mxu0 %v5699
  %7324 = vmatprep.subr.bf16.mxu0 %v5708
  %7325 = vmatpush1.bf16.msra.mxu0 %v5707
  %7326 = vmatprep.subr.bf16.mxu0 %v5716
  %7327 = vmatpush1.bf16.msra.mxu0 %v5715
  %7328 = vmatprep.subr.bf16.mxu0 %v5724
  %7329 = vmatpush1.bf16.msra.mxu0 %v5723
  %7330 = vmatprep.mubr.bf16.mxu0 %v54
  %7331 = vmatmul.mubr.bf16.gmra.mrb[0].mxu0 %v53
  %v7332 = vpop.f32.mrb[0].mxu0
  %v7333 = vadd.f32 %v7292, %v7332
  %v7334 = vpop.f32.mrb[0].mxu0
  %v7335 = vadd.f32 %v7294, %v7334
  %v7336 = vpop.f32.mrb[0].mxu0
  %v7337 = vpop.f32.mrb[0].mxu0
  %7338 = vdwg.mxu0
  %7339 = vmatprep.subr.bf16.mxu0 %v5732
  %7340 = vmatpush1.bf16.msra.mxu0 %v5731
  %7341 = vmatprep.subr.bf16.mxu0 %v5740
  %7342 = vmatpush1.bf16.msra.mxu0 %v5739
  %7343 = vmatprep.subr.bf16.mxu0 %v5748
  %7344 = vmatpush1.bf16.msra.mxu0 %v5747
  %7345 = vmatprep.subr.bf16.mxu0 %v5756
  %7346 = vmatpush1.bf16.msra.mxu0 %v5755
  %7347 = vmatprep.subr.bf16.mxu0 %v5764
  %7348 = vmatpush1.bf16.msra.mxu0 %v5763
  %7349 = vmatprep.subr.bf16.mxu0 %v5772
  %7350 = vmatpush1.bf16.msra.mxu0 %v5771
  %7351 = vmatprep.subr.bf16.mxu0 %v5780
  %7352 = vmatpush1.bf16.msra.mxu0 %v5779
  %7353 = vmatprep.subr.bf16.mxu0 %v5788
  %7354 = vmatpush1.bf16.msra.mxu0 %v5787
  %7355 = vmatprep.subr.bf16.mxu0 %v5796
  %7356 = vmatpush1.bf16.msra.mxu0 %v5795
  %7357 = vmatprep.subr.bf16.mxu0 %v5804
  %7358 = vmatpush1.bf16.msra.mxu0 %v5803
  %7359 = vmatprep.subr.bf16.mxu0 %v5812
  %7360 = vmatpush1.bf16.msra.mxu0 %v5811
  %7361 = vmatprep.subr.bf16.mxu0 %v5820
  %7362 = vmatpush1.bf16.msra.mxu0 %v5819
  %7363 = vmatprep.subr.bf16.mxu0 %v5828
  %7364 = vmatpush1.bf16.msra.mxu0 %v5827
  %7365 = vmatprep.subr.bf16.mxu0 %v5836
  %7366 = vmatpush1.bf16.msra.mxu0 %v5835
  %7367 = vmatprep.subr.bf16.mxu0 %v5844
  %7368 = vmatpush1.bf16.msra.mxu0 %v5843
  %7369 = vmatprep.subr.bf16.mxu0 %v5852
  %7370 = vmatpush1.bf16.msra.mxu0 %v5851
  %7371 = vmatprep.mubr.bf16.mxu0 %v56
  %7372 = vmatmul.mubr.bf16.gmra.mrb[0].mxu0 %v55
  %v7373 = vpop.f32.mrb[0].mxu0
  %v7374 = vadd.f32 %v7333, %v7373
  %v7375 = vpop.f32.mrb[0].mxu0
  %v7376 = vadd.f32 %v7335, %v7375
  %v7377 = vpop.f32.mrb[0].mxu0
  %v7378 = vpop.f32.mrb[0].mxu0
  %7379 = vdwg.mxu0
  %7380 = vmatprep.subr.bf16.mxu0 %v4710
  %7381 = vmatpush1.bf16.msra.mxu0 %v4709
  %7382 = vmatprep.subr.bf16.mxu0 %v4718
  %7383 = vmatpush1.bf16.msra.mxu0 %v4717
  %7384 = vmatprep.subr.bf16.mxu0 %v4726
  %7385 = vmatpush1.bf16.msra.mxu0 %v4725
  %7386 = vmatprep.subr.bf16.mxu0 %v4734
  %7387 = vmatpush1.bf16.msra.mxu0 %v4733
  %7388 = vmatprep.subr.bf16.mxu0 %v4742
  %7389 = vmatpush1.bf16.msra.mxu0 %v4741
  %7390 = vmatprep.subr.bf16.mxu0 %v4750
  %7391 = vmatpush1.bf16.msra.mxu0 %v4749
  %7392 = vmatprep.subr.bf16.mxu0 %v4758
  %7393 = vmatpush1.bf16.msra.mxu0 %v4757
  %7394 = vmatprep.subr.bf16.mxu0 %v4766
  %7395 = vmatpush1.bf16.msra.mxu0 %v4765
  %7396 = vmatprep.subr.bf16.mxu0 %v4774
  %7397 = vmatpush1.bf16.msra.mxu0 %v4773
  %7398 = vmatprep.subr.bf16.mxu0 %v4782
  %7399 = vmatpush1.bf16.msra.mxu0 %v4781
  %7400 = vmatprep.subr.bf16.mxu0 %v4790
  %7401 = vmatpush1.bf16.msra.mxu0 %v4789
  %7402 = vmatprep.subr.bf16.mxu0 %v4798
  %7403 = vmatpush1.bf16.msra.mxu0 %v4797
  %7404 = vmatprep.subr.bf16.mxu0 %v4806
  %7405 = vmatpush1.bf16.msra.mxu0 %v4805
  %7406 = vmatprep.subr.bf16.mxu0 %v4814
  %7407 = vmatpush1.bf16.msra.mxu0 %v4813
  %7408 = vmatprep.subr.bf16.mxu0 %v4822
  %7409 = vmatpush1.bf16.msra.mxu0 %v4821
  %7410 = vmatprep.subr.bf16.mxu0 %v4830
  %7411 = vmatpush1.bf16.msra.mxu0 %v4829
  %7412 = vmatprep.mubr.bf16.mxu0 %v40
  %7413 = vmatmul.mubr.bf16.gmra.mrb[0].mxu0 %v39
  %v7414 = vpop.f32.mrb[0].mxu0
  %v7415 = vadd.f32 %v1222, %v7414
  %v7416 = vpop.f32.mrb[0].mxu0
  %v7417 = vadd.f32 %v1226, %v7416
  %v7418 = vpop.f32.mrb[0].mxu0
  %v7419 = vpop.f32.mrb[0].mxu0
  %7420 = vdwg.mxu0
  %7421 = vmatprep.subr.bf16.mxu0 %v4838
  %7422 = vmatpush1.bf16.msra.mxu0 %v4837
  %7423 = vmatprep.subr.bf16.mxu0 %v4846
  %7424 = vmatpush1.bf16.msra.mxu0 %v4845
  %7425 = vmatprep.subr.bf16.mxu0 %v4854
  %7426 = vmatpush1.bf16.msra.mxu0 %v4853
  %7427 = vmatprep.subr.bf16.mxu0 %v4862
  %7428 = vmatpush1.bf16.msra.mxu0 %v4861
  %7429 = vmatprep.subr.bf16.mxu0 %v4870
  %7430 = vmatpush1.bf16.msra.mxu0 %v4869
  %7431 = vmatprep.subr.bf16.mxu0 %v4878
  %7432 = vmatpush1.bf16.msra.mxu0 %v4877
  %7433 = vmatprep.subr.bf16.mxu0 %v4886
  %7434 = vmatpush1.bf16.msra.mxu0 %v4885
  %7435 = vmatprep.subr.bf16.mxu0 %v4894
  %7436 = vmatpush1.bf16.msra.mxu0 %v4893
  %7437 = vmatprep.subr.bf16.mxu0 %v4902
  %7438 = vmatpush1.bf16.msra.mxu0 %v4901
  %7439 = vmatprep.subr.bf16.mxu0 %v4910
  %7440 = vmatpush1.bf16.msra.mxu0 %v4909
  %7441 = vmatprep.subr.bf16.mxu0 %v4918
  %7442 = vmatpush1.bf16.msra.mxu0 %v4917
  %7443 = vmatprep.subr.bf16.mxu0 %v4926
  %7444 = vmatpush1.bf16.msra.mxu0 %v4925
  %7445 = vmatprep.subr.bf16.mxu0 %v4934
  %7446 = vmatpush1.bf16.msra.mxu0 %v4933
  %7447 = vmatprep.subr.bf16.mxu0 %v4942
  %7448 = vmatpush1.bf16.msra.mxu0 %v4941
  %7449 = vmatprep.subr.bf16.mxu0 %v4950
  %7450 = vmatpush1.bf16.msra.mxu0 %v4949
  %7451 = vmatprep.subr.bf16.mxu0 %v4958
  %7452 = vmatpush1.bf16.msra.mxu0 %v4957
  %7453 = vmatprep.mubr.bf16.mxu0 %v42
  %7454 = vmatmul.mubr.bf16.gmra.mrb[0].mxu0 %v41
  %v7455 = vpop.f32.mrb[0].mxu0
  %v7456 = vadd.f32 %v7415, %v7455
  %v7457 = vpop.f32.mrb[0].mxu0
  %v7458 = vadd.f32 %v7417, %v7457
  %v7459 = vpop.f32.mrb[0].mxu0
  %v7460 = vpop.f32.mrb[0].mxu0
  %7461 = vdwg.mxu0
  %7462 = vmatprep.subr.bf16.mxu0 %v4966
  %7463 = vmatpush1.bf16.msra.mxu0 %v4965
  %7464 = vmatprep.subr.bf16.mxu0 %v4974
  %7465 = vmatpush1.bf16.msra.mxu0 %v4973
  %7466 = vmatprep.subr.bf16.mxu0 %v4982
  %7467 = vmatpush1.bf16.msra.mxu0 %v4981
  %7468 = vmatprep.subr.bf16.mxu0 %v4990
  %7469 = vmatpush1.bf16.msra.mxu0 %v4989
  %7470 = vmatprep.subr.bf16.mxu0 %v4998
  %7471 = vmatpush1.bf16.msra.mxu0 %v4997
  %7472 = vmatprep.subr.bf16.mxu0 %v5006
  %7473 = vmatpush1.bf16.msra.mxu0 %v5005
  %7474 = vmatprep.subr.bf16.mxu0 %v5014
  %7475 = vmatpush1.bf16.msra.mxu0 %v5013
  %7476 = vmatprep.subr.bf16.mxu0 %v5022
  %7477 = vmatpush1.bf16.msra.mxu0 %v5021
  %7478 = vmatprep.subr.bf16.mxu0 %v5030
  %7479 = vmatpush1.bf16.msra.mxu0 %v5029
  %7480 = vmatprep.subr.bf16.mxu0 %v5038
  %7481 = vmatpush1.bf16.msra.mxu0 %v5037
  %7482 = vmatprep.subr.bf16.mxu0 %v5046
  %7483 = vmatpush1.bf16.msra.mxu0 %v5045
  %7484 = vmatprep.subr.bf16.mxu0 %v5054
  %7485 = vmatpush1.bf16.msra.mxu0 %v5053
  %7486 = vmatprep.subr.bf16.mxu0 %v5062
  %7487 = vmatpush1.bf16.msra.mxu0 %v5061
  %7488 = vmatprep.subr.bf16.mxu0 %v5070
  %7489 = vmatpush1.bf16.msra.mxu0 %v5069
  %7490 = vmatprep.subr.bf16.mxu0 %v5078
  %7491 = vmatpush1.bf16.msra.mxu0 %v5077
  %7492 = vmatprep.subr.bf16.mxu0 %v5086
  %7493 = vmatpush1.bf16.msra.mxu0 %v5085
  %7494 = vmatprep.mubr.bf16.mxu0 %v44
  %7495 = vmatmul.mubr.bf16.gmra.mrb[0].mxu0 %v43
  %v7496 = vpop.f32.mrb[0].mxu0
  %v7497 = vadd.f32 %v7456, %v7496
  %v7498 = vpop.f32.mrb[0].mxu0
  %v7499 = vadd.f32 %v7458, %v7498
  %v7500 = vpop.f32.mrb[0].mxu0
  %v7501 = vpop.f32.mrb[0].mxu0
  %7502 = vdwg.mxu0
  %7503 = vmatprep.subr.bf16.mxu0 %v5094
  %7504 = vmatpush1.bf16.msra.mxu0 %v5093
  %7505 = vmatprep.subr.bf16.mxu0 %v5102
  %7506 = vmatpush1.bf16.msra.mxu0 %v5101
  %7507 = vmatprep.subr.bf16.mxu0 %v5110
  %7508 = vmatpush1.bf16.msra.mxu0 %v5109
  %7509 = vmatprep.subr.bf16.mxu0 %v5118
  %7510 = vmatpush1.bf16.msra.mxu0 %v5117
  %7511 = vmatprep.subr.bf16.mxu0 %v5126
  %7512 = vmatpush1.bf16.msra.mxu0 %v5125
  %7513 = vmatprep.subr.bf16.mxu0 %v5134
  %7514 = vmatpush1.bf16.msra.mxu0 %v5133
  %7515 = vmatprep.subr.bf16.mxu0 %v5142
  %7516 = vmatpush1.bf16.msra.mxu0 %v5141
  %7517 = vmatprep.subr.bf16.mxu0 %v5150
  %7518 = vmatpush1.bf16.msra.mxu0 %v5149
  %7519 = vmatprep.subr.bf16.mxu0 %v5158
  %7520 = vmatpush1.bf16.msra.mxu0 %v5157
  %7521 = vmatprep.subr.bf16.mxu0 %v5166
  %7522 = vmatpush1.bf16.msra.mxu0 %v5165
  %7523 = vmatprep.subr.bf16.mxu0 %v5174
  %7524 = vmatpush1.bf16.msra.mxu0 %v5173
  %7525 = vmatprep.subr.bf16.mxu0 %v5182
  %7526 = vmatpush1.bf16.msra.mxu0 %v5181
  %7527 = vmatprep.subr.bf16.mxu0 %v5190
  %7528 = vmatpush1.bf16.msra.mxu0 %v5189
  %7529 = vmatprep.subr.bf16.mxu0 %v5198
  %7530 = vmatpush1.bf16.msra.mxu0 %v5197
  %7531 = vmatprep.subr.bf16.mxu0 %v5206
  %7532 = vmatpush1.bf16.msra.mxu0 %v5205
  %7533 = vmatprep.subr.bf16.mxu0 %v5214
  %7534 = vmatpush1.bf16.msra.mxu0 %v5213
  %7535 = vmatprep.mubr.bf16.mxu0 %v46
  %7536 = vmatmul.mubr.bf16.gmra.mrb[0].mxu0 %v45
  %v7537 = vpop.f32.mrb[0].mxu0
  %v7538 = vadd.f32 %v7497, %v7537
  %v7539 = vpop.f32.mrb[0].mxu0
  %v7540 = vadd.f32 %v7499, %v7539
  %v7541 = vpop.f32.mrb[0].mxu0
  %v7542 = vpop.f32.mrb[0].mxu0
  %7543 = vdwg.mxu0
  %7544 = vmatprep.subr.bf16.mxu0 %v5222
  %7545 = vmatpush1.bf16.msra.mxu0 %v5221
  %7546 = vmatprep.subr.bf16.mxu0 %v5230
  %7547 = vmatpush1.bf16.msra.mxu0 %v5229
  %7548 = vmatprep.subr.bf16.mxu0 %v5238
  %7549 = vmatpush1.bf16.msra.mxu0 %v5237
  %7550 = vmatprep.subr.bf16.mxu0 %v5246
  %7551 = vmatpush1.bf16.msra.mxu0 %v5245
  %7552 = vmatprep.subr.bf16.mxu0 %v5254
  %7553 = vmatpush1.bf16.msra.mxu0 %v5253
  %7554 = vmatprep.subr.bf16.mxu0 %v5262
  %7555 = vmatpush1.bf16.msra.mxu0 %v5261
  %7556 = vmatprep.subr.bf16.mxu0 %v5270
  %7557 = vmatpush1.bf16.msra.mxu0 %v5269
  %7558 = vmatprep.subr.bf16.mxu0 %v5278
  %7559 = vmatpush1.bf16.msra.mxu0 %v5277
  %7560 = vmatprep.subr.bf16.mxu0 %v5286
  %7561 = vmatpush1.bf16.msra.mxu0 %v5285
  %7562 = vmatprep.subr.bf16.mxu0 %v5294
  %7563 = vmatpush1.bf16.msra.mxu0 %v5293
  %7564 = vmatprep.subr.bf16.mxu0 %v5302
  %7565 = vmatpush1.bf16.msra.mxu0 %v5301
  %7566 = vmatprep.subr.bf16.mxu0 %v5310
  %7567 = vmatpush1.bf16.msra.mxu0 %v5309
  %7568 = vmatprep.subr.bf16.mxu0 %v5318
  %7569 = vmatpush1.bf16.msra.mxu0 %v5317
  %7570 = vmatprep.subr.bf16.mxu0 %v5326
  %7571 = vmatpush1.bf16.msra.mxu0 %v5325
  %7572 = vmatprep.subr.bf16.mxu0 %v5334
  %7573 = vmatpush1.bf16.msra.mxu0 %v5333
  %7574 = vmatprep.subr.bf16.mxu0 %v5342
  %7575 = vmatpush1.bf16.msra.mxu0 %v5341
  %7576 = vmatprep.mubr.bf16.mxu0 %v48
  %7577 = vmatmul.mubr.bf16.gmra.mrb[0].mxu0 %v47
  %v7578 = vpop.f32.mrb[0].mxu0
  %v7579 = vadd.f32 %v7538, %v7578
  %v7580 = vpop.f32.mrb[0].mxu0
  %v7581 = vadd.f32 %v7540, %v7580
  %v7582 = vpop.f32.mrb[0].mxu0
  %v7583 = vpop.f32.mrb[0].mxu0
  %7584 = vdwg.mxu0
  %7585 = vmatprep.subr.bf16.mxu0 %v5350
  %7586 = vmatpush1.bf16.msra.mxu0 %v5349
  %7587 = vmatprep.subr.bf16.mxu0 %v5358
  %7588 = vmatpush1.bf16.msra.mxu0 %v5357
  %7589 = vmatprep.subr.bf16.mxu0 %v5366
  %7590 = vmatpush1.bf16.msra.mxu0 %v5365
  %7591 = vmatprep.subr.bf16.mxu0 %v5374
  %7592 = vmatpush1.bf16.msra.mxu0 %v5373
  %7593 = vmatprep.subr.bf16.mxu0 %v5382
  %7594 = vmatpush1.bf16.msra.mxu0 %v5381
  %7595 = vmatprep.subr.bf16.mxu0 %v5390
  %7596 = vmatpush1.bf16.msra.mxu0 %v5389
  %7597 = vmatprep.subr.bf16.mxu0 %v5398
  %7598 = vmatpush1.bf16.msra.mxu0 %v5397
  %7599 = vmatprep.subr.bf16.mxu0 %v5406
  %7600 = vmatpush1.bf16.msra.mxu0 %v5405
  %7601 = vmatprep.subr.bf16.mxu0 %v5414
  %7602 = vmatpush1.bf16.msra.mxu0 %v5413
  %7603 = vmatprep.subr.bf16.mxu0 %v5422
  %7604 = vmatpush1.bf16.msra.mxu0 %v5421
  %7605 = vmatprep.subr.bf16.mxu0 %v5430
  %7606 = vmatpush1.bf16.msra.mxu0 %v5429
  %7607 = vmatprep.subr.bf16.mxu0 %v5438
  %7608 = vmatpush1.bf16.msra.mxu0 %v5437
  %7609 = vmatprep.subr.bf16.mxu0 %v5446
  %7610 = vmatpush1.bf16.msra.mxu0 %v5445
  %7611 = vmatprep.subr.bf16.mxu0 %v5454
  %7612 = vmatpush1.bf16.msra.mxu0 %v5453
  %7613 = vmatprep.subr.bf16.mxu0 %v5462
  %7614 = vmatpush1.bf16.msra.mxu0 %v5461
  %7615 = vmatprep.subr.bf16.mxu0 %v5470
  %7616 = vmatpush1.bf16.msra.mxu0 %v5469
  %7617 = vmatprep.mubr.bf16.mxu0 %v50
  %7618 = vmatmul.mubr.bf16.gmra.mrb[0].mxu0 %v49
  %v7619 = vpop.f32.mrb[0].mxu0
  %v7620 = vadd.f32 %v7579, %v7619
  %v7621 = vpop.f32.mrb[0].mxu0
  %v7622 = vadd.f32 %v7581, %v7621
  %v7623 = vpop.f32.mrb[0].mxu0
  %v7624 = vpop.f32.mrb[0].mxu0
  %7625 = vdwg.mxu0
  %7626 = vmatprep.subr.bf16.mxu0 %v5478
  %7627 = vmatpush1.bf16.msra.mxu0 %v5477
  %7628 = vmatprep.subr.bf16.mxu0 %v5486
  %7629 = vmatpush1.bf16.msra.mxu0 %v5485
  %7630 = vmatprep.subr.bf16.mxu0 %v5494
  %7631 = vmatpush1.bf16.msra.mxu0 %v5493
  %7632 = vmatprep.subr.bf16.mxu0 %v5502
  %7633 = vmatpush1.bf16.msra.mxu0 %v5501
  %7634 = vmatprep.subr.bf16.mxu0 %v5510
  %7635 = vmatpush1.bf16.msra.mxu0 %v5509
  %7636 = vmatprep.subr.bf16.mxu0 %v5518
  %7637 = vmatpush1.bf16.msra.mxu0 %v5517
  %7638 = vmatprep.subr.bf16.mxu0 %v5526
  %7639 = vmatpush1.bf16.msra.mxu0 %v5525
  %7640 = vmatprep.subr.bf16.mxu0 %v5534
  %7641 = vmatpush1.bf16.msra.mxu0 %v5533
  %7642 = vmatprep.subr.bf16.mxu0 %v5542
  %7643 = vmatpush1.bf16.msra.mxu0 %v5541
  %7644 = vmatprep.subr.bf16.mxu0 %v5550
  %7645 = vmatpush1.bf16.msra.mxu0 %v5549
  %7646 = vmatprep.subr.bf16.mxu0 %v5558
  %7647 = vmatpush1.bf16.msra.mxu0 %v5557
  %7648 = vmatprep.subr.bf16.mxu0 %v5566
  %7649 = vmatpush1.bf16.msra.mxu0 %v5565
  %7650 = vmatprep.subr.bf16.mxu0 %v5574
  %7651 = vmatpush1.bf16.msra.mxu0 %v5573
  %7652 = vmatprep.subr.bf16.mxu0 %v5582
  %7653 = vmatpush1.bf16.msra.mxu0 %v5581
  %7654 = vmatprep.subr.bf16.mxu0 %v5590
  %7655 = vmatpush1.bf16.msra.mxu0 %v5589
  %7656 = vmatprep.subr.bf16.mxu0 %v5598
  %7657 = vmatpush1.bf16.msra.mxu0 %v5597
  %7658 = vmatprep.mubr.bf16.mxu0 %v52
  %7659 = vmatmul.mubr.bf16.gmra.mrb[0].mxu0 %v51
  %v7660 = vpop.f32.mrb[0].mxu0
  %v7661 = vadd.f32 %v7620, %v7660
  %v7662 = vpop.f32.mrb[0].mxu0
  %v7663 = vadd.f32 %v7622, %v7662
  %v7664 = vpop.f32.mrb[0].mxu0
  %v7665 = vpop.f32.mrb[0].mxu0
  %7666 = vdwg.mxu0
  %7667 = vmatprep.subr.bf16.mxu0 %v5606
  %7668 = vmatpush1.bf16.msra.mxu0 %v5605
  %7669 = vmatprep.subr.bf16.mxu0 %v5614
  %7670 = vmatpush1.bf16.msra.mxu0 %v5613
  %7671 = vmatprep.subr.bf16.mxu0 %v5622
  %7672 = vmatpush1.bf16.msra.mxu0 %v5621
  %7673 = vmatprep.subr.bf16.mxu0 %v5630
  %7674 = vmatpush1.bf16.msra.mxu0 %v5629
  %7675 = vmatprep.subr.bf16.mxu0 %v5638
  %7676 = vmatpush1.bf16.msra.mxu0 %v5637
  %7677 = vmatprep.subr.bf16.mxu0 %v5646
  %7678 = vmatpush1.bf16.msra.mxu0 %v5645
  %7679 = vmatprep.subr.bf16.mxu0 %v5654
  %7680 = vmatpush1.bf16.msra.mxu0 %v5653
  %7681 = vmatprep.subr.bf16.mxu0 %v5662
  %7682 = vmatpush1.bf16.msra.mxu0 %v5661
  %7683 = vmatprep.subr.bf16.mxu0 %v5670
  %7684 = vmatpush1.bf16.msra.mxu0 %v5669
  %7685 = vmatprep.subr.bf16.mxu0 %v5678
  %7686 = vmatpush1.bf16.msra.mxu0 %v5677
  %7687 = vmatprep.subr.bf16.mxu0 %v5686
  %7688 = vmatpush1.bf16.msra.mxu0 %v5685
  %7689 = vmatprep.subr.bf16.mxu0 %v5694
  %7690 = vmatpush1.bf16.msra.mxu0 %v5693
  %7691 = vmatprep.subr.bf16.mxu0 %v5702
  %7692 = vmatpush1.bf16.msra.mxu0 %v5701
  %7693 = vmatprep.subr.bf16.mxu0 %v5710
  %7694 = vmatpush1.bf16.msra.mxu0 %v5709
  %7695 = vmatprep.subr.bf16.mxu0 %v5718
  %7696 = vmatpush1.bf16.msra.mxu0 %v5717
  %7697 = vmatprep.subr.bf16.mxu0 %v5726
  %7698 = vmatpush1.bf16.msra.mxu0 %v5725
  %7699 = vmatprep.mubr.bf16.mxu0 %v54
  %7700 = vmatmul.mubr.bf16.gmra.mrb[0].mxu0 %v53
  %v7701 = vpop.f32.mrb[0].mxu0
  %v7702 = vadd.f32 %v7661, %v7701
  %v7703 = vpop.f32.mrb[0].mxu0
  %v7704 = vadd.f32 %v7663, %v7703
  %v7705 = vpop.f32.mrb[0].mxu0
  %v7706 = vpop.f32.mrb[0].mxu0
  %7707 = vdwg.mxu0
  %7708 = vmatprep.subr.bf16.mxu0 %v5734
  %7709 = vmatpush1.bf16.msra.mxu0 %v5733
  %7710 = vmatprep.subr.bf16.mxu0 %v5742
  %7711 = vmatpush1.bf16.msra.mxu0 %v5741
  %7712 = vmatprep.subr.bf16.mxu0 %v5750
  %7713 = vmatpush1.bf16.msra.mxu0 %v5749
  %7714 = vmatprep.subr.bf16.mxu0 %v5758
  %7715 = vmatpush1.bf16.msra.mxu0 %v5757
  %7716 = vmatprep.subr.bf16.mxu0 %v5766
  %7717 = vmatpush1.bf16.msra.mxu0 %v5765
  %7718 = vmatprep.subr.bf16.mxu0 %v5774
  %7719 = vmatpush1.bf16.msra.mxu0 %v5773
  %7720 = vmatprep.subr.bf16.mxu0 %v5782
  %7721 = vmatpush1.bf16.msra.mxu0 %v5781
  %7722 = vmatprep.subr.bf16.mxu0 %v5790
  %7723 = vmatpush1.bf16.msra.mxu0 %v5789
  %7724 = vmatprep.subr.bf16.mxu0 %v5798
  %7725 = vmatpush1.bf16.msra.mxu0 %v5797
  %7726 = vmatprep.subr.bf16.mxu0 %v5806
  %7727 = vmatpush1.bf16.msra.mxu0 %v5805
  %7728 = vmatprep.subr.bf16.mxu0 %v5814
  %7729 = vmatpush1.bf16.msra.mxu0 %v5813
  %7730 = vmatprep.subr.bf16.mxu0 %v5822
  %7731 = vmatpush1.bf16.msra.mxu0 %v5821
  %7732 = vmatprep.subr.bf16.mxu0 %v5830
  %7733 = vmatpush1.bf16.msra.mxu0 %v5829
  %7734 = vmatprep.subr.bf16.mxu0 %v5838
  %7735 = vmatpush1.bf16.msra.mxu0 %v5837
  %7736 = vmatprep.subr.bf16.mxu0 %v5846
  %7737 = vmatpush1.bf16.msra.mxu0 %v5845
  %7738 = vmatprep.subr.bf16.mxu0 %v5854
  %7739 = vmatpush1.bf16.msra.mxu0 %v5853
  %7740 = vmatprep.mubr.bf16.mxu0 %v56
  %7741 = vmatmul.mubr.bf16.gmra.mrb[0].mxu0 %v55
  %v7742 = vpop.f32.mrb[0].mxu0
  %v7743 = vadd.f32 %v7702, %v7742
  %v7744 = vpop.f32.mrb[0].mxu0
  %v7745 = vadd.f32 %v7704, %v7744
  %v7746 = vpop.f32.mrb[0].mxu0
  %v7747 = vpop.f32.mrb[0].mxu0
  %7748 = vdwg.mxu0
  %7749 = vmatprep.subr.bf16.mxu0 %v4712
  %7750 = vmatpush1.bf16.msra.mxu0 %v4711
  %7751 = vmatprep.subr.bf16.mxu0 %v4720
  %7752 = vmatpush1.bf16.msra.mxu0 %v4719
  %7753 = vmatprep.subr.bf16.mxu0 %v4728
  %7754 = vmatpush1.bf16.msra.mxu0 %v4727
  %7755 = vmatprep.subr.bf16.mxu0 %v4736
  %7756 = vmatpush1.bf16.msra.mxu0 %v4735
  %7757 = vmatprep.subr.bf16.mxu0 %v4744
  %7758 = vmatpush1.bf16.msra.mxu0 %v4743
  %7759 = vmatprep.subr.bf16.mxu0 %v4752
  %7760 = vmatpush1.bf16.msra.mxu0 %v4751
  %7761 = vmatprep.subr.bf16.mxu0 %v4760
  %7762 = vmatpush1.bf16.msra.mxu0 %v4759
  %7763 = vmatprep.subr.bf16.mxu0 %v4768
  %7764 = vmatpush1.bf16.msra.mxu0 %v4767
  %7765 = vmatprep.subr.bf16.mxu0 %v4776
  %7766 = vmatpush1.bf16.msra.mxu0 %v4775
  %7767 = vmatprep.subr.bf16.mxu0 %v4784
  %7768 = vmatpush1.bf16.msra.mxu0 %v4783
  %7769 = vmatprep.subr.bf16.mxu0 %v4792
  %7770 = vmatpush1.bf16.msra.mxu0 %v4791
  %7771 = vmatprep.subr.bf16.mxu0 %v4800
  %7772 = vmatpush1.bf16.msra.mxu0 %v4799
  %7773 = vmatprep.subr.bf16.mxu0 %v4808
  %7774 = vmatpush1.bf16.msra.mxu0 %v4807
  %7775 = vmatprep.subr.bf16.mxu0 %v4816
  %7776 = vmatpush1.bf16.msra.mxu0 %v4815
  %7777 = vmatprep.subr.bf16.mxu0 %v4824
  %7778 = vmatpush1.bf16.msra.mxu0 %v4823
  %7779 = vmatprep.subr.bf16.mxu0 %v4832
  %7780 = vmatpush1.bf16.msra.mxu0 %v4831
  %7781 = vmatprep.mubr.bf16.mxu0 %v40
  %7782 = vmatmul.mubr.bf16.gmra.mrb[0].mxu0 %v39
  %v7783 = vpop.f32.mrb[0].mxu0
  %v7784 = vadd.f32 %v1230, %v7783
  %v7785 = vpop.f32.mrb[0].mxu0
  %v7786 = vadd.f32 %v1234, %v7785
  %v7787 = vpop.f32.mrb[0].mxu0
  %v7788 = vpop.f32.mrb[0].mxu0
  %7789 = vdwg.mxu0
  %7790 = vmatprep.subr.bf16.mxu0 %v4840
  %7791 = vmatpush1.bf16.msra.mxu0 %v4839
  %7792 = vmatprep.subr.bf16.mxu0 %v4848
  %7793 = vmatpush1.bf16.msra.mxu0 %v4847
  %7794 = vmatprep.subr.bf16.mxu0 %v4856
  %7795 = vmatpush1.bf16.msra.mxu0 %v4855
  %7796 = vmatprep.subr.bf16.mxu0 %v4864
  %7797 = vmatpush1.bf16.msra.mxu0 %v4863
  %7798 = vmatprep.subr.bf16.mxu0 %v4872
  %7799 = vmatpush1.bf16.msra.mxu0 %v4871
  %7800 = vmatprep.subr.bf16.mxu0 %v4880
  %7801 = vmatpush1.bf16.msra.mxu0 %v4879
  %7802 = vmatprep.subr.bf16.mxu0 %v4888
  %7803 = vmatpush1.bf16.msra.mxu0 %v4887
  %7804 = vmatprep.subr.bf16.mxu0 %v4896
  %7805 = vmatpush1.bf16.msra.mxu0 %v4895
  %7806 = vmatprep.subr.bf16.mxu0 %v4904
  %7807 = vmatpush1.bf16.msra.mxu0 %v4903
  %7808 = vmatprep.subr.bf16.mxu0 %v4912
  %7809 = vmatpush1.bf16.msra.mxu0 %v4911
  %7810 = vmatprep.subr.bf16.mxu0 %v4920
  %7811 = vmatpush1.bf16.msra.mxu0 %v4919
  %7812 = vmatprep.subr.bf16.mxu0 %v4928
  %7813 = vmatpush1.bf16.msra.mxu0 %v4927
  %7814 = vmatprep.subr.bf16.mxu0 %v4936
  %7815 = vmatpush1.bf16.msra.mxu0 %v4935
  %7816 = vmatprep.subr.bf16.mxu0 %v4944
  %7817 = vmatpush1.bf16.msra.mxu0 %v4943
  %7818 = vmatprep.subr.bf16.mxu0 %v4952
  %7819 = vmatpush1.bf16.msra.mxu0 %v4951
  %7820 = vmatprep.subr.bf16.mxu0 %v4960
  %7821 = vmatpush1.bf16.msra.mxu0 %v4959
  %7822 = vmatprep.mubr.bf16.mxu0 %v42
  %7823 = vmatmul.mubr.bf16.gmra.mrb[0].mxu0 %v41
  %v7824 = vpop.f32.mrb[0].mxu0
  %v7825 = vadd.f32 %v7784, %v7824
  %v7826 = vpop.f32.mrb[0].mxu0
  %v7827 = vadd.f32 %v7786, %v7826
  %v7828 = vpop.f32.mrb[0].mxu0
  %v7829 = vpop.f32.mrb[0].mxu0
  %7830 = vdwg.mxu0
  %7831 = vmatprep.subr.bf16.mxu0 %v4968
  %7832 = vmatpush1.bf16.msra.mxu0 %v4967
  %7833 = vmatprep.subr.bf16.mxu0 %v4976
  %7834 = vmatpush1.bf16.msra.mxu0 %v4975
  %7835 = vmatprep.subr.bf16.mxu0 %v4984
  %7836 = vmatpush1.bf16.msra.mxu0 %v4983
  %7837 = vmatprep.subr.bf16.mxu0 %v4992
  %7838 = vmatpush1.bf16.msra.mxu0 %v4991
  %7839 = vmatprep.subr.bf16.mxu0 %v5000
  %7840 = vmatpush1.bf16.msra.mxu0 %v4999
  %7841 = vmatprep.subr.bf16.mxu0 %v5008
  %7842 = vmatpush1.bf16.msra.mxu0 %v5007
  %7843 = vmatprep.subr.bf16.mxu0 %v5016
  %7844 = vmatpush1.bf16.msra.mxu0 %v5015
  %7845 = vmatprep.subr.bf16.mxu0 %v5024
  %7846 = vmatpush1.bf16.msra.mxu0 %v5023
  %7847 = vmatprep.subr.bf16.mxu0 %v5032
  %7848 = vmatpush1.bf16.msra.mxu0 %v5031
  %7849 = vmatprep.subr.bf16.mxu0 %v5040
  %7850 = vmatpush1.bf16.msra.mxu0 %v5039
  %7851 = vmatprep.subr.bf16.mxu0 %v5048
  %7852 = vmatpush1.bf16.msra.mxu0 %v5047
  %7853 = vmatprep.subr.bf16.mxu0 %v5056
  %7854 = vmatpush1.bf16.msra.mxu0 %v5055
  %7855 = vmatprep.subr.bf16.mxu0 %v5064
  %7856 = vmatpush1.bf16.msra.mxu0 %v5063
  %7857 = vmatprep.subr.bf16.mxu0 %v5072
  %7858 = vmatpush1.bf16.msra.mxu0 %v5071
  %7859 = vmatprep.subr.bf16.mxu0 %v5080
  %7860 = vmatpush1.bf16.msra.mxu0 %v5079
  %7861 = vmatprep.subr.bf16.mxu0 %v5088
  %7862 = vmatpush1.bf16.msra.mxu0 %v5087
  %7863 = vmatprep.mubr.bf16.mxu0 %v44
  %7864 = vmatmul.mubr.bf16.gmra.mrb[0].mxu0 %v43
  %v7865 = vpop.f32.mrb[0].mxu0
  %v7866 = vadd.f32 %v7825, %v7865
  %v7867 = vpop.f32.mrb[0].mxu0
  %v7868 = vadd.f32 %v7827, %v7867
  %v7869 = vpop.f32.mrb[0].mxu0
  %v7870 = vpop.f32.mrb[0].mxu0
  %7871 = vdwg.mxu0
  %7872 = vmatprep.subr.bf16.mxu0 %v5096
  %7873 = vmatpush1.bf16.msra.mxu0 %v5095
  %7874 = vmatprep.subr.bf16.mxu0 %v5104
  %7875 = vmatpush1.bf16.msra.mxu0 %v5103
  %7876 = vmatprep.subr.bf16.mxu0 %v5112
  %7877 = vmatpush1.bf16.msra.mxu0 %v5111
  %7878 = vmatprep.subr.bf16.mxu0 %v5120
  %7879 = vmatpush1.bf16.msra.mxu0 %v5119
  %7880 = vmatprep.subr.bf16.mxu0 %v5128
  %7881 = vmatpush1.bf16.msra.mxu0 %v5127
  %7882 = vmatprep.subr.bf16.mxu0 %v5136
  %7883 = vmatpush1.bf16.msra.mxu0 %v5135
  %7884 = vmatprep.subr.bf16.mxu0 %v5144
  %7885 = vmatpush1.bf16.msra.mxu0 %v5143
  %7886 = vmatprep.subr.bf16.mxu0 %v5152
  %7887 = vmatpush1.bf16.msra.mxu0 %v5151
  %7888 = vmatprep.subr.bf16.mxu0 %v5160
  %7889 = vmatpush1.bf16.msra.mxu0 %v5159
  %7890 = vmatprep.subr.bf16.mxu0 %v5168
  %7891 = vmatpush1.bf16.msra.mxu0 %v5167
  %7892 = vmatprep.subr.bf16.mxu0 %v5176
  %7893 = vmatpush1.bf16.msra.mxu0 %v5175
  %7894 = vmatprep.subr.bf16.mxu0 %v5184
  %7895 = vmatpush1.bf16.msra.mxu0 %v5183
  %7896 = vmatprep.subr.bf16.mxu0 %v5192
  %7897 = vmatpush1.bf16.msra.mxu0 %v5191
  %7898 = vmatprep.subr.bf16.mxu0 %v5200
  %7899 = vmatpush1.bf16.msra.mxu0 %v5199
  %7900 = vmatprep.subr.bf16.mxu0 %v5208
  %7901 = vmatpush1.bf16.msra.mxu0 %v5207
  %7902 = vmatprep.subr.bf16.mxu0 %v5216
  %7903 = vmatpush1.bf16.msra.mxu0 %v5215
  %7904 = vmatprep.mubr.bf16.mxu0 %v46
  %7905 = vmatmul.mubr.bf16.gmra.mrb[0].mxu0 %v45
  %v7906 = vpop.f32.mrb[0].mxu0
  %v7907 = vadd.f32 %v7866, %v7906
  %v7908 = vpop.f32.mrb[0].mxu0
  %v7909 = vadd.f32 %v7868, %v7908
  %v7910 = vpop.f32.mrb[0].mxu0
  %v7911 = vpop.f32.mrb[0].mxu0
  %7912 = vdwg.mxu0
  %7913 = vmatprep.subr.bf16.mxu0 %v5224
  %7914 = vmatpush1.bf16.msra.mxu0 %v5223
  %7915 = vmatprep.subr.bf16.mxu0 %v5232
  %7916 = vmatpush1.bf16.msra.mxu0 %v5231
  %7917 = vmatprep.subr.bf16.mxu0 %v5240
  %7918 = vmatpush1.bf16.msra.mxu0 %v5239
  %7919 = vmatprep.subr.bf16.mxu0 %v5248
  %7920 = vmatpush1.bf16.msra.mxu0 %v5247
  %7921 = vmatprep.subr.bf16.mxu0 %v5256
  %7922 = vmatpush1.bf16.msra.mxu0 %v5255
  %7923 = vmatprep.subr.bf16.mxu0 %v5264
  %7924 = vmatpush1.bf16.msra.mxu0 %v5263
  %7925 = vmatprep.subr.bf16.mxu0 %v5272
  %7926 = vmatpush1.bf16.msra.mxu0 %v5271
  %7927 = vmatprep.subr.bf16.mxu0 %v5280
  %7928 = vmatpush1.bf16.msra.mxu0 %v5279
  %7929 = vmatprep.subr.bf16.mxu0 %v5288
  %7930 = vmatpush1.bf16.msra.mxu0 %v5287
  %7931 = vmatprep.subr.bf16.mxu0 %v5296
  %7932 = vmatpush1.bf16.msra.mxu0 %v5295
  %7933 = vmatprep.subr.bf16.mxu0 %v5304
  %7934 = vmatpush1.bf16.msra.mxu0 %v5303
  %7935 = vmatprep.subr.bf16.mxu0 %v5312
  %7936 = vmatpush1.bf16.msra.mxu0 %v5311
  %7937 = vmatprep.subr.bf16.mxu0 %v5320
  %7938 = vmatpush1.bf16.msra.mxu0 %v5319
  %7939 = vmatprep.subr.bf16.mxu0 %v5328
  %7940 = vmatpush1.bf16.msra.mxu0 %v5327
  %7941 = vmatprep.subr.bf16.mxu0 %v5336
  %7942 = vmatpush1.bf16.msra.mxu0 %v5335
  %7943 = vmatprep.subr.bf16.mxu0 %v5344
  %7944 = vmatpush1.bf16.msra.mxu0 %v5343
  %7945 = vmatprep.mubr.bf16.mxu0 %v48
  %7946 = vmatmul.mubr.bf16.gmra.mrb[0].mxu0 %v47
  %v7947 = vpop.f32.mrb[0].mxu0
  %v7948 = vadd.f32 %v7907, %v7947
  %v7949 = vpop.f32.mrb[0].mxu0
  %v7950 = vadd.f32 %v7909, %v7949
  %v7951 = vpop.f32.mrb[0].mxu0
  %v7952 = vpop.f32.mrb[0].mxu0
  %7953 = vdwg.mxu0
  %7954 = vmatprep.subr.bf16.mxu0 %v5352
  %7955 = vmatpush1.bf16.msra.mxu0 %v5351
  %7956 = vmatprep.subr.bf16.mxu0 %v5360
  %7957 = vmatpush1.bf16.msra.mxu0 %v5359
  %7958 = vmatprep.subr.bf16.mxu0 %v5368
  %7959 = vmatpush1.bf16.msra.mxu0 %v5367
  %7960 = vmatprep.subr.bf16.mxu0 %v5376
  %7961 = vmatpush1.bf16.msra.mxu0 %v5375
  %7962 = vmatprep.subr.bf16.mxu0 %v5384
  %7963 = vmatpush1.bf16.msra.mxu0 %v5383
  %7964 = vmatprep.subr.bf16.mxu0 %v5392
  %7965 = vmatpush1.bf16.msra.mxu0 %v5391
  %7966 = vmatprep.subr.bf16.mxu0 %v5400
  %7967 = vmatpush1.bf16.msra.mxu0 %v5399
  %7968 = vmatprep.subr.bf16.mxu0 %v5408
  %7969 = vmatpush1.bf16.msra.mxu0 %v5407
  %7970 = vmatprep.subr.bf16.mxu0 %v5416
  %7971 = vmatpush1.bf16.msra.mxu0 %v5415
  %7972 = vmatprep.subr.bf16.mxu0 %v5424
  %7973 = vmatpush1.bf16.msra.mxu0 %v5423
  %7974 = vmatprep.subr.bf16.mxu0 %v5432
  %7975 = vmatpush1.bf16.msra.mxu0 %v5431
  %7976 = vmatprep.subr.bf16.mxu0 %v5440
  %7977 = vmatpush1.bf16.msra.mxu0 %v5439
  %7978 = vmatprep.subr.bf16.mxu0 %v5448
  %7979 = vmatpush1.bf16.msra.mxu0 %v5447
  %7980 = vmatprep.subr.bf16.mxu0 %v5456
  %7981 = vmatpush1.bf16.msra.mxu0 %v5455
  %7982 = vmatprep.subr.bf16.mxu0 %v5464
  %7983 = vmatpush1.bf16.msra.mxu0 %v5463
  %7984 = vmatprep.subr.bf16.mxu0 %v5472
  %7985 = vmatpush1.bf16.msra.mxu0 %v5471
  %7986 = vmatprep.mubr.bf16.mxu0 %v50
  %7987 = vmatmul.mubr.bf16.gmra.mrb[0].mxu0 %v49
  %v7988 = vpop.f32.mrb[0].mxu0
  %v7989 = vadd.f32 %v7948, %v7988
  %v7990 = vpop.f32.mrb[0].mxu0
  %v7991 = vadd.f32 %v7950, %v7990
  %v7992 = vpop.f32.mrb[0].mxu0
  %v7993 = vpop.f32.mrb[0].mxu0
  %7994 = vdwg.mxu0
  %7995 = vmatprep.subr.bf16.mxu0 %v5480
  %7996 = vmatpush1.bf16.msra.mxu0 %v5479
  %7997 = vmatprep.subr.bf16.mxu0 %v5488
  %7998 = vmatpush1.bf16.msra.mxu0 %v5487
  %7999 = vmatprep.subr.bf16.mxu0 %v5496
  %8000 = vmatpush1.bf16.msra.mxu0 %v5495
  %8001 = vmatprep.subr.bf16.mxu0 %v5504
  %8002 = vmatpush1.bf16.msra.mxu0 %v5503
  %8003 = vmatprep.subr.bf16.mxu0 %v5512
  %8004 = vmatpush1.bf16.msra.mxu0 %v5511
  %8005 = vmatprep.subr.bf16.mxu0 %v5520
  %8006 = vmatpush1.bf16.msra.mxu0 %v5519
  %8007 = vmatprep.subr.bf16.mxu0 %v5528
  %8008 = vmatpush1.bf16.msra.mxu0 %v5527
  %8009 = vmatprep.subr.bf16.mxu0 %v5536
  %8010 = vmatpush1.bf16.msra.mxu0 %v5535
  %8011 = vmatprep.subr.bf16.mxu0 %v5544
  %8012 = vmatpush1.bf16.msra.mxu0 %v5543
  %8013 = vmatprep.subr.bf16.mxu0 %v5552
  %8014 = vmatpush1.bf16.msra.mxu0 %v5551
  %8015 = vmatprep.subr.bf16.mxu0 %v5560
  %8016 = vmatpush1.bf16.msra.mxu0 %v5559
  %8017 = vmatprep.subr.bf16.mxu0 %v5568
  %8018 = vmatpush1.bf16.msra.mxu0 %v5567
  %8019 = vmatprep.subr.bf16.mxu0 %v5576
  %8020 = vmatpush1.bf16.msra.mxu0 %v5575
  %8021 = vmatprep.subr.bf16.mxu0 %v5584
  %8022 = vmatpush1.bf16.msra.mxu0 %v5583
  %8023 = vmatprep.subr.bf16.mxu0 %v5592
  %8024 = vmatpush1.bf16.msra.mxu0 %v5591
  %8025 = vmatprep.subr.bf16.mxu0 %v5600
  %8026 = vmatpush1.bf16.msra.mxu0 %v5599
  %8027 = vmatprep.mubr.bf16.mxu0 %v52
  %8028 = vmatmul.mubr.bf16.gmra.mrb[0].mxu0 %v51
  %v8029 = vpop.f32.mrb[0].mxu0
  %v8030 = vadd.f32 %v7989, %v8029
  %v8031 = vpop.f32.mrb[0].mxu0
  %v8032 = vadd.f32 %v7991, %v8031
  %v8033 = vpop.f32.mrb[0].mxu0
  %v8034 = vpop.f32.mrb[0].mxu0
  %8035 = vdwg.mxu0
  %8036 = vmatprep.subr.bf16.mxu0 %v5608
  %8037 = vmatpush1.bf16.msra.mxu0 %v5607
  %8038 = vmatprep.subr.bf16.mxu0 %v5616
  %8039 = vmatpush1.bf16.msra.mxu0 %v5615
  %8040 = vmatprep.subr.bf16.mxu0 %v5624
  %8041 = vmatpush1.bf16.msra.mxu0 %v5623
  %8042 = vmatprep.subr.bf16.mxu0 %v5632
  %8043 = vmatpush1.bf16.msra.mxu0 %v5631
  %8044 = vmatprep.subr.bf16.mxu0 %v5640
  %8045 = vmatpush1.bf16.msra.mxu0 %v5639
  %8046 = vmatprep.subr.bf16.mxu0 %v5648
  %8047 = vmatpush1.bf16.msra.mxu0 %v5647
  %8048 = vmatprep.subr.bf16.mxu0 %v5656
  %8049 = vmatpush1.bf16.msra.mxu0 %v5655
  %8050 = vmatprep.subr.bf16.mxu0 %v5664
  %8051 = vmatpush1.bf16.msra.mxu0 %v5663
  %8052 = vmatprep.subr.bf16.mxu0 %v5672
  %8053 = vmatpush1.bf16.msra.mxu0 %v5671
  %8054 = vmatprep.subr.bf16.mxu0 %v5680
  %8055 = vmatpush1.bf16.msra.mxu0 %v5679
  %8056 = vmatprep.subr.bf16.mxu0 %v5688
  %8057 = vmatpush1.bf16.msra.mxu0 %v5687
  %8058 = vmatprep.subr.bf16.mxu0 %v5696
  %8059 = vmatpush1.bf16.msra.mxu0 %v5695
  %8060 = vmatprep.subr.bf16.mxu0 %v5704
  %8061 = vmatpush1.bf16.msra.mxu0 %v5703
  %8062 = vmatprep.subr.bf16.mxu0 %v5712
  %8063 = vmatpush1.bf16.msra.mxu0 %v5711
  %8064 = vmatprep.subr.bf16.mxu0 %v5720
  %8065 = vmatpush1.bf16.msra.mxu0 %v5719
  %8066 = vmatprep.subr.bf16.mxu0 %v5728
  %8067 = vmatpush1.bf16.msra.mxu0 %v5727
  %8068 = vmatprep.mubr.bf16.mxu0 %v54
  %8069 = vmatmul.mubr.bf16.gmra.mrb[0].mxu0 %v53
  %v8070 = vpop.f32.mrb[0].mxu0
  %v8071 = vadd.f32 %v8030, %v8070
  %v8072 = vpop.f32.mrb[0].mxu0
  %v8073 = vadd.f32 %v8032, %v8072
  %v8074 = vpop.f32.mrb[0].mxu0
  %v8075 = vpop.f32.mrb[0].mxu0
  %8076 = vdwg.mxu0
  %8077 = vmatprep.subr.bf16.mxu0 %v5736
  %8078 = vmatpush1.bf16.msra.mxu0 %v5735
  %8079 = vmatprep.subr.bf16.mxu0 %v5744
  %8080 = vmatpush1.bf16.msra.mxu0 %v5743
  %8081 = vmatprep.subr.bf16.mxu0 %v5752
  %8082 = vmatpush1.bf16.msra.mxu0 %v5751
  %8083 = vmatprep.subr.bf16.mxu0 %v5760
  %8084 = vmatpush1.bf16.msra.mxu0 %v5759
  %8085 = vmatprep.subr.bf16.mxu0 %v5768
  %8086 = vmatpush1.bf16.msra.mxu0 %v5767
  %8087 = vmatprep.subr.bf16.mxu0 %v5776
  %8088 = vmatpush1.bf16.msra.mxu0 %v5775
  %8089 = vmatprep.subr.bf16.mxu0 %v5784
  %8090 = vmatpush1.bf16.msra.mxu0 %v5783
  %8091 = vmatprep.subr.bf16.mxu0 %v5792
  %8092 = vmatpush1.bf16.msra.mxu0 %v5791
  %8093 = vmatprep.subr.bf16.mxu0 %v5800
  %8094 = vmatpush1.bf16.msra.mxu0 %v5799
  %8095 = vmatprep.subr.bf16.mxu0 %v5808
  %8096 = vmatpush1.bf16.msra.mxu0 %v5807
  %8097 = vmatprep.subr.bf16.mxu0 %v5816
  %8098 = vmatpush1.bf16.msra.mxu0 %v5815
  %8099 = vmatprep.subr.bf16.mxu0 %v5824
  %8100 = vmatpush1.bf16.msra.mxu0 %v5823
  %8101 = vmatprep.subr.bf16.mxu0 %v5832
  %8102 = vmatpush1.bf16.msra.mxu0 %v5831
  %8103 = vmatprep.subr.bf16.mxu0 %v5840
  %8104 = vmatpush1.bf16.msra.mxu0 %v5839
  %8105 = vmatprep.subr.bf16.mxu0 %v5848
  %8106 = vmatpush1.bf16.msra.mxu0 %v5847
  %8107 = vmatprep.subr.bf16.mxu0 %v5856
  %8108 = vmatpush1.bf16.msra.mxu0 %v5855
  %8109 = vmatprep.mubr.bf16.mxu0 %v56
  %8110 = vmatmul.mubr.bf16.gmra.mrb[0].mxu0 %v55
  %v8111 = vpop.f32.mrb[0].mxu0
  %v8112 = vadd.f32 %v8071, %v8111
  %v8113 = vpop.f32.mrb[0].mxu0
  %v8114 = vadd.f32 %v8073, %v8113
  %v8115 = vpop.f32.mrb[0].mxu0
  %v8116 = vpop.f32.mrb[0].mxu0
  %8117 = vdwg.mxu0
  %8118 = vmatprep.subr.bf16.mxu0 %v4714
  %8119 = vmatpush1.bf16.msra.mxu0 %v4713
  %8120 = vmatprep.subr.bf16.mxu0 %v4722
  %8121 = vmatpush1.bf16.msra.mxu0 %v4721
  %8122 = vmatprep.subr.bf16.mxu0 %v4730
  %8123 = vmatpush1.bf16.msra.mxu0 %v4729
  %8124 = vmatprep.subr.bf16.mxu0 %v4738
  %8125 = vmatpush1.bf16.msra.mxu0 %v4737
  %8126 = vmatprep.subr.bf16.mxu0 %v4746
  %8127 = vmatpush1.bf16.msra.mxu0 %v4745
  %8128 = vmatprep.subr.bf16.mxu0 %v4754
  %8129 = vmatpush1.bf16.msra.mxu0 %v4753
  %8130 = vmatprep.subr.bf16.mxu0 %v4762
  %8131 = vmatpush1.bf16.msra.mxu0 %v4761
  %8132 = vmatprep.subr.bf16.mxu0 %v4770
  %8133 = vmatpush1.bf16.msra.mxu0 %v4769
  %8134 = vmatprep.subr.bf16.mxu0 %v4778
  %8135 = vmatpush1.bf16.msra.mxu0 %v4777
  %8136 = vmatprep.subr.bf16.mxu0 %v4786
  %8137 = vmatpush1.bf16.msra.mxu0 %v4785
  %8138 = vmatprep.subr.bf16.mxu0 %v4794
  %8139 = vmatpush1.bf16.msra.mxu0 %v4793
  %8140 = vmatprep.subr.bf16.mxu0 %v4802
  %8141 = vmatpush1.bf16.msra.mxu0 %v4801
  %8142 = vmatprep.subr.bf16.mxu0 %v4810
  %8143 = vmatpush1.bf16.msra.mxu0 %v4809
  %8144 = vmatprep.subr.bf16.mxu0 %v4818
  %8145 = vmatpush1.bf16.msra.mxu0 %v4817
  %8146 = vmatprep.subr.bf16.mxu0 %v4826
  %8147 = vmatpush1.bf16.msra.mxu0 %v4825
  %8148 = vmatprep.subr.bf16.mxu0 %v4834
  %8149 = vmatpush1.bf16.msra.mxu0 %v4833
  %8150 = vmatprep.mubr.bf16.mxu0 %v40
  %8151 = vmatmul.mubr.bf16.gmra.mrb[0].mxu0 %v39
  %v8152 = vpop.f32.mrb[0].mxu0
  %v8153 = vadd.f32 %v1238, %v8152
  %v8154 = vpop.f32.mrb[0].mxu0
  %v8155 = vadd.f32 %v1242, %v8154
  %v8156 = vpop.f32.mrb[0].mxu0
  %v8157 = vpop.f32.mrb[0].mxu0
  %8158 = vdwg.mxu0
  %8159 = vmatprep.subr.bf16.mxu0 %v4842
  %8160 = vmatpush1.bf16.msra.mxu0 %v4841
  %8161 = vmatprep.subr.bf16.mxu0 %v4850
  %8162 = vmatpush1.bf16.msra.mxu0 %v4849
  %8163 = vmatprep.subr.bf16.mxu0 %v4858
  %8164 = vmatpush1.bf16.msra.mxu0 %v4857
  %8165 = vmatprep.subr.bf16.mxu0 %v4866
  %8166 = vmatpush1.bf16.msra.mxu0 %v4865
  %8167 = vmatprep.subr.bf16.mxu0 %v4874
  %8168 = vmatpush1.bf16.msra.mxu0 %v4873
  %8169 = vmatprep.subr.bf16.mxu0 %v4882
  %8170 = vmatpush1.bf16.msra.mxu0 %v4881
  %8171 = vmatprep.subr.bf16.mxu0 %v4890
  %8172 = vmatpush1.bf16.msra.mxu0 %v4889
  %8173 = vmatprep.subr.bf16.mxu0 %v4898
  %8174 = vmatpush1.bf16.msra.mxu0 %v4897
  %8175 = vmatprep.subr.bf16.mxu0 %v4906
  %8176 = vmatpush1.bf16.msra.mxu0 %v4905
  %8177 = vmatprep.subr.bf16.mxu0 %v4914
  %8178 = vmatpush1.bf16.msra.mxu0 %v4913
  %8179 = vmatprep.subr.bf16.mxu0 %v4922
  %8180 = vmatpush1.bf16.msra.mxu0 %v4921
  %8181 = vmatprep.subr.bf16.mxu0 %v4930
  %8182 = vmatpush1.bf16.msra.mxu0 %v4929
  %8183 = vmatprep.subr.bf16.mxu0 %v4938
  %8184 = vmatpush1.bf16.msra.mxu0 %v4937
  %8185 = vmatprep.subr.bf16.mxu0 %v4946
  %8186 = vmatpush1.bf16.msra.mxu0 %v4945
  %8187 = vmatprep.subr.bf16.mxu0 %v4954
  %8188 = vmatpush1.bf16.msra.mxu0 %v4953
  %8189 = vmatprep.subr.bf16.mxu0 %v4962
  %8190 = vmatpush1.bf16.msra.mxu0 %v4961
  %8191 = vmatprep.mubr.bf16.mxu0 %v42
  %8192 = vmatmul.mubr.bf16.gmra.mrb[0].mxu0 %v41
  %v8193 = vpop.f32.mrb[0].mxu0
  %v8194 = vadd.f32 %v8153, %v8193
  %v8195 = vpop.f32.mrb[0].mxu0
  %v8196 = vadd.f32 %v8155, %v8195
  %v8197 = vpop.f32.mrb[0].mxu0
  %v8198 = vpop.f32.mrb[0].mxu0
  %8199 = vdwg.mxu0
  %8200 = vmatprep.subr.bf16.mxu0 %v4970
  %8201 = vmatpush1.bf16.msra.mxu0 %v4969
  %8202 = vmatprep.subr.bf16.mxu0 %v4978
  %8203 = vmatpush1.bf16.msra.mxu0 %v4977
  %8204 = vmatprep.subr.bf16.mxu0 %v4986
  %8205 = vmatpush1.bf16.msra.mxu0 %v4985
  %8206 = vmatprep.subr.bf16.mxu0 %v4994
  %8207 = vmatpush1.bf16.msra.mxu0 %v4993
  %8208 = vmatprep.subr.bf16.mxu0 %v5002
  %8209 = vmatpush1.bf16.msra.mxu0 %v5001
  %8210 = vmatprep.subr.bf16.mxu0 %v5010
  %8211 = vmatpush1.bf16.msra.mxu0 %v5009
  %8212 = vmatprep.subr.bf16.mxu0 %v5018
  %8213 = vmatpush1.bf16.msra.mxu0 %v5017
  %8214 = vmatprep.subr.bf16.mxu0 %v5026
  %8215 = vmatpush1.bf16.msra.mxu0 %v5025
  %8216 = vmatprep.subr.bf16.mxu0 %v5034
  %8217 = vmatpush1.bf16.msra.mxu0 %v5033
  %8218 = vmatprep.subr.bf16.mxu0 %v5042
  %8219 = vmatpush1.bf16.msra.mxu0 %v5041
  %8220 = vmatprep.subr.bf16.mxu0 %v5050
  %8221 = vmatpush1.bf16.msra.mxu0 %v5049
  %8222 = vmatprep.subr.bf16.mxu0 %v5058
  %8223 = vmatpush1.bf16.msra.mxu0 %v5057
  %8224 = vmatprep.subr.bf16.mxu0 %v5066
  %8225 = vmatpush1.bf16.msra.mxu0 %v5065
  %8226 = vmatprep.subr.bf16.mxu0 %v5074
  %8227 = vmatpush1.bf16.msra.mxu0 %v5073
  %8228 = vmatprep.subr.bf16.mxu0 %v5082
  %8229 = vmatpush1.bf16.msra.mxu0 %v5081
  %8230 = vmatprep.subr.bf16.mxu0 %v5090
  %8231 = vmatpush1.bf16.msra.mxu0 %v5089
  %8232 = vmatprep.mubr.bf16.mxu0 %v44
  %8233 = vmatmul.mubr.bf16.gmra.mrb[0].mxu0 %v43
  %v8234 = vpop.f32.mrb[0].mxu0
  %v8235 = vadd.f32 %v8194, %v8234
  %v8236 = vpop.f32.mrb[0].mxu0
  %v8237 = vadd.f32 %v8196, %v8236
  %v8238 = vpop.f32.mrb[0].mxu0
  %v8239 = vpop.f32.mrb[0].mxu0
  %8240 = vdwg.mxu0
  %8241 = vmatprep.subr.bf16.mxu0 %v5098
  %8242 = vmatpush1.bf16.msra.mxu0 %v5097
  %8243 = vmatprep.subr.bf16.mxu0 %v5106
  %8244 = vmatpush1.bf16.msra.mxu0 %v5105
  %8245 = vmatprep.subr.bf16.mxu0 %v5114
  %8246 = vmatpush1.bf16.msra.mxu0 %v5113
  %8247 = vmatprep.subr.bf16.mxu0 %v5122
  %8248 = vmatpush1.bf16.msra.mxu0 %v5121
  %8249 = vmatprep.subr.bf16.mxu0 %v5130
  %8250 = vmatpush1.bf16.msra.mxu0 %v5129
  %8251 = vmatprep.subr.bf16.mxu0 %v5138
  %8252 = vmatpush1.bf16.msra.mxu0 %v5137
  %8253 = vmatprep.subr.bf16.mxu0 %v5146
  %8254 = vmatpush1.bf16.msra.mxu0 %v5145
  %8255 = vmatprep.subr.bf16.mxu0 %v5154
  %8256 = vmatpush1.bf16.msra.mxu0 %v5153
  %8257 = vmatprep.subr.bf16.mxu0 %v5162
  %8258 = vmatpush1.bf16.msra.mxu0 %v5161
  %8259 = vmatprep.subr.bf16.mxu0 %v5170
  %8260 = vmatpush1.bf16.msra.mxu0 %v5169
  %8261 = vmatprep.subr.bf16.mxu0 %v5178
  %8262 = vmatpush1.bf16.msra.mxu0 %v5177
  %8263 = vmatprep.subr.bf16.mxu0 %v5186
  %8264 = vmatpush1.bf16.msra.mxu0 %v5185
  %8265 = vmatprep.subr.bf16.mxu0 %v5194
  %8266 = vmatpush1.bf16.msra.mxu0 %v5193
  %8267 = vmatprep.subr.bf16.mxu0 %v5202
  %8268 = vmatpush1.bf16.msra.mxu0 %v5201
  %8269 = vmatprep.subr.bf16.mxu0 %v5210
  %8270 = vmatpush1.bf16.msra.mxu0 %v5209
  %8271 = vmatprep.subr.bf16.mxu0 %v5218
  %8272 = vmatpush1.bf16.msra.mxu0 %v5217
  %8273 = vmatprep.mubr.bf16.mxu0 %v46
  %8274 = vmatmul.mubr.bf16.gmra.mrb[0].mxu0 %v45
  %v8275 = vpop.f32.mrb[0].mxu0
  %v8276 = vadd.f32 %v8235, %v8275
  %v8277 = vpop.f32.mrb[0].mxu0
  %v8278 = vadd.f32 %v8237, %v8277
  %v8279 = vpop.f32.mrb[0].mxu0
  %v8280 = vpop.f32.mrb[0].mxu0
  %8281 = vdwg.mxu0
  %8282 = vmatprep.subr.bf16.mxu0 %v5226
  %8283 = vmatpush1.bf16.msra.mxu0 %v5225
  %8284 = vmatprep.subr.bf16.mxu0 %v5234
  %8285 = vmatpush1.bf16.msra.mxu0 %v5233
  %8286 = vmatprep.subr.bf16.mxu0 %v5242
  %8287 = vmatpush1.bf16.msra.mxu0 %v5241
  %8288 = vmatprep.subr.bf16.mxu0 %v5250
  %8289 = vmatpush1.bf16.msra.mxu0 %v5249
  %8290 = vmatprep.subr.bf16.mxu0 %v5258
  %8291 = vmatpush1.bf16.msra.mxu0 %v5257
  %8292 = vmatprep.subr.bf16.mxu0 %v5266
  %8293 = vmatpush1.bf16.msra.mxu0 %v5265
  %8294 = vmatprep.subr.bf16.mxu0 %v5274
  %8295 = vmatpush1.bf16.msra.mxu0 %v5273
  %8296 = vmatprep.subr.bf16.mxu0 %v5282
  %8297 = vmatpush1.bf16.msra.mxu0 %v5281
  %8298 = vmatprep.subr.bf16.mxu0 %v5290
  %8299 = vmatpush1.bf16.msra.mxu0 %v5289
  %8300 = vmatprep.subr.bf16.mxu0 %v5298
  %8301 = vmatpush1.bf16.msra.mxu0 %v5297
  %8302 = vmatprep.subr.bf16.mxu0 %v5306
  %8303 = vmatpush1.bf16.msra.mxu0 %v5305
  %8304 = vmatprep.subr.bf16.mxu0 %v5314
  %8305 = vmatpush1.bf16.msra.mxu0 %v5313
  %8306 = vmatprep.subr.bf16.mxu0 %v5322
  %8307 = vmatpush1.bf16.msra.mxu0 %v5321
  %8308 = vmatprep.subr.bf16.mxu0 %v5330
  %8309 = vmatpush1.bf16.msra.mxu0 %v5329
  %8310 = vmatprep.subr.bf16.mxu0 %v5338
  %8311 = vmatpush1.bf16.msra.mxu0 %v5337
  %8312 = vmatprep.subr.bf16.mxu0 %v5346
  %8313 = vmatpush1.bf16.msra.mxu0 %v5345
  %8314 = vmatprep.mubr.bf16.mxu0 %v48
  %8315 = vmatmul.mubr.bf16.gmra.mrb[0].mxu0 %v47
  %v8316 = vpop.f32.mrb[0].mxu0
  %v8317 = vadd.f32 %v8276, %v8316
  %v8318 = vpop.f32.mrb[0].mxu0
  %v8319 = vadd.f32 %v8278, %v8318
  %v8320 = vpop.f32.mrb[0].mxu0
  %v8321 = vpop.f32.mrb[0].mxu0
  %8322 = vdwg.mxu0
  %8323 = vmatprep.subr.bf16.mxu0 %v5354
  %8324 = vmatpush1.bf16.msra.mxu0 %v5353
  %8325 = vmatprep.subr.bf16.mxu0 %v5362
  %8326 = vmatpush1.bf16.msra.mxu0 %v5361
  %8327 = vmatprep.subr.bf16.mxu0 %v5370
  %8328 = vmatpush1.bf16.msra.mxu0 %v5369
  %8329 = vmatprep.subr.bf16.mxu0 %v5378
  %8330 = vmatpush1.bf16.msra.mxu0 %v5377
  %8331 = vmatprep.subr.bf16.mxu0 %v5386
  %8332 = vmatpush1.bf16.msra.mxu0 %v5385
  %8333 = vmatprep.subr.bf16.mxu0 %v5394
  %8334 = vmatpush1.bf16.msra.mxu0 %v5393
  %8335 = vmatprep.subr.bf16.mxu0 %v5402
  %8336 = vmatpush1.bf16.msra.mxu0 %v5401
  %8337 = vmatprep.subr.bf16.mxu0 %v5410
  %8338 = vmatpush1.bf16.msra.mxu0 %v5409
  %8339 = vmatprep.subr.bf16.mxu0 %v5418
  %8340 = vmatpush1.bf16.msra.mxu0 %v5417
  %8341 = vmatprep.subr.bf16.mxu0 %v5426
  %8342 = vmatpush1.bf16.msra.mxu0 %v5425
  %8343 = vmatprep.subr.bf16.mxu0 %v5434
  %8344 = vmatpush1.bf16.msra.mxu0 %v5433
  %8345 = vmatprep.subr.bf16.mxu0 %v5442
  %8346 = vmatpush1.bf16.msra.mxu0 %v5441
  %8347 = vmatprep.subr.bf16.mxu0 %v5450
  %8348 = vmatpush1.bf16.msra.mxu0 %v5449
  %8349 = vmatprep.subr.bf16.mxu0 %v5458
  %8350 = vmatpush1.bf16.msra.mxu0 %v5457
  %8351 = vmatprep.subr.bf16.mxu0 %v5466
  %8352 = vmatpush1.bf16.msra.mxu0 %v5465
  %8353 = vmatprep.subr.bf16.mxu0 %v5474
  %8354 = vmatpush1.bf16.msra.mxu0 %v5473
  %8355 = vmatprep.mubr.bf16.mxu0 %v50
  %8356 = vmatmul.mubr.bf16.gmra.mrb[0].mxu0 %v49
  %v8357 = vpop.f32.mrb[0].mxu0
  %v8358 = vadd.f32 %v8317, %v8357
  %v8359 = vpop.f32.mrb[0].mxu0
  %v8360 = vadd.f32 %v8319, %v8359
  %v8361 = vpop.f32.mrb[0].mxu0
  %v8362 = vpop.f32.mrb[0].mxu0
  %8363 = vdwg.mxu0
  %8364 = vmatprep.subr.bf16.mxu0 %v5482
  %8365 = vmatpush1.bf16.msra.mxu0 %v5481
  %8366 = vmatprep.subr.bf16.mxu0 %v5490
  %8367 = vmatpush1.bf16.msra.mxu0 %v5489
  %8368 = vmatprep.subr.bf16.mxu0 %v5498
  %8369 = vmatpush1.bf16.msra.mxu0 %v5497
  %8370 = vmatprep.subr.bf16.mxu0 %v5506
  %8371 = vmatpush1.bf16.msra.mxu0 %v5505
  %8372 = vmatprep.subr.bf16.mxu0 %v5514
  %8373 = vmatpush1.bf16.msra.mxu0 %v5513
  %8374 = vmatprep.subr.bf16.mxu0 %v5522
  %8375 = vmatpush1.bf16.msra.mxu0 %v5521
  %8376 = vmatprep.subr.bf16.mxu0 %v5530
  %8377 = vmatpush1.bf16.msra.mxu0 %v5529
  %8378 = vmatprep.subr.bf16.mxu0 %v5538
  %8379 = vmatpush1.bf16.msra.mxu0 %v5537
  %8380 = vmatprep.subr.bf16.mxu0 %v5546
  %8381 = vmatpush1.bf16.msra.mxu0 %v5545
  %8382 = vmatprep.subr.bf16.mxu0 %v5554
  %8383 = vmatpush1.bf16.msra.mxu0 %v5553
  %8384 = vmatprep.subr.bf16.mxu0 %v5562
  %8385 = vmatpush1.bf16.msra.mxu0 %v5561
  %8386 = vmatprep.subr.bf16.mxu0 %v5570
  %8387 = vmatpush1.bf16.msra.mxu0 %v5569
  %8388 = vmatprep.subr.bf16.mxu0 %v5578
  %8389 = vmatpush1.bf16.msra.mxu0 %v5577
  %8390 = vmatprep.subr.bf16.mxu0 %v5586
  %8391 = vmatpush1.bf16.msra.mxu0 %v5585
  %8392 = vmatprep.subr.bf16.mxu0 %v5594
  %8393 = vmatpush1.bf16.msra.mxu0 %v5593
  %8394 = vmatprep.subr.bf16.mxu0 %v5602
  %8395 = vmatpush1.bf16.msra.mxu0 %v5601
  %8396 = vmatprep.mubr.bf16.mxu0 %v52
  %8397 = vmatmul.mubr.bf16.gmra.mrb[0].mxu0 %v51
  %v8398 = vpop.f32.mrb[0].mxu0
  %v8399 = vadd.f32 %v8358, %v8398
  %v8400 = vpop.f32.mrb[0].mxu0
  %v8401 = vadd.f32 %v8360, %v8400
  %v8402 = vpop.f32.mrb[0].mxu0
  %v8403 = vpop.f32.mrb[0].mxu0
  %8404 = vdwg.mxu0
  %8405 = vmatprep.subr.bf16.mxu0 %v5610
  %8406 = vmatpush1.bf16.msra.mxu0 %v5609
  %8407 = vmatprep.subr.bf16.mxu0 %v5618
  %8408 = vmatpush1.bf16.msra.mxu0 %v5617
  %8409 = vmatprep.subr.bf16.mxu0 %v5626
  %8410 = vmatpush1.bf16.msra.mxu0 %v5625
  %8411 = vmatprep.subr.bf16.mxu0 %v5634
  %8412 = vmatpush1.bf16.msra.mxu0 %v5633
  %8413 = vmatprep.subr.bf16.mxu0 %v5642
  %8414 = vmatpush1.bf16.msra.mxu0 %v5641
  %8415 = vmatprep.subr.bf16.mxu0 %v5650
  %8416 = vmatpush1.bf16.msra.mxu0 %v5649
  %8417 = vmatprep.subr.bf16.mxu0 %v5658
  %8418 = vmatpush1.bf16.msra.mxu0 %v5657
  %8419 = vmatprep.subr.bf16.mxu0 %v5666
  %8420 = vmatpush1.bf16.msra.mxu0 %v5665
  %8421 = vmatprep.subr.bf16.mxu0 %v5674
  %8422 = vmatpush1.bf16.msra.mxu0 %v5673
  %8423 = vmatprep.subr.bf16.mxu0 %v5682
  %8424 = vmatpush1.bf16.msra.mxu0 %v5681
  %8425 = vmatprep.subr.bf16.mxu0 %v5690
  %8426 = vmatpush1.bf16.msra.mxu0 %v5689
  %8427 = vmatprep.subr.bf16.mxu0 %v5698
  %8428 = vmatpush1.bf16.msra.mxu0 %v5697
  %8429 = vmatprep.subr.bf16.mxu0 %v5706
  %8430 = vmatpush1.bf16.msra.mxu0 %v5705
  %8431 = vmatprep.subr.bf16.mxu0 %v5714
  %8432 = vmatpush1.bf16.msra.mxu0 %v5713
  %8433 = vmatprep.subr.bf16.mxu0 %v5722
  %8434 = vmatpush1.bf16.msra.mxu0 %v5721
  %8435 = vmatprep.subr.bf16.mxu0 %v5730
  %8436 = vmatpush1.bf16.msra.mxu0 %v5729
  %8437 = vmatprep.mubr.bf16.mxu0 %v54
  %8438 = vmatmul.mubr.bf16.gmra.mrb[0].mxu0 %v53
  %v8439 = vpop.f32.mrb[0].mxu0
  %v8440 = vadd.f32 %v8399, %v8439
  %v8441 = vpop.f32.mrb[0].mxu0
  %v8442 = vadd.f32 %v8401, %v8441
  %v8443 = vpop.f32.mrb[0].mxu0
  %v8444 = vpop.f32.mrb[0].mxu0
  %8445 = vdwg.mxu0
  %8446 = vmatprep.subr.bf16.mxu0 %v5738
  %8447 = vmatpush1.bf16.msra.mxu0 %v5737
  %8448 = vmatprep.subr.bf16.mxu0 %v5746
  %8449 = vmatpush1.bf16.msra.mxu0 %v5745
  %8450 = vmatprep.subr.bf16.mxu0 %v5754
  %8451 = vmatpush1.bf16.msra.mxu0 %v5753
  %8452 = vmatprep.subr.bf16.mxu0 %v5762
  %8453 = vmatpush1.bf16.msra.mxu0 %v5761
  %8454 = vmatprep.subr.bf16.mxu0 %v5770
  %8455 = vmatpush1.bf16.msra.mxu0 %v5769
  %8456 = vmatprep.subr.bf16.mxu0 %v5778
  %8457 = vmatpush1.bf16.msra.mxu0 %v5777
  %8458 = vmatprep.subr.bf16.mxu0 %v5786
  %8459 = vmatpush1.bf16.msra.mxu0 %v5785
  %8460 = vmatprep.subr.bf16.mxu0 %v5794
  %8461 = vmatpush1.bf16.msra.mxu0 %v5793
  %8462 = vmatprep.subr.bf16.mxu0 %v5802
  %8463 = vmatpush1.bf16.msra.mxu0 %v5801
  %8464 = vmatprep.subr.bf16.mxu0 %v5810
  %8465 = vmatpush1.bf16.msra.mxu0 %v5809
  %8466 = vmatprep.subr.bf16.mxu0 %v5818
  %8467 = vmatpush1.bf16.msra.mxu0 %v5817
  %8468 = vmatprep.subr.bf16.mxu0 %v5826
  %8469 = vmatpush1.bf16.msra.mxu0 %v5825
  %8470 = vmatprep.subr.bf16.mxu0 %v5834
  %8471 = vmatpush1.bf16.msra.mxu0 %v5833
  %8472 = vmatprep.subr.bf16.mxu0 %v5842
  %8473 = vmatpush1.bf16.msra.mxu0 %v5841
  %8474 = vmatprep.subr.bf16.mxu0 %v5850
  %8475 = vmatpush1.bf16.msra.mxu0 %v5849
  %8476 = vmatprep.subr.bf16.mxu0 %v5858
  %8477 = vmatpush1.bf16.msra.mxu0 %v5857
  %8478 = vmatprep.mubr.bf16.mxu0 %v56
  %8479 = vmatmul.mubr.bf16.gmra.mrb[0].mxu0 %v55
  %v8480 = vpop.f32.mrb[0].mxu0
  %v8481 = vadd.f32 %v8440, %v8480
  %v8482 = vpop.f32.mrb[0].mxu0
  %v8483 = vadd.f32 %v8442, %v8482
  %v8484 = vpop.f32.mrb[0].mxu0
  %v8485 = vpop.f32.mrb[0].mxu0
  %8486 = vdwg.mxu0
  %v8487 = vmax.f32 %v7374, 0.0
  %v8488 = vmax.f32 %v7376, 0.0
  %v8489 = vmax.f32 %v7743, 0.0
  %v8490 = vmax.f32 %v7745, 0.0
  %v8491 = vmax.f32 %v8112, 0.0
  %v8492 = vmax.f32 %v8114, 0.0
  %v8493 = vmax.f32 %v8481, 0.0
  %v8494 = vmax.f32 %v8483, 0.0
  %v8495 = vpack.c.bf16 %v8487, %v8487
  %v8496 = vpack.c.bf16 %v8488, %v8488
  %v8497 = vpack.c.bf16 %v8489, %v8489
  %v8498 = vpack.c.bf16 %v8490, %v8490
  %v8499 = vpack.c.bf16 %v8491, %v8491
  %v8500 = vpack.c.bf16 %v8492, %v8492
  %v8501 = vpack.c.bf16 %v8493, %v8493
  %v8502 = vpack.c.bf16 %v8494, %v8494
  %v8503 = vld [vmem:[%s3] sm:$0xf]
  %v8504 = vld [vmem:[%s3 + $0x4] sm:$0xf]
  %v8505 = vld [vmem:[%s3 + $0x8] sm:$0xf]
  %v8506 = vld [vmem:[%s3 + $0xc] sm:$0xf]
  %v8507 = vld [vmem:[%s3 + $0x10] sm:$0xf]
  %v8508 = vld [vmem:[%s3 + $0x14] sm:$0xf]
  %v8509 = vld [vmem:[%s3 + $0x18] sm:$0xf]
  %v8510 = vld [vmem:[%s3 + $0x1c] sm:$0xf]
  %v8511 = vld [vmem:[%s3 + $0x20] sm:$0xf]
  %v8512 = vld [vmem:[%s3 + $0x24] sm:$0xf]
  %v8513 = vld [vmem:[%s3 + $0x28] sm:$0xf]
  %v8514 = vld [vmem:[%s3 + $0x2c] sm:$0xf]
  %v8515 = vld [vmem:[%s3 + $0x30] sm:$0xf]
  %v8516 = vld [vmem:[%s3 + $0x34] sm:$0xf]
  %v8517 = vld [vmem:[%s3 + $0x38] sm:$0xf]
  %v8518 = vld [vmem:[%s3 + $0x3c] sm:$0xf]
  %v8519 = vld [vmem:[%s3 + $0x40] sm:$0xf]
  %v8520 = vld [vmem:[%s3 + $0x44] sm:$0xf]
  %v8521 = vld [vmem:[%s3 + $0x48] sm:$0xf]
  %v8522 = vld [vmem:[%s3 + $0x4c] sm:$0xf]
  %v8523 = vld [vmem:[%s3 + $0x50] sm:$0xf]
  %v8524 = vld [vmem:[%s3 + $0x54] sm:$0xf]
  %v8525 = vld [vmem:[%s3 + $0x58] sm:$0xf]
  %v8526 = vld [vmem:[%s3 + $0x5c] sm:$0xf]
  %v8527 = vld [vmem:[%s3 + $0x60] sm:$0xf]
  %v8528 = vld [vmem:[%s3 + $0x64] sm:$0xf]
  %v8529 = vld [vmem:[%s3 + $0x68] sm:$0xf]
  %v8530 = vld [vmem:[%s3 + $0x6c] sm:$0xf]
  %v8531 = vld [vmem:[%s3 + $0x70] sm:$0xf]
  %v8532 = vld [vmem:[%s3 + $0x74] sm:$0xf]
  %v8533 = vld [vmem:[%s3 + $0x78] sm:$0xf]
  %v8534 = vld [vmem:[%s3 + $0x7c] sm:$0xf]
  %v8535 = vld [vmem:[%s3 + $0x80] sm:$0xf]
  %v8536 = vld [vmem:[%s3 + $0x84] sm:$0xf]
  %v8537 = vld [vmem:[%s3 + $0x88] sm:$0xf]
  %v8538 = vld [vmem:[%s3 + $0x8c] sm:$0xf]
  %v8539 = vld [vmem:[%s3 + $0x90] sm:$0xf]
  %v8540 = vld [vmem:[%s3 + $0x94] sm:$0xf]
  %v8541 = vld [vmem:[%s3 + $0x98] sm:$0xf]
  %v8542 = vld [vmem:[%s3 + $0x9c] sm:$0xf]
  %v8543 = vld [vmem:[%s3 + $0xa0] sm:$0xf]
  %v8544 = vld [vmem:[%s3 + $0xa4] sm:$0xf]
  %v8545 = vld [vmem:[%s3 + $0xa8] sm:$0xf]
  %v8546 = vld [vmem:[%s3 + $0xac] sm:$0xf]
  %v8547 = vld [vmem:[%s3 + $0xb0] sm:$0xf]
  %v8548 = vld [vmem:[%s3 + $0xb4] sm:$0xf]
  %v8549 = vld [vmem:[%s3 + $0xb8] sm:$0xf]
  %v8550 = vld [vmem:[%s3 + $0xbc] sm:$0xf]
  %v8551 = vld [vmem:[%s3 + $0xc0] sm:$0xf]
  %v8552 = vld [vmem:[%s3 + $0xc4] sm:$0xf]
  %v8553 = vld [vmem:[%s3 + $0xc8] sm:$0xf]
  %v8554 = vld [vmem:[%s3 + $0xcc] sm:$0xf]
  %v8555 = vld [vmem:[%s3 + $0xd0] sm:$0xf]
  %v8556 = vld [vmem:[%s3 + $0xd4] sm:$0xf]
  %v8557 = vld [vmem:[%s3 + $0xd8] sm:$0xf]
  %v8558 = vld [vmem:[%s3 + $0xdc] sm:$0xf]
  %v8559 = vld [vmem:[%s3 + $0xe0] sm:$0xf]
  %v8560 = vld [vmem:[%s3 + $0xe4] sm:$0xf]
  %v8561 = vld [vmem:[%s3 + $0xe8] sm:$0xf]
  %v8562 = vld [vmem:[%s3 + $0xec] sm:$0xf]
  %v8563 = vld [vmem:[%s3 + $0xf0] sm:$0xf]
  %v8564 = vld [vmem:[%s3 + $0xf4] sm:$0xf]
  %v8565 = vld [vmem:[%s3 + $0xf8] sm:$0xf]
  %v8566 = vld [vmem:[%s3 + $0xfc] sm:$0xf]
  %v8567 = vld [vmem:[%s3 + $0x100] sm:$0xf]
  %v8568 = vld [vmem:[%s3 + $0x104] sm:$0xf]
  %v8569 = vld [vmem:[%s3 + $0x108] sm:$0xf]
  %v8570 = vld [vmem:[%s3 + $0x10c] sm:$0xf]
  %v8571 = vld [vmem:[%s3 + $0x110] sm:$0xf]
  %v8572 = vld [vmem:[%s3 + $0x114] sm:$0xf]
  %v8573 = vld [vmem:[%s3 + $0x118] sm:$0xf]
  %v8574 = vld [vmem:[%s3 + $0x11c] sm:$0xf]
  %v8575 = vld [vmem:[%s3 + $0x120] sm:$0xf]
  %v8576 = vld [vmem:[%s3 + $0x124] sm:$0xf]
  %v8577 = vld [vmem:[%s3 + $0x128] sm:$0xf]
  %v8578 = vld [vmem:[%s3 + $0x12c] sm:$0xf]
  %v8579 = vld [vmem:[%s3 + $0x130] sm:$0xf]
  %v8580 = vld [vmem:[%s3 + $0x134] sm:$0xf]
  %v8581 = vld [vmem:[%s3 + $0x138] sm:$0xf]
  %v8582 = vld [vmem:[%s3 + $0x13c] sm:$0xf]
  %v8583 = vld [vmem:[%s3 + $0x140] sm:$0xf]
  %v8584 = vld [vmem:[%s3 + $0x144] sm:$0xf]
  %v8585 = vld [vmem:[%s3 + $0x148] sm:$0xf]
  %v8586 = vld [vmem:[%s3 + $0x14c] sm:$0xf]
  %v8587 = vld [vmem:[%s3 + $0x150] sm:$0xf]
  %v8588 = vld [vmem:[%s3 + $0x154] sm:$0xf]
  %v8589 = vld [vmem:[%s3 + $0x158] sm:$0xf]
  %v8590 = vld [vmem:[%s3 + $0x15c] sm:$0xf]
  %v8591 = vld [vmem:[%s3 + $0x160] sm:$0xf]
  %v8592 = vld [vmem:[%s3 + $0x164] sm:$0xf]
  %v8593 = vld [vmem:[%s3 + $0x168] sm:$0xf]
  %v8594 = vld [vmem:[%s3 + $0x16c] sm:$0xf]
  %v8595 = vld [vmem:[%s3 + $0x170] sm:$0xf]
  %v8596 = vld [vmem:[%s3 + $0x174] sm:$0xf]
  %v8597 = vld [vmem:[%s3 + $0x178] sm:$0xf]
  %v8598 = vld [vmem:[%s3 + $0x17c] sm:$0xf]
  %v8599 = vld [vmem:[%s3 + $0x180] sm:$0xf]
  %v8600 = vld [vmem:[%s3 + $0x184] sm:$0xf]
  %v8601 = vld [vmem:[%s3 + $0x188] sm:$0xf]
  %v8602 = vld [vmem:[%s3 + $0x18c] sm:$0xf]
  %v8603 = vld [vmem:[%s3 + $0x190] sm:$0xf]
  %v8604 = vld [vmem:[%s3 + $0x194] sm:$0xf]
  %v8605 = vld [vmem:[%s3 + $0x198] sm:$0xf]
  %v8606 = vld [vmem:[%s3 + $0x19c] sm:$0xf]
  %v8607 = vld [vmem:[%s3 + $0x1a0] sm:$0xf]
  %v8608 = vld [vmem:[%s3 + $0x1a4] sm:$0xf]
  %v8609 = vld [vmem:[%s3 + $0x1a8] sm:$0xf]
  %v8610 = vld [vmem:[%s3 + $0x1ac] sm:$0xf]
  %v8611 = vld [vmem:[%s3 + $0x1b0] sm:$0xf]
  %v8612 = vld [vmem:[%s3 + $0x1b4] sm:$0xf]
  %v8613 = vld [vmem:[%s3 + $0x1b8] sm:$0xf]
  %v8614 = vld [vmem:[%s3 + $0x1bc] sm:$0xf]
  %v8615 = vld [vmem:[%s3 + $0x1c0] sm:$0xf]
  %v8616 = vld [vmem:[%s3 + $0x1c4] sm:$0xf]
  %v8617 = vld [vmem:[%s3 + $0x1c8] sm:$0xf]
  %v8618 = vld [vmem:[%s3 + $0x1cc] sm:$0xf]
  %v8619 = vld [vmem:[%s3 + $0x1d0] sm:$0xf]
  %v8620 = vld [vmem:[%s3 + $0x1d4] sm:$0xf]
  %v8621 = vld [vmem:[%s3 + $0x1d8] sm:$0xf]
  %v8622 = vld [vmem:[%s3 + $0x1dc] sm:$0xf]
  %v8623 = vld [vmem:[%s3 + $0x1e0] sm:$0xf]
  %v8624 = vld [vmem:[%s3 + $0x1e4] sm:$0xf]
  %v8625 = vld [vmem:[%s3 + $0x1e8] sm:$0xf]
  %v8626 = vld [vmem:[%s3 + $0x1ec] sm:$0xf]
  %v8627 = vld [vmem:[%s3 + $0x1f0] sm:$0xf]
  %v8628 = vld [vmem:[%s3 + $0x1f4] sm:$0xf]
  %v8629 = vld [vmem:[%s3 + $0x1f8] sm:$0xf]
  %v8630 = vld [vmem:[%s3 + $0x1fc] sm:$0xf]
  %v8631 = vld [vmem:[%s4] sm:$0x1]
  %v8633 = vlaneseq
  %v8634 = vshrl.u32 %v8633, 7
  %v8635 = vsub.s32 0, %v8634
  %v8636 = vrot.slane %v8631, %v8635
  %v8766 = vunpack.c.l.b16 %v8503
  %v8767 = vunpack.c.l.b16 %v8504
  %v8768 = vunpack.c.l.b16 %v8505
  %v8769 = vunpack.c.l.b16 %v8506
  %v8770 = vunpack.c.l.b16 %v8507
  %v8771 = vunpack.c.l.b16 %v8508
  %v8772 = vunpack.c.l.b16 %v8509
  %v8773 = vunpack.c.l.b16 %v8510
  %v8774 = vunpack.c.l.b16 %v8511
  %v8775 = vunpack.c.l.b16 %v8512
  %v8776 = vunpack.c.l.b16 %v8513
  %v8777 = vunpack.c.l.b16 %v8514
  %v8778 = vunpack.c.l.b16 %v8515
  %v8779 = vunpack.c.l.b16 %v8516
  %v8780 = vunpack.c.l.b16 %v8517
  %v8781 = vunpack.c.l.b16 %v8518
  %v8782 = vunpack.c.l.b16 %v8519
  %v8783 = vunpack.c.l.b16 %v8520
  %v8784 = vunpack.c.l.b16 %v8521
  %v8785 = vunpack.c.l.b16 %v8522
  %v8786 = vunpack.c.l.b16 %v8523
  %v8787 = vunpack.c.l.b16 %v8524
  %v8788 = vunpack.c.l.b16 %v8525
  %v8789 = vunpack.c.l.b16 %v8526
  %v8790 = vunpack.c.l.b16 %v8527
  %v8791 = vunpack.c.l.b16 %v8528
  %v8792 = vunpack.c.l.b16 %v8529
  %v8793 = vunpack.c.l.b16 %v8530
  %v8794 = vunpack.c.l.b16 %v8531
  %v8795 = vunpack.c.l.b16 %v8532
  %v8796 = vunpack.c.l.b16 %v8533
  %v8797 = vunpack.c.l.b16 %v8534
  %v8798 = vunpack.c.l.b16 %v8535
  %v8799 = vunpack.c.l.b16 %v8536
  %v8800 = vunpack.c.l.b16 %v8537
  %v8801 = vunpack.c.l.b16 %v8538
  %v8802 = vunpack.c.l.b16 %v8539
  %v8803 = vunpack.c.l.b16 %v8540
  %v8804 = vunpack.c.l.b16 %v8541
  %v8805 = vunpack.c.l.b16 %v8542
  %v8806 = vunpack.c.l.b16 %v8543
  %v8807 = vunpack.c.l.b16 %v8544
  %v8808 = vunpack.c.l.b16 %v8545
  %v8809 = vunpack.c.l.b16 %v8546
  %v8810 = vunpack.c.l.b16 %v8547
  %v8811 = vunpack.c.l.b16 %v8548
  %v8812 = vunpack.c.l.b16 %v8549
  %v8813 = vunpack.c.l.b16 %v8550
  %v8814 = vunpack.c.l.b16 %v8551
  %v8815 = vunpack.c.l.b16 %v8552
  %v8816 = vunpack.c.l.b16 %v8553
  %v8817 = vunpack.c.l.b16 %v8554
  %v8818 = vunpack.c.l.b16 %v8555
  %v8819 = vunpack.c.l.b16 %v8556
  %v8820 = vunpack.c.l.b16 %v8557
  %v8821 = vunpack.c.l.b16 %v8558
  %v8822 = vunpack.c.l.b16 %v8559
  %v8823 = vunpack.c.l.b16 %v8560
  %v8824 = vunpack.c.l.b16 %v8561
  %v8825 = vunpack.c.l.b16 %v8562
  %v8826 = vunpack.c.l.b16 %v8563
  %v8827 = vunpack.c.l.b16 %v8564
  %v8828 = vunpack.c.l.b16 %v8565
  %v8829 = vunpack.c.l.b16 %v8566
  %v8830 = vunpack.c.l.b16 %v8567
  %v8831 = vunpack.c.l.b16 %v8568
  %v8832 = vunpack.c.l.b16 %v8569
  %v8833 = vunpack.c.l.b16 %v8570
  %v8834 = vunpack.c.l.b16 %v8571
  %v8835 = vunpack.c.l.b16 %v8572
  %v8836 = vunpack.c.l.b16 %v8573
  %v8837 = vunpack.c.l.b16 %v8574
  %v8838 = vunpack.c.l.b16 %v8575
  %v8839 = vunpack.c.l.b16 %v8576
  %v8840 = vunpack.c.l.b16 %v8577
  %v8841 = vunpack.c.l.b16 %v8578
  %v8842 = vunpack.c.l.b16 %v8579
  %v8843 = vunpack.c.l.b16 %v8580
  %v8844 = vunpack.c.l.b16 %v8581
  %v8845 = vunpack.c.l.b16 %v8582
  %v8846 = vunpack.c.l.b16 %v8583
  %v8847 = vunpack.c.l.b16 %v8584
  %v8848 = vunpack.c.l.b16 %v8585
  %v8849 = vunpack.c.l.b16 %v8586
  %v8850 = vunpack.c.l.b16 %v8587
  %v8851 = vunpack.c.l.b16 %v8588
  %v8852 = vunpack.c.l.b16 %v8589
  %v8853 = vunpack.c.l.b16 %v8590
  %v8854 = vunpack.c.l.b16 %v8591
  %v8855 = vunpack.c.l.b16 %v8592
  %v8856 = vunpack.c.l.b16 %v8593
  %v8857 = vunpack.c.l.b16 %v8594
  %v8858 = vunpack.c.l.b16 %v8595
  %v8859 = vunpack.c.l.b16 %v8596
  %v8860 = vunpack.c.l.b16 %v8597
  %v8861 = vunpack.c.l.b16 %v8598
  %v8862 = vunpack.c.l.b16 %v8599
  %v8863 = vunpack.c.l.b16 %v8600
  %v8864 = vunpack.c.l.b16 %v8601
  %v8865 = vunpack.c.l.b16 %v8602
  %v8866 = vunpack.c.l.b16 %v8603
  %v8867 = vunpack.c.l.b16 %v8604
  %v8868 = vunpack.c.l.b16 %v8605
  %v8869 = vunpack.c.l.b16 %v8606
  %v8870 = vunpack.c.l.b16 %v8607
  %v8871 = vunpack.c.l.b16 %v8608
  %v8872 = vunpack.c.l.b16 %v8609
  %v8873 = vunpack.c.l.b16 %v8610
  %v8874 = vunpack.c.l.b16 %v8611
  %v8875 = vunpack.c.l.b16 %v8612
  %v8876 = vunpack.c.l.b16 %v8613
  %v8877 = vunpack.c.l.b16 %v8614
  %v8878 = vunpack.c.l.b16 %v8615
  %v8879 = vunpack.c.l.b16 %v8616
  %v8880 = vunpack.c.l.b16 %v8617
  %v8881 = vunpack.c.l.b16 %v8618
  %v8882 = vunpack.c.l.b16 %v8619
  %v8883 = vunpack.c.l.b16 %v8620
  %v8884 = vunpack.c.l.b16 %v8621
  %v8885 = vunpack.c.l.b16 %v8622
  %v8886 = vunpack.c.l.b16 %v8623
  %v8887 = vunpack.c.l.b16 %v8624
  %v8888 = vunpack.c.l.b16 %v8625
  %v8889 = vunpack.c.l.b16 %v8626
  %v8890 = vunpack.c.l.b16 %v8627
  %v8891 = vunpack.c.l.b16 %v8628
  %v8892 = vunpack.c.l.b16 %v8629
  %v8893 = vunpack.c.l.b16 %v8630
  %v8894 = vpack.c.b16 %v8767, %v8766
  %v8895 = vpack.c.b16 %v8769, %v8768
  %v8896 = vpack.c.b16 %v8771, %v8770
  %v8897 = vpack.c.b16 %v8773, %v8772
  %v8898 = vpack.c.b16 %v8775, %v8774
  %v8899 = vpack.c.b16 %v8777, %v8776
  %v8900 = vpack.c.b16 %v8779, %v8778
  %v8901 = vpack.c.b16 %v8781, %v8780
  %v8902 = vpack.c.b16 %v8783, %v8782
  %v8903 = vpack.c.b16 %v8785, %v8784
  %v8904 = vpack.c.b16 %v8787, %v8786
  %v8905 = vpack.c.b16 %v8789, %v8788
  %v8906 = vpack.c.b16 %v8791, %v8790
  %v8907 = vpack.c.b16 %v8793, %v8792
  %v8908 = vpack.c.b16 %v8795, %v8794
  %v8909 = vpack.c.b16 %v8797, %v8796
  %v8910 = vpack.c.b16 %v8799, %v8798
  %v8911 = vpack.c.b16 %v8801, %v8800
  %v8912 = vpack.c.b16 %v8803, %v8802
  %v8913 = vpack.c.b16 %v8805, %v8804
  %v8914 = vpack.c.b16 %v8807, %v8806
  %v8915 = vpack.c.b16 %v8809, %v8808
  %v8916 = vpack.c.b16 %v8811, %v8810
  %v8917 = vpack.c.b16 %v8813, %v8812
  %v8918 = vpack.c.b16 %v8815, %v8814
  %v8919 = vpack.c.b16 %v8817, %v8816
  %v8920 = vpack.c.b16 %v8819, %v8818
  %v8921 = vpack.c.b16 %v8821, %v8820
  %v8922 = vpack.c.b16 %v8823, %v8822
  %v8923 = vpack.c.b16 %v8825, %v8824
  %v8924 = vpack.c.b16 %v8827, %v8826
  %v8925 = vpack.c.b16 %v8829, %v8828
  %v8926 = vpack.c.b16 %v8831, %v8830
  %v8927 = vpack.c.b16 %v8833, %v8832
  %v8928 = vpack.c.b16 %v8835, %v8834
  %v8929 = vpack.c.b16 %v8837, %v8836
  %v8930 = vpack.c.b16 %v8839, %v8838
  %v8931 = vpack.c.b16 %v8841, %v8840
  %v8932 = vpack.c.b16 %v8843, %v8842
  %v8933 = vpack.c.b16 %v8845, %v8844
  %v8934 = vpack.c.b16 %v8847, %v8846
  %v8935 = vpack.c.b16 %v8849, %v8848
  %v8936 = vpack.c.b16 %v8851, %v8850
  %v8937 = vpack.c.b16 %v8853, %v8852
  %v8938 = vpack.c.b16 %v8855, %v8854
  %v8939 = vpack.c.b16 %v8857, %v8856
  %v8940 = vpack.c.b16 %v8859, %v8858
  %v8941 = vpack.c.b16 %v8861, %v8860
  %v8942 = vpack.c.b16 %v8863, %v8862
  %v8943 = vpack.c.b16 %v8865, %v8864
  %v8944 = vpack.c.b16 %v8867, %v8866
  %v8945 = vpack.c.b16 %v8869, %v8868
  %v8946 = vpack.c.b16 %v8871, %v8870
  %v8947 = vpack.c.b16 %v8873, %v8872
  %v8948 = vpack.c.b16 %v8875, %v8874
  %v8949 = vpack.c.b16 %v8877, %v8876
  %v8950 = vpack.c.b16 %v8879, %v8878
  %v8951 = vpack.c.b16 %v8881, %v8880
  %v8952 = vpack.c.b16 %v8883, %v8882
  %v8953 = vpack.c.b16 %v8885, %v8884
  %v8954 = vpack.c.b16 %v8887, %v8886
  %v8955 = vpack.c.b16 %v8889, %v8888
  %v8956 = vpack.c.b16 %v8891, %v8890
  %v8957 = vpack.c.b16 %v8893, %v8892
  %9022 = vmatprep.subr.bf16.mxu0 0
  %9023 = vmatpush1.bf16.msra.mxu0 %v8894
  %9024 = vmatprep.subr.bf16.mxu0 0
  %9025 = vmatpush1.bf16.msra.mxu0 %v8895
  %9026 = vmatprep.subr.bf16.mxu0 0
  %9027 = vmatpush1.bf16.msra.mxu0 %v8896
  %9028 = vmatprep.subr.bf16.mxu0 0
  %9029 = vmatpush1.bf16.msra.mxu0 %v8897
  %9030 = vmatprep.subr.bf16.mxu0 0
  %9031 = vmatpush1.bf16.msra.mxu0 %v8898
  %9032 = vmatprep.subr.bf16.mxu0 0
  %9033 = vmatpush1.bf16.msra.mxu0 %v8899
  %9034 = vmatprep.subr.bf16.mxu0 0
  %9035 = vmatpush1.bf16.msra.mxu0 %v8900
  %9036 = vmatprep.subr.bf16.mxu0 0
  %9037 = vmatpush1.bf16.msra.mxu0 %v8901
  %9038 = vmatprep.subr.bf16.mxu0 0
  %9039 = vmatpush1.bf16.msra.mxu0 %v8902
  %9040 = vmatprep.subr.bf16.mxu0 0
  %9041 = vmatpush1.bf16.msra.mxu0 %v8903
  %9042 = vmatprep.subr.bf16.mxu0 0
  %9043 = vmatpush1.bf16.msra.mxu0 %v8904
  %9044 = vmatprep.subr.bf16.mxu0 0
  %9045 = vmatpush1.bf16.msra.mxu0 %v8905
  %9046 = vmatprep.subr.bf16.mxu0 0
  %9047 = vmatpush1.bf16.msra.mxu0 %v8906
  %9048 = vmatprep.subr.bf16.mxu0 0
  %9049 = vmatpush1.bf16.msra.mxu0 %v8907
  %9050 = vmatprep.subr.bf16.mxu0 0
  %9051 = vmatpush1.bf16.msra.mxu0 %v8908
  %9052 = vmatprep.subr.bf16.mxu0 0
  %9053 = vmatpush1.bf16.msra.mxu0 %v8909
  %9054 = vmatprep.mubr.bf16.mxu0 %v8496
  %9055 = vmatmul.mubr.bf16.gmra.mrb[0].mxu0 %v8495
  %v9056 = vpop.f32.mrb[0].mxu0
  %v9057 = vadd.f32 %v8636, %v9056
  %v9058 = vpop.f32.mrb[0].mxu0
  %v9059 = vpop.f32.mrb[0].mxu0
  %v9060 = vpop.f32.mrb[0].mxu0
  %9061 = vdwg.mxu0
  %9062 = vmatprep.subr.bf16.mxu0 0
  %9063 = vmatpush1.bf16.msra.mxu0 %v8910
  %9064 = vmatprep.subr.bf16.mxu0 0
  %9065 = vmatpush1.bf16.msra.mxu0 %v8911
  %9066 = vmatprep.subr.bf16.mxu0 0
  %9067 = vmatpush1.bf16.msra.mxu0 %v8912
  %9068 = vmatprep.subr.bf16.mxu0 0
  %9069 = vmatpush1.bf16.msra.mxu0 %v8913
  %9070 = vmatprep.subr.bf16.mxu0 0
  %9071 = vmatpush1.bf16.msra.mxu0 %v8914
  %9072 = vmatprep.subr.bf16.mxu0 0
  %9073 = vmatpush1.bf16.msra.mxu0 %v8915
  %9074 = vmatprep.subr.bf16.mxu0 0
  %9075 = vmatpush1.bf16.msra.mxu0 %v8916
  %9076 = vmatprep.subr.bf16.mxu0 0
  %9077 = vmatpush1.bf16.msra.mxu0 %v8917
  %9078 = vmatprep.subr.bf16.mxu0 0
  %9079 = vmatpush1.bf16.msra.mxu0 %v8918
  %9080 = vmatprep.subr.bf16.mxu0 0
  %9081 = vmatpush1.bf16.msra.mxu0 %v8919
  %9082 = vmatprep.subr.bf16.mxu0 0
  %9083 = vmatpush1.bf16.msra.mxu0 %v8920
  %9084 = vmatprep.subr.bf16.mxu0 0
  %9085 = vmatpush1.bf16.msra.mxu0 %v8921
  %9086 = vmatprep.subr.bf16.mxu0 0
  %9087 = vmatpush1.bf16.msra.mxu0 %v8922
  %9088 = vmatprep.subr.bf16.mxu0 0
  %9089 = vmatpush1.bf16.msra.mxu0 %v8923
  %9090 = vmatprep.subr.bf16.mxu0 0
  %9091 = vmatpush1.bf16.msra.mxu0 %v8924
  %9092 = vmatprep.subr.bf16.mxu0 0
  %9093 = vmatpush1.bf16.msra.mxu0 %v8925
  %9094 = vmatprep.mubr.bf16.mxu0 %v8498
  %9095 = vmatmul.mubr.bf16.gmra.mrb[0].mxu0 %v8497
  %v9096 = vpop.f32.mrb[0].mxu0
  %v9097 = vadd.f32 %v9057, %v9096
  %v9098 = vpop.f32.mrb[0].mxu0
  %v9099 = vpop.f32.mrb[0].mxu0
  %v9100 = vpop.f32.mrb[0].mxu0
  %9101 = vdwg.mxu0
  %9102 = vmatprep.subr.bf16.mxu0 0
  %9103 = vmatpush1.bf16.msra.mxu0 %v8926
  %9104 = vmatprep.subr.bf16.mxu0 0
  %9105 = vmatpush1.bf16.msra.mxu0 %v8927
  %9106 = vmatprep.subr.bf16.mxu0 0
  %9107 = vmatpush1.bf16.msra.mxu0 %v8928
  %9108 = vmatprep.subr.bf16.mxu0 0
  %9109 = vmatpush1.bf16.msra.mxu0 %v8929
  %9110 = vmatprep.subr.bf16.mxu0 0
  %9111 = vmatpush1.bf16.msra.mxu0 %v8930
  %9112 = vmatprep.subr.bf16.mxu0 0
  %9113 = vmatpush1.bf16.msra.mxu0 %v8931
  %9114 = vmatprep.subr.bf16.mxu0 0
  %9115 = vmatpush1.bf16.msra.mxu0 %v8932
  %9116 = vmatprep.subr.bf16.mxu0 0
  %9117 = vmatpush1.bf16.msra.mxu0 %v8933
  %9118 = vmatprep.subr.bf16.mxu0 0
  %9119 = vmatpush1.bf16.msra.mxu0 %v8934
  %9120 = vmatprep.subr.bf16.mxu0 0
  %9121 = vmatpush1.bf16.msra.mxu0 %v8935
  %9122 = vmatprep.subr.bf16.mxu0 0
  %9123 = vmatpush1.bf16.msra.mxu0 %v8936
  %9124 = vmatprep.subr.bf16.mxu0 0
  %9125 = vmatpush1.bf16.msra.mxu0 %v8937
  %9126 = vmatprep.subr.bf16.mxu0 0
  %9127 = vmatpush1.bf16.msra.mxu0 %v8938
  %9128 = vmatprep.subr.bf16.mxu0 0
  %9129 = vmatpush1.bf16.msra.mxu0 %v8939
  %9130 = vmatprep.subr.bf16.mxu0 0
  %9131 = vmatpush1.bf16.msra.mxu0 %v8940
  %9132 = vmatprep.subr.bf16.mxu0 0
  %9133 = vmatpush1.bf16.msra.mxu0 %v8941
  %9134 = vmatprep.mubr.bf16.mxu0 %v8500
  %9135 = vmatmul.mubr.bf16.gmra.mrb[0].mxu0 %v8499
  %v9136 = vpop.f32.mrb[0].mxu0
  %v9137 = vadd.f32 %v9097, %v9136
  %v9138 = vpop.f32.mrb[0].mxu0
  %v9139 = vpop.f32.mrb[0].mxu0
  %v9140 = vpop.f32.mrb[0].mxu0
  %9141 = vdwg.mxu0
  %9142 = vmatprep.subr.bf16.mxu0 0
  %9143 = vmatpush1.bf16.msra.mxu0 %v8942
  %9144 = vmatprep.subr.bf16.mxu0 0
  %9145 = vmatpush1.bf16.msra.mxu0 %v8943
  %9146 = vmatprep.subr.bf16.mxu0 0
  %9147 = vmatpush1.bf16.msra.mxu0 %v8944
  %9148 = vmatprep.subr.bf16.mxu0 0
  %9149 = vmatpush1.bf16.msra.mxu0 %v8945
  %9150 = vmatprep.subr.bf16.mxu0 0
  %9151 = vmatpush1.bf16.msra.mxu0 %v8946
  %9152 = vmatprep.subr.bf16.mxu0 0
  %9153 = vmatpush1.bf16.msra.mxu0 %v8947
  %9154 = vmatprep.subr.bf16.mxu0 0
  %9155 = vmatpush1.bf16.msra.mxu0 %v8948
  %9156 = vmatprep.subr.bf16.mxu0 0
  %9157 = vmatpush1.bf16.msra.mxu0 %v8949
  %9158 = vmatprep.subr.bf16.mxu0 0
  %9159 = vmatpush1.bf16.msra.mxu0 %v8950
  %9160 = vmatprep.subr.bf16.mxu0 0
  %9161 = vmatpush1.bf16.msra.mxu0 %v8951
  %9162 = vmatprep.subr.bf16.mxu0 0
  %9163 = vmatpush1.bf16.msra.mxu0 %v8952
  %9164 = vmatprep.subr.bf16.mxu0 0
  %9165 = vmatpush1.bf16.msra.mxu0 %v8953
  %9166 = vmatprep.subr.bf16.mxu0 0
  %9167 = vmatpush1.bf16.msra.mxu0 %v8954
  %9168 = vmatprep.subr.bf16.mxu0 0
  %9169 = vmatpush1.bf16.msra.mxu0 %v8955
  %9170 = vmatprep.subr.bf16.mxu0 0
  %9171 = vmatpush1.bf16.msra.mxu0 %v8956
  %9172 = vmatprep.subr.bf16.mxu0 0
  %9173 = vmatpush1.bf16.msra.mxu0 %v8957
  %9174 = vmatprep.mubr.bf16.mxu0 %v8502
  %9175 = vmatmul.mubr.bf16.gmra.mrb[0].mxu0 %v8501
  %v9176 = vpop.f32.mrb[0].mxu0
  %v9177 = vadd.f32 %v9137, %v9176
  %v9178 = vpop.f32.mrb[0].mxu0
  %v9179 = vpop.f32.mrb[0].mxu0
  %v9180 = vpop.f32.mrb[0].mxu0
  %9181 = vdwg.mxu0
  %9182 = vst [vmem:[%s5] sm:$0xff] %v9177
  // Predicated region
  $region22: #{alexnet_forward.5} parent=0 // pred_check
    _
  $region23: #{alexnet_forward.5} parent=0 // pred_check_branch
    %9184 = sbr.rel (0) target = $region25
  $region24: #{alexnet_forward.5} parent=0 // pred_region
    _
  $region25: #{alexnet_forward.5} parent=0 // pred_fallthru
    _
  // Predicated region
  $region26: #{alexnet_forward.5} parent=0 // pred_check
    _
  $region27: #{alexnet_forward.5} parent=0 // pred_check_branch
    %9186 = sbr.rel (0) target = $region29
  $region28: #{alexnet_forward.5} parent=0 // pred_region
    _
  $region29: #{alexnet_forward.5} parent=0 // pred_fallthru
    _

</llo_original>
